<compile_context>
chip_gen: v7x
topology: tpu7x:2x2x1
jax: 0.10.0
libtpu: 0.0.40
codegen_flags: <defaults>
</compile_context>

<pallas_src>
import jax
import jax.numpy as jnp
from jax.experimental import pallas as pl
from jax.experimental.pallas import tpu as pltpu


# Geometry for a 32x32 input (fc1 expects 32 * 8 * 8 = 2048 features).
_G = 18                      # zero-padded 16x16 grid (conv2 input) side
_GG = _G * _G                # 324: flat padded conv2 grid
_YW = _GG + 2 * 19           # 362: stage-1 output width (margins for conv2 shifts)
_XW = 384                    # parity-slab buffer width (38 + 17*18 + pad)
_WW = _GG - 19               # 305: pool2 window-max width
_CIN1 = 8                    # conv1 Cin padded 3 -> 8 (zero taps, clean K)


# ----------------------------------------------------------------------------
# Kernels
# ----------------------------------------------------------------------------
def _convnet_kernel(xpb_ref, mask_ref, w1_ref, b1_ref, w2_ref, b2_ref, sel_ref,
                    feat_ref):
    # xpb_ref : (1, 4, 8, 384) bf16  2x2-parity slabs of the zero-padded image
    # mask_ref: (1, 362) f32         1.0 on the interior of the padded 18x18 grid
    # w1_ref  : (9, 32, 8)  bf16     conv1 taps, both branches stacked on Cout
    # b1_ref  : (32, 1) f32
    # w2_ref  : (2, 9, 32, 16) bf16  conv2 taps per branch
    # b2_ref  : (2, 32, 1) f32
    # sel_ref : (305, 64) f32        0/1 matrix picking the 64 pooled positions
    # feat_ref: (1, 32, 64) bf16     pooled conv2 features (x1 + x2), NCHW order
    mask = mask_ref[...]
    xs = [xpb_ref[0, m] for m in range(4)]          # 4 x (8, 384) parity slabs

    # --- stage 1: conv1 (both branches) + bias + 2x2/stride-2 max-pool,
    #     emitted directly onto the zero-padded 18x18 grid conv2 consumes. ---
    pooled = None
    for p1 in range(2):                             # pool-window row tap
        for p2 in range(2):                         # pool-window col tap
            acc = None
            for dy in range(3):
                for dx in range(3):
                    u, v = p1 + dy, p2 + dx
                    m = (u & 1) * 2 + (v & 1)       # parity slab to read
                    off = 18 * (u >> 1) + (v >> 1)  # in-slab shift (lanes)
                    c = jnp.dot(w1_ref[dy * 3 + dx], xs[m][:, off:off + _YW],
                                preferred_element_type=jnp.float32)
                    acc = c if acc is None else acc + c
            pooled = acc if pooled is None else jnp.maximum(pooled, acc)
    # bias, zero the padding ring (= conv2's SAME padding), cast for conv2.
    y1 = ((pooled + b1_ref[...]) * mask).astype(jnp.bfloat16)   # (32, 362)

    # --- stage 2: conv2 + bias + 2x2 max-pool per branch, then x1 + x2. ---
    wind_sum = None
    for br in range(2):
        ybr = y1[br * 16:(br + 1) * 16, :]          # (16, 362) branch channels
        cacc = None
        for dy in range(3):
            for dx in range(3):
                off = 18 * dy + dx
                c = jnp.dot(w2_ref[br, dy * 3 + dx], ybr[:, off:off + _GG],
                            preferred_element_type=jnp.float32)
                cacc = c if cacc is None else cacc + c
        # 2x2 windowed max over the padded grid (pool fold), bias after max.
        wind = jnp.maximum(jnp.maximum(cacc[:, 0:_WW], cacc[:, 1:_WW + 1]),
                           jnp.maximum(cacc[:, 18:18 + _WW], cacc[:, 19:19 + _WW]))
        wind = wind + b2_ref[br]
        wind_sum = wind if wind_sum is None else wind_sum + wind

    # --- pick the 64 pooled output positions per channel (exact 0/1 matmul). ---
    feat_ref[0] = jnp.dot(wind_sum, sel_ref[...],
                          preferred_element_type=jnp.float32).astype(feat_ref.dtype)


def _head_kernel(f_ref, w1_ref, b1_ref, w2_ref, b2_ref, o_ref):
    # f: (B, 2048) bf16, w1: (2048, 64) bf16, w2: (64, 10) f32
    h = jnp.dot(f_ref[...], w1_ref[...],
                preferred_element_type=jnp.float32) + b1_ref[...]
    o_ref[...] = jnp.dot(h, w2_ref[...],
                         preferred_element_type=jnp.float32) + b2_ref[...]


# ----------------------------------------------------------------------------
# Wrapper-side layout prep (all on original-sized data; no patch expansion)
# ----------------------------------------------------------------------------
def _parity_slabs(x_nchw):
    # (B,3,32,32) f32 -> (B, 4, 8, 384) bf16: pad to 34x34, split the padded
    # grid into its four 2x2-parity sub-grids (17x17 each) and lay every slab
    # on an 18-column stride with a 38-column left margin so all in-kernel
    # shifted slices stay in-bounds.  Cin padded 3 -> 8 with zero rows.
    B, C, H, W = x_nchw.shape
    xb = x_nchw.astype(jnp.bfloat16)
    xp = jnp.pad(xb, ((0, 0), (0, 0), (1, 1), (1, 1)))            # (B,3,34,34)
    xp = xp.reshape(B, C, 17, 2, 17, 2)
    xp = xp.transpose(0, 3, 5, 1, 2, 4)                           # (B,2,2,3,17,17)
    xp = jnp.pad(xp, ((0, 0),) * 5 + ((0, 1),))                   # cols 17 -> 18
    xp = xp.reshape(B, 2, 2, C, 17 * 18)
    xp = jnp.pad(xp, ((0, 0),) * 4 + ((38, _XW - 38 - 17 * 18),))
    xp = xp.reshape(B, 4, C, _XW)
    return jnp.pad(xp, ((0, 0), (0, 0), (0, _CIN1 - C), (0, 0)))


def _interior_mask():
    j = jnp.arange(_YW)
    g = j - 19
    s, t = g // _G, g % _G
    m = (g >= 0) & (g < _GG) & (s >= 1) & (s <= 16) & (t >= 1) & (t <= 16)
    return m.astype(jnp.float32).reshape(1, _YW)


def _pool_select():
    # sel[q, 8a+b] = 1  iff  q = 18*(2a+1) + (2b+1): top-left corner of pool
    # window (a, b) on the padded conv2 grid.  Flatten order matches NCHW.
    a = jnp.arange(8)
    rows = (36 * a[:, None] + 2 * a[None, :] + 19).reshape(-1)
    cols = (8 * a[:, None] + a[None, :]).reshape(-1)
    return jnp.zeros((_WW, 64), jnp.float32).at[rows, cols].set(1.0)


def _conv_params(params):
    w1 = jnp.concatenate([params["conv1_1_w"], params["conv1_2_w"]], axis=0)
    w1 = jnp.transpose(w1, (2, 3, 0, 1)).reshape(9, 32, 3)
    w1 = jnp.pad(w1, ((0, 0), (0, 0), (0, _CIN1 - 3))).astype(jnp.bfloat16)
    b1 = jnp.concatenate([params["conv1_1_b"], params["conv1_2_b"]]).reshape(32, 1)
    w2 = jnp.stack([params["conv2_1_w"], params["conv2_2_w"]], axis=0)
    w2 = jnp.transpose(w2, (0, 3, 4, 1, 2)).reshape(2, 9, 32, 16).astype(jnp.bfloat16)
    b2 = jnp.stack([params["conv2_1_b"], params["conv2_2_b"]], axis=0).reshape(2, 32, 1)
    return w1, b1, w2, b2


# ----------------------------------------------------------------------------
# Full forward pass
# ----------------------------------------------------------------------------
@jax.jit
def parallel_net(x_nchw, params):
    B, C, H, W = x_nchw.shape
    assert (C, H, W) == (3, 32, 32), "fc1 expects 32 * 8 * 8 = 2048 features"
    xpb = _parity_slabs(x_nchw)
    mask = _interior_mask()
    sel = _pool_select()
    w1, b1, w2, b2 = _conv_params(params)

    feats = pl.pallas_call(
        _convnet_kernel,
        out_shape=jax.ShapeDtypeStruct((B, 32, 64), jnp.bfloat16),
        grid=(B,),
        in_specs=[
            pl.BlockSpec((1, 4, _CIN1, _XW), lambda i: (i, 0, 0, 0)),
            pl.BlockSpec((1, _YW), lambda i: (0, 0)),
            pl.BlockSpec((9, 32, _CIN1), lambda i: (0, 0, 0)),
            pl.BlockSpec((32, 1), lambda i: (0, 0)),
            pl.BlockSpec((2, 9, 32, 16), lambda i: (0, 0, 0, 0)),
            pl.BlockSpec((2, 32, 1), lambda i: (0, 0, 0)),
            pl.BlockSpec((_WW, 64), lambda i: (0, 0)),
        ],
        out_specs=pl.BlockSpec((1, 32, 64), lambda i: (i, 0, 0)),
        compiler_params=pltpu.CompilerParams(
            dimension_semantics=("parallel",)),
    )(xpb, mask, w1, b1, w2, b2, sel)

    # Per image the (32, 64) block flattens exactly like torch.nn.Flatten on
    # NCHW, so this reshape is contiguous (no transpose, no relayout).
    f = feats.reshape(B, 32 * 64)

    w1h = params["fc1_w"].T.astype(jnp.bfloat16)   # (2048, 64)
    b1h = params["fc1_b"].reshape(1, -1)
    w2h = params["out_w"].T                         # (64, 10), keep f32 (tiny)
    b2h = params["out_b"].reshape(1, -1)
    return pl.pallas_call(
        _head_kernel,
        out_shape=jax.ShapeDtypeStruct((B, 10), jnp.float32),
        grid=(1,),
        in_specs=[
            pl.BlockSpec((B, 2048), lambda i: (0, 0)),
            pl.BlockSpec((2048, 64), lambda i: (0, 0)),
            pl.BlockSpec((1, 64), lambda i: (0, 0)),
            pl.BlockSpec((64, 10), lambda i: (0, 0)),
            pl.BlockSpec((1, 10), lambda i: (0, 0)),
        ],
        out_specs=pl.BlockSpec((B, 10), lambda i: (0, 0)),
        compiler_params=pltpu.CompilerParams(
            dimension_semantics=("arbitrary",)),
    )(f, w1h, b1h, w2h, b2h)


def init_params(key):
    ks = jax.random.split(key, 12)
    return {
        "conv1_1_w": 0.1 * jax.random.normal(ks[0], (16, 3, 3, 3), jnp.float32),
        "conv1_1_b": 0.1 * jax.random.normal(ks[1], (16,), jnp.float32),
        "conv2_1_w": 0.05 * jax.random.normal(ks[2], (32, 16, 3, 3), jnp.float32),
        "conv2_1_b": 0.05 * jax.random.normal(ks[3], (32,), jnp.float32),
        "conv1_2_w": 0.1 * jax.random.normal(ks[4], (16, 3, 3, 3), jnp.float32),
        "conv1_2_b": 0.1 * jax.random.normal(ks[5], (16,), jnp.float32),
        "conv2_2_w": 0.05 * jax.random.normal(ks[6], (32, 16, 3, 3), jnp.float32),
        "conv2_2_b": 0.05 * jax.random.normal(ks[7], (32,), jnp.float32),
        "fc1_w": 0.02 * jax.random.normal(ks[8], (64, 2048), jnp.float32),
        "fc1_b": 0.02 * jax.random.normal(ks[9], (64,), jnp.float32),
        "out_w": 0.1 * jax.random.normal(ks[10], (10, 64), jnp.float32),
        "out_b": 0.1 * jax.random.normal(ks[11], (10,), jnp.float32),
    }


# ----------------------------------------------------------------------------
# Pure-JAX reference (correctness check only)
# ----------------------------------------------------------------------------
def _ref_forward(x_nchw, params):
    x = jnp.transpose(x_nchw, (0, 2, 3, 1))

    def conv(y, w, b):
        w_hwio = jnp.transpose(w, (2, 3, 1, 0))
        y = jax.lax.conv_general_dilated(
            y, w_hwio, (1, 1), "SAME",
            dimension_numbers=("NHWC", "HWIO", "NHWC"))
        return y + b.reshape(1, 1, 1, -1)

    def pool(y):
        return jax.lax.reduce_window(
            y, -jnp.inf, jax.lax.max, (1, 2, 2, 1), (1, 2, 2, 1), "VALID")

    def branch(cw1, cb1, cw2, cb2):
        return pool(conv(pool(conv(x, cw1, cb1)), cw2, cb2))

    x1 = branch(params["conv1_1_w"], params["conv1_1_b"],
                params["conv2_1_w"], params["conv2_1_b"])
    x2 = branch(params["conv1_2_w"], params["conv1_2_b"],
                params["conv2_2_w"], params["conv2_2_b"])
    B = x1.shape[0]
    f = (jnp.transpose(x1, (0, 3, 1, 2)).reshape(B, -1)
         + jnp.transpose(x2, (0, 3, 1, 2)).reshape(B, -1))
    h = f @ params["fc1_w"].T + params["fc1_b"]
    return h @ params["out_w"].T + params["out_b"]


if __name__ == "__main__":
    key = jax.random.PRNGKey(0)
    kx, kp = jax.random.split(key)
    # fc1 expects 2048 = 32 * 8 * 8 features => input spatial size must be 32x32.
    x = jax.random.normal(kx, (2, 3, 32, 32), jnp.float32)
    params = init_params(kp)

    out = jax.block_until_ready(parallel_net(x, params))
    assert out.shape == (2, 10) and out.dtype == jnp.float32

    ref = jax.block_until_ready(_ref_forward(x, params))
    # bf16 conv / fc1 operands (f32 accumulation) => slightly relaxed tolerance.
    assert jnp.allclose(out, ref, rtol=2e-2, atol=2e-2), (out, ref)

    print("KERNEL_OK")
</pallas_src>

<mosaic_0001>
module attributes {stable_mosaic.version = 11 : i64} {
  func.func @_convnet_kernel(%arg0: i32, %arg1: memref<1x4x8x384xbf16, #tpu.memory_space<vmem>>, %arg2: memref<1x362xf32, #tpu.memory_space<vmem>>, %arg3: memref<9x32x8xbf16, #tpu.memory_space<vmem>>, %arg4: memref<32x1xf32, #tpu.memory_space<vmem>>, %arg5: memref<2x9x32x16xbf16, #tpu.memory_space<vmem>>, %arg6: memref<2x32x1xf32, #tpu.memory_space<vmem>>, %arg7: memref<305x64xf32, #tpu.memory_space<vmem>>, %arg8: memref<1x32x64xbf16, #tpu.memory_space<vmem>>) attributes {dimension_semantics = [#tpu.dimension_semantics<parallel>], iteration_bounds = array<i64: 2>, scalar_prefetch = 0 : i64, scratch_operands = 0 : i64, tpu.core_type = #tpu.core_type<tc>, window_params = [{transform_indices = @transform_0, window_bounds = array<i64: 1, 4, 8, 384>}, {pipeline_mode = #tpu.pipeline_mode<synchronous>, transform_indices = @transform_1, window_bounds = array<i64: 1, 362>}, {pipeline_mode = #tpu.pipeline_mode<synchronous>, transform_indices = @transform_2, window_bounds = array<i64: 9, 32, 8>}, {pipeline_mode = #tpu.pipeline_mode<synchronous>, transform_indices = @transform_3, window_bounds = array<i64: 32, 1>}, {pipeline_mode = #tpu.pipeline_mode<synchronous>, transform_indices = @transform_4, window_bounds = array<i64: 2, 9, 32, 16>}, {pipeline_mode = #tpu.pipeline_mode<synchronous>, transform_indices = @transform_5, window_bounds = array<i64: 2, 32, 1>}, {pipeline_mode = #tpu.pipeline_mode<synchronous>, transform_indices = @transform_6, window_bounds = array<i64: 305, 64>}, {transform_indices = @transform_7, window_bounds = array<i64: 1, 32, 64>}]} {
    %c0 = arith.constant 0 : index
    %c0_0 = arith.constant 0 : index
    %0 = vector.load %arg2[%c0, %c0_0] : memref<1x362xf32, #tpu.memory_space<vmem>>, vector<1x362xf32>
    %c0_1 = arith.constant 0 : index
    %c0_2 = arith.constant 0 : index
    %c0_3 = arith.constant 0 : index
    %c0_4 = arith.constant 0 : index
    %1 = vector.load %arg1[%c0_1, %c0_2, %c0_3, %c0_4] : memref<1x4x8x384xbf16, #tpu.memory_space<vmem>>, vector<1x1x8x384xbf16>
    %2 = vector.shape_cast %1 : vector<1x1x8x384xbf16> to vector<8x384xbf16>
    %c0_5 = arith.constant 0 : index
    %c1 = arith.constant 1 : index
    %c0_6 = arith.constant 0 : index
    %c0_7 = arith.constant 0 : index
    %3 = vector.load %arg1[%c0_5, %c1, %c0_6, %c0_7] : memref<1x4x8x384xbf16, #tpu.memory_space<vmem>>, vector<1x1x8x384xbf16>
    %4 = vector.shape_cast %3 : vector<1x1x8x384xbf16> to vector<8x384xbf16>
    %c0_8 = arith.constant 0 : index
    %c2 = arith.constant 2 : index
    %c0_9 = arith.constant 0 : index
    %c0_10 = arith.constant 0 : index
    %5 = vector.load %arg1[%c0_8, %c2, %c0_9, %c0_10] : memref<1x4x8x384xbf16, #tpu.memory_space<vmem>>, vector<1x1x8x384xbf16>
    %6 = vector.shape_cast %5 : vector<1x1x8x384xbf16> to vector<8x384xbf16>
    %c0_11 = arith.constant 0 : index
    %c3 = arith.constant 3 : index
    %c0_12 = arith.constant 0 : index
    %c0_13 = arith.constant 0 : index
    %7 = vector.load %arg1[%c0_11, %c3, %c0_12, %c0_13] : memref<1x4x8x384xbf16, #tpu.memory_space<vmem>>, vector<1x1x8x384xbf16>
    %8 = vector.shape_cast %7 : vector<1x1x8x384xbf16> to vector<8x384xbf16>
    %c0_14 = arith.constant 0 : index
    %c0_15 = arith.constant 0 : index
    %c0_16 = arith.constant 0 : index
    %9 = vector.load %arg3[%c0_14, %c0_15, %c0_16] : memref<9x32x8xbf16, #tpu.memory_space<vmem>>, vector<1x32x8xbf16>
    %10 = vector.shape_cast %9 : vector<1x32x8xbf16> to vector<32x8xbf16>
    %11 = vector.extract_strided_slice %2 {offsets = [0, 0], sizes = [8, 362], strides = [1, 1]} : vector<8x384xbf16> to vector<8x362xbf16>
    %cst = arith.constant dense<0.000000e+00> : vector<32x362xf32>
    %12 = tpu.matmul %10, %11, %cst {dimension_numbers = #tpu.dot_dimension_numbers<[1], [0], [0], [1], [0, 0, 1, 1], [], []>} : vector<32x8xbf16>, vector<8x362xbf16>, vector<32x362xf32> -> vector<32x362xf32>
    %c1_17 = arith.constant 1 : index
    %c0_18 = arith.constant 0 : index
    %c0_19 = arith.constant 0 : index
    %13 = vector.load %arg3[%c1_17, %c0_18, %c0_19] : memref<9x32x8xbf16, #tpu.memory_space<vmem>>, vector<1x32x8xbf16>
    %14 = vector.shape_cast %13 : vector<1x32x8xbf16> to vector<32x8xbf16>
    %15 = vector.extract_strided_slice %4 {offsets = [0, 0], sizes = [8, 362], strides = [1, 1]} : vector<8x384xbf16> to vector<8x362xbf16>
    %cst_20 = arith.constant dense<0.000000e+00> : vector<32x362xf32>
    %16 = tpu.matmul %14, %15, %cst_20 {dimension_numbers = #tpu.dot_dimension_numbers<[1], [0], [0], [1], [0, 0, 1, 1], [], []>} : vector<32x8xbf16>, vector<8x362xbf16>, vector<32x362xf32> -> vector<32x362xf32>
    %17 = arith.addf %12, %16 : vector<32x362xf32>
    %c2_21 = arith.constant 2 : index
    %c0_22 = arith.constant 0 : index
    %c0_23 = arith.constant 0 : index
    %18 = vector.load %arg3[%c2_21, %c0_22, %c0_23] : memref<9x32x8xbf16, #tpu.memory_space<vmem>>, vector<1x32x8xbf16>
    %19 = vector.shape_cast %18 : vector<1x32x8xbf16> to vector<32x8xbf16>
    %20 = vector.extract_strided_slice %2 {offsets = [0, 1], sizes = [8, 362], strides = [1, 1]} : vector<8x384xbf16> to vector<8x362xbf16>
    %cst_24 = arith.constant dense<0.000000e+00> : vector<32x362xf32>
    %21 = tpu.matmul %19, %20, %cst_24 {dimension_numbers = #tpu.dot_dimension_numbers<[1], [0], [0], [1], [0, 0, 1, 1], [], []>} : vector<32x8xbf16>, vector<8x362xbf16>, vector<32x362xf32> -> vector<32x362xf32>
    %22 = arith.addf %17, %21 : vector<32x362xf32>
    %c3_25 = arith.constant 3 : index
    %c0_26 = arith.constant 0 : index
    %c0_27 = arith.constant 0 : index
    %23 = vector.load %arg3[%c3_25, %c0_26, %c0_27] : memref<9x32x8xbf16, #tpu.memory_space<vmem>>, vector<1x32x8xbf16>
    %24 = vector.shape_cast %23 : vector<1x32x8xbf16> to vector<32x8xbf16>
    %25 = vector.extract_strided_slice %6 {offsets = [0, 0], sizes = [8, 362], strides = [1, 1]} : vector<8x384xbf16> to vector<8x362xbf16>
    %cst_28 = arith.constant dense<0.000000e+00> : vector<32x362xf32>
    %26 = tpu.matmul %24, %25, %cst_28 {dimension_numbers = #tpu.dot_dimension_numbers<[1], [0], [0], [1], [0, 0, 1, 1], [], []>} : vector<32x8xbf16>, vector<8x362xbf16>, vector<32x362xf32> -> vector<32x362xf32>
    %27 = arith.addf %22, %26 : vector<32x362xf32>
    %c4 = arith.constant 4 : index
    %c0_29 = arith.constant 0 : index
    %c0_30 = arith.constant 0 : index
    %28 = vector.load %arg3[%c4, %c0_29, %c0_30] : memref<9x32x8xbf16, #tpu.memory_space<vmem>>, vector<1x32x8xbf16>
    %29 = vector.shape_cast %28 : vector<1x32x8xbf16> to vector<32x8xbf16>
    %30 = vector.extract_strided_slice %8 {offsets = [0, 0], sizes = [8, 362], strides = [1, 1]} : vector<8x384xbf16> to vector<8x362xbf16>
    %cst_31 = arith.constant dense<0.000000e+00> : vector<32x362xf32>
    %31 = tpu.matmul %29, %30, %cst_31 {dimension_numbers = #tpu.dot_dimension_numbers<[1], [0], [0], [1], [0, 0, 1, 1], [], []>} : vector<32x8xbf16>, vector<8x362xbf16>, vector<32x362xf32> -> vector<32x362xf32>
    %32 = arith.addf %27, %31 : vector<32x362xf32>
    %c5 = arith.constant 5 : index
    %c0_32 = arith.constant 0 : index
    %c0_33 = arith.constant 0 : index
    %33 = vector.load %arg3[%c5, %c0_32, %c0_33] : memref<9x32x8xbf16, #tpu.memory_space<vmem>>, vector<1x32x8xbf16>
    %34 = vector.shape_cast %33 : vector<1x32x8xbf16> to vector<32x8xbf16>
    %35 = vector.extract_strided_slice %6 {offsets = [0, 1], sizes = [8, 362], strides = [1, 1]} : vector<8x384xbf16> to vector<8x362xbf16>
    %cst_34 = arith.constant dense<0.000000e+00> : vector<32x362xf32>
    %36 = tpu.matmul %34, %35, %cst_34 {dimension_numbers = #tpu.dot_dimension_numbers<[1], [0], [0], [1], [0, 0, 1, 1], [], []>} : vector<32x8xbf16>, vector<8x362xbf16>, vector<32x362xf32> -> vector<32x362xf32>
    %37 = arith.addf %32, %36 : vector<32x362xf32>
    %c6 = arith.constant 6 : index
    %c0_35 = arith.constant 0 : index
    %c0_36 = arith.constant 0 : index
    %38 = vector.load %arg3[%c6, %c0_35, %c0_36] : memref<9x32x8xbf16, #tpu.memory_space<vmem>>, vector<1x32x8xbf16>
    %39 = vector.shape_cast %38 : vector<1x32x8xbf16> to vector<32x8xbf16>
    %40 = vector.extract_strided_slice %2 {offsets = [0, 18], sizes = [8, 362], strides = [1, 1]} : vector<8x384xbf16> to vector<8x362xbf16>
    %cst_37 = arith.constant dense<0.000000e+00> : vector<32x362xf32>
    %41 = tpu.matmul %39, %40, %cst_37 {dimension_numbers = #tpu.dot_dimension_numbers<[1], [0], [0], [1], [0, 0, 1, 1], [], []>} : vector<32x8xbf16>, vector<8x362xbf16>, vector<32x362xf32> -> vector<32x362xf32>
    %42 = arith.addf %37, %41 : vector<32x362xf32>
    %c7 = arith.constant 7 : index
    %c0_38 = arith.constant 0 : index
    %c0_39 = arith.constant 0 : index
    %43 = vector.load %arg3[%c7, %c0_38, %c0_39] : memref<9x32x8xbf16, #tpu.memory_space<vmem>>, vector<1x32x8xbf16>
    %44 = vector.shape_cast %43 : vector<1x32x8xbf16> to vector<32x8xbf16>
    %45 = vector.extract_strided_slice %4 {offsets = [0, 18], sizes = [8, 362], strides = [1, 1]} : vector<8x384xbf16> to vector<8x362xbf16>
    %cst_40 = arith.constant dense<0.000000e+00> : vector<32x362xf32>
    %46 = tpu.matmul %44, %45, %cst_40 {dimension_numbers = #tpu.dot_dimension_numbers<[1], [0], [0], [1], [0, 0, 1, 1], [], []>} : vector<32x8xbf16>, vector<8x362xbf16>, vector<32x362xf32> -> vector<32x362xf32>
    %47 = arith.addf %42, %46 : vector<32x362xf32>
    %c8 = arith.constant 8 : index
    %c0_41 = arith.constant 0 : index
    %c0_42 = arith.constant 0 : index
    %48 = vector.load %arg3[%c8, %c0_41, %c0_42] : memref<9x32x8xbf16, #tpu.memory_space<vmem>>, vector<1x32x8xbf16>
    %49 = vector.shape_cast %48 : vector<1x32x8xbf16> to vector<32x8xbf16>
    %50 = vector.extract_strided_slice %2 {offsets = [0, 19], sizes = [8, 362], strides = [1, 1]} : vector<8x384xbf16> to vector<8x362xbf16>
    %cst_43 = arith.constant dense<0.000000e+00> : vector<32x362xf32>
    %51 = tpu.matmul %49, %50, %cst_43 {dimension_numbers = #tpu.dot_dimension_numbers<[1], [0], [0], [1], [0, 0, 1, 1], [], []>} : vector<32x8xbf16>, vector<8x362xbf16>, vector<32x362xf32> -> vector<32x362xf32>
    %52 = arith.addf %47, %51 : vector<32x362xf32>
    %c0_44 = arith.constant 0 : index
    %c0_45 = arith.constant 0 : index
    %c0_46 = arith.constant 0 : index
    %53 = vector.load %arg3[%c0_44, %c0_45, %c0_46] : memref<9x32x8xbf16, #tpu.memory_space<vmem>>, vector<1x32x8xbf16>
    %54 = vector.shape_cast %53 : vector<1x32x8xbf16> to vector<32x8xbf16>
    %55 = vector.extract_strided_slice %4 {offsets = [0, 0], sizes = [8, 362], strides = [1, 1]} : vector<8x384xbf16> to vector<8x362xbf16>
    %cst_47 = arith.constant dense<0.000000e+00> : vector<32x362xf32>
    %56 = tpu.matmul %54, %55, %cst_47 {dimension_numbers = #tpu.dot_dimension_numbers<[1], [0], [0], [1], [0, 0, 1, 1], [], []>} : vector<32x8xbf16>, vector<8x362xbf16>, vector<32x362xf32> -> vector<32x362xf32>
    %c1_48 = arith.constant 1 : index
    %c0_49 = arith.constant 0 : index
    %c0_50 = arith.constant 0 : index
    %57 = vector.load %arg3[%c1_48, %c0_49, %c0_50] : memref<9x32x8xbf16, #tpu.memory_space<vmem>>, vector<1x32x8xbf16>
    %58 = vector.shape_cast %57 : vector<1x32x8xbf16> to vector<32x8xbf16>
    %59 = vector.extract_strided_slice %2 {offsets = [0, 1], sizes = [8, 362], strides = [1, 1]} : vector<8x384xbf16> to vector<8x362xbf16>
    %cst_51 = arith.constant dense<0.000000e+00> : vector<32x362xf32>
    %60 = tpu.matmul %58, %59, %cst_51 {dimension_numbers = #tpu.dot_dimension_numbers<[1], [0], [0], [1], [0, 0, 1, 1], [], []>} : vector<32x8xbf16>, vector<8x362xbf16>, vector<32x362xf32> -> vector<32x362xf32>
    %61 = arith.addf %56, %60 : vector<32x362xf32>
    %c2_52 = arith.constant 2 : index
    %c0_53 = arith.constant 0 : index
    %c0_54 = arith.constant 0 : index
    %62 = vector.load %arg3[%c2_52, %c0_53, %c0_54] : memref<9x32x8xbf16, #tpu.memory_space<vmem>>, vector<1x32x8xbf16>
    %63 = vector.shape_cast %62 : vector<1x32x8xbf16> to vector<32x8xbf16>
    %64 = vector.extract_strided_slice %4 {offsets = [0, 1], sizes = [8, 362], strides = [1, 1]} : vector<8x384xbf16> to vector<8x362xbf16>
    %cst_55 = arith.constant dense<0.000000e+00> : vector<32x362xf32>
    %65 = tpu.matmul %63, %64, %cst_55 {dimension_numbers = #tpu.dot_dimension_numbers<[1], [0], [0], [1], [0, 0, 1, 1], [], []>} : vector<32x8xbf16>, vector<8x362xbf16>, vector<32x362xf32> -> vector<32x362xf32>
    %66 = arith.addf %61, %65 : vector<32x362xf32>
    %c3_56 = arith.constant 3 : index
    %c0_57 = arith.constant 0 : index
    %c0_58 = arith.constant 0 : index
    %67 = vector.load %arg3[%c3_56, %c0_57, %c0_58] : memref<9x32x8xbf16, #tpu.memory_space<vmem>>, vector<1x32x8xbf16>
    %68 = vector.shape_cast %67 : vector<1x32x8xbf16> to vector<32x8xbf16>
    %69 = vector.extract_strided_slice %8 {offsets = [0, 0], sizes = [8, 362], strides = [1, 1]} : vector<8x384xbf16> to vector<8x362xbf16>
    %cst_59 = arith.constant dense<0.000000e+00> : vector<32x362xf32>
    %70 = tpu.matmul %68, %69, %cst_59 {dimension_numbers = #tpu.dot_dimension_numbers<[1], [0], [0], [1], [0, 0, 1, 1], [], []>} : vector<32x8xbf16>, vector<8x362xbf16>, vector<32x362xf32> -> vector<32x362xf32>
    %71 = arith.addf %66, %70 : vector<32x362xf32>
    %c4_60 = arith.constant 4 : index
    %c0_61 = arith.constant 0 : index
    %c0_62 = arith.constant 0 : index
    %72 = vector.load %arg3[%c4_60, %c0_61, %c0_62] : memref<9x32x8xbf16, #tpu.memory_space<vmem>>, vector<1x32x8xbf16>
    %73 = vector.shape_cast %72 : vector<1x32x8xbf16> to vector<32x8xbf16>
    %74 = vector.extract_strided_slice %6 {offsets = [0, 1], sizes = [8, 362], strides = [1, 1]} : vector<8x384xbf16> to vector<8x362xbf16>
    %cst_63 = arith.constant dense<0.000000e+00> : vector<32x362xf32>
    %75 = tpu.matmul %73, %74, %cst_63 {dimension_numbers = #tpu.dot_dimension_numbers<[1], [0], [0], [1], [0, 0, 1, 1], [], []>} : vector<32x8xbf16>, vector<8x362xbf16>, vector<32x362xf32> -> vector<32x362xf32>
    %76 = arith.addf %71, %75 : vector<32x362xf32>
    %c5_64 = arith.constant 5 : index
    %c0_65 = arith.constant 0 : index
    %c0_66 = arith.constant 0 : index
    %77 = vector.load %arg3[%c5_64, %c0_65, %c0_66] : memref<9x32x8xbf16, #tpu.memory_space<vmem>>, vector<1x32x8xbf16>
    %78 = vector.shape_cast %77 : vector<1x32x8xbf16> to vector<32x8xbf16>
    %79 = vector.extract_strided_slice %8 {offsets = [0, 1], sizes = [8, 362], strides = [1, 1]} : vector<8x384xbf16> to vector<8x362xbf16>
    %cst_67 = arith.constant dense<0.000000e+00> : vector<32x362xf32>
    %80 = tpu.matmul %78, %79, %cst_67 {dimension_numbers = #tpu.dot_dimension_numbers<[1], [0], [0], [1], [0, 0, 1, 1], [], []>} : vector<32x8xbf16>, vector<8x362xbf16>, vector<32x362xf32> -> vector<32x362xf32>
    %81 = arith.addf %76, %80 : vector<32x362xf32>
    %c6_68 = arith.constant 6 : index
    %c0_69 = arith.constant 0 : index
    %c0_70 = arith.constant 0 : index
    %82 = vector.load %arg3[%c6_68, %c0_69, %c0_70] : memref<9x32x8xbf16, #tpu.memory_space<vmem>>, vector<1x32x8xbf16>
    %83 = vector.shape_cast %82 : vector<1x32x8xbf16> to vector<32x8xbf16>
    %84 = vector.extract_strided_slice %4 {offsets = [0, 18], sizes = [8, 362], strides = [1, 1]} : vector<8x384xbf16> to vector<8x362xbf16>
    %cst_71 = arith.constant dense<0.000000e+00> : vector<32x362xf32>
    %85 = tpu.matmul %83, %84, %cst_71 {dimension_numbers = #tpu.dot_dimension_numbers<[1], [0], [0], [1], [0, 0, 1, 1], [], []>} : vector<32x8xbf16>, vector<8x362xbf16>, vector<32x362xf32> -> vector<32x362xf32>
    %86 = arith.addf %81, %85 : vector<32x362xf32>
    %c7_72 = arith.constant 7 : index
    %c0_73 = arith.constant 0 : index
    %c0_74 = arith.constant 0 : index
    %87 = vector.load %arg3[%c7_72, %c0_73, %c0_74] : memref<9x32x8xbf16, #tpu.memory_space<vmem>>, vector<1x32x8xbf16>
    %88 = vector.shape_cast %87 : vector<1x32x8xbf16> to vector<32x8xbf16>
    %89 = vector.extract_strided_slice %2 {offsets = [0, 19], sizes = [8, 362], strides = [1, 1]} : vector<8x384xbf16> to vector<8x362xbf16>
    %cst_75 = arith.constant dense<0.000000e+00> : vector<32x362xf32>
    %90 = tpu.matmul %88, %89, %cst_75 {dimension_numbers = #tpu.dot_dimension_numbers<[1], [0], [0], [1], [0, 0, 1, 1], [], []>} : vector<32x8xbf16>, vector<8x362xbf16>, vector<32x362xf32> -> vector<32x362xf32>
    %91 = arith.addf %86, %90 : vector<32x362xf32>
    %c8_76 = arith.constant 8 : index
    %c0_77 = arith.constant 0 : index
    %c0_78 = arith.constant 0 : index
    %92 = vector.load %arg3[%c8_76, %c0_77, %c0_78] : memref<9x32x8xbf16, #tpu.memory_space<vmem>>, vector<1x32x8xbf16>
    %93 = vector.shape_cast %92 : vector<1x32x8xbf16> to vector<32x8xbf16>
    %94 = vector.extract_strided_slice %4 {offsets = [0, 19], sizes = [8, 362], strides = [1, 1]} : vector<8x384xbf16> to vector<8x362xbf16>
    %cst_79 = arith.constant dense<0.000000e+00> : vector<32x362xf32>
    %95 = tpu.matmul %93, %94, %cst_79 {dimension_numbers = #tpu.dot_dimension_numbers<[1], [0], [0], [1], [0, 0, 1, 1], [], []>} : vector<32x8xbf16>, vector<8x362xbf16>, vector<32x362xf32> -> vector<32x362xf32>
    %96 = arith.addf %91, %95 : vector<32x362xf32>
    %97 = arith.maximumf %52, %96 : vector<32x362xf32>
    %c0_80 = arith.constant 0 : index
    %c0_81 = arith.constant 0 : index
    %c0_82 = arith.constant 0 : index
    %98 = vector.load %arg3[%c0_80, %c0_81, %c0_82] : memref<9x32x8xbf16, #tpu.memory_space<vmem>>, vector<1x32x8xbf16>
    %99 = vector.shape_cast %98 : vector<1x32x8xbf16> to vector<32x8xbf16>
    %100 = vector.extract_strided_slice %6 {offsets = [0, 0], sizes = [8, 362], strides = [1, 1]} : vector<8x384xbf16> to vector<8x362xbf16>
    %cst_83 = arith.constant dense<0.000000e+00> : vector<32x362xf32>
    %101 = tpu.matmul %99, %100, %cst_83 {dimension_numbers = #tpu.dot_dimension_numbers<[1], [0], [0], [1], [0, 0, 1, 1], [], []>} : vector<32x8xbf16>, vector<8x362xbf16>, vector<32x362xf32> -> vector<32x362xf32>
    %c1_84 = arith.constant 1 : index
    %c0_85 = arith.constant 0 : index
    %c0_86 = arith.constant 0 : index
    %102 = vector.load %arg3[%c1_84, %c0_85, %c0_86] : memref<9x32x8xbf16, #tpu.memory_space<vmem>>, vector<1x32x8xbf16>
    %103 = vector.shape_cast %102 : vector<1x32x8xbf16> to vector<32x8xbf16>
    %104 = vector.extract_strided_slice %8 {offsets = [0, 0], sizes = [8, 362], strides = [1, 1]} : vector<8x384xbf16> to vector<8x362xbf16>
    %cst_87 = arith.constant dense<0.000000e+00> : vector<32x362xf32>
    %105 = tpu.matmul %103, %104, %cst_87 {dimension_numbers = #tpu.dot_dimension_numbers<[1], [0], [0], [1], [0, 0, 1, 1], [], []>} : vector<32x8xbf16>, vector<8x362xbf16>, vector<32x362xf32> -> vector<32x362xf32>
    %106 = arith.addf %101, %105 : vector<32x362xf32>
    %c2_88 = arith.constant 2 : index
    %c0_89 = arith.constant 0 : index
    %c0_90 = arith.constant 0 : index
    %107 = vector.load %arg3[%c2_88, %c0_89, %c0_90] : memref<9x32x8xbf16, #tpu.memory_space<vmem>>, vector<1x32x8xbf16>
    %108 = vector.shape_cast %107 : vector<1x32x8xbf16> to vector<32x8xbf16>
    %109 = vector.extract_strided_slice %6 {offsets = [0, 1], sizes = [8, 362], strides = [1, 1]} : vector<8x384xbf16> to vector<8x362xbf16>
    %cst_91 = arith.constant dense<0.000000e+00> : vector<32x362xf32>
    %110 = tpu.matmul %108, %109, %cst_91 {dimension_numbers = #tpu.dot_dimension_numbers<[1], [0], [0], [1], [0, 0, 1, 1], [], []>} : vector<32x8xbf16>, vector<8x362xbf16>, vector<32x362xf32> -> vector<32x362xf32>
    %111 = arith.addf %106, %110 : vector<32x362xf32>
    %c3_92 = arith.constant 3 : index
    %c0_93 = arith.constant 0 : index
    %c0_94 = arith.constant 0 : index
    %112 = vector.load %arg3[%c3_92, %c0_93, %c0_94] : memref<9x32x8xbf16, #tpu.memory_space<vmem>>, vector<1x32x8xbf16>
    %113 = vector.shape_cast %112 : vector<1x32x8xbf16> to vector<32x8xbf16>
    %114 = vector.extract_strided_slice %2 {offsets = [0, 18], sizes = [8, 362], strides = [1, 1]} : vector<8x384xbf16> to vector<8x362xbf16>
    %cst_95 = arith.constant dense<0.000000e+00> : vector<32x362xf32>
    %115 = tpu.matmul %113, %114, %cst_95 {dimension_numbers = #tpu.dot_dimension_numbers<[1], [0], [0], [1], [0, 0, 1, 1], [], []>} : vector<32x8xbf16>, vector<8x362xbf16>, vector<32x362xf32> -> vector<32x362xf32>
    %116 = arith.addf %111, %115 : vector<32x362xf32>
    %c4_96 = arith.constant 4 : index
    %c0_97 = arith.constant 0 : index
    %c0_98 = arith.constant 0 : index
    %117 = vector.load %arg3[%c4_96, %c0_97, %c0_98] : memref<9x32x8xbf16, #tpu.memory_space<vmem>>, vector<1x32x8xbf16>
    %118 = vector.shape_cast %117 : vector<1x32x8xbf16> to vector<32x8xbf16>
    %119 = vector.extract_strided_slice %4 {offsets = [0, 18], sizes = [8, 362], strides = [1, 1]} : vector<8x384xbf16> to vector<8x362xbf16>
    %cst_99 = arith.constant dense<0.000000e+00> : vector<32x362xf32>
    %120 = tpu.matmul %118, %119, %cst_99 {dimension_numbers = #tpu.dot_dimension_numbers<[1], [0], [0], [1], [0, 0, 1, 1], [], []>} : vector<32x8xbf16>, vector<8x362xbf16>, vector<32x362xf32> -> vector<32x362xf32>
    %121 = arith.addf %116, %120 : vector<32x362xf32>
    %c5_100 = arith.constant 5 : index
    %c0_101 = arith.constant 0 : index
    %c0_102 = arith.constant 0 : index
    %122 = vector.load %arg3[%c5_100, %c0_101, %c0_102] : memref<9x32x8xbf16, #tpu.memory_space<vmem>>, vector<1x32x8xbf16>
    %123 = vector.shape_cast %122 : vector<1x32x8xbf16> to vector<32x8xbf16>
    %124 = vector.extract_strided_slice %2 {offsets = [0, 19], sizes = [8, 362], strides = [1, 1]} : vector<8x384xbf16> to vector<8x362xbf16>
    %cst_103 = arith.constant dense<0.000000e+00> : vector<32x362xf32>
    %125 = tpu.matmul %123, %124, %cst_103 {dimension_numbers = #tpu.dot_dimension_numbers<[1], [0], [0], [1], [0, 0, 1, 1], [], []>} : vector<32x8xbf16>, vector<8x362xbf16>, vector<32x362xf32> -> vector<32x362xf32>
    %126 = arith.addf %121, %125 : vector<32x362xf32>
    %c6_104 = arith.constant 6 : index
    %c0_105 = arith.constant 0 : index
    %c0_106 = arith.constant 0 : index
    %127 = vector.load %arg3[%c6_104, %c0_105, %c0_106] : memref<9x32x8xbf16, #tpu.memory_space<vmem>>, vector<1x32x8xbf16>
    %128 = vector.shape_cast %127 : vector<1x32x8xbf16> to vector<32x8xbf16>
    %129 = vector.extract_strided_slice %6 {offsets = [0, 18], sizes = [8, 362], strides = [1, 1]} : vector<8x384xbf16> to vector<8x362xbf16>
    %cst_107 = arith.constant dense<0.000000e+00> : vector<32x362xf32>
    %130 = tpu.matmul %128, %129, %cst_107 {dimension_numbers = #tpu.dot_dimension_numbers<[1], [0], [0], [1], [0, 0, 1, 1], [], []>} : vector<32x8xbf16>, vector<8x362xbf16>, vector<32x362xf32> -> vector<32x362xf32>
    %131 = arith.addf %126, %130 : vector<32x362xf32>
    %c7_108 = arith.constant 7 : index
    %c0_109 = arith.constant 0 : index
    %c0_110 = arith.constant 0 : index
    %132 = vector.load %arg3[%c7_108, %c0_109, %c0_110] : memref<9x32x8xbf16, #tpu.memory_space<vmem>>, vector<1x32x8xbf16>
    %133 = vector.shape_cast %132 : vector<1x32x8xbf16> to vector<32x8xbf16>
    %134 = vector.extract_strided_slice %8 {offsets = [0, 18], sizes = [8, 362], strides = [1, 1]} : vector<8x384xbf16> to vector<8x362xbf16>
    %cst_111 = arith.constant dense<0.000000e+00> : vector<32x362xf32>
    %135 = tpu.matmul %133, %134, %cst_111 {dimension_numbers = #tpu.dot_dimension_numbers<[1], [0], [0], [1], [0, 0, 1, 1], [], []>} : vector<32x8xbf16>, vector<8x362xbf16>, vector<32x362xf32> -> vector<32x362xf32>
    %136 = arith.addf %131, %135 : vector<32x362xf32>
    %c8_112 = arith.constant 8 : index
    %c0_113 = arith.constant 0 : index
    %c0_114 = arith.constant 0 : index
    %137 = vector.load %arg3[%c8_112, %c0_113, %c0_114] : memref<9x32x8xbf16, #tpu.memory_space<vmem>>, vector<1x32x8xbf16>
    %138 = vector.shape_cast %137 : vector<1x32x8xbf16> to vector<32x8xbf16>
    %139 = vector.extract_strided_slice %6 {offsets = [0, 19], sizes = [8, 362], strides = [1, 1]} : vector<8x384xbf16> to vector<8x362xbf16>
    %cst_115 = arith.constant dense<0.000000e+00> : vector<32x362xf32>
    %140 = tpu.matmul %138, %139, %cst_115 {dimension_numbers = #tpu.dot_dimension_numbers<[1], [0], [0], [1], [0, 0, 1, 1], [], []>} : vector<32x8xbf16>, vector<8x362xbf16>, vector<32x362xf32> -> vector<32x362xf32>
    %141 = arith.addf %136, %140 : vector<32x362xf32>
    %142 = arith.maximumf %97, %141 : vector<32x362xf32>
    %c0_116 = arith.constant 0 : index
    %c0_117 = arith.constant 0 : index
    %c0_118 = arith.constant 0 : index
    %143 = vector.load %arg3[%c0_116, %c0_117, %c0_118] : memref<9x32x8xbf16, #tpu.memory_space<vmem>>, vector<1x32x8xbf16>
    %144 = vector.shape_cast %143 : vector<1x32x8xbf16> to vector<32x8xbf16>
    %145 = vector.extract_strided_slice %8 {offsets = [0, 0], sizes = [8, 362], strides = [1, 1]} : vector<8x384xbf16> to vector<8x362xbf16>
    %cst_119 = arith.constant dense<0.000000e+00> : vector<32x362xf32>
    %146 = tpu.matmul %144, %145, %cst_119 {dimension_numbers = #tpu.dot_dimension_numbers<[1], [0], [0], [1], [0, 0, 1, 1], [], []>} : vector<32x8xbf16>, vector<8x362xbf16>, vector<32x362xf32> -> vector<32x362xf32>
    %c1_120 = arith.constant 1 : index
    %c0_121 = arith.constant 0 : index
    %c0_122 = arith.constant 0 : index
    %147 = vector.load %arg3[%c1_120, %c0_121, %c0_122] : memref<9x32x8xbf16, #tpu.memory_space<vmem>>, vector<1x32x8xbf16>
    %148 = vector.shape_cast %147 : vector<1x32x8xbf16> to vector<32x8xbf16>
    %149 = vector.extract_strided_slice %6 {offsets = [0, 1], sizes = [8, 362], strides = [1, 1]} : vector<8x384xbf16> to vector<8x362xbf16>
    %cst_123 = arith.constant dense<0.000000e+00> : vector<32x362xf32>
    %150 = tpu.matmul %148, %149, %cst_123 {dimension_numbers = #tpu.dot_dimension_numbers<[1], [0], [0], [1], [0, 0, 1, 1], [], []>} : vector<32x8xbf16>, vector<8x362xbf16>, vector<32x362xf32> -> vector<32x362xf32>
    %151 = arith.addf %146, %150 : vector<32x362xf32>
    %c2_124 = arith.constant 2 : index
    %c0_125 = arith.constant 0 : index
    %c0_126 = arith.constant 0 : index
    %152 = vector.load %arg3[%c2_124, %c0_125, %c0_126] : memref<9x32x8xbf16, #tpu.memory_space<vmem>>, vector<1x32x8xbf16>
    %153 = vector.shape_cast %152 : vector<1x32x8xbf16> to vector<32x8xbf16>
    %154 = vector.extract_strided_slice %8 {offsets = [0, 1], sizes = [8, 362], strides = [1, 1]} : vector<8x384xbf16> to vector<8x362xbf16>
    %cst_127 = arith.constant dense<0.000000e+00> : vector<32x362xf32>
    %155 = tpu.matmul %153, %154, %cst_127 {dimension_numbers = #tpu.dot_dimension_numbers<[1], [0], [0], [1], [0, 0, 1, 1], [], []>} : vector<32x8xbf16>, vector<8x362xbf16>, vector<32x362xf32> -> vector<32x362xf32>
    %156 = arith.addf %151, %155 : vector<32x362xf32>
    %c3_128 = arith.constant 3 : index
    %c0_129 = arith.constant 0 : index
    %c0_130 = arith.constant 0 : index
    %157 = vector.load %arg3[%c3_128, %c0_129, %c0_130] : memref<9x32x8xbf16, #tpu.memory_space<vmem>>, vector<1x32x8xbf16>
    %158 = vector.shape_cast %157 : vector<1x32x8xbf16> to vector<32x8xbf16>
    %159 = vector.extract_strided_slice %4 {offsets = [0, 18], sizes = [8, 362], strides = [1, 1]} : vector<8x384xbf16> to vector<8x362xbf16>
    %cst_131 = arith.constant dense<0.000000e+00> : vector<32x362xf32>
    %160 = tpu.matmul %158, %159, %cst_131 {dimension_numbers = #tpu.dot_dimension_numbers<[1], [0], [0], [1], [0, 0, 1, 1], [], []>} : vector<32x8xbf16>, vector<8x362xbf16>, vector<32x362xf32> -> vector<32x362xf32>
    %161 = arith.addf %156, %160 : vector<32x362xf32>
    %c4_132 = arith.constant 4 : index
    %c0_133 = arith.constant 0 : index
    %c0_134 = arith.constant 0 : index
    %162 = vector.load %arg3[%c4_132, %c0_133, %c0_134] : memref<9x32x8xbf16, #tpu.memory_space<vmem>>, vector<1x32x8xbf16>
    %163 = vector.shape_cast %162 : vector<1x32x8xbf16> to vector<32x8xbf16>
    %164 = vector.extract_strided_slice %2 {offsets = [0, 19], sizes = [8, 362], strides = [1, 1]} : vector<8x384xbf16> to vector<8x362xbf16>
    %cst_135 = arith.constant dense<0.000000e+00> : vector<32x362xf32>
    %165 = tpu.matmul %163, %164, %cst_135 {dimension_numbers = #tpu.dot_dimension_numbers<[1], [0], [0], [1], [0, 0, 1, 1], [], []>} : vector<32x8xbf16>, vector<8x362xbf16>, vector<32x362xf32> -> vector<32x362xf32>
    %166 = arith.addf %161, %165 : vector<32x362xf32>
    %c5_136 = arith.constant 5 : index
    %c0_137 = arith.constant 0 : index
    %c0_138 = arith.constant 0 : index
    %167 = vector.load %arg3[%c5_136, %c0_137, %c0_138] : memref<9x32x8xbf16, #tpu.memory_space<vmem>>, vector<1x32x8xbf16>
    %168 = vector.shape_cast %167 : vector<1x32x8xbf16> to vector<32x8xbf16>
    %169 = vector.extract_strided_slice %4 {offsets = [0, 19], sizes = [8, 362], strides = [1, 1]} : vector<8x384xbf16> to vector<8x362xbf16>
    %cst_139 = arith.constant dense<0.000000e+00> : vector<32x362xf32>
    %170 = tpu.matmul %168, %169, %cst_139 {dimension_numbers = #tpu.dot_dimension_numbers<[1], [0], [0], [1], [0, 0, 1, 1], [], []>} : vector<32x8xbf16>, vector<8x362xbf16>, vector<32x362xf32> -> vector<32x362xf32>
    %171 = arith.addf %166, %170 : vector<32x362xf32>
    %c6_140 = arith.constant 6 : index
    %c0_141 = arith.constant 0 : index
    %c0_142 = arith.constant 0 : index
    %172 = vector.load %arg3[%c6_140, %c0_141, %c0_142] : memref<9x32x8xbf16, #tpu.memory_space<vmem>>, vector<1x32x8xbf16>
    %173 = vector.shape_cast %172 : vector<1x32x8xbf16> to vector<32x8xbf16>
    %174 = vector.extract_strided_slice %8 {offsets = [0, 18], sizes = [8, 362], strides = [1, 1]} : vector<8x384xbf16> to vector<8x362xbf16>
    %cst_143 = arith.constant dense<0.000000e+00> : vector<32x362xf32>
    %175 = tpu.matmul %173, %174, %cst_143 {dimension_numbers = #tpu.dot_dimension_numbers<[1], [0], [0], [1], [0, 0, 1, 1], [], []>} : vector<32x8xbf16>, vector<8x362xbf16>, vector<32x362xf32> -> vector<32x362xf32>
    %176 = arith.addf %171, %175 : vector<32x362xf32>
    %c7_144 = arith.constant 7 : index
    %c0_145 = arith.constant 0 : index
    %c0_146 = arith.constant 0 : index
    %177 = vector.load %arg3[%c7_144, %c0_145, %c0_146] : memref<9x32x8xbf16, #tpu.memory_space<vmem>>, vector<1x32x8xbf16>
    %178 = vector.shape_cast %177 : vector<1x32x8xbf16> to vector<32x8xbf16>
    %179 = vector.extract_strided_slice %6 {offsets = [0, 19], sizes = [8, 362], strides = [1, 1]} : vector<8x384xbf16> to vector<8x362xbf16>
    %cst_147 = arith.constant dense<0.000000e+00> : vector<32x362xf32>
    %180 = tpu.matmul %178, %179, %cst_147 {dimension_numbers = #tpu.dot_dimension_numbers<[1], [0], [0], [1], [0, 0, 1, 1], [], []>} : vector<32x8xbf16>, vector<8x362xbf16>, vector<32x362xf32> -> vector<32x362xf32>
    %181 = arith.addf %176, %180 : vector<32x362xf32>
    %c8_148 = arith.constant 8 : index
    %c0_149 = arith.constant 0 : index
    %c0_150 = arith.constant 0 : index
    %182 = vector.load %arg3[%c8_148, %c0_149, %c0_150] : memref<9x32x8xbf16, #tpu.memory_space<vmem>>, vector<1x32x8xbf16>
    %183 = vector.shape_cast %182 : vector<1x32x8xbf16> to vector<32x8xbf16>
    %184 = vector.extract_strided_slice %8 {offsets = [0, 19], sizes = [8, 362], strides = [1, 1]} : vector<8x384xbf16> to vector<8x362xbf16>
    %cst_151 = arith.constant dense<0.000000e+00> : vector<32x362xf32>
    %185 = tpu.matmul %183, %184, %cst_151 {dimension_numbers = #tpu.dot_dimension_numbers<[1], [0], [0], [1], [0, 0, 1, 1], [], []>} : vector<32x8xbf16>, vector<8x362xbf16>, vector<32x362xf32> -> vector<32x362xf32>
    %186 = arith.addf %181, %185 : vector<32x362xf32>
    %187 = arith.maximumf %142, %186 : vector<32x362xf32>
    %c0_152 = arith.constant 0 : index
    %c0_153 = arith.constant 0 : index
    %188 = vector.load %arg4[%c0_152, %c0_153] : memref<32x1xf32, #tpu.memory_space<vmem>>, vector<32x1xf32>
    %189 = vector.broadcast %188 : vector<32x1xf32> to vector<32x362xf32>
    %190 = arith.addf %187, %189 : vector<32x362xf32>
    %191 = vector.broadcast %0 : vector<1x362xf32> to vector<32x362xf32>
    %192 = arith.mulf %190, %191 : vector<32x362xf32>
    %193 = arith.truncf %192 : vector<32x362xf32> to vector<32x362xbf16>
    %194 = vector.extract_strided_slice %193 {offsets = [0, 0], sizes = [16, 362], strides = [1, 1]} : vector<32x362xbf16> to vector<16x362xbf16>
    %c0_154 = arith.constant 0 : index
    %c0_155 = arith.constant 0 : index
    %c0_156 = arith.constant 0 : index
    %c0_157 = arith.constant 0 : index
    %195 = vector.load %arg5[%c0_154, %c0_155, %c0_156, %c0_157] : memref<2x9x32x16xbf16, #tpu.memory_space<vmem>>, vector<1x1x32x16xbf16>
    %196 = vector.shape_cast %195 : vector<1x1x32x16xbf16> to vector<32x16xbf16>
    %197 = vector.extract_strided_slice %194 {offsets = [0, 0], sizes = [16, 324], strides = [1, 1]} : vector<16x362xbf16> to vector<16x324xbf16>
    %cst_158 = arith.constant dense<0.000000e+00> : vector<32x324xf32>
    %198 = tpu.matmul %196, %197, %cst_158 {dimension_numbers = #tpu.dot_dimension_numbers<[1], [0], [0], [1], [0, 0, 1, 1], [], []>} : vector<32x16xbf16>, vector<16x324xbf16>, vector<32x324xf32> -> vector<32x324xf32>
    %c0_159 = arith.constant 0 : index
    %c1_160 = arith.constant 1 : index
    %c0_161 = arith.constant 0 : index
    %c0_162 = arith.constant 0 : index
    %199 = vector.load %arg5[%c0_159, %c1_160, %c0_161, %c0_162] : memref<2x9x32x16xbf16, #tpu.memory_space<vmem>>, vector<1x1x32x16xbf16>
    %200 = vector.shape_cast %199 : vector<1x1x32x16xbf16> to vector<32x16xbf16>
    %201 = vector.extract_strided_slice %194 {offsets = [0, 1], sizes = [16, 324], strides = [1, 1]} : vector<16x362xbf16> to vector<16x324xbf16>
    %cst_163 = arith.constant dense<0.000000e+00> : vector<32x324xf32>
    %202 = tpu.matmul %200, %201, %cst_163 {dimension_numbers = #tpu.dot_dimension_numbers<[1], [0], [0], [1], [0, 0, 1, 1], [], []>} : vector<32x16xbf16>, vector<16x324xbf16>, vector<32x324xf32> -> vector<32x324xf32>
    %203 = arith.addf %198, %202 : vector<32x324xf32>
    %c0_164 = arith.constant 0 : index
    %c2_165 = arith.constant 2 : index
    %c0_166 = arith.constant 0 : index
    %c0_167 = arith.constant 0 : index
    %204 = vector.load %arg5[%c0_164, %c2_165, %c0_166, %c0_167] : memref<2x9x32x16xbf16, #tpu.memory_space<vmem>>, vector<1x1x32x16xbf16>
    %205 = vector.shape_cast %204 : vector<1x1x32x16xbf16> to vector<32x16xbf16>
    %206 = vector.extract_strided_slice %194 {offsets = [0, 2], sizes = [16, 324], strides = [1, 1]} : vector<16x362xbf16> to vector<16x324xbf16>
    %cst_168 = arith.constant dense<0.000000e+00> : vector<32x324xf32>
    %207 = tpu.matmul %205, %206, %cst_168 {dimension_numbers = #tpu.dot_dimension_numbers<[1], [0], [0], [1], [0, 0, 1, 1], [], []>} : vector<32x16xbf16>, vector<16x324xbf16>, vector<32x324xf32> -> vector<32x324xf32>
    %208 = arith.addf %203, %207 : vector<32x324xf32>
    %c0_169 = arith.constant 0 : index
    %c3_170 = arith.constant 3 : index
    %c0_171 = arith.constant 0 : index
    %c0_172 = arith.constant 0 : index
    %209 = vector.load %arg5[%c0_169, %c3_170, %c0_171, %c0_172] : memref<2x9x32x16xbf16, #tpu.memory_space<vmem>>, vector<1x1x32x16xbf16>
    %210 = vector.shape_cast %209 : vector<1x1x32x16xbf16> to vector<32x16xbf16>
    %211 = vector.extract_strided_slice %194 {offsets = [0, 18], sizes = [16, 324], strides = [1, 1]} : vector<16x362xbf16> to vector<16x324xbf16>
    %cst_173 = arith.constant dense<0.000000e+00> : vector<32x324xf32>
    %212 = tpu.matmul %210, %211, %cst_173 {dimension_numbers = #tpu.dot_dimension_numbers<[1], [0], [0], [1], [0, 0, 1, 1], [], []>} : vector<32x16xbf16>, vector<16x324xbf16>, vector<32x324xf32> -> vector<32x324xf32>
    %213 = arith.addf %208, %212 : vector<32x324xf32>
    %c0_174 = arith.constant 0 : index
    %c4_175 = arith.constant 4 : index
    %c0_176 = arith.constant 0 : index
    %c0_177 = arith.constant 0 : index
    %214 = vector.load %arg5[%c0_174, %c4_175, %c0_176, %c0_177] : memref<2x9x32x16xbf16, #tpu.memory_space<vmem>>, vector<1x1x32x16xbf16>
    %215 = vector.shape_cast %214 : vector<1x1x32x16xbf16> to vector<32x16xbf16>
    %216 = vector.extract_strided_slice %194 {offsets = [0, 19], sizes = [16, 324], strides = [1, 1]} : vector<16x362xbf16> to vector<16x324xbf16>
    %cst_178 = arith.constant dense<0.000000e+00> : vector<32x324xf32>
    %217 = tpu.matmul %215, %216, %cst_178 {dimension_numbers = #tpu.dot_dimension_numbers<[1], [0], [0], [1], [0, 0, 1, 1], [], []>} : vector<32x16xbf16>, vector<16x324xbf16>, vector<32x324xf32> -> vector<32x324xf32>
    %218 = arith.addf %213, %217 : vector<32x324xf32>
    %c0_179 = arith.constant 0 : index
    %c5_180 = arith.constant 5 : index
    %c0_181 = arith.constant 0 : index
    %c0_182 = arith.constant 0 : index
    %219 = vector.load %arg5[%c0_179, %c5_180, %c0_181, %c0_182] : memref<2x9x32x16xbf16, #tpu.memory_space<vmem>>, vector<1x1x32x16xbf16>
    %220 = vector.shape_cast %219 : vector<1x1x32x16xbf16> to vector<32x16xbf16>
    %221 = vector.extract_strided_slice %194 {offsets = [0, 20], sizes = [16, 324], strides = [1, 1]} : vector<16x362xbf16> to vector<16x324xbf16>
    %cst_183 = arith.constant dense<0.000000e+00> : vector<32x324xf32>
    %222 = tpu.matmul %220, %221, %cst_183 {dimension_numbers = #tpu.dot_dimension_numbers<[1], [0], [0], [1], [0, 0, 1, 1], [], []>} : vector<32x16xbf16>, vector<16x324xbf16>, vector<32x324xf32> -> vector<32x324xf32>
    %223 = arith.addf %218, %222 : vector<32x324xf32>
    %c0_184 = arith.constant 0 : index
    %c6_185 = arith.constant 6 : index
    %c0_186 = arith.constant 0 : index
    %c0_187 = arith.constant 0 : index
    %224 = vector.load %arg5[%c0_184, %c6_185, %c0_186, %c0_187] : memref<2x9x32x16xbf16, #tpu.memory_space<vmem>>, vector<1x1x32x16xbf16>
    %225 = vector.shape_cast %224 : vector<1x1x32x16xbf16> to vector<32x16xbf16>
    %226 = vector.extract_strided_slice %194 {offsets = [0, 36], sizes = [16, 324], strides = [1, 1]} : vector<16x362xbf16> to vector<16x324xbf16>
    %cst_188 = arith.constant dense<0.000000e+00> : vector<32x324xf32>
    %227 = tpu.matmul %225, %226, %cst_188 {dimension_numbers = #tpu.dot_dimension_numbers<[1], [0], [0], [1], [0, 0, 1, 1], [], []>} : vector<32x16xbf16>, vector<16x324xbf16>, vector<32x324xf32> -> vector<32x324xf32>
    %228 = arith.addf %223, %227 : vector<32x324xf32>
    %c0_189 = arith.constant 0 : index
    %c7_190 = arith.constant 7 : index
    %c0_191 = arith.constant 0 : index
    %c0_192 = arith.constant 0 : index
    %229 = vector.load %arg5[%c0_189, %c7_190, %c0_191, %c0_192] : memref<2x9x32x16xbf16, #tpu.memory_space<vmem>>, vector<1x1x32x16xbf16>
    %230 = vector.shape_cast %229 : vector<1x1x32x16xbf16> to vector<32x16xbf16>
    %231 = vector.extract_strided_slice %194 {offsets = [0, 37], sizes = [16, 324], strides = [1, 1]} : vector<16x362xbf16> to vector<16x324xbf16>
    %cst_193 = arith.constant dense<0.000000e+00> : vector<32x324xf32>
    %232 = tpu.matmul %230, %231, %cst_193 {dimension_numbers = #tpu.dot_dimension_numbers<[1], [0], [0], [1], [0, 0, 1, 1], [], []>} : vector<32x16xbf16>, vector<16x324xbf16>, vector<32x324xf32> -> vector<32x324xf32>
    %233 = arith.addf %228, %232 : vector<32x324xf32>
    %c0_194 = arith.constant 0 : index
    %c8_195 = arith.constant 8 : index
    %c0_196 = arith.constant 0 : index
    %c0_197 = arith.constant 0 : index
    %234 = vector.load %arg5[%c0_194, %c8_195, %c0_196, %c0_197] : memref<2x9x32x16xbf16, #tpu.memory_space<vmem>>, vector<1x1x32x16xbf16>
    %235 = vector.shape_cast %234 : vector<1x1x32x16xbf16> to vector<32x16xbf16>
    %236 = vector.extract_strided_slice %194 {offsets = [0, 38], sizes = [16, 324], strides = [1, 1]} : vector<16x362xbf16> to vector<16x324xbf16>
    %cst_198 = arith.constant dense<0.000000e+00> : vector<32x324xf32>
    %237 = tpu.matmul %235, %236, %cst_198 {dimension_numbers = #tpu.dot_dimension_numbers<[1], [0], [0], [1], [0, 0, 1, 1], [], []>} : vector<32x16xbf16>, vector<16x324xbf16>, vector<32x324xf32> -> vector<32x324xf32>
    %238 = arith.addf %233, %237 : vector<32x324xf32>
    %239 = vector.extract_strided_slice %238 {offsets = [0, 0], sizes = [32, 305], strides = [1, 1]} : vector<32x324xf32> to vector<32x305xf32>
    %240 = vector.extract_strided_slice %238 {offsets = [0, 1], sizes = [32, 305], strides = [1, 1]} : vector<32x324xf32> to vector<32x305xf32>
    %241 = arith.maximumf %239, %240 : vector<32x305xf32>
    %242 = vector.extract_strided_slice %238 {offsets = [0, 18], sizes = [32, 305], strides = [1, 1]} : vector<32x324xf32> to vector<32x305xf32>
    %243 = vector.extract_strided_slice %238 {offsets = [0, 19], sizes = [32, 305], strides = [1, 1]} : vector<32x324xf32> to vector<32x305xf32>
    %244 = arith.maximumf %242, %243 : vector<32x305xf32>
    %245 = arith.maximumf %241, %244 : vector<32x305xf32>
    %c0_199 = arith.constant 0 : index
    %c0_200 = arith.constant 0 : index
    %c0_201 = arith.constant 0 : index
    %246 = vector.load %arg6[%c0_199, %c0_200, %c0_201] : memref<2x32x1xf32, #tpu.memory_space<vmem>>, vector<1x32x1xf32>
    %247 = vector.shape_cast %246 : vector<1x32x1xf32> to vector<32x1xf32>
    %248 = vector.broadcast %247 : vector<32x1xf32> to vector<32x305xf32>
    %249 = arith.addf %245, %248 : vector<32x305xf32>
    %250 = vector.extract_strided_slice %193 {offsets = [16, 0], sizes = [16, 362], strides = [1, 1]} : vector<32x362xbf16> to vector<16x362xbf16>
    %c1_202 = arith.constant 1 : index
    %c0_203 = arith.constant 0 : index
    %c0_204 = arith.constant 0 : index
    %c0_205 = arith.constant 0 : index
    %251 = vector.load %arg5[%c1_202, %c0_203, %c0_204, %c0_205] : memref<2x9x32x16xbf16, #tpu.memory_space<vmem>>, vector<1x1x32x16xbf16>
    %252 = vector.shape_cast %251 : vector<1x1x32x16xbf16> to vector<32x16xbf16>
    %253 = vector.extract_strided_slice %250 {offsets = [0, 0], sizes = [16, 324], strides = [1, 1]} : vector<16x362xbf16> to vector<16x324xbf16>
    %cst_206 = arith.constant dense<0.000000e+00> : vector<32x324xf32>
    %254 = tpu.matmul %252, %253, %cst_206 {dimension_numbers = #tpu.dot_dimension_numbers<[1], [0], [0], [1], [0, 0, 1, 1], [], []>} : vector<32x16xbf16>, vector<16x324xbf16>, vector<32x324xf32> -> vector<32x324xf32>
    %c1_207 = arith.constant 1 : index
    %c1_208 = arith.constant 1 : index
    %c0_209 = arith.constant 0 : index
    %c0_210 = arith.constant 0 : index
    %255 = vector.load %arg5[%c1_207, %c1_208, %c0_209, %c0_210] : memref<2x9x32x16xbf16, #tpu.memory_space<vmem>>, vector<1x1x32x16xbf16>
    %256 = vector.shape_cast %255 : vector<1x1x32x16xbf16> to vector<32x16xbf16>
    %257 = vector.extract_strided_slice %250 {offsets = [0, 1], sizes = [16, 324], strides = [1, 1]} : vector<16x362xbf16> to vector<16x324xbf16>
    %cst_211 = arith.constant dense<0.000000e+00> : vector<32x324xf32>
    %258 = tpu.matmul %256, %257, %cst_211 {dimension_numbers = #tpu.dot_dimension_numbers<[1], [0], [0], [1], [0, 0, 1, 1], [], []>} : vector<32x16xbf16>, vector<16x324xbf16>, vector<32x324xf32> -> vector<32x324xf32>
    %259 = arith.addf %254, %258 : vector<32x324xf32>
    %c1_212 = arith.constant 1 : index
    %c2_213 = arith.constant 2 : index
    %c0_214 = arith.constant 0 : index
    %c0_215 = arith.constant 0 : index
    %260 = vector.load %arg5[%c1_212, %c2_213, %c0_214, %c0_215] : memref<2x9x32x16xbf16, #tpu.memory_space<vmem>>, vector<1x1x32x16xbf16>
    %261 = vector.shape_cast %260 : vector<1x1x32x16xbf16> to vector<32x16xbf16>
    %262 = vector.extract_strided_slice %250 {offsets = [0, 2], sizes = [16, 324], strides = [1, 1]} : vector<16x362xbf16> to vector<16x324xbf16>
    %cst_216 = arith.constant dense<0.000000e+00> : vector<32x324xf32>
    %263 = tpu.matmul %261, %262, %cst_216 {dimension_numbers = #tpu.dot_dimension_numbers<[1], [0], [0], [1], [0, 0, 1, 1], [], []>} : vector<32x16xbf16>, vector<16x324xbf16>, vector<32x324xf32> -> vector<32x324xf32>
    %264 = arith.addf %259, %263 : vector<32x324xf32>
    %c1_217 = arith.constant 1 : index
    %c3_218 = arith.constant 3 : index
    %c0_219 = arith.constant 0 : index
    %c0_220 = arith.constant 0 : index
    %265 = vector.load %arg5[%c1_217, %c3_218, %c0_219, %c0_220] : memref<2x9x32x16xbf16, #tpu.memory_space<vmem>>, vector<1x1x32x16xbf16>
    %266 = vector.shape_cast %265 : vector<1x1x32x16xbf16> to vector<32x16xbf16>
    %267 = vector.extract_strided_slice %250 {offsets = [0, 18], sizes = [16, 324], strides = [1, 1]} : vector<16x362xbf16> to vector<16x324xbf16>
    %cst_221 = arith.constant dense<0.000000e+00> : vector<32x324xf32>
    %268 = tpu.matmul %266, %267, %cst_221 {dimension_numbers = #tpu.dot_dimension_numbers<[1], [0], [0], [1], [0, 0, 1, 1], [], []>} : vector<32x16xbf16>, vector<16x324xbf16>, vector<32x324xf32> -> vector<32x324xf32>
    %269 = arith.addf %264, %268 : vector<32x324xf32>
    %c1_222 = arith.constant 1 : index
    %c4_223 = arith.constant 4 : index
    %c0_224 = arith.constant 0 : index
    %c0_225 = arith.constant 0 : index
    %270 = vector.load %arg5[%c1_222, %c4_223, %c0_224, %c0_225] : memref<2x9x32x16xbf16, #tpu.memory_space<vmem>>, vector<1x1x32x16xbf16>
    %271 = vector.shape_cast %270 : vector<1x1x32x16xbf16> to vector<32x16xbf16>
    %272 = vector.extract_strided_slice %250 {offsets = [0, 19], sizes = [16, 324], strides = [1, 1]} : vector<16x362xbf16> to vector<16x324xbf16>
    %cst_226 = arith.constant dense<0.000000e+00> : vector<32x324xf32>
    %273 = tpu.matmul %271, %272, %cst_226 {dimension_numbers = #tpu.dot_dimension_numbers<[1], [0], [0], [1], [0, 0, 1, 1], [], []>} : vector<32x16xbf16>, vector<16x324xbf16>, vector<32x324xf32> -> vector<32x324xf32>
    %274 = arith.addf %269, %273 : vector<32x324xf32>
    %c1_227 = arith.constant 1 : index
    %c5_228 = arith.constant 5 : index
    %c0_229 = arith.constant 0 : index
    %c0_230 = arith.constant 0 : index
    %275 = vector.load %arg5[%c1_227, %c5_228, %c0_229, %c0_230] : memref<2x9x32x16xbf16, #tpu.memory_space<vmem>>, vector<1x1x32x16xbf16>
    %276 = vector.shape_cast %275 : vector<1x1x32x16xbf16> to vector<32x16xbf16>
    %277 = vector.extract_strided_slice %250 {offsets = [0, 20], sizes = [16, 324], strides = [1, 1]} : vector<16x362xbf16> to vector<16x324xbf16>
    %cst_231 = arith.constant dense<0.000000e+00> : vector<32x324xf32>
    %278 = tpu.matmul %276, %277, %cst_231 {dimension_numbers = #tpu.dot_dimension_numbers<[1], [0], [0], [1], [0, 0, 1, 1], [], []>} : vector<32x16xbf16>, vector<16x324xbf16>, vector<32x324xf32> -> vector<32x324xf32>
    %279 = arith.addf %274, %278 : vector<32x324xf32>
    %c1_232 = arith.constant 1 : index
    %c6_233 = arith.constant 6 : index
    %c0_234 = arith.constant 0 : index
    %c0_235 = arith.constant 0 : index
    %280 = vector.load %arg5[%c1_232, %c6_233, %c0_234, %c0_235] : memref<2x9x32x16xbf16, #tpu.memory_space<vmem>>, vector<1x1x32x16xbf16>
    %281 = vector.shape_cast %280 : vector<1x1x32x16xbf16> to vector<32x16xbf16>
    %282 = vector.extract_strided_slice %250 {offsets = [0, 36], sizes = [16, 324], strides = [1, 1]} : vector<16x362xbf16> to vector<16x324xbf16>
    %cst_236 = arith.constant dense<0.000000e+00> : vector<32x324xf32>
    %283 = tpu.matmul %281, %282, %cst_236 {dimension_numbers = #tpu.dot_dimension_numbers<[1], [0], [0], [1], [0, 0, 1, 1], [], []>} : vector<32x16xbf16>, vector<16x324xbf16>, vector<32x324xf32> -> vector<32x324xf32>
    %284 = arith.addf %279, %283 : vector<32x324xf32>
    %c1_237 = arith.constant 1 : index
    %c7_238 = arith.constant 7 : index
    %c0_239 = arith.constant 0 : index
    %c0_240 = arith.constant 0 : index
    %285 = vector.load %arg5[%c1_237, %c7_238, %c0_239, %c0_240] : memref<2x9x32x16xbf16, #tpu.memory_space<vmem>>, vector<1x1x32x16xbf16>
    %286 = vector.shape_cast %285 : vector<1x1x32x16xbf16> to vector<32x16xbf16>
    %287 = vector.extract_strided_slice %250 {offsets = [0, 37], sizes = [16, 324], strides = [1, 1]} : vector<16x362xbf16> to vector<16x324xbf16>
    %cst_241 = arith.constant dense<0.000000e+00> : vector<32x324xf32>
    %288 = tpu.matmul %286, %287, %cst_241 {dimension_numbers = #tpu.dot_dimension_numbers<[1], [0], [0], [1], [0, 0, 1, 1], [], []>} : vector<32x16xbf16>, vector<16x324xbf16>, vector<32x324xf32> -> vector<32x324xf32>
    %289 = arith.addf %284, %288 : vector<32x324xf32>
    %c1_242 = arith.constant 1 : index
    %c8_243 = arith.constant 8 : index
    %c0_244 = arith.constant 0 : index
    %c0_245 = arith.constant 0 : index
    %290 = vector.load %arg5[%c1_242, %c8_243, %c0_244, %c0_245] : memref<2x9x32x16xbf16, #tpu.memory_space<vmem>>, vector<1x1x32x16xbf16>
    %291 = vector.shape_cast %290 : vector<1x1x32x16xbf16> to vector<32x16xbf16>
    %292 = vector.extract_strided_slice %250 {offsets = [0, 38], sizes = [16, 324], strides = [1, 1]} : vector<16x362xbf16> to vector<16x324xbf16>
    %cst_246 = arith.constant dense<0.000000e+00> : vector<32x324xf32>
    %293 = tpu.matmul %291, %292, %cst_246 {dimension_numbers = #tpu.dot_dimension_numbers<[1], [0], [0], [1], [0, 0, 1, 1], [], []>} : vector<32x16xbf16>, vector<16x324xbf16>, vector<32x324xf32> -> vector<32x324xf32>
    %294 = arith.addf %289, %293 : vector<32x324xf32>
    %295 = vector.extract_strided_slice %294 {offsets = [0, 0], sizes = [32, 305], strides = [1, 1]} : vector<32x324xf32> to vector<32x305xf32>
    %296 = vector.extract_strided_slice %294 {offsets = [0, 1], sizes = [32, 305], strides = [1, 1]} : vector<32x324xf32> to vector<32x305xf32>
    %297 = arith.maximumf %295, %296 : vector<32x305xf32>
    %298 = vector.extract_strided_slice %294 {offsets = [0, 18], sizes = [32, 305], strides = [1, 1]} : vector<32x324xf32> to vector<32x305xf32>
    %299 = vector.extract_strided_slice %294 {offsets = [0, 19], sizes = [32, 305], strides = [1, 1]} : vector<32x324xf32> to vector<32x305xf32>
    %300 = arith.maximumf %298, %299 : vector<32x305xf32>
    %301 = arith.maximumf %297, %300 : vector<32x305xf32>
    %c1_247 = arith.constant 1 : index
    %c0_248 = arith.constant 0 : index
    %c0_249 = arith.constant 0 : index
    %302 = vector.load %arg6[%c1_247, %c0_248, %c0_249] : memref<2x32x1xf32, #tpu.memory_space<vmem>>, vector<1x32x1xf32>
    %303 = vector.shape_cast %302 : vector<1x32x1xf32> to vector<32x1xf32>
    %304 = vector.broadcast %303 : vector<32x1xf32> to vector<32x305xf32>
    %305 = arith.addf %301, %304 : vector<32x305xf32>
    %306 = arith.addf %249, %305 : vector<32x305xf32>
    %c0_250 = arith.constant 0 : index
    %c0_251 = arith.constant 0 : index
    %307 = vector.load %arg7[%c0_250, %c0_251] : memref<305x64xf32, #tpu.memory_space<vmem>>, vector<305x64xf32>
    %cst_252 = arith.constant dense<0.000000e+00> : vector<32x64xf32>
    %308 = tpu.matmul %306, %307, %cst_252 {dimension_numbers = #tpu.dot_dimension_numbers<[1], [0], [0], [1], [0, 0, 1, 1], [], []>} : vector<32x305xf32>, vector<305x64xf32>, vector<32x64xf32> -> vector<32x64xf32>
    %309 = arith.truncf %308 : vector<32x64xf32> to vector<32x64xbf16>
    %c0_253 = arith.constant 0 : index
    %c0_254 = arith.constant 0 : index
    %c0_255 = arith.constant 0 : index
    %310 = vector.load %arg8[%c0_253, %c0_254, %c0_255] : memref<1x32x64xbf16, #tpu.memory_space<vmem>>, vector<1x32x64xbf16>
    %311 = vector.shape_cast %310 : vector<1x32x64xbf16> to vector<32x64xbf16>
    %312 = vector.shape_cast %309 : vector<32x64xbf16> to vector<1x32x64xbf16>
    tpu.vector_store %arg8[%c0_253, %c0_254, %c0_255], %312 {strides = array<i32>} : memref<1x32x64xbf16, #tpu.memory_space<vmem>>, vector<1x32x64xbf16>,
    return
  }
  func.func @transform_0(%arg0: i32) -> (i32, i32, i32, i32) {
    %c0_i32 = arith.constant 0 : i32
    %c0_i32_0 = arith.constant 0 : i32
    %c0_i32_1 = arith.constant 0 : i32
    %c0_i32_2 = arith.constant 0 : i32
    return %arg0, %c0_i32, %c0_i32_0, %c0_i32_1 : i32, i32, i32, i32
  }
  func.func @transform_1(%arg0: i32) -> (i32, i32) {
    %c0_i32 = arith.constant 0 : i32
    %c0_i32_0 = arith.constant 0 : i32
    %c0_i32_1 = arith.constant 0 : i32
    return %c0_i32, %c0_i32_0 : i32, i32
  }
  func.func @transform_2(%arg0: i32) -> (i32, i32, i32) {
    %c0_i32 = arith.constant 0 : i32
    %c0_i32_0 = arith.constant 0 : i32
    %c0_i32_1 = arith.constant 0 : i32
    %c0_i32_2 = arith.constant 0 : i32
    return %c0_i32, %c0_i32_0, %c0_i32_1 : i32, i32, i32
  }
  func.func @transform_3(%arg0: i32) -> (i32, i32) {
    %c0_i32 = arith.constant 0 : i32
    %c0_i32_0 = arith.constant 0 : i32
    %c0_i32_1 = arith.constant 0 : i32
    return %c0_i32, %c0_i32_0 : i32, i32
  }
  func.func @transform_4(%arg0: i32) -> (i32, i32, i32, i32) {
    %c0_i32 = arith.constant 0 : i32
    %c0_i32_0 = arith.constant 0 : i32
    %c0_i32_1 = arith.constant 0 : i32
    %c0_i32_2 = arith.constant 0 : i32
    %c0_i32_3 = arith.constant 0 : i32
    return %c0_i32, %c0_i32_0, %c0_i32_1, %c0_i32_2 : i32, i32, i32, i32
  }
  func.func @transform_5(%arg0: i32) -> (i32, i32, i32) {
    %c0_i32 = arith.constant 0 : i32
    %c0_i32_0 = arith.constant 0 : i32
    %c0_i32_1 = arith.constant 0 : i32
    %c0_i32_2 = arith.constant 0 : i32
    return %c0_i32, %c0_i32_0, %c0_i32_1 : i32, i32, i32
  }
  func.func @transform_6(%arg0: i32) -> (i32, i32) {
    %c0_i32 = arith.constant 0 : i32
    %c0_i32_0 = arith.constant 0 : i32
    %c0_i32_1 = arith.constant 0 : i32
    return %c0_i32, %c0_i32_0 : i32, i32
  }
  func.func @transform_7(%arg0: i32) -> (i32, i32, i32) {
    %c0_i32 = arith.constant 0 : i32
    %c0_i32_0 = arith.constant 0 : i32
    %c0_i32_1 = arith.constant 0 : i32
    return %arg0, %c0_i32, %c0_i32_0 : i32, i32, i32
  }
}

module attributes {stable_mosaic.version = 11 : i64} {
  func.func @_head_kernel(%arg0: i32, %arg1: memref<2x2048xbf16, #tpu.memory_space<vmem>>, %arg2: memref<2048x64xbf16, #tpu.memory_space<vmem>>, %arg3: memref<1x64xf32, #tpu.memory_space<vmem>>, %arg4: memref<64x10xf32, #tpu.memory_space<vmem>>, %arg5: memref<1x10xf32, #tpu.memory_space<vmem>>, %arg6: memref<2x10xf32, #tpu.memory_space<vmem>>) attributes {dimension_semantics = [#tpu.dimension_semantics<arbitrary>], iteration_bounds = array<i64: 1>, scalar_prefetch = 0 : i64, scratch_operands = 0 : i64, tpu.core_type = #tpu.core_type<tc>, window_params = [{pipeline_mode = #tpu.pipeline_mode<synchronous>, transform_indices = @transform_0, window_bounds = array<i64: 2, 2048>}, {pipeline_mode = #tpu.pipeline_mode<synchronous>, transform_indices = @transform_1, window_bounds = array<i64: 2048, 64>}, {pipeline_mode = #tpu.pipeline_mode<synchronous>, transform_indices = @transform_2, window_bounds = array<i64: 1, 64>}, {pipeline_mode = #tpu.pipeline_mode<synchronous>, transform_indices = @transform_3, window_bounds = array<i64: 64, 10>}, {pipeline_mode = #tpu.pipeline_mode<synchronous>, transform_indices = @transform_4, window_bounds = array<i64: 1, 10>}, {pipeline_mode = #tpu.pipeline_mode<synchronous>, transform_indices = @transform_5, window_bounds = array<i64: 2, 10>}]} {
    %c0 = arith.constant 0 : index
    %c0_0 = arith.constant 0 : index
    %0 = vector.load %arg1[%c0, %c0_0] : memref<2x2048xbf16, #tpu.memory_space<vmem>>, vector<2x2048xbf16>
    %c0_1 = arith.constant 0 : index
    %c0_2 = arith.constant 0 : index
    %1 = vector.load %arg2[%c0_1, %c0_2] : memref<2048x64xbf16, #tpu.memory_space<vmem>>, vector<2048x64xbf16>
    %cst = arith.constant dense<0.000000e+00> : vector<2x64xf32>
    %2 = tpu.matmul %0, %1, %cst {dimension_numbers = #tpu.dot_dimension_numbers<[1], [0], [0], [1], [0, 0, 1, 1], [], []>} : vector<2x2048xbf16>, vector<2048x64xbf16>, vector<2x64xf32> -> vector<2x64xf32>
    %c0_3 = arith.constant 0 : index
    %c0_4 = arith.constant 0 : index
    %3 = vector.load %arg3[%c0_3, %c0_4] : memref<1x64xf32, #tpu.memory_space<vmem>>, vector<1x64xf32>
    %4 = vector.broadcast %3 : vector<1x64xf32> to vector<2x64xf32>
    %5 = arith.addf %2, %4 : vector<2x64xf32>
    %c0_5 = arith.constant 0 : index
    %c0_6 = arith.constant 0 : index
    %6 = vector.load %arg4[%c0_5, %c0_6] : memref<64x10xf32, #tpu.memory_space<vmem>>, vector<64x10xf32>
    %cst_7 = arith.constant dense<0.000000e+00> : vector<2x10xf32>
    %7 = tpu.matmul %5, %6, %cst_7 {dimension_numbers = #tpu.dot_dimension_numbers<[1], [0], [0], [1], [0, 0, 1, 1], [], []>} : vector<2x64xf32>, vector<64x10xf32>, vector<2x10xf32> -> vector<2x10xf32>
    %c0_8 = arith.constant 0 : index
    %c0_9 = arith.constant 0 : index
    %8 = vector.load %arg5[%c0_8, %c0_9] : memref<1x10xf32, #tpu.memory_space<vmem>>, vector<1x10xf32>
    %9 = vector.broadcast %8 : vector<1x10xf32> to vector<2x10xf32>
    %10 = arith.addf %7, %9 : vector<2x10xf32>
    %c0_10 = arith.constant 0 : index
    %c0_11 = arith.constant 0 : index
    %11 = vector.load %arg6[%c0_10, %c0_11] : memref<2x10xf32, #tpu.memory_space<vmem>>, vector<2x10xf32>
    tpu.vector_store %arg6[%c0_10, %c0_11], %10 {strides = array<i32>} : memref<2x10xf32, #tpu.memory_space<vmem>>, vector<2x10xf32>,
    return
  }
  func.func @transform_0(%arg0: i32) -> (i32, i32) {
    %c0_i32 = arith.constant 0 : i32
    %c0_i32_0 = arith.constant 0 : i32
    %c0_i32_1 = arith.constant 0 : i32
    return %c0_i32, %c0_i32_0 : i32, i32
  }
  func.func @transform_1(%arg0: i32) -> (i32, i32) {
    %c0_i32 = arith.constant 0 : i32
    %c0_i32_0 = arith.constant 0 : i32
    %c0_i32_1 = arith.constant 0 : i32
    return %c0_i32, %c0_i32_0 : i32, i32
  }
  func.func @transform_2(%arg0: i32) -> (i32, i32) {
    %c0_i32 = arith.constant 0 : i32
    %c0_i32_0 = arith.constant 0 : i32
    %c0_i32_1 = arith.constant 0 : i32
    return %c0_i32, %c0_i32_0 : i32, i32
  }
  func.func @transform_3(%arg0: i32) -> (i32, i32) {
    %c0_i32 = arith.constant 0 : i32
    %c0_i32_0 = arith.constant 0 : i32
    %c0_i32_1 = arith.constant 0 : i32
    return %c0_i32, %c0_i32_0 : i32, i32
  }
  func.func @transform_4(%arg0: i32) -> (i32, i32) {
    %c0_i32 = arith.constant 0 : i32
    %c0_i32_0 = arith.constant 0 : i32
    %c0_i32_1 = arith.constant 0 : i32
    return %c0_i32, %c0_i32_0 : i32, i32
  }
  func.func @transform_5(%arg0: i32) -> (i32, i32) {
    %c0_i32 = arith.constant 0 : i32
    %c0_i32_0 = arith.constant 0 : i32
    %c0_i32_1 = arith.constant 0 : i32
    return %c0_i32, %c0_i32_0 : i32, i32
  }
}

</mosaic_0001>

<llo_original>
// kernel: parallel_net.3
$region0: #{parallel_net.3}
  #allocation0 [shape = 'u32[]', space=smem, size = 0x4, offset = 0x4, fixed_abs, tag = 'smem constant byte address 0x4 - core index']
  #allocation1 [shape = 'u32[144,128]{1,0:T(1,128)}', space=vmem, size = 0x12000, scoped, tag = 'internal scratch']
  %s0 = inlined_call_operand.vmem [shape: bf16[2,2048], index: 0, kind: input, shape index: {}]
  %s1 = inlined_call_operand.vmem [shape: bf16[2048,64], index: 1, kind: input, shape index: {}]
  %s2 = inlined_call_operand.vmem [shape: f32[1,64], index: 2, kind: input, shape index: {}]
  %s3 = inlined_call_operand.vmem [shape: f32[64,10], index: 3, kind: input, shape index: {}]
  %s4 = inlined_call_operand.vmem [shape: f32[1,10], index: 4, kind: input, shape index: {}]
  %s5 = inlined_call_operand.hbm [shape: f32[2,10], index: 5, kind: output, shape index: {}]
  %s6 = sld [smem:[#allocation0]]
  $region30: #{parallel_net.3} parent=0
    _
  %s8 = ssub.s32 1, %s6
  %s9 = scalar_select 0, %s8, %s6
  $region1: #{parallel_net.3} parent=0
    #allocation2 [shape = 'u8[1024]{0}', space=vmem, size = 0x400, scoped, tag = 'output window, operand 0, single buffered']
    #allocation3 [shape = 's32[1]{0}', space=sflag, size = 0x4, scoped, tag = 'scoped memory for parallel_net.3']
    %10 = vsyncpa [#allocation3], 0
    // Predicated region
    $region2: #{parallel_net.3} parent=1 // pred_check
      _
    $region3: #{parallel_net.3} parent=1 // pred_check_branch
      %12 = sbr.rel (0) target = $region5
    $region4: #{parallel_net.3} parent=1 // pred_region
      _
    $region5: #{parallel_net.3} parent=1 // pred_fallthru
      _
    // Predicated region
    $region6: #{parallel_net.3} parent=1 // pred_check
      _
    $region7: #{parallel_net.3} parent=1 // pred_check_branch
      %14 = sbr.rel (0) target = $region9
    $region8: #{parallel_net.3} parent=1 // pred_region
      _
    $region9: #{parallel_net.3} parent=1 // pred_fallthru
      _
    // Predicated region
    $region10: #{parallel_net.3} parent=1 // pred_check
      _
    $region11: #{parallel_net.3} parent=1 // pred_check_branch
      %16 = sbr.rel (0) target = $region13
    $region12: #{parallel_net.3} parent=1 // pred_region
      _
    $region13: #{parallel_net.3} parent=1 // pred_fallthru
      _
    // Predicated region
    $region14: #{parallel_net.3} parent=1 // pred_check
      _
    $region15: #{parallel_net.3} parent=1 // pred_check_branch
      %18 = sbr.rel (0) target = $region17
    $region16: #{parallel_net.3} parent=1 // pred_region
      _
    $region17: #{parallel_net.3} parent=1 // pred_fallthru
      _
    // Predicated region
    $region18: #{parallel_net.3} parent=1 // pred_check
      _
    $region19: #{parallel_net.3} parent=1 // pred_check_branch
      %20 = sbr.rel (0) target = $region21
    $region20: #{parallel_net.3} parent=1 // pred_region
      _
    $region21: #{parallel_net.3} parent=1 // pred_fallthru
      _
    %v22 = vld [vmem:[%s0] sm:$0xff]
    %v23 = vld [vmem:[%s0 + $0x8] sm:$0xff]
    %v24 = vld [vmem:[%s1] sm:$0xf]
    %v25 = vld [vmem:[%s1 + $0x4] sm:$0xf]
    %v26 = vld [vmem:[%s1 + $0x8] sm:$0xf]
    %v27 = vld [vmem:[%s1 + $0xc] sm:$0xf]
    %v28 = vld [vmem:[%s1 + $0x10] sm:$0xf]
    %v29 = vld [vmem:[%s1 + $0x14] sm:$0xf]
    %v30 = vld [vmem:[%s1 + $0x18] sm:$0xf]
    %v31 = vld [vmem:[%s1 + $0x1c] sm:$0xf]
    %v32 = vld [vmem:[%s1 + $0x20] sm:$0xf]
    %v33 = vld [vmem:[%s1 + $0x24] sm:$0xf]
    %v34 = vld [vmem:[%s1 + $0x28] sm:$0xf]
    %v35 = vld [vmem:[%s1 + $0x2c] sm:$0xf]
    %v36 = vld [vmem:[%s1 + $0x30] sm:$0xf]
    %v37 = vld [vmem:[%s1 + $0x34] sm:$0xf]
    %v38 = vld [vmem:[%s1 + $0x38] sm:$0xf]
    %v39 = vld [vmem:[%s1 + $0x3c] sm:$0xf]
    %v40 = vld [vmem:[%s1 + $0x40] sm:$0xf]
    %v41 = vld [vmem:[%s1 + $0x44] sm:$0xf]
    %v42 = vld [vmem:[%s1 + $0x48] sm:$0xf]
    %v43 = vld [vmem:[%s1 + $0x4c] sm:$0xf]
    %v44 = vld [vmem:[%s1 + $0x50] sm:$0xf]
    %v45 = vld [vmem:[%s1 + $0x54] sm:$0xf]
    %v46 = vld [vmem:[%s1 + $0x58] sm:$0xf]
    %v47 = vld [vmem:[%s1 + $0x5c] sm:$0xf]
    %v48 = vld [vmem:[%s1 + $0x60] sm:$0xf]
    %v49 = vld [vmem:[%s1 + $0x64] sm:$0xf]
    %v50 = vld [vmem:[%s1 + $0x68] sm:$0xf]
    %v51 = vld [vmem:[%s1 + $0x6c] sm:$0xf]
    %v52 = vld [vmem:[%s1 + $0x70] sm:$0xf]
    %v53 = vld [vmem:[%s1 + $0x74] sm:$0xf]
    %v54 = vld [vmem:[%s1 + $0x78] sm:$0xf]
    %v55 = vld [vmem:[%s1 + $0x7c] sm:$0xf]
    %v56 = vld [vmem:[%s1 + $0x80] sm:$0xf]
    %v57 = vld [vmem:[%s1 + $0x84] sm:$0xf]
    %v58 = vld [vmem:[%s1 + $0x88] sm:$0xf]
    %v59 = vld [vmem:[%s1 + $0x8c] sm:$0xf]
    %v60 = vld [vmem:[%s1 + $0x90] sm:$0xf]
    %v61 = vld [vmem:[%s1 + $0x94] sm:$0xf]
    %v62 = vld [vmem:[%s1 + $0x98] sm:$0xf]
    %v63 = vld [vmem:[%s1 + $0x9c] sm:$0xf]
    %v64 = vld [vmem:[%s1 + $0xa0] sm:$0xf]
    %v65 = vld [vmem:[%s1 + $0xa4] sm:$0xf]
    %v66 = vld [vmem:[%s1 + $0xa8] sm:$0xf]
    %v67 = vld [vmem:[%s1 + $0xac] sm:$0xf]
    %v68 = vld [vmem:[%s1 + $0xb0] sm:$0xf]
    %v69 = vld [vmem:[%s1 + $0xb4] sm:$0xf]
    %v70 = vld [vmem:[%s1 + $0xb8] sm:$0xf]
    %v71 = vld [vmem:[%s1 + $0xbc] sm:$0xf]
    %v72 = vld [vmem:[%s1 + $0xc0] sm:$0xf]
    %v73 = vld [vmem:[%s1 + $0xc4] sm:$0xf]
    %v74 = vld [vmem:[%s1 + $0xc8] sm:$0xf]
    %v75 = vld [vmem:[%s1 + $0xcc] sm:$0xf]
    %v76 = vld [vmem:[%s1 + $0xd0] sm:$0xf]
    %v77 = vld [vmem:[%s1 + $0xd4] sm:$0xf]
    %v78 = vld [vmem:[%s1 + $0xd8] sm:$0xf]
    %v79 = vld [vmem:[%s1 + $0xdc] sm:$0xf]
    %v80 = vld [vmem:[%s1 + $0xe0] sm:$0xf]
    %v81 = vld [vmem:[%s1 + $0xe4] sm:$0xf]
    %v82 = vld [vmem:[%s1 + $0xe8] sm:$0xf]
    %v83 = vld [vmem:[%s1 + $0xec] sm:$0xf]
    %v84 = vld [vmem:[%s1 + $0xf0] sm:$0xf]
    %v85 = vld [vmem:[%s1 + $0xf4] sm:$0xf]
    %v86 = vld [vmem:[%s1 + $0xf8] sm:$0xf]
    %v87 = vld [vmem:[%s1 + $0xfc] sm:$0xf]
    %v88 = vld [vmem:[%s1 + $0x100] sm:$0xf]
    %v89 = vld [vmem:[%s1 + $0x104] sm:$0xf]
    %v90 = vld [vmem:[%s1 + $0x108] sm:$0xf]
    %v91 = vld [vmem:[%s1 + $0x10c] sm:$0xf]
    %v92 = vld [vmem:[%s1 + $0x110] sm:$0xf]
    %v93 = vld [vmem:[%s1 + $0x114] sm:$0xf]
    %v94 = vld [vmem:[%s1 + $0x118] sm:$0xf]
    %v95 = vld [vmem:[%s1 + $0x11c] sm:$0xf]
    %v96 = vld [vmem:[%s1 + $0x120] sm:$0xf]
    %v97 = vld [vmem:[%s1 + $0x124] sm:$0xf]
    %v98 = vld [vmem:[%s1 + $0x128] sm:$0xf]
    %v99 = vld [vmem:[%s1 + $0x12c] sm:$0xf]
    %v100 = vld [vmem:[%s1 + $0x130] sm:$0xf]
    %v101 = vld [vmem:[%s1 + $0x134] sm:$0xf]
    %v102 = vld [vmem:[%s1 + $0x138] sm:$0xf]
    %v103 = vld [vmem:[%s1 + $0x13c] sm:$0xf]
    %v104 = vld [vmem:[%s1 + $0x140] sm:$0xf]
    %v105 = vld [vmem:[%s1 + $0x144] sm:$0xf]
    %v106 = vld [vmem:[%s1 + $0x148] sm:$0xf]
    %v107 = vld [vmem:[%s1 + $0x14c] sm:$0xf]
    %v108 = vld [vmem:[%s1 + $0x150] sm:$0xf]
    %v109 = vld [vmem:[%s1 + $0x154] sm:$0xf]
    %v110 = vld [vmem:[%s1 + $0x158] sm:$0xf]
    %v111 = vld [vmem:[%s1 + $0x15c] sm:$0xf]
    %v112 = vld [vmem:[%s1 + $0x160] sm:$0xf]
    %v113 = vld [vmem:[%s1 + $0x164] sm:$0xf]
    %v114 = vld [vmem:[%s1 + $0x168] sm:$0xf]
    %v115 = vld [vmem:[%s1 + $0x16c] sm:$0xf]
    %v116 = vld [vmem:[%s1 + $0x170] sm:$0xf]
    %v117 = vld [vmem:[%s1 + $0x174] sm:$0xf]
    %v118 = vld [vmem:[%s1 + $0x178] sm:$0xf]
    %v119 = vld [vmem:[%s1 + $0x17c] sm:$0xf]
    %v120 = vld [vmem:[%s1 + $0x180] sm:$0xf]
    %v121 = vld [vmem:[%s1 + $0x184] sm:$0xf]
    %v122 = vld [vmem:[%s1 + $0x188] sm:$0xf]
    %v123 = vld [vmem:[%s1 + $0x18c] sm:$0xf]
    %v124 = vld [vmem:[%s1 + $0x190] sm:$0xf]
    %v125 = vld [vmem:[%s1 + $0x194] sm:$0xf]
    %v126 = vld [vmem:[%s1 + $0x198] sm:$0xf]
    %v127 = vld [vmem:[%s1 + $0x19c] sm:$0xf]
    %v128 = vld [vmem:[%s1 + $0x1a0] sm:$0xf]
    %v129 = vld [vmem:[%s1 + $0x1a4] sm:$0xf]
    %v130 = vld [vmem:[%s1 + $0x1a8] sm:$0xf]
    %v131 = vld [vmem:[%s1 + $0x1ac] sm:$0xf]
    %v132 = vld [vmem:[%s1 + $0x1b0] sm:$0xf]
    %v133 = vld [vmem:[%s1 + $0x1b4] sm:$0xf]
    %v134 = vld [vmem:[%s1 + $0x1b8] sm:$0xf]
    %v135 = vld [vmem:[%s1 + $0x1bc] sm:$0xf]
    %v136 = vld [vmem:[%s1 + $0x1c0] sm:$0xf]
    %v137 = vld [vmem:[%s1 + $0x1c4] sm:$0xf]
    %v138 = vld [vmem:[%s1 + $0x1c8] sm:$0xf]
    %v139 = vld [vmem:[%s1 + $0x1cc] sm:$0xf]
    %v140 = vld [vmem:[%s1 + $0x1d0] sm:$0xf]
    %v141 = vld [vmem:[%s1 + $0x1d4] sm:$0xf]
    %v142 = vld [vmem:[%s1 + $0x1d8] sm:$0xf]
    %v143 = vld [vmem:[%s1 + $0x1dc] sm:$0xf]
    %v144 = vld [vmem:[%s1 + $0x1e0] sm:$0xf]
    %v145 = vld [vmem:[%s1 + $0x1e4] sm:$0xf]
    %v146 = vld [vmem:[%s1 + $0x1e8] sm:$0xf]
    %v147 = vld [vmem:[%s1 + $0x1ec] sm:$0xf]
    %v148 = vld [vmem:[%s1 + $0x1f0] sm:$0xf]
    %v149 = vld [vmem:[%s1 + $0x1f4] sm:$0xf]
    %v150 = vld [vmem:[%s1 + $0x1f8] sm:$0xf]
    %v151 = vld [vmem:[%s1 + $0x1fc] sm:$0xf]
    %v152 = vld [vmem:[%s1 + $0x200] sm:$0xf]
    %v153 = vld [vmem:[%s1 + $0x204] sm:$0xf]
    %v154 = vld [vmem:[%s1 + $0x208] sm:$0xf]
    %v155 = vld [vmem:[%s1 + $0x20c] sm:$0xf]
    %v156 = vld [vmem:[%s1 + $0x210] sm:$0xf]
    %v157 = vld [vmem:[%s1 + $0x214] sm:$0xf]
    %v158 = vld [vmem:[%s1 + $0x218] sm:$0xf]
    %v159 = vld [vmem:[%s1 + $0x21c] sm:$0xf]
    %v160 = vld [vmem:[%s1 + $0x220] sm:$0xf]
    %v161 = vld [vmem:[%s1 + $0x224] sm:$0xf]
    %v162 = vld [vmem:[%s1 + $0x228] sm:$0xf]
    %v163 = vld [vmem:[%s1 + $0x22c] sm:$0xf]
    %v164 = vld [vmem:[%s1 + $0x230] sm:$0xf]
    %v165 = vld [vmem:[%s1 + $0x234] sm:$0xf]
    %v166 = vld [vmem:[%s1 + $0x238] sm:$0xf]
    %v167 = vld [vmem:[%s1 + $0x23c] sm:$0xf]
    %v168 = vld [vmem:[%s1 + $0x240] sm:$0xf]
    %v169 = vld [vmem:[%s1 + $0x244] sm:$0xf]
    %v170 = vld [vmem:[%s1 + $0x248] sm:$0xf]
    %v171 = vld [vmem:[%s1 + $0x24c] sm:$0xf]
    %v172 = vld [vmem:[%s1 + $0x250] sm:$0xf]
    %v173 = vld [vmem:[%s1 + $0x254] sm:$0xf]
    %v174 = vld [vmem:[%s1 + $0x258] sm:$0xf]
    %v175 = vld [vmem:[%s1 + $0x25c] sm:$0xf]
    %v176 = vld [vmem:[%s1 + $0x260] sm:$0xf]
    %v177 = vld [vmem:[%s1 + $0x264] sm:$0xf]
    %v178 = vld [vmem:[%s1 + $0x268] sm:$0xf]
    %v179 = vld [vmem:[%s1 + $0x26c] sm:$0xf]
    %v180 = vld [vmem:[%s1 + $0x270] sm:$0xf]
    %v181 = vld [vmem:[%s1 + $0x274] sm:$0xf]
    %v182 = vld [vmem:[%s1 + $0x278] sm:$0xf]
    %v183 = vld [vmem:[%s1 + $0x27c] sm:$0xf]
    %v184 = vld [vmem:[%s1 + $0x280] sm:$0xf]
    %v185 = vld [vmem:[%s1 + $0x284] sm:$0xf]
    %v186 = vld [vmem:[%s1 + $0x288] sm:$0xf]
    %v187 = vld [vmem:[%s1 + $0x28c] sm:$0xf]
    %v188 = vld [vmem:[%s1 + $0x290] sm:$0xf]
    %v189 = vld [vmem:[%s1 + $0x294] sm:$0xf]
    %v190 = vld [vmem:[%s1 + $0x298] sm:$0xf]
    %v191 = vld [vmem:[%s1 + $0x29c] sm:$0xf]
    %v192 = vld [vmem:[%s1 + $0x2a0] sm:$0xf]
    %v193 = vld [vmem:[%s1 + $0x2a4] sm:$0xf]
    %v194 = vld [vmem:[%s1 + $0x2a8] sm:$0xf]
    %v195 = vld [vmem:[%s1 + $0x2ac] sm:$0xf]
    %v196 = vld [vmem:[%s1 + $0x2b0] sm:$0xf]
    %v197 = vld [vmem:[%s1 + $0x2b4] sm:$0xf]
    %v198 = vld [vmem:[%s1 + $0x2b8] sm:$0xf]
    %v199 = vld [vmem:[%s1 + $0x2bc] sm:$0xf]
    %v200 = vld [vmem:[%s1 + $0x2c0] sm:$0xf]
    %v201 = vld [vmem:[%s1 + $0x2c4] sm:$0xf]
    %v202 = vld [vmem:[%s1 + $0x2c8] sm:$0xf]
    %v203 = vld [vmem:[%s1 + $0x2cc] sm:$0xf]
    %v204 = vld [vmem:[%s1 + $0x2d0] sm:$0xf]
    %v205 = vld [vmem:[%s1 + $0x2d4] sm:$0xf]
    %v206 = vld [vmem:[%s1 + $0x2d8] sm:$0xf]
    %v207 = vld [vmem:[%s1 + $0x2dc] sm:$0xf]
    %v208 = vld [vmem:[%s1 + $0x2e0] sm:$0xf]
    %v209 = vld [vmem:[%s1 + $0x2e4] sm:$0xf]
    %v210 = vld [vmem:[%s1 + $0x2e8] sm:$0xf]
    %v211 = vld [vmem:[%s1 + $0x2ec] sm:$0xf]
    %v212 = vld [vmem:[%s1 + $0x2f0] sm:$0xf]
    %v213 = vld [vmem:[%s1 + $0x2f4] sm:$0xf]
    %v214 = vld [vmem:[%s1 + $0x2f8] sm:$0xf]
    %v215 = vld [vmem:[%s1 + $0x2fc] sm:$0xf]
    %v216 = vld [vmem:[%s1 + $0x300] sm:$0xf]
    %v217 = vld [vmem:[%s1 + $0x304] sm:$0xf]
    %v218 = vld [vmem:[%s1 + $0x308] sm:$0xf]
    %v219 = vld [vmem:[%s1 + $0x30c] sm:$0xf]
    %v220 = vld [vmem:[%s1 + $0x310] sm:$0xf]
    %v221 = vld [vmem:[%s1 + $0x314] sm:$0xf]
    %v222 = vld [vmem:[%s1 + $0x318] sm:$0xf]
    %v223 = vld [vmem:[%s1 + $0x31c] sm:$0xf]
    %v224 = vld [vmem:[%s1 + $0x320] sm:$0xf]
    %v225 = vld [vmem:[%s1 + $0x324] sm:$0xf]
    %v226 = vld [vmem:[%s1 + $0x328] sm:$0xf]
    %v227 = vld [vmem:[%s1 + $0x32c] sm:$0xf]
    %v228 = vld [vmem:[%s1 + $0x330] sm:$0xf]
    %v229 = vld [vmem:[%s1 + $0x334] sm:$0xf]
    %v230 = vld [vmem:[%s1 + $0x338] sm:$0xf]
    %v231 = vld [vmem:[%s1 + $0x33c] sm:$0xf]
    %v232 = vld [vmem:[%s1 + $0x340] sm:$0xf]
    %v233 = vld [vmem:[%s1 + $0x344] sm:$0xf]
    %v234 = vld [vmem:[%s1 + $0x348] sm:$0xf]
    %v235 = vld [vmem:[%s1 + $0x34c] sm:$0xf]
    %v236 = vld [vmem:[%s1 + $0x350] sm:$0xf]
    %v237 = vld [vmem:[%s1 + $0x354] sm:$0xf]
    %v238 = vld [vmem:[%s1 + $0x358] sm:$0xf]
    %v239 = vld [vmem:[%s1 + $0x35c] sm:$0xf]
    %v240 = vld [vmem:[%s1 + $0x360] sm:$0xf]
    %v241 = vld [vmem:[%s1 + $0x364] sm:$0xf]
    %v242 = vld [vmem:[%s1 + $0x368] sm:$0xf]
    %v243 = vld [vmem:[%s1 + $0x36c] sm:$0xf]
    %v244 = vld [vmem:[%s1 + $0x370] sm:$0xf]
    %v245 = vld [vmem:[%s1 + $0x374] sm:$0xf]
    %v246 = vld [vmem:[%s1 + $0x378] sm:$0xf]
    %v247 = vld [vmem:[%s1 + $0x37c] sm:$0xf]
    %v248 = vld [vmem:[%s1 + $0x380] sm:$0xf]
    %v249 = vld [vmem:[%s1 + $0x384] sm:$0xf]
    %v250 = vld [vmem:[%s1 + $0x388] sm:$0xf]
    %v251 = vld [vmem:[%s1 + $0x38c] sm:$0xf]
    %v252 = vld [vmem:[%s1 + $0x390] sm:$0xf]
    %v253 = vld [vmem:[%s1 + $0x394] sm:$0xf]
    %v254 = vld [vmem:[%s1 + $0x398] sm:$0xf]
    %v255 = vld [vmem:[%s1 + $0x39c] sm:$0xf]
    %v256 = vld [vmem:[%s1 + $0x3a0] sm:$0xf]
    %v257 = vld [vmem:[%s1 + $0x3a4] sm:$0xf]
    %v258 = vld [vmem:[%s1 + $0x3a8] sm:$0xf]
    %v259 = vld [vmem:[%s1 + $0x3ac] sm:$0xf]
    %v260 = vld [vmem:[%s1 + $0x3b0] sm:$0xf]
    %v261 = vld [vmem:[%s1 + $0x3b4] sm:$0xf]
    %v262 = vld [vmem:[%s1 + $0x3b8] sm:$0xf]
    %v263 = vld [vmem:[%s1 + $0x3bc] sm:$0xf]
    %v264 = vld [vmem:[%s1 + $0x3c0] sm:$0xf]
    %v265 = vld [vmem:[%s1 + $0x3c4] sm:$0xf]
    %v266 = vld [vmem:[%s1 + $0x3c8] sm:$0xf]
    %v267 = vld [vmem:[%s1 + $0x3cc] sm:$0xf]
    %v268 = vld [vmem:[%s1 + $0x3d0] sm:$0xf]
    %v269 = vld [vmem:[%s1 + $0x3d4] sm:$0xf]
    %v270 = vld [vmem:[%s1 + $0x3d8] sm:$0xf]
    %v271 = vld [vmem:[%s1 + $0x3dc] sm:$0xf]
    %v272 = vld [vmem:[%s1 + $0x3e0] sm:$0xf]
    %v273 = vld [vmem:[%s1 + $0x3e4] sm:$0xf]
    %v274 = vld [vmem:[%s1 + $0x3e8] sm:$0xf]
    %v275 = vld [vmem:[%s1 + $0x3ec] sm:$0xf]
    %v276 = vld [vmem:[%s1 + $0x3f0] sm:$0xf]
    %v277 = vld [vmem:[%s1 + $0x3f4] sm:$0xf]
    %v278 = vld [vmem:[%s1 + $0x3f8] sm:$0xf]
    %v279 = vld [vmem:[%s1 + $0x3fc] sm:$0xf]
    %v280 = vld [vmem:[%s2] sm:$0x1]
    %v282 = vlaneseq
    %v283 = vshrl.u32 %v282, 7
    %v284 = vsub.s32 0, %v283
    %v285 = vrot.slane %v280, %v284
    %v289 = vcombine.high %v22, %v22
    %v291 = vunpack.c.l.s4 1966171168
    %v292 = vunpack.c.0.s8 %v291
    %v293 = vlaneseq
    %v294 = vshrl.u32 %v293, 7
    %v295 = vsub.s32 %v292, %v294
    %v296 = vrot.slane %v22, %v295
    %v298 = vunpack.c.l.s4 1966171168
    %v299 = vunpack.c.0.s8 %v298
    %v300 = vlaneseq
    %v301 = vshrl.u32 %v300, 7
    %v302 = vsub.s32 %v299, %v301
    %v303 = vrot.slane %v289, %v302
    %v304 = vcombine.high %v296, %v296
    %v305 = vcombine.high %v303, %v303
    %v307 = vunpack.c.l.s4 1966171168
    %v308 = vunpack.c.0.s8 %v307
    %v309 = vlaneseq
    %v310 = vshrl.u32 %v309, 7
    %v311 = vsub.s32 %v308, %v310
    %v312 = vrot.slane %v296, %v311
    %v314 = vunpack.c.l.s4 1966171168
    %v315 = vunpack.c.0.s8 %v314
    %v316 = vlaneseq
    %v317 = vshrl.u32 %v316, 7
    %v318 = vsub.s32 %v315, %v317
    %v319 = vrot.slane %v303, %v318
    %v321 = vunpack.c.l.s4 1966171168
    %v322 = vunpack.c.0.s8 %v321
    %v323 = vlaneseq
    %v324 = vshrl.u32 %v323, 7
    %v325 = vsub.s32 %v322, %v324
    %v326 = vrot.slane %v304, %v325
    %v328 = vunpack.c.l.s4 1966171168
    %v329 = vunpack.c.0.s8 %v328
    %v330 = vlaneseq
    %v331 = vshrl.u32 %v330, 7
    %v332 = vsub.s32 %v329, %v331
    %v333 = vrot.slane %v305, %v332
    %v334 = vcombine.high %v312, %v312
    %v335 = vcombine.high %v319, %v319
    %v336 = vcombine.high %v326, %v326
    %v337 = vcombine.high %v333, %v333
    %v338 = vcombine.high %v23, %v23
    %v340 = vunpack.c.l.s4 1966171168
    %v341 = vunpack.c.0.s8 %v340
    %v342 = vlaneseq
    %v343 = vshrl.u32 %v342, 7
    %v344 = vsub.s32 %v341, %v343
    %v345 = vrot.slane %v23, %v344
    %v347 = vunpack.c.l.s4 1966171168
    %v348 = vunpack.c.0.s8 %v347
    %v349 = vlaneseq
    %v350 = vshrl.u32 %v349, 7
    %v351 = vsub.s32 %v348, %v350
    %v352 = vrot.slane %v338, %v351
    %v353 = vcombine.high %v345, %v345
    %v354 = vcombine.high %v352, %v352
    %v356 = vunpack.c.l.s4 1966171168
    %v357 = vunpack.c.0.s8 %v356
    %v358 = vlaneseq
    %v359 = vshrl.u32 %v358, 7
    %v360 = vsub.s32 %v357, %v359
    %v361 = vrot.slane %v345, %v360
    %v363 = vunpack.c.l.s4 1966171168
    %v364 = vunpack.c.0.s8 %v363
    %v365 = vlaneseq
    %v366 = vshrl.u32 %v365, 7
    %v367 = vsub.s32 %v364, %v366
    %v368 = vrot.slane %v352, %v367
    %v370 = vunpack.c.l.s4 1966171168
    %v371 = vunpack.c.0.s8 %v370
    %v372 = vlaneseq
    %v373 = vshrl.u32 %v372, 7
    %v374 = vsub.s32 %v371, %v373
    %v375 = vrot.slane %v353, %v374
    %v377 = vunpack.c.l.s4 1966171168
    %v378 = vunpack.c.0.s8 %v377
    %v379 = vlaneseq
    %v380 = vshrl.u32 %v379, 7
    %v381 = vsub.s32 %v378, %v380
    %v382 = vrot.slane %v354, %v381
    %v383 = vcombine.high %v361, %v361
    %v384 = vcombine.high %v368, %v368
    %v385 = vcombine.high %v375, %v375
    %v386 = vcombine.high %v382, %v382
    %v659 = vunpack.c.l.b16 %v24
    %v660 = vunpack.c.l.b16 %v25
    %v661 = vunpack.c.l.b16 %v26
    %v662 = vunpack.c.l.b16 %v27
    %v663 = vunpack.c.l.b16 %v28
    %v664 = vunpack.c.l.b16 %v29
    %v665 = vunpack.c.l.b16 %v30
    %v666 = vunpack.c.l.b16 %v31
    %v667 = vunpack.c.l.b16 %v32
    %v668 = vunpack.c.l.b16 %v33
    %v669 = vunpack.c.l.b16 %v34
    %v670 = vunpack.c.l.b16 %v35
    %v671 = vunpack.c.l.b16 %v36
    %v672 = vunpack.c.l.b16 %v37
    %v673 = vunpack.c.l.b16 %v38
    %v674 = vunpack.c.l.b16 %v39
    %v675 = vunpack.c.l.b16 %v40
    %v676 = vunpack.c.l.b16 %v41
    %v677 = vunpack.c.l.b16 %v42
    %v678 = vunpack.c.l.b16 %v43
    %v679 = vunpack.c.l.b16 %v44
    %v680 = vunpack.c.l.b16 %v45
    %v681 = vunpack.c.l.b16 %v46
    %v682 = vunpack.c.l.b16 %v47
    %v683 = vunpack.c.l.b16 %v48
    %v684 = vunpack.c.l.b16 %v49
    %v685 = vunpack.c.l.b16 %v50
    %v686 = vunpack.c.l.b16 %v51
    %v687 = vunpack.c.l.b16 %v52
    %v688 = vunpack.c.l.b16 %v53
    %v689 = vunpack.c.l.b16 %v54
    %v690 = vunpack.c.l.b16 %v55
    %v691 = vunpack.c.l.b16 %v56
    %v692 = vunpack.c.l.b16 %v57
    %v693 = vunpack.c.l.b16 %v58
    %v694 = vunpack.c.l.b16 %v59
    %v695 = vunpack.c.l.b16 %v60
    %v696 = vunpack.c.l.b16 %v61
    %v697 = vunpack.c.l.b16 %v62
    %v698 = vunpack.c.l.b16 %v63
    %v699 = vunpack.c.l.b16 %v64
    %v700 = vunpack.c.l.b16 %v65
    %v701 = vunpack.c.l.b16 %v66
    %v702 = vunpack.c.l.b16 %v67
    %v703 = vunpack.c.l.b16 %v68
    %v704 = vunpack.c.l.b16 %v69
    %v705 = vunpack.c.l.b16 %v70
    %v706 = vunpack.c.l.b16 %v71
    %v707 = vunpack.c.l.b16 %v72
    %v708 = vunpack.c.l.b16 %v73
    %v709 = vunpack.c.l.b16 %v74
    %v710 = vunpack.c.l.b16 %v75
    %v711 = vunpack.c.l.b16 %v76
    %v712 = vunpack.c.l.b16 %v77
    %v713 = vunpack.c.l.b16 %v78
    %v714 = vunpack.c.l.b16 %v79
    %v715 = vunpack.c.l.b16 %v80
    %v716 = vunpack.c.l.b16 %v81
    %v717 = vunpack.c.l.b16 %v82
    %v718 = vunpack.c.l.b16 %v83
    %v719 = vunpack.c.l.b16 %v84
    %v720 = vunpack.c.l.b16 %v85
    %v721 = vunpack.c.l.b16 %v86
    %v722 = vunpack.c.l.b16 %v87
    %v723 = vunpack.c.l.b16 %v88
    %v724 = vunpack.c.l.b16 %v89
    %v725 = vunpack.c.l.b16 %v90
    %v726 = vunpack.c.l.b16 %v91
    %v727 = vunpack.c.l.b16 %v92
    %v728 = vunpack.c.l.b16 %v93
    %v729 = vunpack.c.l.b16 %v94
    %v730 = vunpack.c.l.b16 %v95
    %v731 = vunpack.c.l.b16 %v96
    %v732 = vunpack.c.l.b16 %v97
    %v733 = vunpack.c.l.b16 %v98
    %v734 = vunpack.c.l.b16 %v99
    %v735 = vunpack.c.l.b16 %v100
    %v736 = vunpack.c.l.b16 %v101
    %v737 = vunpack.c.l.b16 %v102
    %v738 = vunpack.c.l.b16 %v103
    %v739 = vunpack.c.l.b16 %v104
    %v740 = vunpack.c.l.b16 %v105
    %v741 = vunpack.c.l.b16 %v106
    %v742 = vunpack.c.l.b16 %v107
    %v743 = vunpack.c.l.b16 %v108
    %v744 = vunpack.c.l.b16 %v109
    %v745 = vunpack.c.l.b16 %v110
    %v746 = vunpack.c.l.b16 %v111
    %v747 = vunpack.c.l.b16 %v112
    %v748 = vunpack.c.l.b16 %v113
    %v749 = vunpack.c.l.b16 %v114
    %v750 = vunpack.c.l.b16 %v115
    %v751 = vunpack.c.l.b16 %v116
    %v752 = vunpack.c.l.b16 %v117
    %v753 = vunpack.c.l.b16 %v118
    %v754 = vunpack.c.l.b16 %v119
    %v755 = vunpack.c.l.b16 %v120
    %v756 = vunpack.c.l.b16 %v121
    %v757 = vunpack.c.l.b16 %v122
    %v758 = vunpack.c.l.b16 %v123
    %v759 = vunpack.c.l.b16 %v124
    %v760 = vunpack.c.l.b16 %v125
    %v761 = vunpack.c.l.b16 %v126
    %v762 = vunpack.c.l.b16 %v127
    %v763 = vunpack.c.l.b16 %v128
    %v764 = vunpack.c.l.b16 %v129
    %v765 = vunpack.c.l.b16 %v130
    %v766 = vunpack.c.l.b16 %v131
    %v767 = vunpack.c.l.b16 %v132
    %v768 = vunpack.c.l.b16 %v133
    %v769 = vunpack.c.l.b16 %v134
    %v770 = vunpack.c.l.b16 %v135
    %v771 = vunpack.c.l.b16 %v136
    %v772 = vunpack.c.l.b16 %v137
    %v773 = vunpack.c.l.b16 %v138
    %v774 = vunpack.c.l.b16 %v139
    %v775 = vunpack.c.l.b16 %v140
    %v776 = vunpack.c.l.b16 %v141
    %v777 = vunpack.c.l.b16 %v142
    %v778 = vunpack.c.l.b16 %v143
    %v779 = vunpack.c.l.b16 %v144
    %v780 = vunpack.c.l.b16 %v145
    %v781 = vunpack.c.l.b16 %v146
    %v782 = vunpack.c.l.b16 %v147
    %v783 = vunpack.c.l.b16 %v148
    %v784 = vunpack.c.l.b16 %v149
    %v785 = vunpack.c.l.b16 %v150
    %v786 = vunpack.c.l.b16 %v151
    %v787 = vunpack.c.l.b16 %v152
    %v788 = vunpack.c.l.b16 %v153
    %v789 = vunpack.c.l.b16 %v154
    %v790 = vunpack.c.l.b16 %v155
    %v791 = vunpack.c.l.b16 %v156
    %v792 = vunpack.c.l.b16 %v157
    %v793 = vunpack.c.l.b16 %v158
    %v794 = vunpack.c.l.b16 %v159
    %v795 = vunpack.c.l.b16 %v160
    %v796 = vunpack.c.l.b16 %v161
    %v797 = vunpack.c.l.b16 %v162
    %v798 = vunpack.c.l.b16 %v163
    %v799 = vunpack.c.l.b16 %v164
    %v800 = vunpack.c.l.b16 %v165
    %v801 = vunpack.c.l.b16 %v166
    %v802 = vunpack.c.l.b16 %v167
    %v803 = vunpack.c.l.b16 %v168
    %v804 = vunpack.c.l.b16 %v169
    %v805 = vunpack.c.l.b16 %v170
    %v806 = vunpack.c.l.b16 %v171
    %v807 = vunpack.c.l.b16 %v172
    %v808 = vunpack.c.l.b16 %v173
    %v809 = vunpack.c.l.b16 %v174
    %v810 = vunpack.c.l.b16 %v175
    %v811 = vunpack.c.l.b16 %v176
    %v812 = vunpack.c.l.b16 %v177
    %v813 = vunpack.c.l.b16 %v178
    %v814 = vunpack.c.l.b16 %v179
    %v815 = vunpack.c.l.b16 %v180
    %v816 = vunpack.c.l.b16 %v181
    %v817 = vunpack.c.l.b16 %v182
    %v818 = vunpack.c.l.b16 %v183
    %v819 = vunpack.c.l.b16 %v184
    %v820 = vunpack.c.l.b16 %v185
    %v821 = vunpack.c.l.b16 %v186
    %v822 = vunpack.c.l.b16 %v187
    %v823 = vunpack.c.l.b16 %v188
    %v824 = vunpack.c.l.b16 %v189
    %v825 = vunpack.c.l.b16 %v190
    %v826 = vunpack.c.l.b16 %v191
    %v827 = vunpack.c.l.b16 %v192
    %v828 = vunpack.c.l.b16 %v193
    %v829 = vunpack.c.l.b16 %v194
    %v830 = vunpack.c.l.b16 %v195
    %v831 = vunpack.c.l.b16 %v196
    %v832 = vunpack.c.l.b16 %v197
    %v833 = vunpack.c.l.b16 %v198
    %v834 = vunpack.c.l.b16 %v199
    %v835 = vunpack.c.l.b16 %v200
    %v836 = vunpack.c.l.b16 %v201
    %v837 = vunpack.c.l.b16 %v202
    %v838 = vunpack.c.l.b16 %v203
    %v839 = vunpack.c.l.b16 %v204
    %v840 = vunpack.c.l.b16 %v205
    %v841 = vunpack.c.l.b16 %v206
    %v842 = vunpack.c.l.b16 %v207
    %v843 = vunpack.c.l.b16 %v208
    %v844 = vunpack.c.l.b16 %v209
    %v845 = vunpack.c.l.b16 %v210
    %v846 = vunpack.c.l.b16 %v211
    %v847 = vunpack.c.l.b16 %v212
    %v848 = vunpack.c.l.b16 %v213
    %v849 = vunpack.c.l.b16 %v214
    %v850 = vunpack.c.l.b16 %v215
    %v851 = vunpack.c.l.b16 %v216
    %v852 = vunpack.c.l.b16 %v217
    %v853 = vunpack.c.l.b16 %v218
    %v854 = vunpack.c.l.b16 %v219
    %v855 = vunpack.c.l.b16 %v220
    %v856 = vunpack.c.l.b16 %v221
    %v857 = vunpack.c.l.b16 %v222
    %v858 = vunpack.c.l.b16 %v223
    %v859 = vunpack.c.l.b16 %v224
    %v860 = vunpack.c.l.b16 %v225
    %v861 = vunpack.c.l.b16 %v226
    %v862 = vunpack.c.l.b16 %v227
    %v863 = vunpack.c.l.b16 %v228
    %v864 = vunpack.c.l.b16 %v229
    %v865 = vunpack.c.l.b16 %v230
    %v866 = vunpack.c.l.b16 %v231
    %v867 = vunpack.c.l.b16 %v232
    %v868 = vunpack.c.l.b16 %v233
    %v869 = vunpack.c.l.b16 %v234
    %v870 = vunpack.c.l.b16 %v235
    %v871 = vunpack.c.l.b16 %v236
    %v872 = vunpack.c.l.b16 %v237
    %v873 = vunpack.c.l.b16 %v238
    %v874 = vunpack.c.l.b16 %v239
    %v875 = vunpack.c.l.b16 %v240
    %v876 = vunpack.c.l.b16 %v241
    %v877 = vunpack.c.l.b16 %v242
    %v878 = vunpack.c.l.b16 %v243
    %v879 = vunpack.c.l.b16 %v244
    %v880 = vunpack.c.l.b16 %v245
    %v881 = vunpack.c.l.b16 %v246
    %v882 = vunpack.c.l.b16 %v247
    %v883 = vunpack.c.l.b16 %v248
    %v884 = vunpack.c.l.b16 %v249
    %v885 = vunpack.c.l.b16 %v250
    %v886 = vunpack.c.l.b16 %v251
    %v887 = vunpack.c.l.b16 %v252
    %v888 = vunpack.c.l.b16 %v253
    %v889 = vunpack.c.l.b16 %v254
    %v890 = vunpack.c.l.b16 %v255
    %v891 = vunpack.c.l.b16 %v256
    %v892 = vunpack.c.l.b16 %v257
    %v893 = vunpack.c.l.b16 %v258
    %v894 = vunpack.c.l.b16 %v259
    %v895 = vunpack.c.l.b16 %v260
    %v896 = vunpack.c.l.b16 %v261
    %v897 = vunpack.c.l.b16 %v262
    %v898 = vunpack.c.l.b16 %v263
    %v899 = vunpack.c.l.b16 %v264
    %v900 = vunpack.c.l.b16 %v265
    %v901 = vunpack.c.l.b16 %v266
    %v902 = vunpack.c.l.b16 %v267
    %v903 = vunpack.c.l.b16 %v268
    %v904 = vunpack.c.l.b16 %v269
    %v905 = vunpack.c.l.b16 %v270
    %v906 = vunpack.c.l.b16 %v271
    %v907 = vunpack.c.l.b16 %v272
    %v908 = vunpack.c.l.b16 %v273
    %v909 = vunpack.c.l.b16 %v274
    %v910 = vunpack.c.l.b16 %v275
    %v911 = vunpack.c.l.b16 %v276
    %v912 = vunpack.c.l.b16 %v277
    %v913 = vunpack.c.l.b16 %v278
    %v914 = vunpack.c.l.b16 %v279
    %v915 = vpack.c.b16 %v660, %v659
    %v916 = vpack.c.b16 %v662, %v661
    %v917 = vpack.c.b16 %v664, %v663
    %v918 = vpack.c.b16 %v666, %v665
    %v919 = vpack.c.b16 %v668, %v667
    %v920 = vpack.c.b16 %v670, %v669
    %v921 = vpack.c.b16 %v672, %v671
    %v922 = vpack.c.b16 %v674, %v673
    %v923 = vpack.c.b16 %v676, %v675
    %v924 = vpack.c.b16 %v678, %v677
    %v925 = vpack.c.b16 %v680, %v679
    %v926 = vpack.c.b16 %v682, %v681
    %v927 = vpack.c.b16 %v684, %v683
    %v928 = vpack.c.b16 %v686, %v685
    %v929 = vpack.c.b16 %v688, %v687
    %v930 = vpack.c.b16 %v690, %v689
    %v931 = vpack.c.b16 %v692, %v691
    %v932 = vpack.c.b16 %v694, %v693
    %v933 = vpack.c.b16 %v696, %v695
    %v934 = vpack.c.b16 %v698, %v697
    %v935 = vpack.c.b16 %v700, %v699
    %v936 = vpack.c.b16 %v702, %v701
    %v937 = vpack.c.b16 %v704, %v703
    %v938 = vpack.c.b16 %v706, %v705
    %v939 = vpack.c.b16 %v708, %v707
    %v940 = vpack.c.b16 %v710, %v709
    %v941 = vpack.c.b16 %v712, %v711
    %v942 = vpack.c.b16 %v714, %v713
    %v943 = vpack.c.b16 %v716, %v715
    %v944 = vpack.c.b16 %v718, %v717
    %v945 = vpack.c.b16 %v720, %v719
    %v946 = vpack.c.b16 %v722, %v721
    %v947 = vpack.c.b16 %v724, %v723
    %v948 = vpack.c.b16 %v726, %v725
    %v949 = vpack.c.b16 %v728, %v727
    %v950 = vpack.c.b16 %v730, %v729
    %v951 = vpack.c.b16 %v732, %v731
    %v952 = vpack.c.b16 %v734, %v733
    %v953 = vpack.c.b16 %v736, %v735
    %v954 = vpack.c.b16 %v738, %v737
    %v955 = vpack.c.b16 %v740, %v739
    %v956 = vpack.c.b16 %v742, %v741
    %v957 = vpack.c.b16 %v744, %v743
    %v958 = vpack.c.b16 %v746, %v745
    %v959 = vpack.c.b16 %v748, %v747
    %v960 = vpack.c.b16 %v750, %v749
    %v961 = vpack.c.b16 %v752, %v751
    %v962 = vpack.c.b16 %v754, %v753
    %v963 = vpack.c.b16 %v756, %v755
    %v964 = vpack.c.b16 %v758, %v757
    %v965 = vpack.c.b16 %v760, %v759
    %v966 = vpack.c.b16 %v762, %v761
    %v967 = vpack.c.b16 %v764, %v763
    %v968 = vpack.c.b16 %v766, %v765
    %v969 = vpack.c.b16 %v768, %v767
    %v970 = vpack.c.b16 %v770, %v769
    %v971 = vpack.c.b16 %v772, %v771
    %v972 = vpack.c.b16 %v774, %v773
    %v973 = vpack.c.b16 %v776, %v775
    %v974 = vpack.c.b16 %v778, %v777
    %v975 = vpack.c.b16 %v780, %v779
    %v976 = vpack.c.b16 %v782, %v781
    %v977 = vpack.c.b16 %v784, %v783
    %v978 = vpack.c.b16 %v786, %v785
    %v979 = vpack.c.b16 %v788, %v787
    %v980 = vpack.c.b16 %v790, %v789
    %v981 = vpack.c.b16 %v792, %v791
    %v982 = vpack.c.b16 %v794, %v793
    %v983 = vpack.c.b16 %v796, %v795
    %v984 = vpack.c.b16 %v798, %v797
    %v985 = vpack.c.b16 %v800, %v799
    %v986 = vpack.c.b16 %v802, %v801
    %v987 = vpack.c.b16 %v804, %v803
    %v988 = vpack.c.b16 %v806, %v805
    %v989 = vpack.c.b16 %v808, %v807
    %v990 = vpack.c.b16 %v810, %v809
    %v991 = vpack.c.b16 %v812, %v811
    %v992 = vpack.c.b16 %v814, %v813
    %v993 = vpack.c.b16 %v816, %v815
    %v994 = vpack.c.b16 %v818, %v817
    %v995 = vpack.c.b16 %v820, %v819
    %v996 = vpack.c.b16 %v822, %v821
    %v997 = vpack.c.b16 %v824, %v823
    %v998 = vpack.c.b16 %v826, %v825
    %v999 = vpack.c.b16 %v828, %v827
    %v1000 = vpack.c.b16 %v830, %v829
    %v1001 = vpack.c.b16 %v832, %v831
    %v1002 = vpack.c.b16 %v834, %v833
    %v1003 = vpack.c.b16 %v836, %v835
    %v1004 = vpack.c.b16 %v838, %v837
    %v1005 = vpack.c.b16 %v840, %v839
    %v1006 = vpack.c.b16 %v842, %v841
    %v1007 = vpack.c.b16 %v844, %v843
    %v1008 = vpack.c.b16 %v846, %v845
    %v1009 = vpack.c.b16 %v848, %v847
    %v1010 = vpack.c.b16 %v850, %v849
    %v1011 = vpack.c.b16 %v852, %v851
    %v1012 = vpack.c.b16 %v854, %v853
    %v1013 = vpack.c.b16 %v856, %v855
    %v1014 = vpack.c.b16 %v858, %v857
    %v1015 = vpack.c.b16 %v860, %v859
    %v1016 = vpack.c.b16 %v862, %v861
    %v1017 = vpack.c.b16 %v864, %v863
    %v1018 = vpack.c.b16 %v866, %v865
    %v1019 = vpack.c.b16 %v868, %v867
    %v1020 = vpack.c.b16 %v870, %v869
    %v1021 = vpack.c.b16 %v872, %v871
    %v1022 = vpack.c.b16 %v874, %v873
    %v1023 = vpack.c.b16 %v876, %v875
    %v1024 = vpack.c.b16 %v878, %v877
    %v1025 = vpack.c.b16 %v880, %v879
    %v1026 = vpack.c.b16 %v882, %v881
    %v1027 = vpack.c.b16 %v884, %v883
    %v1028 = vpack.c.b16 %v886, %v885
    %v1029 = vpack.c.b16 %v888, %v887
    %v1030 = vpack.c.b16 %v890, %v889
    %v1031 = vpack.c.b16 %v892, %v891
    %v1032 = vpack.c.b16 %v894, %v893
    %v1033 = vpack.c.b16 %v896, %v895
    %v1034 = vpack.c.b16 %v898, %v897
    %v1035 = vpack.c.b16 %v900, %v899
    %v1036 = vpack.c.b16 %v902, %v901
    %v1037 = vpack.c.b16 %v904, %v903
    %v1038 = vpack.c.b16 %v906, %v905
    %v1039 = vpack.c.b16 %v908, %v907
    %v1040 = vpack.c.b16 %v910, %v909
    %v1041 = vpack.c.b16 %v912, %v911
    %v1042 = vpack.c.b16 %v914, %v913
    %1171 = vmatprep.subr.bf16.mxu0 0
    %1172 = vmatpush1.bf16.msra.mxu0 %v915
    %1173 = vmatprep.subr.bf16.mxu0 0
    %1174 = vmatpush1.bf16.msra.mxu0 %v916
    %1175 = vmatprep.subr.bf16.mxu0 0
    %1176 = vmatpush1.bf16.msra.mxu0 %v917
    %1177 = vmatprep.subr.bf16.mxu0 0
    %1178 = vmatpush1.bf16.msra.mxu0 %v918
    %1179 = vmatprep.subr.bf16.mxu0 0
    %1180 = vmatpush1.bf16.msra.mxu0 %v919
    %1181 = vmatprep.subr.bf16.mxu0 0
    %1182 = vmatpush1.bf16.msra.mxu0 %v920
    %1183 = vmatprep.subr.bf16.mxu0 0
    %1184 = vmatpush1.bf16.msra.mxu0 %v921
    %1185 = vmatprep.subr.bf16.mxu0 0
    %1186 = vmatpush1.bf16.msra.mxu0 %v922
    %1187 = vmatprep.subr.bf16.mxu0 0
    %1188 = vmatpush1.bf16.msra.mxu0 %v923
    %1189 = vmatprep.subr.bf16.mxu0 0
    %1190 = vmatpush1.bf16.msra.mxu0 %v924
    %1191 = vmatprep.subr.bf16.mxu0 0
    %1192 = vmatpush1.bf16.msra.mxu0 %v925
    %1193 = vmatprep.subr.bf16.mxu0 0
    %1194 = vmatpush1.bf16.msra.mxu0 %v926
    %1195 = vmatprep.subr.bf16.mxu0 0
    %1196 = vmatpush1.bf16.msra.mxu0 %v927
    %1197 = vmatprep.subr.bf16.mxu0 0
    %1198 = vmatpush1.bf16.msra.mxu0 %v928
    %1199 = vmatprep.subr.bf16.mxu0 0
    %1200 = vmatpush1.bf16.msra.mxu0 %v929
    %1201 = vmatprep.subr.bf16.mxu0 0
    %1202 = vmatpush1.bf16.msra.mxu0 %v930
    %1203 = vmatprep.mubr.bf16.mxu0 %v326
    %1204 = vmatmul.mubr.bf16.gmra.mrb[0].mxu0 %v312
    %v1205 = vpop.f32.mrb[0].mxu0
    %v1206 = vadd.f32 %v285, %v1205
    %v1207 = vpop.f32.mrb[0].mxu0
    %v1208 = vpop.f32.mrb[0].mxu0
    %v1209 = vpop.f32.mrb[0].mxu0
    %1210 = vdwg.mxu0
    %1211 = vmatprep.subr.bf16.mxu0 0
    %1212 = vmatpush1.bf16.msra.mxu0 %v931
    %1213 = vmatprep.subr.bf16.mxu0 0
    %1214 = vmatpush1.bf16.msra.mxu0 %v932
    %1215 = vmatprep.subr.bf16.mxu0 0
    %1216 = vmatpush1.bf16.msra.mxu0 %v933
    %1217 = vmatprep.subr.bf16.mxu0 0
    %1218 = vmatpush1.bf16.msra.mxu0 %v934
    %1219 = vmatprep.subr.bf16.mxu0 0
    %1220 = vmatpush1.bf16.msra.mxu0 %v935
    %1221 = vmatprep.subr.bf16.mxu0 0
    %1222 = vmatpush1.bf16.msra.mxu0 %v936
    %1223 = vmatprep.subr.bf16.mxu0 0
    %1224 = vmatpush1.bf16.msra.mxu0 %v937
    %1225 = vmatprep.subr.bf16.mxu0 0
    %1226 = vmatpush1.bf16.msra.mxu0 %v938
    %1227 = vmatprep.subr.bf16.mxu0 0
    %1228 = vmatpush1.bf16.msra.mxu0 %v939
    %1229 = vmatprep.subr.bf16.mxu0 0
    %1230 = vmatpush1.bf16.msra.mxu0 %v940
    %1231 = vmatprep.subr.bf16.mxu0 0
    %1232 = vmatpush1.bf16.msra.mxu0 %v941
    %1233 = vmatprep.subr.bf16.mxu0 0
    %1234 = vmatpush1.bf16.msra.mxu0 %v942
    %1235 = vmatprep.subr.bf16.mxu0 0
    %1236 = vmatpush1.bf16.msra.mxu0 %v943
    %1237 = vmatprep.subr.bf16.mxu0 0
    %1238 = vmatpush1.bf16.msra.mxu0 %v944
    %1239 = vmatprep.subr.bf16.mxu0 0
    %1240 = vmatpush1.bf16.msra.mxu0 %v945
    %1241 = vmatprep.subr.bf16.mxu0 0
    %1242 = vmatpush1.bf16.msra.mxu0 %v946
    %1243 = vmatprep.mubr.bf16.mxu0 %v336
    %1244 = vmatmul.mubr.bf16.gmra.mrb[0].mxu0 %v334
    %v1245 = vpop.f32.mrb[0].mxu0
    %v1246 = vadd.f32 %v1206, %v1245
    %v1247 = vpop.f32.mrb[0].mxu0
    %v1248 = vpop.f32.mrb[0].mxu0
    %v1249 = vpop.f32.mrb[0].mxu0
    %1250 = vdwg.mxu0
    %1251 = vmatprep.subr.bf16.mxu0 0
    %1252 = vmatpush1.bf16.msra.mxu0 %v947
    %1253 = vmatprep.subr.bf16.mxu0 0
    %1254 = vmatpush1.bf16.msra.mxu0 %v948
    %1255 = vmatprep.subr.bf16.mxu0 0
    %1256 = vmatpush1.bf16.msra.mxu0 %v949
    %1257 = vmatprep.subr.bf16.mxu0 0
    %1258 = vmatpush1.bf16.msra.mxu0 %v950
    %1259 = vmatprep.subr.bf16.mxu0 0
    %1260 = vmatpush1.bf16.msra.mxu0 %v951
    %1261 = vmatprep.subr.bf16.mxu0 0
    %1262 = vmatpush1.bf16.msra.mxu0 %v952
    %1263 = vmatprep.subr.bf16.mxu0 0
    %1264 = vmatpush1.bf16.msra.mxu0 %v953
    %1265 = vmatprep.subr.bf16.mxu0 0
    %1266 = vmatpush1.bf16.msra.mxu0 %v954
    %1267 = vmatprep.subr.bf16.mxu0 0
    %1268 = vmatpush1.bf16.msra.mxu0 %v955
    %1269 = vmatprep.subr.bf16.mxu0 0
    %1270 = vmatpush1.bf16.msra.mxu0 %v956
    %1271 = vmatprep.subr.bf16.mxu0 0
    %1272 = vmatpush1.bf16.msra.mxu0 %v957
    %1273 = vmatprep.subr.bf16.mxu0 0
    %1274 = vmatpush1.bf16.msra.mxu0 %v958
    %1275 = vmatprep.subr.bf16.mxu0 0
    %1276 = vmatpush1.bf16.msra.mxu0 %v959
    %1277 = vmatprep.subr.bf16.mxu0 0
    %1278 = vmatpush1.bf16.msra.mxu0 %v960
    %1279 = vmatprep.subr.bf16.mxu0 0
    %1280 = vmatpush1.bf16.msra.mxu0 %v961
    %1281 = vmatprep.subr.bf16.mxu0 0
    %1282 = vmatpush1.bf16.msra.mxu0 %v962
    %1283 = vmatprep.mubr.bf16.mxu0 %v333
    %1284 = vmatmul.mubr.bf16.gmra.mrb[0].mxu0 %v319
    %v1285 = vpop.f32.mrb[0].mxu0
    %v1286 = vadd.f32 %v1246, %v1285
    %v1287 = vpop.f32.mrb[0].mxu0
    %v1288 = vpop.f32.mrb[0].mxu0
    %v1289 = vpop.f32.mrb[0].mxu0
    %1290 = vdwg.mxu0
    %1291 = vmatprep.subr.bf16.mxu0 0
    %1292 = vmatpush1.bf16.msra.mxu0 %v963
    %1293 = vmatprep.subr.bf16.mxu0 0
    %1294 = vmatpush1.bf16.msra.mxu0 %v964
    %1295 = vmatprep.subr.bf16.mxu0 0
    %1296 = vmatpush1.bf16.msra.mxu0 %v965
    %1297 = vmatprep.subr.bf16.mxu0 0
    %1298 = vmatpush1.bf16.msra.mxu0 %v966
    %1299 = vmatprep.subr.bf16.mxu0 0
    %1300 = vmatpush1.bf16.msra.mxu0 %v967
    %1301 = vmatprep.subr.bf16.mxu0 0
    %1302 = vmatpush1.bf16.msra.mxu0 %v968
    %1303 = vmatprep.subr.bf16.mxu0 0
    %1304 = vmatpush1.bf16.msra.mxu0 %v969
    %1305 = vmatprep.subr.bf16.mxu0 0
    %1306 = vmatpush1.bf16.msra.mxu0 %v970
    %1307 = vmatprep.subr.bf16.mxu0 0
    %1308 = vmatpush1.bf16.msra.mxu0 %v971
    %1309 = vmatprep.subr.bf16.mxu0 0
    %1310 = vmatpush1.bf16.msra.mxu0 %v972
    %1311 = vmatprep.subr.bf16.mxu0 0
    %1312 = vmatpush1.bf16.msra.mxu0 %v973
    %1313 = vmatprep.subr.bf16.mxu0 0
    %1314 = vmatpush1.bf16.msra.mxu0 %v974
    %1315 = vmatprep.subr.bf16.mxu0 0
    %1316 = vmatpush1.bf16.msra.mxu0 %v975
    %1317 = vmatprep.subr.bf16.mxu0 0
    %1318 = vmatpush1.bf16.msra.mxu0 %v976
    %1319 = vmatprep.subr.bf16.mxu0 0
    %1320 = vmatpush1.bf16.msra.mxu0 %v977
    %1321 = vmatprep.subr.bf16.mxu0 0
    %1322 = vmatpush1.bf16.msra.mxu0 %v978
    %1323 = vmatprep.mubr.bf16.mxu0 %v337
    %1324 = vmatmul.mubr.bf16.gmra.mrb[0].mxu0 %v335
    %v1325 = vpop.f32.mrb[0].mxu0
    %v1326 = vadd.f32 %v1286, %v1325
    %v1327 = vpop.f32.mrb[0].mxu0
    %v1328 = vpop.f32.mrb[0].mxu0
    %v1329 = vpop.f32.mrb[0].mxu0
    %1330 = vdwg.mxu0
    %1331 = vmatprep.subr.bf16.mxu0 0
    %1332 = vmatpush1.bf16.msra.mxu0 %v979
    %1333 = vmatprep.subr.bf16.mxu0 0
    %1334 = vmatpush1.bf16.msra.mxu0 %v980
    %1335 = vmatprep.subr.bf16.mxu0 0
    %1336 = vmatpush1.bf16.msra.mxu0 %v981
    %1337 = vmatprep.subr.bf16.mxu0 0
    %1338 = vmatpush1.bf16.msra.mxu0 %v982
    %1339 = vmatprep.subr.bf16.mxu0 0
    %1340 = vmatpush1.bf16.msra.mxu0 %v983
    %1341 = vmatprep.subr.bf16.mxu0 0
    %1342 = vmatpush1.bf16.msra.mxu0 %v984
    %1343 = vmatprep.subr.bf16.mxu0 0
    %1344 = vmatpush1.bf16.msra.mxu0 %v985
    %1345 = vmatprep.subr.bf16.mxu0 0
    %1346 = vmatpush1.bf16.msra.mxu0 %v986
    %1347 = vmatprep.subr.bf16.mxu0 0
    %1348 = vmatpush1.bf16.msra.mxu0 %v987
    %1349 = vmatprep.subr.bf16.mxu0 0
    %1350 = vmatpush1.bf16.msra.mxu0 %v988
    %1351 = vmatprep.subr.bf16.mxu0 0
    %1352 = vmatpush1.bf16.msra.mxu0 %v989
    %1353 = vmatprep.subr.bf16.mxu0 0
    %1354 = vmatpush1.bf16.msra.mxu0 %v990
    %1355 = vmatprep.subr.bf16.mxu0 0
    %1356 = vmatpush1.bf16.msra.mxu0 %v991
    %1357 = vmatprep.subr.bf16.mxu0 0
    %1358 = vmatpush1.bf16.msra.mxu0 %v992
    %1359 = vmatprep.subr.bf16.mxu0 0
    %1360 = vmatpush1.bf16.msra.mxu0 %v993
    %1361 = vmatprep.subr.bf16.mxu0 0
    %1362 = vmatpush1.bf16.msra.mxu0 %v994
    %1363 = vmatprep.mubr.bf16.mxu0 %v375
    %1364 = vmatmul.mubr.bf16.gmra.mrb[0].mxu0 %v361
    %v1365 = vpop.f32.mrb[0].mxu0
    %v1366 = vadd.f32 %v1326, %v1365
    %v1367 = vpop.f32.mrb[0].mxu0
    %v1368 = vpop.f32.mrb[0].mxu0
    %v1369 = vpop.f32.mrb[0].mxu0
    %1370 = vdwg.mxu0
    %1371 = vmatprep.subr.bf16.mxu0 0
    %1372 = vmatpush1.bf16.msra.mxu0 %v995
    %1373 = vmatprep.subr.bf16.mxu0 0
    %1374 = vmatpush1.bf16.msra.mxu0 %v996
    %1375 = vmatprep.subr.bf16.mxu0 0
    %1376 = vmatpush1.bf16.msra.mxu0 %v997
    %1377 = vmatprep.subr.bf16.mxu0 0
    %1378 = vmatpush1.bf16.msra.mxu0 %v998
    %1379 = vmatprep.subr.bf16.mxu0 0
    %1380 = vmatpush1.bf16.msra.mxu0 %v999
    %1381 = vmatprep.subr.bf16.mxu0 0
    %1382 = vmatpush1.bf16.msra.mxu0 %v1000
    %1383 = vmatprep.subr.bf16.mxu0 0
    %1384 = vmatpush1.bf16.msra.mxu0 %v1001
    %1385 = vmatprep.subr.bf16.mxu0 0
    %1386 = vmatpush1.bf16.msra.mxu0 %v1002
    %1387 = vmatprep.subr.bf16.mxu0 0
    %1388 = vmatpush1.bf16.msra.mxu0 %v1003
    %1389 = vmatprep.subr.bf16.mxu0 0
    %1390 = vmatpush1.bf16.msra.mxu0 %v1004
    %1391 = vmatprep.subr.bf16.mxu0 0
    %1392 = vmatpush1.bf16.msra.mxu0 %v1005
    %1393 = vmatprep.subr.bf16.mxu0 0
    %1394 = vmatpush1.bf16.msra.mxu0 %v1006
    %1395 = vmatprep.subr.bf16.mxu0 0
    %1396 = vmatpush1.bf16.msra.mxu0 %v1007
    %1397 = vmatprep.subr.bf16.mxu0 0
    %1398 = vmatpush1.bf16.msra.mxu0 %v1008
    %1399 = vmatprep.subr.bf16.mxu0 0
    %1400 = vmatpush1.bf16.msra.mxu0 %v1009
    %1401 = vmatprep.subr.bf16.mxu0 0
    %1402 = vmatpush1.bf16.msra.mxu0 %v1010
    %1403 = vmatprep.mubr.bf16.mxu0 %v385
    %1404 = vmatmul.mubr.bf16.gmra.mrb[0].mxu0 %v383
    %v1405 = vpop.f32.mrb[0].mxu0
    %v1406 = vadd.f32 %v1366, %v1405
    %v1407 = vpop.f32.mrb[0].mxu0
    %v1408 = vpop.f32.mrb[0].mxu0
    %v1409 = vpop.f32.mrb[0].mxu0
    %1410 = vdwg.mxu0
    %1411 = vmatprep.subr.bf16.mxu0 0
    %1412 = vmatpush1.bf16.msra.mxu0 %v1011
    %1413 = vmatprep.subr.bf16.mxu0 0
    %1414 = vmatpush1.bf16.msra.mxu0 %v1012
    %1415 = vmatprep.subr.bf16.mxu0 0
    %1416 = vmatpush1.bf16.msra.mxu0 %v1013
    %1417 = vmatprep.subr.bf16.mxu0 0
    %1418 = vmatpush1.bf16.msra.mxu0 %v1014
    %1419 = vmatprep.subr.bf16.mxu0 0
    %1420 = vmatpush1.bf16.msra.mxu0 %v1015
    %1421 = vmatprep.subr.bf16.mxu0 0
    %1422 = vmatpush1.bf16.msra.mxu0 %v1016
    %1423 = vmatprep.subr.bf16.mxu0 0
    %1424 = vmatpush1.bf16.msra.mxu0 %v1017
    %1425 = vmatprep.subr.bf16.mxu0 0
    %1426 = vmatpush1.bf16.msra.mxu0 %v1018
    %1427 = vmatprep.subr.bf16.mxu0 0
    %1428 = vmatpush1.bf16.msra.mxu0 %v1019
    %1429 = vmatprep.subr.bf16.mxu0 0
    %1430 = vmatpush1.bf16.msra.mxu0 %v1020
    %1431 = vmatprep.subr.bf16.mxu0 0
    %1432 = vmatpush1.bf16.msra.mxu0 %v1021
    %1433 = vmatprep.subr.bf16.mxu0 0
    %1434 = vmatpush1.bf16.msra.mxu0 %v1022
    %1435 = vmatprep.subr.bf16.mxu0 0
    %1436 = vmatpush1.bf16.msra.mxu0 %v1023
    %1437 = vmatprep.subr.bf16.mxu0 0
    %1438 = vmatpush1.bf16.msra.mxu0 %v1024
    %1439 = vmatprep.subr.bf16.mxu0 0
    %1440 = vmatpush1.bf16.msra.mxu0 %v1025
    %1441 = vmatprep.subr.bf16.mxu0 0
    %1442 = vmatpush1.bf16.msra.mxu0 %v1026
    %1443 = vmatprep.mubr.bf16.mxu0 %v382
    %1444 = vmatmul.mubr.bf16.gmra.mrb[0].mxu0 %v368
    %v1445 = vpop.f32.mrb[0].mxu0
    %v1446 = vadd.f32 %v1406, %v1445
    %v1447 = vpop.f32.mrb[0].mxu0
    %v1448 = vpop.f32.mrb[0].mxu0
    %v1449 = vpop.f32.mrb[0].mxu0
    %1450 = vdwg.mxu0
    %1451 = vmatprep.subr.bf16.mxu0 0
    %1452 = vmatpush1.bf16.msra.mxu0 %v1027
    %1453 = vmatprep.subr.bf16.mxu0 0
    %1454 = vmatpush1.bf16.msra.mxu0 %v1028
    %1455 = vmatprep.subr.bf16.mxu0 0
    %1456 = vmatpush1.bf16.msra.mxu0 %v1029
    %1457 = vmatprep.subr.bf16.mxu0 0
    %1458 = vmatpush1.bf16.msra.mxu0 %v1030
    %1459 = vmatprep.subr.bf16.mxu0 0
    %1460 = vmatpush1.bf16.msra.mxu0 %v1031
    %1461 = vmatprep.subr.bf16.mxu0 0
    %1462 = vmatpush1.bf16.msra.mxu0 %v1032
    %1463 = vmatprep.subr.bf16.mxu0 0
    %1464 = vmatpush1.bf16.msra.mxu0 %v1033
    %1465 = vmatprep.subr.bf16.mxu0 0
    %1466 = vmatpush1.bf16.msra.mxu0 %v1034
    %1467 = vmatprep.subr.bf16.mxu0 0
    %1468 = vmatpush1.bf16.msra.mxu0 %v1035
    %1469 = vmatprep.subr.bf16.mxu0 0
    %1470 = vmatpush1.bf16.msra.mxu0 %v1036
    %1471 = vmatprep.subr.bf16.mxu0 0
    %1472 = vmatpush1.bf16.msra.mxu0 %v1037
    %1473 = vmatprep.subr.bf16.mxu0 0
    %1474 = vmatpush1.bf16.msra.mxu0 %v1038
    %1475 = vmatprep.subr.bf16.mxu0 0
    %1476 = vmatpush1.bf16.msra.mxu0 %v1039
    %1477 = vmatprep.subr.bf16.mxu0 0
    %1478 = vmatpush1.bf16.msra.mxu0 %v1040
    %1479 = vmatprep.subr.bf16.mxu0 0
    %1480 = vmatpush1.bf16.msra.mxu0 %v1041
    %1481 = vmatprep.subr.bf16.mxu0 0
    %1482 = vmatpush1.bf16.msra.mxu0 %v1042
    %1483 = vmatprep.mubr.bf16.mxu0 %v386
    %1484 = vmatmul.mubr.bf16.gmra.mrb[0].mxu0 %v384
    %v1485 = vpop.f32.mrb[0].mxu0
    %v1486 = vadd.f32 %v1446, %v1485
    %v1487 = vpop.f32.mrb[0].mxu0
    %v1488 = vpop.f32.mrb[0].mxu0
    %v1489 = vpop.f32.mrb[0].mxu0
    %1490 = vdwg.mxu0
    %v1491 = vld [vmem:[%s3] sm:$0xff]
    %v1492 = vld [vmem:[%s3 + $0x8] sm:$0xff]
    %v1493 = vld [vmem:[%s3 + $0x10] sm:$0xff]
    %v1494 = vld [vmem:[%s3 + $0x18] sm:$0xff]
    %v1495 = vld [vmem:[%s3 + $0x20] sm:$0xff]
    %v1496 = vld [vmem:[%s3 + $0x28] sm:$0xff]
    %v1497 = vld [vmem:[%s3 + $0x30] sm:$0xff]
    %v1498 = vld [vmem:[%s3 + $0x38] sm:$0xff]
    %v1499 = vld [vmem:[%s4] sm:$0x1]
    %v1501 = vlaneseq
    %v1502 = vshrl.u32 %v1501, 7
    %v1503 = vsub.s32 0, %v1502
    %v1504 = vrot.slane %v1499, %v1503
    %vm1506 = vcmask 523264
    %v1508 = vsel %vm1506, %v1486, 0
    %1510 = vmatprep.subr.mxu0 0.0
    %1511 = vmatpush1.msra.mxu0 %v1491
    %1512 = vmatprep.subr.mxu0 0.0
    %1513 = vmatpush1.msra.mxu0 %v1492
    %1514 = vmatprep.subr.mxu0 0.0
    %1515 = vmatpush1.msra.mxu0 %v1493
    %1516 = vmatprep.subr.mxu0 0.0
    %1517 = vmatpush1.msra.mxu0 %v1494
    %1518 = vmatprep.subr.mxu0 0.0
    %1519 = vmatpush1.msra.mxu0 %v1495
    %1520 = vmatprep.subr.mxu0 0.0
    %1521 = vmatpush1.msra.mxu0 %v1496
    %1522 = vmatprep.subr.mxu0 0.0
    %1523 = vmatpush1.msra.mxu0 %v1497
    %1524 = vmatprep.subr.mxu0 0.0
    %1525 = vmatpush1.msra.mxu0 %v1498
    %1526 = vmatprep.subr.mxu0 0.0
    %1527 = vmatpush1.msra.mxu0 0.0
    %1528 = vmatprep.subr.mxu0 0.0
    %1529 = vmatpush1.msra.mxu0 0.0
    %1530 = vmatprep.subr.mxu0 0.0
    %1531 = vmatpush1.msra.mxu0 0.0
    %1532 = vmatprep.subr.mxu0 0.0
    %1533 = vmatpush1.msra.mxu0 0.0
    %1534 = vmatprep.subr.mxu0 0.0
    %1535 = vmatpush1.msra.mxu0 0.0
    %1536 = vmatprep.subr.mxu0 0.0
    %1537 = vmatpush1.msra.mxu0 0.0
    %1538 = vmatprep.subr.mxu0 0.0
    %1539 = vmatpush1.msra.mxu0 0.0
    %1540 = vmatprep.subr.mxu0 0.0
    %1541 = vmatpush1.msra.mxu0 0.0
    %1542 = vmatprep.subr.mxu0 0.0
    %1543 = vmatpush1.msra.mxu0 0.0
    %1544 = vmatprep.subr.mxu0 0.0
    %1545 = vmatpush1.msra.mxu0 0.0
    %1546 = vmatprep.subr.mxu0 0.0
    %1547 = vmatpush1.msra.mxu0 0.0
    %1548 = vmatprep.subr.mxu0 0.0
    %1549 = vmatpush1.msra.mxu0 0.0
    %1550 = vmatprep.subr.mxu0 0.0
    %1551 = vmatpush1.msra.mxu0 0.0
    %1552 = vmatprep.subr.mxu0 0.0
    %1553 = vmatpush1.msra.mxu0 0.0
    %1554 = vmatprep.subr.mxu0 0.0
    %1555 = vmatpush1.msra.mxu0 0.0
    %1556 = vmatprep.subr.mxu0 0.0
    %1557 = vmatpush1.msra.mxu0 0.0
    %1558 = vmatprep.subr.mxu0 0.0
    %1559 = vmatpush1.msra.mxu0 0.0
    %1560 = vmatprep.subr.mxu0 0.0
    %1561 = vmatpush1.msra.mxu0 0.0
    %1562 = vmatprep.subr.mxu0 0.0
    %1563 = vmatpush1.msra.mxu0 0.0
    %1564 = vmatprep.subr.mxu0 0.0
    %1565 = vmatpush1.msra.mxu0 0.0
    %1566 = vmatprep.subr.mxu0 0.0
    %1567 = vmatpush1.msra.mxu0 0.0
    %1568 = vmatprep.subr.mxu0 0.0
    %1569 = vmatpush1.msra.mxu0 0.0
    %1570 = vmatprep.subr.mxu0 0.0
    %1571 = vmatpush1.msra.mxu0 0.0
    %1572 = vmatprep.subr.mxu0 0.0
    %1573 = vmatpush1.msra.mxu0 0.0
    %1574 = vmatprep.mubr.f32.mxu0 0.0
    %1575 = vmatmul.mubr.f32.gmra.mrb[0].mxu0 %v1508
    %v1576 = vpop.f32.mrb[0].mxu0
    %v1577 = vadd.f32 %v1504, %v1576
    %v1578 = vpop.f32.mrb[0].mxu0
    %1579 = vdwg.mxu0
    %vm1580 = vcmask 74752
    %1581 = vst.msk [vmem:[#allocation2] sm:$0x3] %vm1580, %v1577
    // Predicated region
    $region22: #{parallel_net.3} parent=1 // pred_check
      _
    $region23: #{parallel_net.3} parent=1 // pred_check_branch
      %1583 = sbr.rel (0) target = $region25
    $region24: #{parallel_net.3} parent=1 // pred_region
      %s1585 = ssub.s32 32, 32
      %1586 = vsyncadd [#allocation3], %s1585
      %s1588 = sshll.u32 [#allocation2], 4
      %s1589 = int_to_ptr.vmem [resolvable:$true] %s1588
      %1591 = dma.vmem_to_hbm [thread:$0]  %s1589, 32, %s5, [#allocation3]
    $region25: #{parallel_net.3} parent=1 // pred_fallthru
      _
    // Predicated region
    $region26: #{parallel_net.3} parent=1 // pred_check
      _
    $region27: #{parallel_net.3} parent=1 // pred_check_branch
      %1593 = sbr.rel (0) target = $region29
    $region28: #{parallel_net.3} parent=1 // pred_region
      %1594 = dma.done [#allocation3], 32
    $region29: #{parallel_net.3} parent=1 // pred_fallthru
      _
    %1595 = vsyncpa [#allocation3], 1

// kernel: parallel_net.2
$region0: #{parallel_net.2}
  #allocation0 [shape = 'u32[]', space=smem, size = 0x4, offset = 0x4, fixed_abs, tag = 'smem constant byte address 0x4 - core index']
  #allocation1 [shape = 'u32[144,128]{1,0:T(1,128)}', space=vmem, size = 0x12000, scoped, tag = 'internal scratch']
  %s0 = inlined_call_operand.vmem [shape: bf16[2,4,8,384], index: 0, kind: input, shape index: {}]
  %s1 = inlined_call_operand.vmem [shape: f32[1,362], index: 1, kind: input, shape index: {}]
  %s2 = inlined_call_operand.vmem [shape: bf16[9,32,8], index: 2, kind: input, shape index: {}]
  %s3 = inlined_call_operand.vmem [shape: f32[32,1], index: 3, kind: input, shape index: {}]
  %s4 = inlined_call_operand.vmem [shape: bf16[2,9,32,16], index: 4, kind: input, shape index: {}]
  %s5 = inlined_call_operand.vmem [shape: f32[2,32,1], index: 5, kind: input, shape index: {}]
  %s6 = inlined_call_operand.vmem [shape: f32[305,64], index: 6, kind: input, shape index: {}]
  %s7 = inlined_call_operand.vmem [shape: bf16[2,32,64], index: 7, kind: output, shape index: {}]
  %s8 = sld [smem:[#allocation0]]
  $region61: #{parallel_net.2} parent=0
    _
  %s10 = ssub.s32 1, %s8
  %s11 = scalar_select 0, %s10, %s8
  loop: start=0, step=1, limit=4
  $region2: #{parallel_net.2} parent=0 // loop_pre_header
    _
  $region3: #{parallel_net.2} parent=0 // loop_header
    %s13 = sphi 0, %s17
    %p14 = scmp.ge.s32.totalorder %s13, 4
    %s23 = sphi 0, %s25
    %s26 = sphi 0, %s23
    %s27 = sphi 0, %s26
    %s43 = sphi 0, %s27
    %s47 = sphi 0, %s47
    %s49 = sphi 0, %s47
    %s50 = sphi 0, %s49
    %s64 = sphi 0, %s50
    %s68 = sphi 0, %s68
    %s70 = sphi 0, %s68
    %s71 = sphi 0, %s70
    %s85 = sphi 0, %s71
    %s89 = sphi 0, %s89
    %s91 = sphi 0, %s89
    %s92 = sphi 0, %s91
    %s106 = sphi 0, %s92
    %s110 = sphi 0, %s110
    %s112 = sphi 0, %s110
    %s113 = sphi 0, %s112
    %s127 = sphi 0, %s113
    %s131 = sphi 0, %s131
    %s133 = sphi 0, %s131
    %s134 = sphi 0, %s133
    %s148 = sphi 0, %s134
    %s152 = sphi 0, %s152
    %s154 = sphi 0, %s152
    %s155 = sphi 0, %s154
    %s169 = sphi 0, %s155
    %s175 = sphi 0, %s177
    %s178 = sphi 0, %s175
    %s179 = sphi 0, %s178
    %s195 = sphi 0, %s179
  $region4: #{parallel_net.2} parent=0 // loop_header_branch
    %16 = sbr.rel (%p14) target = $region8
  $region5: #{parallel_net.2} parent=0 // loop_body
    %s18 = ssub.s32 %s13, 1
    %s19 = ssub.s32 %s13, 2
    %s20 = sadd.s32 %s13, 1
    %s21 = ssub.s32 %s13, %s20
    %p22 = scmp.eq.s32.totalorder %s21, 0
    %s24 = sadd.s32 %s23, 1
    %s25 = scalar_select %p22, %s23, %s24
    %p28 = pneg %p22
    %p29 = scmp.eq.s32.totalorder %s13, 1
    %p30 = por %p28, %p29
    %p31 = scmp.ne.s32.totalorder %s23, %s26
    %p32 = scmp.eq.s32.totalorder %s13, 0
    %p33 = por %p31, %p32
    %p34 = scmp.ne.s32.totalorder %s23, %s26
    %p35 = scmp.eq.s32.totalorder %s18, 1
    %p36 = por %p34, %p35
    %p37 = scmp.ne.s32.totalorder %s26, %s27
    %p38 = scmp.eq.s32.totalorder %s18, 0
    %p39 = por %p37, %p38
    %p40 = scmp.ne.s32.totalorder %s26, %s27
    %p41 = scmp.eq.s32.totalorder %s19, 1
    %p42 = por %p40, %p41
    %p44 = scmp.ne.s32.totalorder %s27, %s43
    %p45 = scmp.eq.s32.totalorder %s19, 0
    %p46 = por %p44, %p45
    %s48 = sadd.s32 %s47, 1
    %p51 = scmp.eq.s32.totalorder %s13, 1
    %p52 = scmp.ne.s32.totalorder %s47, %s49
    %p53 = scmp.eq.s32.totalorder %s13, 0
    %p54 = por %p52, %p53
    %p55 = scmp.ne.s32.totalorder %s47, %s49
    %p56 = scmp.eq.s32.totalorder %s18, 1
    %p57 = por %p55, %p56
    %p58 = scmp.ne.s32.totalorder %s49, %s50
    %p59 = scmp.eq.s32.totalorder %s18, 0
    %p60 = por %p58, %p59
    %p61 = scmp.ne.s32.totalorder %s49, %s50
    %p62 = scmp.eq.s32.totalorder %s19, 1
    %p63 = por %p61, %p62
    %p65 = scmp.ne.s32.totalorder %s50, %s64
    %p66 = scmp.eq.s32.totalorder %s19, 0
    %p67 = por %p65, %p66
    %s69 = sadd.s32 %s68, 1
    %p72 = scmp.eq.s32.totalorder %s13, 1
    %p73 = scmp.ne.s32.totalorder %s68, %s70
    %p74 = scmp.eq.s32.totalorder %s13, 0
    %p75 = por %p73, %p74
    %p76 = scmp.ne.s32.totalorder %s68, %s70
    %p77 = scmp.eq.s32.totalorder %s18, 1
    %p78 = por %p76, %p77
    %p79 = scmp.ne.s32.totalorder %s70, %s71
    %p80 = scmp.eq.s32.totalorder %s18, 0
    %p81 = por %p79, %p80
    %p82 = scmp.ne.s32.totalorder %s70, %s71
    %p83 = scmp.eq.s32.totalorder %s19, 1
    %p84 = por %p82, %p83
    %p86 = scmp.ne.s32.totalorder %s71, %s85
    %p87 = scmp.eq.s32.totalorder %s19, 0
    %p88 = por %p86, %p87
    %s90 = sadd.s32 %s89, 1
    %p93 = scmp.eq.s32.totalorder %s13, 1
    %p94 = scmp.ne.s32.totalorder %s89, %s91
    %p95 = scmp.eq.s32.totalorder %s13, 0
    %p96 = por %p94, %p95
    %p97 = scmp.ne.s32.totalorder %s89, %s91
    %p98 = scmp.eq.s32.totalorder %s18, 1
    %p99 = por %p97, %p98
    %p100 = scmp.ne.s32.totalorder %s91, %s92
    %p101 = scmp.eq.s32.totalorder %s18, 0
    %p102 = por %p100, %p101
    %p103 = scmp.ne.s32.totalorder %s91, %s92
    %p104 = scmp.eq.s32.totalorder %s19, 1
    %p105 = por %p103, %p104
    %p107 = scmp.ne.s32.totalorder %s92, %s106
    %p108 = scmp.eq.s32.totalorder %s19, 0
    %p109 = por %p107, %p108
    %s111 = sadd.s32 %s110, 1
    %p114 = scmp.eq.s32.totalorder %s13, 1
    %p115 = scmp.ne.s32.totalorder %s110, %s112
    %p116 = scmp.eq.s32.totalorder %s13, 0
    %p117 = por %p115, %p116
    %p118 = scmp.ne.s32.totalorder %s110, %s112
    %p119 = scmp.eq.s32.totalorder %s18, 1
    %p120 = por %p118, %p119
    %p121 = scmp.ne.s32.totalorder %s112, %s113
    %p122 = scmp.eq.s32.totalorder %s18, 0
    %p123 = por %p121, %p122
    %p124 = scmp.ne.s32.totalorder %s112, %s113
    %p125 = scmp.eq.s32.totalorder %s19, 1
    %p126 = por %p124, %p125
    %p128 = scmp.ne.s32.totalorder %s113, %s127
    %p129 = scmp.eq.s32.totalorder %s19, 0
    %p130 = por %p128, %p129
    %s132 = sadd.s32 %s131, 1
    %p135 = scmp.eq.s32.totalorder %s13, 1
    %p136 = scmp.ne.s32.totalorder %s131, %s133
    %p137 = scmp.eq.s32.totalorder %s13, 0
    %p138 = por %p136, %p137
    %p139 = scmp.ne.s32.totalorder %s131, %s133
    %p140 = scmp.eq.s32.totalorder %s18, 1
    %p141 = por %p139, %p140
    %p142 = scmp.ne.s32.totalorder %s133, %s134
    %p143 = scmp.eq.s32.totalorder %s18, 0
    %p144 = por %p142, %p143
    %p145 = scmp.ne.s32.totalorder %s133, %s134
    %p146 = scmp.eq.s32.totalorder %s19, 1
    %p147 = por %p145, %p146
    %p149 = scmp.ne.s32.totalorder %s134, %s148
    %p150 = scmp.eq.s32.totalorder %s19, 0
    %p151 = por %p149, %p150
    %s153 = sadd.s32 %s152, 1
    %p156 = scmp.eq.s32.totalorder %s13, 1
    %p157 = scmp.ne.s32.totalorder %s152, %s154
    %p158 = scmp.eq.s32.totalorder %s13, 0
    %p159 = por %p157, %p158
    %p160 = scmp.ne.s32.totalorder %s152, %s154
    %p161 = scmp.eq.s32.totalorder %s18, 1
    %p162 = por %p160, %p161
    %p163 = scmp.ne.s32.totalorder %s154, %s155
    %p164 = scmp.eq.s32.totalorder %s18, 0
    %p165 = por %p163, %p164
    %p166 = scmp.ne.s32.totalorder %s154, %s155
    %p167 = scmp.eq.s32.totalorder %s19, 1
    %p168 = por %p166, %p167
    %p170 = scmp.ne.s32.totalorder %s155, %s169
    %p171 = scmp.eq.s32.totalorder %s19, 0
    %p172 = por %p170, %p171
    %s173 = ssub.s32 %s13, %s20
    %p174 = scmp.eq.s32.totalorder %s173, 0
    %s176 = sadd.s32 %s175, 1
    %s177 = scalar_select %p174, %s175, %s176
    %p180 = pneg %p174
    %p181 = scmp.eq.s32.totalorder %s13, 1
    %p182 = por %p180, %p181
    %p183 = scmp.ne.s32.totalorder %s175, %s178
    %p184 = scmp.eq.s32.totalorder %s13, 0
    %p185 = por %p183, %p184
    %p186 = scmp.ne.s32.totalorder %s175, %s178
    %p187 = scmp.eq.s32.totalorder %s18, 1
    %p188 = por %p186, %p187
    %p189 = scmp.ne.s32.totalorder %s178, %s179
    %p190 = scmp.eq.s32.totalorder %s18, 0
    %p191 = por %p189, %p190
    %p192 = scmp.ne.s32.totalorder %s178, %s179
    %p193 = scmp.eq.s32.totalorder %s19, 1
    %p194 = por %p192, %p193
    %p196 = scmp.ne.s32.totalorder %s179, %s195
    %p197 = scmp.eq.s32.totalorder %s19, 0
    %p198 = por %p196, %p197
    %p199 = scmp.le.s32.totalorder 1, %s13
    %p200 = scmp.lt.s32.totalorder %s13, 3
    %p201 = pnand %p199, %p200
    %p202 = pneg %p201
    // Predicated region
    $region9: #{parallel_net.2} parent=5 // pred_check
      _
    $region10: #{parallel_net.2} parent=5 // pred_check_branch
      %204 = sbr.rel (%p201) target = $region12
    $region11: #{parallel_net.2} parent=5 // pred_region
      %s205 = ssub.s32 %s13, 1
      // Predicated region
      $region13: #{parallel_net.2} parent=11 // pred_check
        %p206 = pneg %p60
      $region14: #{parallel_net.2} parent=11 // pred_check_branch
        %208 = sbr.rel (%p206) target = $region16
      $region15: #{parallel_net.2} parent=11 // pred_region
        _
      $region16: #{parallel_net.2} parent=11 // pred_fallthru
        _
      // Predicated region
      $region17: #{parallel_net.2} parent=11 // pred_check
        %p209 = pneg %p81
      $region18: #{parallel_net.2} parent=11 // pred_check_branch
        %211 = sbr.rel (%p209) target = $region20
      $region19: #{parallel_net.2} parent=11 // pred_region
        _
      $region20: #{parallel_net.2} parent=11 // pred_fallthru
        _
      // Predicated region
      $region21: #{parallel_net.2} parent=11 // pred_check
        %p212 = pneg %p102
      $region22: #{parallel_net.2} parent=11 // pred_check_branch
        %214 = sbr.rel (%p212) target = $region24
      $region23: #{parallel_net.2} parent=11 // pred_region
        _
      $region24: #{parallel_net.2} parent=11 // pred_fallthru
        _
      // Predicated region
      $region25: #{parallel_net.2} parent=11 // pred_check
        %p215 = pneg %p123
      $region26: #{parallel_net.2} parent=11 // pred_check_branch
        %217 = sbr.rel (%p215) target = $region28
      $region27: #{parallel_net.2} parent=11 // pred_region
        _
      $region28: #{parallel_net.2} parent=11 // pred_fallthru
        _
      // Predicated region
      $region29: #{parallel_net.2} parent=11 // pred_check
        %p218 = pneg %p144
      $region30: #{parallel_net.2} parent=11 // pred_check_branch
        %220 = sbr.rel (%p218) target = $region32
      $region31: #{parallel_net.2} parent=11 // pred_region
        _
      $region32: #{parallel_net.2} parent=11 // pred_fallthru
        _
      // Predicated region
      $region33: #{parallel_net.2} parent=11 // pred_check
        %p221 = pneg %p165
      $region34: #{parallel_net.2} parent=11 // pred_check_branch
        %223 = sbr.rel (%p221) target = $region36
      $region35: #{parallel_net.2} parent=11 // pred_region
        _
      $region36: #{parallel_net.2} parent=11 // pred_fallthru
        _
    $region12: #{parallel_net.2} parent=5 // pred_fallthru
      _
    %p224 = scmp.lt.s32.totalorder %s13, 2
    // Predicated region
    $region37: #{parallel_net.2} parent=5 // pred_check
      %p225 = pneg %p224
    $region38: #{parallel_net.2} parent=5 // pred_check_branch
      %227 = sbr.rel (%p225) target = $region40
    $region39: #{parallel_net.2} parent=5 // pred_region
      // Predicated region
      $region41: #{parallel_net.2} parent=39 // pred_check
        %p228 = pneg %p33
      $region42: #{parallel_net.2} parent=39 // pred_check_branch
        %230 = sbr.rel (%p228) target = $region44
      $region43: #{parallel_net.2} parent=39 // pred_region
        %p231 = scmp.lt.s32.totalorder %s13, 1
        %s232 = scalar_select %p231, %s13, 1
        %s233 = smul.addr %s232, 12
        %s234 = smul.addr %s233, 4
        %s235 = scalar_lea.vmem %s0, %s234
      $region44: #{parallel_net.2} parent=39 // pred_fallthru
        _
    $region40: #{parallel_net.2} parent=5 // pred_fallthru
      _
    %p236 = scmp.le.s32.totalorder 1, %s13
    %p237 = scmp.lt.s32.totalorder %s13, 3
    %p238 = pnand %p236, %p237
    %p239 = pneg %p238
    // Predicated region
    $region45: #{parallel_net.2} parent=5 // pred_check
      _
    $region46: #{parallel_net.2} parent=5 // pred_check_branch
      %241 = sbr.rel (%p238) target = $region48
    $region47: #{parallel_net.2} parent=5 // pred_region
      %s242 = ssub.s32 %s13, 1
      %p243 = scmp.lt.s32.totalorder %s18, 1
      %s244 = scalar_select %p243, %s18, 1
      %s245 = smul.addr %s244, 12
      %s246 = smul.addr %s245, 4
      %s247 = scalar_lea.vmem %s0, %s246
      %p248 = pneg %p39
      %p249 = pneg %p36
      %p250 = pneg %p60
      %p251 = pneg %p57
      %p252 = pneg %p81
      %p253 = pneg %p78
      %p254 = pneg %p102
      %p255 = pneg %p99
      %p256 = pneg %p123
      %p257 = pneg %p120
      %p258 = pneg %p144
      %p259 = pneg %p141
      %p260 = pneg %p165
      %p261 = pneg %p162
      %p262 = pneg %p191
      %p263 = pneg %p188
      %p264 = scmp.lt.s32.totalorder %s18, 1
      %s265 = scalar_select %p264, %s18, 1
      %s266 = smul.addr %s265, 4
      %s267 = smul.addr %s266, 4
      %s268 = scalar_lea.vmem %s7, %s267
      %p269 = scmp.lt.s32.totalorder %s18, 1
      %s270 = scalar_select %p269, %s18, 1
      %s271 = smul.addr %s270, 12
      %s272 = smul.addr %s271, 4
      %s273 = scalar_lea.vmem %s0, %s272
      %p274 = scmp.lt.s32.totalorder %s18, 1
      %s275 = scalar_select %p274, %s18, 1
      %s276 = smul.addr %s275, 4
      %s277 = smul.addr %s276, 4
      %s278 = scalar_lea.vmem %s7, %s277
      %v280 = vld [vmem:[%s1] sm:$0x7]
      %v281 = vld [vmem:[%s273] sm:$0xff]
      %v282 = vld [vmem:[%s273 + $0x8] sm:$0xf]
      %s283 = scalar_lea.vmem %s273, 12
      %v284 = vld [vmem:[%s283] sm:$0xff]
      %v285 = vld [vmem:[%s283 + $0x8] sm:$0xf]
      %s286 = scalar_lea.vmem %s273, 24
      %v287 = vld [vmem:[%s286] sm:$0xff]
      %v288 = vld [vmem:[%s286 + $0x8] sm:$0xf]
      %s289 = scalar_lea.vmem %s273, 36
      %v290 = vld [vmem:[%s289] sm:$0xff]
      %v291 = vld [vmem:[%s289 + $0x8] sm:$0xf]
      %v292 = vld [vmem:[%s2] sm:$0xf]
      %v293 = vld [vmem:[%s2 + $0x4] sm:$0xf]
      %v294 = vld [vmem:[%s2 + $0x8] sm:$0xf]
      %v295 = vld [vmem:[%s2 + $0xc] sm:$0xf]
      %s296 = scalar_lea.vmem %s2, 16
      %v297 = vld [vmem:[%s296] sm:$0xf]
      %v298 = vld [vmem:[%s296 + $0x4] sm:$0xf]
      %v299 = vld [vmem:[%s296 + $0x8] sm:$0xf]
      %v300 = vld [vmem:[%s296 + $0xc] sm:$0xf]
      %v305 = vunpack.c.l.b16 %v297
      %v306 = vunpack.c.l.b16 %v298
      %v307 = vunpack.c.l.b16 %v299
      %v308 = vunpack.c.l.b16 %v300
      %v309 = vpack.c.b16 %v306, %v305
      %v310 = vpack.c.b16 %v308, %v307
      %v313 = vunpack.c.l.b16 %v284
      %v314 = vunpack.c.h.b16 %v284
      %v315 = vunpack.c.l.b16 %v285
      %v316 = vpack.c.b16 %v313, %v313
      %v317 = vpack.c.b16 %v314, %v314
      %v318 = vpack.c.b16 %v315, %v315
      %vm319 = vcmask 64512
      %v321 = vsel %vm319, %v309, 0
      %v324 = vsel %vm319, %v310, 0
      %vm326 = vcmask 1043456
      %v328 = vsel %vm326, %v316, 0
      %v331 = vsel %vm326, %v317, 0
      %v334 = vsel %vm326, %v318, 0
      %336 = vmatprep.subr.bf16.mxu0 %v331
      %337 = vmatpush1.bf16.msra.mxu0 %v328
      %338 = vmatprep.subr.bf16.mxu0 0
      %339 = vmatpush1.bf16.msra.mxu0 0
      %340 = vmatprep.subr.bf16.mxu0 0
      %341 = vmatpush1.bf16.msra.mxu0 0
      %342 = vmatprep.subr.bf16.mxu0 0
      %343 = vmatpush1.bf16.msra.mxu0 0
      %344 = vmatprep.subr.bf16.mxu0 0
      %345 = vmatpush1.bf16.msra.mxu0 0
      %346 = vmatprep.subr.bf16.mxu0 0
      %347 = vmatpush1.bf16.msra.mxu0 0
      %348 = vmatprep.subr.bf16.mxu0 0
      %349 = vmatpush1.bf16.msra.mxu0 0
      %350 = vmatprep.subr.bf16.mxu0 0
      %351 = vmatpush1.bf16.msra.mxu0 0
      %352 = vmatprep.subr.bf16.mxu0 0
      %353 = vmatpush1.bf16.msra.mxu0 0
      %354 = vmatprep.subr.bf16.mxu0 0
      %355 = vmatpush1.bf16.msra.mxu0 0
      %356 = vmatprep.subr.bf16.mxu0 0
      %357 = vmatpush1.bf16.msra.mxu0 0
      %358 = vmatprep.subr.bf16.mxu0 0
      %359 = vmatpush1.bf16.msra.mxu0 0
      %360 = vmatprep.subr.bf16.mxu0 0
      %361 = vmatpush1.bf16.msra.mxu0 0
      %362 = vmatprep.subr.bf16.mxu0 0
      %363 = vmatpush1.bf16.msra.mxu0 0
      %364 = vmatprep.subr.bf16.mxu0 0
      %365 = vmatpush1.bf16.msra.mxu0 0
      %366 = vmatprep.subr.bf16.mxu0 0
      %367 = vmatpush1.bf16.msra.mxu0 0
      %368 = vmatprep.mubr.bf16.mxu0 0
      %369 = vmatmul.mubr.bf16.gmra.mrb[0].mxu0 %v321
      %v370 = vpop.f32.mrb[0].mxu0
      %v371 = vadd.f32 0.0, %v370
      %v372 = vpop.f32.mrb[0].mxu0
      %v373 = vadd.f32 0.0, %v372
      %v374 = vpop.f32.mrb[0].mxu0
      %v375 = vadd.f32 0.0, %v374
      %v376 = vpop.f32.mrb[0].mxu0
      %v377 = vadd.f32 0.0, %v376
      %378 = vmatprep.mubr.bf16.mxu0 0
      %379 = vmatmul.mubr.bf16.gmra.mrb[0].mxu0 %v324
      %v380 = vpop.f32.mrb[0].mxu0
      %v381 = vadd.f32 0.0, %v380
      %v382 = vpop.f32.mrb[0].mxu0
      %v383 = vadd.f32 0.0, %v382
      %v384 = vpop.f32.mrb[0].mxu0
      %v385 = vadd.f32 0.0, %v384
      %v386 = vpop.f32.mrb[0].mxu0
      %v387 = vadd.f32 0.0, %v386
      %388 = vdwg.mxu0
      %389 = vmatprep.subr.bf16.mxu0 0
      %390 = vmatpush1.bf16.msra.mxu0 %v334
      %391 = vmatprep.subr.bf16.mxu0 0
      %392 = vmatpush1.bf16.msra.mxu0 0
      %393 = vmatprep.subr.bf16.mxu0 0
      %394 = vmatpush1.bf16.msra.mxu0 0
      %395 = vmatprep.subr.bf16.mxu0 0
      %396 = vmatpush1.bf16.msra.mxu0 0
      %397 = vmatprep.subr.bf16.mxu0 0
      %398 = vmatpush1.bf16.msra.mxu0 0
      %399 = vmatprep.subr.bf16.mxu0 0
      %400 = vmatpush1.bf16.msra.mxu0 0
      %401 = vmatprep.subr.bf16.mxu0 0
      %402 = vmatpush1.bf16.msra.mxu0 0
      %403 = vmatprep.subr.bf16.mxu0 0
      %404 = vmatpush1.bf16.msra.mxu0 0
      %405 = vmatprep.subr.bf16.mxu0 0
      %406 = vmatpush1.bf16.msra.mxu0 0
      %407 = vmatprep.subr.bf16.mxu0 0
      %408 = vmatpush1.bf16.msra.mxu0 0
      %409 = vmatprep.subr.bf16.mxu0 0
      %410 = vmatpush1.bf16.msra.mxu0 0
      %411 = vmatprep.subr.bf16.mxu0 0
      %412 = vmatpush1.bf16.msra.mxu0 0
      %413 = vmatprep.subr.bf16.mxu0 0
      %414 = vmatpush1.bf16.msra.mxu0 0
      %415 = vmatprep.subr.bf16.mxu0 0
      %416 = vmatpush1.bf16.msra.mxu0 0
      %417 = vmatprep.subr.bf16.mxu0 0
      %418 = vmatpush1.bf16.msra.mxu0 0
      %419 = vmatprep.subr.bf16.mxu0 0
      %420 = vmatpush1.bf16.msra.mxu0 0
      %421 = vmatprep.mubr.bf16.mxu0 0
      %422 = vmatmul.mubr.bf16.gmra.mrb[0].mxu0 %v321
      %v423 = vpop.f32.mrb[0].mxu0
      %v424 = vadd.f32 0.0, %v423
      %v425 = vpop.f32.mrb[0].mxu0
      %v426 = vpop.f32.mrb[0].mxu0
      %v427 = vadd.f32 0.0, %v426
      %v428 = vpop.f32.mrb[0].mxu0
      %429 = vmatprep.mubr.bf16.mxu0 0
      %430 = vmatmul.mubr.bf16.gmra.mrb[0].mxu0 %v324
      %v431 = vpop.f32.mrb[0].mxu0
      %v432 = vadd.f32 0.0, %v431
      %v433 = vpop.f32.mrb[0].mxu0
      %v434 = vpop.f32.mrb[0].mxu0
      %v435 = vadd.f32 0.0, %v434
      %v436 = vpop.f32.mrb[0].mxu0
      %437 = vdwg.mxu0
      %v442 = vunpack.c.l.b16 %v292
      %v443 = vunpack.c.l.b16 %v293
      %v444 = vunpack.c.l.b16 %v294
      %v445 = vunpack.c.l.b16 %v295
      %v446 = vpack.c.b16 %v443, %v442
      %v447 = vpack.c.b16 %v445, %v444
      %v450 = vunpack.c.l.b16 %v281
      %v451 = vunpack.c.h.b16 %v281
      %v452 = vunpack.c.l.b16 %v282
      %v453 = vpack.c.b16 %v450, %v450
      %v454 = vpack.c.b16 %v451, %v451
      %v455 = vpack.c.b16 %v452, %v452
      %v457 = vsel %vm319, %v446, 0
      %v460 = vsel %vm319, %v447, 0
      %v463 = vsel %vm326, %v453, 0
      %v466 = vsel %vm326, %v454, 0
      %v469 = vsel %vm326, %v455, 0
      %471 = vmatprep.subr.bf16.mxu0 %v466
      %472 = vmatpush1.bf16.msra.mxu0 %v463
      %473 = vmatprep.subr.bf16.mxu0 0
      %474 = vmatpush1.bf16.msra.mxu0 0
      %475 = vmatprep.subr.bf16.mxu0 0
      %476 = vmatpush1.bf16.msra.mxu0 0
      %477 = vmatprep.subr.bf16.mxu0 0
      %478 = vmatpush1.bf16.msra.mxu0 0
      %479 = vmatprep.subr.bf16.mxu0 0
      %480 = vmatpush1.bf16.msra.mxu0 0
      %481 = vmatprep.subr.bf16.mxu0 0
      %482 = vmatpush1.bf16.msra.mxu0 0
      %483 = vmatprep.subr.bf16.mxu0 0
      %484 = vmatpush1.bf16.msra.mxu0 0
      %485 = vmatprep.subr.bf16.mxu0 0
      %486 = vmatpush1.bf16.msra.mxu0 0
      %487 = vmatprep.subr.bf16.mxu0 0
      %488 = vmatpush1.bf16.msra.mxu0 0
      %489 = vmatprep.subr.bf16.mxu0 0
      %490 = vmatpush1.bf16.msra.mxu0 0
      %491 = vmatprep.subr.bf16.mxu0 0
      %492 = vmatpush1.bf16.msra.mxu0 0
      %493 = vmatprep.subr.bf16.mxu0 0
      %494 = vmatpush1.bf16.msra.mxu0 0
      %495 = vmatprep.subr.bf16.mxu0 0
      %496 = vmatpush1.bf16.msra.mxu0 0
      %497 = vmatprep.subr.bf16.mxu0 0
      %498 = vmatpush1.bf16.msra.mxu0 0
      %499 = vmatprep.subr.bf16.mxu0 0
      %500 = vmatpush1.bf16.msra.mxu0 0
      %501 = vmatprep.subr.bf16.mxu0 0
      %502 = vmatpush1.bf16.msra.mxu0 0
      %503 = vmatprep.mubr.bf16.mxu0 0
      %504 = vmatmul.mubr.bf16.gmra.mrb[0].mxu0 %v457
      %v505 = vpop.f32.mrb[0].mxu0
      %v506 = vadd.f32 %v371, %v505
      %v507 = vpop.f32.mrb[0].mxu0
      %v508 = vadd.f32 %v373, %v507
      %v509 = vpop.f32.mrb[0].mxu0
      %v510 = vadd.f32 %v375, %v509
      %v511 = vpop.f32.mrb[0].mxu0
      %v512 = vadd.f32 %v377, %v511
      %513 = vmatprep.mubr.bf16.mxu0 0
      %514 = vmatmul.mubr.bf16.gmra.mrb[0].mxu0 %v460
      %v515 = vpop.f32.mrb[0].mxu0
      %v516 = vadd.f32 %v381, %v515
      %v517 = vpop.f32.mrb[0].mxu0
      %v518 = vadd.f32 %v383, %v517
      %v519 = vpop.f32.mrb[0].mxu0
      %v520 = vadd.f32 %v385, %v519
      %v521 = vpop.f32.mrb[0].mxu0
      %v522 = vadd.f32 %v387, %v521
      %523 = vdwg.mxu0
      %524 = vmatprep.subr.bf16.mxu0 0
      %525 = vmatpush1.bf16.msra.mxu0 %v469
      %526 = vmatprep.subr.bf16.mxu0 0
      %527 = vmatpush1.bf16.msra.mxu0 0
      %528 = vmatprep.subr.bf16.mxu0 0
      %529 = vmatpush1.bf16.msra.mxu0 0
      %530 = vmatprep.subr.bf16.mxu0 0
      %531 = vmatpush1.bf16.msra.mxu0 0
      %532 = vmatprep.subr.bf16.mxu0 0
      %533 = vmatpush1.bf16.msra.mxu0 0
      %534 = vmatprep.subr.bf16.mxu0 0
      %535 = vmatpush1.bf16.msra.mxu0 0
      %536 = vmatprep.subr.bf16.mxu0 0
      %537 = vmatpush1.bf16.msra.mxu0 0
      %538 = vmatprep.subr.bf16.mxu0 0
      %539 = vmatpush1.bf16.msra.mxu0 0
      %540 = vmatprep.subr.bf16.mxu0 0
      %541 = vmatpush1.bf16.msra.mxu0 0
      %542 = vmatprep.subr.bf16.mxu0 0
      %543 = vmatpush1.bf16.msra.mxu0 0
      %544 = vmatprep.subr.bf16.mxu0 0
      %545 = vmatpush1.bf16.msra.mxu0 0
      %546 = vmatprep.subr.bf16.mxu0 0
      %547 = vmatpush1.bf16.msra.mxu0 0
      %548 = vmatprep.subr.bf16.mxu0 0
      %549 = vmatpush1.bf16.msra.mxu0 0
      %550 = vmatprep.subr.bf16.mxu0 0
      %551 = vmatpush1.bf16.msra.mxu0 0
      %552 = vmatprep.subr.bf16.mxu0 0
      %553 = vmatpush1.bf16.msra.mxu0 0
      %554 = vmatprep.subr.bf16.mxu0 0
      %555 = vmatpush1.bf16.msra.mxu0 0
      %556 = vmatprep.mubr.bf16.mxu0 0
      %557 = vmatmul.mubr.bf16.gmra.mrb[0].mxu0 %v457
      %v558 = vpop.f32.mrb[0].mxu0
      %v559 = vadd.f32 %v424, %v558
      %v560 = vpop.f32.mrb[0].mxu0
      %v561 = vpop.f32.mrb[0].mxu0
      %v562 = vadd.f32 %v427, %v561
      %v563 = vpop.f32.mrb[0].mxu0
      %564 = vmatprep.mubr.bf16.mxu0 0
      %565 = vmatmul.mubr.bf16.gmra.mrb[0].mxu0 %v460
      %v566 = vpop.f32.mrb[0].mxu0
      %v567 = vadd.f32 %v432, %v566
      %v568 = vpop.f32.mrb[0].mxu0
      %v569 = vpop.f32.mrb[0].mxu0
      %v570 = vadd.f32 %v435, %v569
      %v571 = vpop.f32.mrb[0].mxu0
      %572 = vdwg.mxu0
      %s573 = scalar_lea.vmem %s2, 32
      %v574 = vld [vmem:[%s573] sm:$0xf]
      %v575 = vld [vmem:[%s573 + $0x4] sm:$0xf]
      %v576 = vld [vmem:[%s573 + $0x8] sm:$0xf]
      %v577 = vld [vmem:[%s573 + $0xc] sm:$0xf]
      %v582 = vunpack.c.l.b16 %v574
      %v583 = vunpack.c.l.b16 %v575
      %v584 = vunpack.c.l.b16 %v576
      %v585 = vunpack.c.l.b16 %v577
      %v586 = vpack.c.b16 %v583, %v582
      %v587 = vpack.c.b16 %v585, %v584
      %588 = vrot.lane.b32.xlu0 %v453, 127
      %v589 = vpop.permute.xlu0 %588
      %590 = vrot.lane.b32.xlu0 %v454, 127
      %v591 = vpop.permute.xlu0 %590
      %592 = vrot.lane.b32.xlu0 %v455, 127
      %v593 = vpop.permute.xlu0 %592
      %vm594 = vcmask 1039360
      %v595 = vsel %vm594, %v589, %v591
      %v596 = vsel %vm594, %v591, %v593
      %v598 = vsel %vm319, %v586, 0
      %v601 = vsel %vm319, %v587, 0
      %v604 = vsel %vm326, %v595, 0
      %v607 = vsel %vm326, %v596, 0
      %v610 = vsel %vm326, %v593, 0
      %612 = vmatprep.subr.bf16.mxu0 %v607
      %613 = vmatpush1.bf16.msra.mxu0 %v604
      %614 = vmatprep.subr.bf16.mxu0 0
      %615 = vmatpush1.bf16.msra.mxu0 0
      %616 = vmatprep.subr.bf16.mxu0 0
      %617 = vmatpush1.bf16.msra.mxu0 0
      %618 = vmatprep.subr.bf16.mxu0 0
      %619 = vmatpush1.bf16.msra.mxu0 0
      %620 = vmatprep.subr.bf16.mxu0 0
      %621 = vmatpush1.bf16.msra.mxu0 0
      %622 = vmatprep.subr.bf16.mxu0 0
      %623 = vmatpush1.bf16.msra.mxu0 0
      %624 = vmatprep.subr.bf16.mxu0 0
      %625 = vmatpush1.bf16.msra.mxu0 0
      %626 = vmatprep.subr.bf16.mxu0 0
      %627 = vmatpush1.bf16.msra.mxu0 0
      %628 = vmatprep.subr.bf16.mxu0 0
      %629 = vmatpush1.bf16.msra.mxu0 0
      %630 = vmatprep.subr.bf16.mxu0 0
      %631 = vmatpush1.bf16.msra.mxu0 0
      %632 = vmatprep.subr.bf16.mxu0 0
      %633 = vmatpush1.bf16.msra.mxu0 0
      %634 = vmatprep.subr.bf16.mxu0 0
      %635 = vmatpush1.bf16.msra.mxu0 0
      %636 = vmatprep.subr.bf16.mxu0 0
      %637 = vmatpush1.bf16.msra.mxu0 0
      %638 = vmatprep.subr.bf16.mxu0 0
      %639 = vmatpush1.bf16.msra.mxu0 0
      %640 = vmatprep.subr.bf16.mxu0 0
      %641 = vmatpush1.bf16.msra.mxu0 0
      %642 = vmatprep.subr.bf16.mxu0 0
      %643 = vmatpush1.bf16.msra.mxu0 0
      %644 = vmatprep.mubr.bf16.mxu0 0
      %645 = vmatmul.mubr.bf16.gmra.mrb[0].mxu0 %v598
      %v646 = vpop.f32.mrb[0].mxu0
      %v647 = vadd.f32 0.0, %v646
      %v648 = vpop.f32.mrb[0].mxu0
      %v649 = vadd.f32 0.0, %v648
      %v650 = vpop.f32.mrb[0].mxu0
      %v651 = vadd.f32 0.0, %v650
      %v652 = vpop.f32.mrb[0].mxu0
      %v653 = vadd.f32 0.0, %v652
      %654 = vmatprep.mubr.bf16.mxu0 0
      %655 = vmatmul.mubr.bf16.gmra.mrb[0].mxu0 %v601
      %v656 = vpop.f32.mrb[0].mxu0
      %v657 = vadd.f32 0.0, %v656
      %v658 = vpop.f32.mrb[0].mxu0
      %v659 = vadd.f32 0.0, %v658
      %v660 = vpop.f32.mrb[0].mxu0
      %v661 = vadd.f32 0.0, %v660
      %v662 = vpop.f32.mrb[0].mxu0
      %v663 = vadd.f32 0.0, %v662
      %664 = vdwg.mxu0
      %665 = vmatprep.subr.bf16.mxu0 0
      %666 = vmatpush1.bf16.msra.mxu0 %v610
      %667 = vmatprep.subr.bf16.mxu0 0
      %668 = vmatpush1.bf16.msra.mxu0 0
      %669 = vmatprep.subr.bf16.mxu0 0
      %670 = vmatpush1.bf16.msra.mxu0 0
      %671 = vmatprep.subr.bf16.mxu0 0
      %672 = vmatpush1.bf16.msra.mxu0 0
      %673 = vmatprep.subr.bf16.mxu0 0
      %674 = vmatpush1.bf16.msra.mxu0 0
      %675 = vmatprep.subr.bf16.mxu0 0
      %676 = vmatpush1.bf16.msra.mxu0 0
      %677 = vmatprep.subr.bf16.mxu0 0
      %678 = vmatpush1.bf16.msra.mxu0 0
      %679 = vmatprep.subr.bf16.mxu0 0
      %680 = vmatpush1.bf16.msra.mxu0 0
      %681 = vmatprep.subr.bf16.mxu0 0
      %682 = vmatpush1.bf16.msra.mxu0 0
      %683 = vmatprep.subr.bf16.mxu0 0
      %684 = vmatpush1.bf16.msra.mxu0 0
      %685 = vmatprep.subr.bf16.mxu0 0
      %686 = vmatpush1.bf16.msra.mxu0 0
      %687 = vmatprep.subr.bf16.mxu0 0
      %688 = vmatpush1.bf16.msra.mxu0 0
      %689 = vmatprep.subr.bf16.mxu0 0
      %690 = vmatpush1.bf16.msra.mxu0 0
      %691 = vmatprep.subr.bf16.mxu0 0
      %692 = vmatpush1.bf16.msra.mxu0 0
      %693 = vmatprep.subr.bf16.mxu0 0
      %694 = vmatpush1.bf16.msra.mxu0 0
      %695 = vmatprep.subr.bf16.mxu0 0
      %696 = vmatpush1.bf16.msra.mxu0 0
      %697 = vmatprep.mubr.bf16.mxu0 0
      %698 = vmatmul.mubr.bf16.gmra.mrb[0].mxu0 %v598
      %v699 = vpop.f32.mrb[0].mxu0
      %v700 = vadd.f32 0.0, %v699
      %v701 = vpop.f32.mrb[0].mxu0
      %v702 = vpop.f32.mrb[0].mxu0
      %v703 = vadd.f32 0.0, %v702
      %v704 = vpop.f32.mrb[0].mxu0
      %705 = vmatprep.mubr.bf16.mxu0 0
      %706 = vmatmul.mubr.bf16.gmra.mrb[0].mxu0 %v601
      %v707 = vpop.f32.mrb[0].mxu0
      %v708 = vadd.f32 0.0, %v707
      %v709 = vpop.f32.mrb[0].mxu0
      %v710 = vpop.f32.mrb[0].mxu0
      %v711 = vadd.f32 0.0, %v710
      %v712 = vpop.f32.mrb[0].mxu0
      %713 = vdwg.mxu0
      %v714 = vadd.f32 %v506, %v647
      %v715 = vadd.f32 %v508, %v649
      %v716 = vadd.f32 %v559, %v700
      %v717 = vadd.f32 %v510, %v651
      %v718 = vadd.f32 %v512, %v653
      %v719 = vadd.f32 %v562, %v703
      %v720 = vadd.f32 %v516, %v657
      %v721 = vadd.f32 %v518, %v659
      %v722 = vadd.f32 %v567, %v708
      %v723 = vadd.f32 %v520, %v661
      %v724 = vadd.f32 %v522, %v663
      %v725 = vadd.f32 %v570, %v711
      %s726 = scalar_lea.vmem %s2, 48
      %v727 = vld [vmem:[%s726] sm:$0xf]
      %v728 = vld [vmem:[%s726 + $0x4] sm:$0xf]
      %v729 = vld [vmem:[%s726 + $0x8] sm:$0xf]
      %v730 = vld [vmem:[%s726 + $0xc] sm:$0xf]
      %v735 = vunpack.c.l.b16 %v727
      %v736 = vunpack.c.l.b16 %v728
      %v737 = vunpack.c.l.b16 %v729
      %v738 = vunpack.c.l.b16 %v730
      %v739 = vpack.c.b16 %v736, %v735
      %v740 = vpack.c.b16 %v738, %v737
      %v743 = vunpack.c.l.b16 %v287
      %v744 = vunpack.c.h.b16 %v287
      %v745 = vunpack.c.l.b16 %v288
      %v746 = vpack.c.b16 %v743, %v743
      %v747 = vpack.c.b16 %v744, %v744
      %v748 = vpack.c.b16 %v745, %v745
      %v750 = vsel %vm319, %v739, 0
      %v753 = vsel %vm319, %v740, 0
      %v756 = vsel %vm326, %v746, 0
      %v759 = vsel %vm326, %v747, 0
      %v762 = vsel %vm326, %v748, 0
      %764 = vmatprep.subr.bf16.mxu0 %v759
      %765 = vmatpush1.bf16.msra.mxu0 %v756
      %766 = vmatprep.subr.bf16.mxu0 0
      %767 = vmatpush1.bf16.msra.mxu0 0
      %768 = vmatprep.subr.bf16.mxu0 0
      %769 = vmatpush1.bf16.msra.mxu0 0
      %770 = vmatprep.subr.bf16.mxu0 0
      %771 = vmatpush1.bf16.msra.mxu0 0
      %772 = vmatprep.subr.bf16.mxu0 0
      %773 = vmatpush1.bf16.msra.mxu0 0
      %774 = vmatprep.subr.bf16.mxu0 0
      %775 = vmatpush1.bf16.msra.mxu0 0
      %776 = vmatprep.subr.bf16.mxu0 0
      %777 = vmatpush1.bf16.msra.mxu0 0
      %778 = vmatprep.subr.bf16.mxu0 0
      %779 = vmatpush1.bf16.msra.mxu0 0
      %780 = vmatprep.subr.bf16.mxu0 0
      %781 = vmatpush1.bf16.msra.mxu0 0
      %782 = vmatprep.subr.bf16.mxu0 0
      %783 = vmatpush1.bf16.msra.mxu0 0
      %784 = vmatprep.subr.bf16.mxu0 0
      %785 = vmatpush1.bf16.msra.mxu0 0
      %786 = vmatprep.subr.bf16.mxu0 0
      %787 = vmatpush1.bf16.msra.mxu0 0
      %788 = vmatprep.subr.bf16.mxu0 0
      %789 = vmatpush1.bf16.msra.mxu0 0
      %790 = vmatprep.subr.bf16.mxu0 0
      %791 = vmatpush1.bf16.msra.mxu0 0
      %792 = vmatprep.subr.bf16.mxu0 0
      %793 = vmatpush1.bf16.msra.mxu0 0
      %794 = vmatprep.subr.bf16.mxu0 0
      %795 = vmatpush1.bf16.msra.mxu0 0
      %796 = vmatprep.mubr.bf16.mxu0 0
      %797 = vmatmul.mubr.bf16.gmra.mrb[0].mxu0 %v750
      %v798 = vpop.f32.mrb[0].mxu0
      %v799 = vadd.f32 0.0, %v798
      %v800 = vpop.f32.mrb[0].mxu0
      %v801 = vadd.f32 0.0, %v800
      %v802 = vpop.f32.mrb[0].mxu0
      %v803 = vadd.f32 0.0, %v802
      %v804 = vpop.f32.mrb[0].mxu0
      %v805 = vadd.f32 0.0, %v804
      %806 = vmatprep.mubr.bf16.mxu0 0
      %807 = vmatmul.mubr.bf16.gmra.mrb[0].mxu0 %v753
      %v808 = vpop.f32.mrb[0].mxu0
      %v809 = vadd.f32 0.0, %v808
      %v810 = vpop.f32.mrb[0].mxu0
      %v811 = vadd.f32 0.0, %v810
      %v812 = vpop.f32.mrb[0].mxu0
      %v813 = vadd.f32 0.0, %v812
      %v814 = vpop.f32.mrb[0].mxu0
      %v815 = vadd.f32 0.0, %v814
      %816 = vdwg.mxu0
      %817 = vmatprep.subr.bf16.mxu0 0
      %818 = vmatpush1.bf16.msra.mxu0 %v762
      %819 = vmatprep.subr.bf16.mxu0 0
      %820 = vmatpush1.bf16.msra.mxu0 0
      %821 = vmatprep.subr.bf16.mxu0 0
      %822 = vmatpush1.bf16.msra.mxu0 0
      %823 = vmatprep.subr.bf16.mxu0 0
      %824 = vmatpush1.bf16.msra.mxu0 0
      %825 = vmatprep.subr.bf16.mxu0 0
      %826 = vmatpush1.bf16.msra.mxu0 0
      %827 = vmatprep.subr.bf16.mxu0 0
      %828 = vmatpush1.bf16.msra.mxu0 0
      %829 = vmatprep.subr.bf16.mxu0 0
      %830 = vmatpush1.bf16.msra.mxu0 0
      %831 = vmatprep.subr.bf16.mxu0 0
      %832 = vmatpush1.bf16.msra.mxu0 0
      %833 = vmatprep.subr.bf16.mxu0 0
      %834 = vmatpush1.bf16.msra.mxu0 0
      %835 = vmatprep.subr.bf16.mxu0 0
      %836 = vmatpush1.bf16.msra.mxu0 0
      %837 = vmatprep.subr.bf16.mxu0 0
      %838 = vmatpush1.bf16.msra.mxu0 0
      %839 = vmatprep.subr.bf16.mxu0 0
      %840 = vmatpush1.bf16.msra.mxu0 0
      %841 = vmatprep.subr.bf16.mxu0 0
      %842 = vmatpush1.bf16.msra.mxu0 0
      %843 = vmatprep.subr.bf16.mxu0 0
      %844 = vmatpush1.bf16.msra.mxu0 0
      %845 = vmatprep.subr.bf16.mxu0 0
      %846 = vmatpush1.bf16.msra.mxu0 0
      %847 = vmatprep.subr.bf16.mxu0 0
      %848 = vmatpush1.bf16.msra.mxu0 0
      %849 = vmatprep.mubr.bf16.mxu0 0
      %850 = vmatmul.mubr.bf16.gmra.mrb[0].mxu0 %v750
      %v851 = vpop.f32.mrb[0].mxu0
      %v852 = vadd.f32 0.0, %v851
      %v853 = vpop.f32.mrb[0].mxu0
      %v854 = vpop.f32.mrb[0].mxu0
      %v855 = vadd.f32 0.0, %v854
      %v856 = vpop.f32.mrb[0].mxu0
      %857 = vmatprep.mubr.bf16.mxu0 0
      %858 = vmatmul.mubr.bf16.gmra.mrb[0].mxu0 %v753
      %v859 = vpop.f32.mrb[0].mxu0
      %v860 = vadd.f32 0.0, %v859
      %v861 = vpop.f32.mrb[0].mxu0
      %v862 = vpop.f32.mrb[0].mxu0
      %v863 = vadd.f32 0.0, %v862
      %v864 = vpop.f32.mrb[0].mxu0
      %865 = vdwg.mxu0
      %v866 = vadd.f32 %v714, %v799
      %v867 = vadd.f32 %v715, %v801
      %v868 = vadd.f32 %v716, %v852
      %v869 = vadd.f32 %v717, %v803
      %v870 = vadd.f32 %v718, %v805
      %v871 = vadd.f32 %v719, %v855
      %v872 = vadd.f32 %v720, %v809
      %v873 = vadd.f32 %v721, %v811
      %v874 = vadd.f32 %v722, %v860
      %v875 = vadd.f32 %v723, %v813
      %v876 = vadd.f32 %v724, %v815
      %v877 = vadd.f32 %v725, %v863
      %s878 = scalar_lea.vmem %s2, 64
      %v879 = vld [vmem:[%s878] sm:$0xf]
      %v880 = vld [vmem:[%s878 + $0x4] sm:$0xf]
      %v881 = vld [vmem:[%s878 + $0x8] sm:$0xf]
      %v882 = vld [vmem:[%s878 + $0xc] sm:$0xf]
      %v887 = vunpack.c.l.b16 %v879
      %v888 = vunpack.c.l.b16 %v880
      %v889 = vunpack.c.l.b16 %v881
      %v890 = vunpack.c.l.b16 %v882
      %v891 = vpack.c.b16 %v888, %v887
      %v892 = vpack.c.b16 %v890, %v889
      %v895 = vunpack.c.l.b16 %v290
      %v896 = vunpack.c.h.b16 %v290
      %v897 = vunpack.c.l.b16 %v291
      %v898 = vpack.c.b16 %v895, %v895
      %v899 = vpack.c.b16 %v896, %v896
      %v900 = vpack.c.b16 %v897, %v897
      %v902 = vsel %vm319, %v891, 0
      %v905 = vsel %vm319, %v892, 0
      %v908 = vsel %vm326, %v898, 0
      %v911 = vsel %vm326, %v899, 0
      %v914 = vsel %vm326, %v900, 0
      %916 = vmatprep.subr.bf16.mxu0 %v911
      %917 = vmatpush1.bf16.msra.mxu0 %v908
      %918 = vmatprep.subr.bf16.mxu0 0
      %919 = vmatpush1.bf16.msra.mxu0 0
      %920 = vmatprep.subr.bf16.mxu0 0
      %921 = vmatpush1.bf16.msra.mxu0 0
      %922 = vmatprep.subr.bf16.mxu0 0
      %923 = vmatpush1.bf16.msra.mxu0 0
      %924 = vmatprep.subr.bf16.mxu0 0
      %925 = vmatpush1.bf16.msra.mxu0 0
      %926 = vmatprep.subr.bf16.mxu0 0
      %927 = vmatpush1.bf16.msra.mxu0 0
      %928 = vmatprep.subr.bf16.mxu0 0
      %929 = vmatpush1.bf16.msra.mxu0 0
      %930 = vmatprep.subr.bf16.mxu0 0
      %931 = vmatpush1.bf16.msra.mxu0 0
      %932 = vmatprep.subr.bf16.mxu0 0
      %933 = vmatpush1.bf16.msra.mxu0 0
      %934 = vmatprep.subr.bf16.mxu0 0
      %935 = vmatpush1.bf16.msra.mxu0 0
      %936 = vmatprep.subr.bf16.mxu0 0
      %937 = vmatpush1.bf16.msra.mxu0 0
      %938 = vmatprep.subr.bf16.mxu0 0
      %939 = vmatpush1.bf16.msra.mxu0 0
      %940 = vmatprep.subr.bf16.mxu0 0
      %941 = vmatpush1.bf16.msra.mxu0 0
      %942 = vmatprep.subr.bf16.mxu0 0
      %943 = vmatpush1.bf16.msra.mxu0 0
      %944 = vmatprep.subr.bf16.mxu0 0
      %945 = vmatpush1.bf16.msra.mxu0 0
      %946 = vmatprep.subr.bf16.mxu0 0
      %947 = vmatpush1.bf16.msra.mxu0 0
      %948 = vmatprep.mubr.bf16.mxu0 0
      %949 = vmatmul.mubr.bf16.gmra.mrb[0].mxu0 %v902
      %v950 = vpop.f32.mrb[0].mxu0
      %v951 = vadd.f32 0.0, %v950
      %v952 = vpop.f32.mrb[0].mxu0
      %v953 = vadd.f32 0.0, %v952
      %v954 = vpop.f32.mrb[0].mxu0
      %v955 = vadd.f32 0.0, %v954
      %v956 = vpop.f32.mrb[0].mxu0
      %v957 = vadd.f32 0.0, %v956
      %958 = vmatprep.mubr.bf16.mxu0 0
      %959 = vmatmul.mubr.bf16.gmra.mrb[0].mxu0 %v905
      %v960 = vpop.f32.mrb[0].mxu0
      %v961 = vadd.f32 0.0, %v960
      %v962 = vpop.f32.mrb[0].mxu0
      %v963 = vadd.f32 0.0, %v962
      %v964 = vpop.f32.mrb[0].mxu0
      %v965 = vadd.f32 0.0, %v964
      %v966 = vpop.f32.mrb[0].mxu0
      %v967 = vadd.f32 0.0, %v966
      %968 = vdwg.mxu0
      %969 = vmatprep.subr.bf16.mxu0 0
      %970 = vmatpush1.bf16.msra.mxu0 %v914
      %971 = vmatprep.subr.bf16.mxu0 0
      %972 = vmatpush1.bf16.msra.mxu0 0
      %973 = vmatprep.subr.bf16.mxu0 0
      %974 = vmatpush1.bf16.msra.mxu0 0
      %975 = vmatprep.subr.bf16.mxu0 0
      %976 = vmatpush1.bf16.msra.mxu0 0
      %977 = vmatprep.subr.bf16.mxu0 0
      %978 = vmatpush1.bf16.msra.mxu0 0
      %979 = vmatprep.subr.bf16.mxu0 0
      %980 = vmatpush1.bf16.msra.mxu0 0
      %981 = vmatprep.subr.bf16.mxu0 0
      %982 = vmatpush1.bf16.msra.mxu0 0
      %983 = vmatprep.subr.bf16.mxu0 0
      %984 = vmatpush1.bf16.msra.mxu0 0
      %985 = vmatprep.subr.bf16.mxu0 0
      %986 = vmatpush1.bf16.msra.mxu0 0
      %987 = vmatprep.subr.bf16.mxu0 0
      %988 = vmatpush1.bf16.msra.mxu0 0
      %989 = vmatprep.subr.bf16.mxu0 0
      %990 = vmatpush1.bf16.msra.mxu0 0
      %991 = vmatprep.subr.bf16.mxu0 0
      %992 = vmatpush1.bf16.msra.mxu0 0
      %993 = vmatprep.subr.bf16.mxu0 0
      %994 = vmatpush1.bf16.msra.mxu0 0
      %995 = vmatprep.subr.bf16.mxu0 0
      %996 = vmatpush1.bf16.msra.mxu0 0
      %997 = vmatprep.subr.bf16.mxu0 0
      %998 = vmatpush1.bf16.msra.mxu0 0
      %999 = vmatprep.subr.bf16.mxu0 0
      %1000 = vmatpush1.bf16.msra.mxu0 0
      %1001 = vmatprep.mubr.bf16.mxu0 0
      %1002 = vmatmul.mubr.bf16.gmra.mrb[0].mxu0 %v902
      %v1003 = vpop.f32.mrb[0].mxu0
      %v1004 = vadd.f32 0.0, %v1003
      %v1005 = vpop.f32.mrb[0].mxu0
      %v1006 = vpop.f32.mrb[0].mxu0
      %v1007 = vadd.f32 0.0, %v1006
      %v1008 = vpop.f32.mrb[0].mxu0
      %1009 = vmatprep.mubr.bf16.mxu0 0
      %1010 = vmatmul.mubr.bf16.gmra.mrb[0].mxu0 %v905
      %v1011 = vpop.f32.mrb[0].mxu0
      %v1012 = vadd.f32 0.0, %v1011
      %v1013 = vpop.f32.mrb[0].mxu0
      %v1014 = vpop.f32.mrb[0].mxu0
      %v1015 = vadd.f32 0.0, %v1014
      %v1016 = vpop.f32.mrb[0].mxu0
      %1017 = vdwg.mxu0
      %v1018 = vadd.f32 %v866, %v951
      %v1019 = vadd.f32 %v867, %v953
      %v1020 = vadd.f32 %v868, %v1004
      %v1021 = vadd.f32 %v869, %v955
      %v1022 = vadd.f32 %v870, %v957
      %v1023 = vadd.f32 %v871, %v1007
      %v1024 = vadd.f32 %v872, %v961
      %v1025 = vadd.f32 %v873, %v963
      %v1026 = vadd.f32 %v874, %v1012
      %v1027 = vadd.f32 %v875, %v965
      %v1028 = vadd.f32 %v876, %v967
      %v1029 = vadd.f32 %v877, %v1015
      %s1030 = scalar_lea.vmem %s2, 80
      %v1031 = vld [vmem:[%s1030] sm:$0xf]
      %v1032 = vld [vmem:[%s1030 + $0x4] sm:$0xf]
      %v1033 = vld [vmem:[%s1030 + $0x8] sm:$0xf]
      %v1034 = vld [vmem:[%s1030 + $0xc] sm:$0xf]
      %v1039 = vunpack.c.l.b16 %v1031
      %v1040 = vunpack.c.l.b16 %v1032
      %v1041 = vunpack.c.l.b16 %v1033
      %v1042 = vunpack.c.l.b16 %v1034
      %v1043 = vpack.c.b16 %v1040, %v1039
      %v1044 = vpack.c.b16 %v1042, %v1041
      %1045 = vrot.lane.b32.xlu0 %v746, 127
      %v1046 = vpop.permute.xlu0 %1045
      %1047 = vrot.lane.b32.xlu0 %v747, 127
      %v1048 = vpop.permute.xlu0 %1047
      %1049 = vrot.lane.b32.xlu0 %v748, 127
      %v1050 = vpop.permute.xlu0 %1049
      %v1051 = vsel %vm594, %v1046, %v1048
      %v1052 = vsel %vm594, %v1048, %v1050
      %v1054 = vsel %vm319, %v1043, 0
      %v1057 = vsel %vm319, %v1044, 0
      %v1060 = vsel %vm326, %v1051, 0
      %v1063 = vsel %vm326, %v1052, 0
      %v1066 = vsel %vm326, %v1050, 0
      %1068 = vmatprep.subr.bf16.mxu0 %v1063
      %1069 = vmatpush1.bf16.msra.mxu0 %v1060
      %1070 = vmatprep.subr.bf16.mxu0 0
      %1071 = vmatpush1.bf16.msra.mxu0 0
      %1072 = vmatprep.subr.bf16.mxu0 0
      %1073 = vmatpush1.bf16.msra.mxu0 0
      %1074 = vmatprep.subr.bf16.mxu0 0
      %1075 = vmatpush1.bf16.msra.mxu0 0
      %1076 = vmatprep.subr.bf16.mxu0 0
      %1077 = vmatpush1.bf16.msra.mxu0 0
      %1078 = vmatprep.subr.bf16.mxu0 0
      %1079 = vmatpush1.bf16.msra.mxu0 0
      %1080 = vmatprep.subr.bf16.mxu0 0
      %1081 = vmatpush1.bf16.msra.mxu0 0
      %1082 = vmatprep.subr.bf16.mxu0 0
      %1083 = vmatpush1.bf16.msra.mxu0 0
      %1084 = vmatprep.subr.bf16.mxu0 0
      %1085 = vmatpush1.bf16.msra.mxu0 0
      %1086 = vmatprep.subr.bf16.mxu0 0
      %1087 = vmatpush1.bf16.msra.mxu0 0
      %1088 = vmatprep.subr.bf16.mxu0 0
      %1089 = vmatpush1.bf16.msra.mxu0 0
      %1090 = vmatprep.subr.bf16.mxu0 0
      %1091 = vmatpush1.bf16.msra.mxu0 0
      %1092 = vmatprep.subr.bf16.mxu0 0
      %1093 = vmatpush1.bf16.msra.mxu0 0
      %1094 = vmatprep.subr.bf16.mxu0 0
      %1095 = vmatpush1.bf16.msra.mxu0 0
      %1096 = vmatprep.subr.bf16.mxu0 0
      %1097 = vmatpush1.bf16.msra.mxu0 0
      %1098 = vmatprep.subr.bf16.mxu0 0
      %1099 = vmatpush1.bf16.msra.mxu0 0
      %1100 = vmatprep.mubr.bf16.mxu0 0
      %1101 = vmatmul.mubr.bf16.gmra.mrb[0].mxu0 %v1054
      %v1102 = vpop.f32.mrb[0].mxu0
      %v1103 = vadd.f32 0.0, %v1102
      %v1104 = vpop.f32.mrb[0].mxu0
      %v1105 = vadd.f32 0.0, %v1104
      %v1106 = vpop.f32.mrb[0].mxu0
      %v1107 = vadd.f32 0.0, %v1106
      %v1108 = vpop.f32.mrb[0].mxu0
      %v1109 = vadd.f32 0.0, %v1108
      %1110 = vmatprep.mubr.bf16.mxu0 0
      %1111 = vmatmul.mubr.bf16.gmra.mrb[0].mxu0 %v1057
      %v1112 = vpop.f32.mrb[0].mxu0
      %v1113 = vadd.f32 0.0, %v1112
      %v1114 = vpop.f32.mrb[0].mxu0
      %v1115 = vadd.f32 0.0, %v1114
      %v1116 = vpop.f32.mrb[0].mxu0
      %v1117 = vadd.f32 0.0, %v1116
      %v1118 = vpop.f32.mrb[0].mxu0
      %v1119 = vadd.f32 0.0, %v1118
      %1120 = vdwg.mxu0
      %1121 = vmatprep.subr.bf16.mxu0 0
      %1122 = vmatpush1.bf16.msra.mxu0 %v1066
      %1123 = vmatprep.subr.bf16.mxu0 0
      %1124 = vmatpush1.bf16.msra.mxu0 0
      %1125 = vmatprep.subr.bf16.mxu0 0
      %1126 = vmatpush1.bf16.msra.mxu0 0
      %1127 = vmatprep.subr.bf16.mxu0 0
      %1128 = vmatpush1.bf16.msra.mxu0 0
      %1129 = vmatprep.subr.bf16.mxu0 0
      %1130 = vmatpush1.bf16.msra.mxu0 0
      %1131 = vmatprep.subr.bf16.mxu0 0
      %1132 = vmatpush1.bf16.msra.mxu0 0
      %1133 = vmatprep.subr.bf16.mxu0 0
      %1134 = vmatpush1.bf16.msra.mxu0 0
      %1135 = vmatprep.subr.bf16.mxu0 0
      %1136 = vmatpush1.bf16.msra.mxu0 0
      %1137 = vmatprep.subr.bf16.mxu0 0
      %1138 = vmatpush1.bf16.msra.mxu0 0
      %1139 = vmatprep.subr.bf16.mxu0 0
      %1140 = vmatpush1.bf16.msra.mxu0 0
      %1141 = vmatprep.subr.bf16.mxu0 0
      %1142 = vmatpush1.bf16.msra.mxu0 0
      %1143 = vmatprep.subr.bf16.mxu0 0
      %1144 = vmatpush1.bf16.msra.mxu0 0
      %1145 = vmatprep.subr.bf16.mxu0 0
      %1146 = vmatpush1.bf16.msra.mxu0 0
      %1147 = vmatprep.subr.bf16.mxu0 0
      %1148 = vmatpush1.bf16.msra.mxu0 0
      %1149 = vmatprep.subr.bf16.mxu0 0
      %1150 = vmatpush1.bf16.msra.mxu0 0
      %1151 = vmatprep.subr.bf16.mxu0 0
      %1152 = vmatpush1.bf16.msra.mxu0 0
      %1153 = vmatprep.mubr.bf16.mxu0 0
      %1154 = vmatmul.mubr.bf16.gmra.mrb[0].mxu0 %v1054
      %v1155 = vpop.f32.mrb[0].mxu0
      %v1156 = vadd.f32 0.0, %v1155
      %v1157 = vpop.f32.mrb[0].mxu0
      %v1158 = vpop.f32.mrb[0].mxu0
      %v1159 = vadd.f32 0.0, %v1158
      %v1160 = vpop.f32.mrb[0].mxu0
      %1161 = vmatprep.mubr.bf16.mxu0 0
      %1162 = vmatmul.mubr.bf16.gmra.mrb[0].mxu0 %v1057
      %v1163 = vpop.f32.mrb[0].mxu0
      %v1164 = vadd.f32 0.0, %v1163
      %v1165 = vpop.f32.mrb[0].mxu0
      %v1166 = vpop.f32.mrb[0].mxu0
      %v1167 = vadd.f32 0.0, %v1166
      %v1168 = vpop.f32.mrb[0].mxu0
      %1169 = vdwg.mxu0
      %v1170 = vadd.f32 %v1018, %v1103
      %v1171 = vadd.f32 %v1019, %v1105
      %v1172 = vadd.f32 %v1020, %v1156
      %v1173 = vadd.f32 %v1021, %v1107
      %v1174 = vadd.f32 %v1022, %v1109
      %v1175 = vadd.f32 %v1023, %v1159
      %v1176 = vadd.f32 %v1024, %v1113
      %v1177 = vadd.f32 %v1025, %v1115
      %v1178 = vadd.f32 %v1026, %v1164
      %v1179 = vadd.f32 %v1027, %v1117
      %v1180 = vadd.f32 %v1028, %v1119
      %v1181 = vadd.f32 %v1029, %v1167
      %s1182 = scalar_lea.vmem %s2, 96
      %v1183 = vld [vmem:[%s1182] sm:$0xf]
      %v1184 = vld [vmem:[%s1182 + $0x4] sm:$0xf]
      %v1185 = vld [vmem:[%s1182 + $0x8] sm:$0xf]
      %v1186 = vld [vmem:[%s1182 + $0xc] sm:$0xf]
      %v1191 = vunpack.c.l.b16 %v1183
      %v1192 = vunpack.c.l.b16 %v1184
      %v1193 = vunpack.c.l.b16 %v1185
      %v1194 = vunpack.c.l.b16 %v1186
      %v1195 = vpack.c.b16 %v1192, %v1191
      %v1196 = vpack.c.b16 %v1194, %v1193
      %1197 = vrot.lane.b32.xlu0 %v453, 110
      %v1198 = vpop.permute.xlu0 %1197
      %1199 = vrot.lane.b32.xlu0 %v454, 110
      %v1200 = vpop.permute.xlu0 %1199
      %1201 = vrot.lane.b32.xlu0 %v455, 110
      %v1202 = vpop.permute.xlu0 %1201
      %vm1203 = vcmask 900096
      %v1204 = vsel %vm1203, %v1198, %v1200
      %v1205 = vsel %vm1203, %v1200, %v1202
      %v1207 = vsel %vm319, %v1195, 0
      %v1210 = vsel %vm319, %v1196, 0
      %v1213 = vsel %vm326, %v1204, 0
      %v1216 = vsel %vm326, %v1205, 0
      %v1219 = vsel %vm326, %v1202, 0
      %1221 = vmatprep.subr.bf16.mxu0 %v1216
      %1222 = vmatpush1.bf16.msra.mxu0 %v1213
      %1223 = vmatprep.subr.bf16.mxu0 0
      %1224 = vmatpush1.bf16.msra.mxu0 0
      %1225 = vmatprep.subr.bf16.mxu0 0
      %1226 = vmatpush1.bf16.msra.mxu0 0
      %1227 = vmatprep.subr.bf16.mxu0 0
      %1228 = vmatpush1.bf16.msra.mxu0 0
      %1229 = vmatprep.subr.bf16.mxu0 0
      %1230 = vmatpush1.bf16.msra.mxu0 0
      %1231 = vmatprep.subr.bf16.mxu0 0
      %1232 = vmatpush1.bf16.msra.mxu0 0
      %1233 = vmatprep.subr.bf16.mxu0 0
      %1234 = vmatpush1.bf16.msra.mxu0 0
      %1235 = vmatprep.subr.bf16.mxu0 0
      %1236 = vmatpush1.bf16.msra.mxu0 0
      %1237 = vmatprep.subr.bf16.mxu0 0
      %1238 = vmatpush1.bf16.msra.mxu0 0
      %1239 = vmatprep.subr.bf16.mxu0 0
      %1240 = vmatpush1.bf16.msra.mxu0 0
      %1241 = vmatprep.subr.bf16.mxu0 0
      %1242 = vmatpush1.bf16.msra.mxu0 0
      %1243 = vmatprep.subr.bf16.mxu0 0
      %1244 = vmatpush1.bf16.msra.mxu0 0
      %1245 = vmatprep.subr.bf16.mxu0 0
      %1246 = vmatpush1.bf16.msra.mxu0 0
      %1247 = vmatprep.subr.bf16.mxu0 0
      %1248 = vmatpush1.bf16.msra.mxu0 0
      %1249 = vmatprep.subr.bf16.mxu0 0
      %1250 = vmatpush1.bf16.msra.mxu0 0
      %1251 = vmatprep.subr.bf16.mxu0 0
      %1252 = vmatpush1.bf16.msra.mxu0 0
      %1253 = vmatprep.mubr.bf16.mxu0 0
      %1254 = vmatmul.mubr.bf16.gmra.mrb[0].mxu0 %v1207
      %v1255 = vpop.f32.mrb[0].mxu0
      %v1256 = vadd.f32 0.0, %v1255
      %v1257 = vpop.f32.mrb[0].mxu0
      %v1258 = vadd.f32 0.0, %v1257
      %v1259 = vpop.f32.mrb[0].mxu0
      %v1260 = vadd.f32 0.0, %v1259
      %v1261 = vpop.f32.mrb[0].mxu0
      %v1262 = vadd.f32 0.0, %v1261
      %1263 = vmatprep.mubr.bf16.mxu0 0
      %1264 = vmatmul.mubr.bf16.gmra.mrb[0].mxu0 %v1210
      %v1265 = vpop.f32.mrb[0].mxu0
      %v1266 = vadd.f32 0.0, %v1265
      %v1267 = vpop.f32.mrb[0].mxu0
      %v1268 = vadd.f32 0.0, %v1267
      %v1269 = vpop.f32.mrb[0].mxu0
      %v1270 = vadd.f32 0.0, %v1269
      %v1271 = vpop.f32.mrb[0].mxu0
      %v1272 = vadd.f32 0.0, %v1271
      %1273 = vdwg.mxu0
      %1274 = vmatprep.subr.bf16.mxu0 0
      %1275 = vmatpush1.bf16.msra.mxu0 %v1219
      %1276 = vmatprep.subr.bf16.mxu0 0
      %1277 = vmatpush1.bf16.msra.mxu0 0
      %1278 = vmatprep.subr.bf16.mxu0 0
      %1279 = vmatpush1.bf16.msra.mxu0 0
      %1280 = vmatprep.subr.bf16.mxu0 0
      %1281 = vmatpush1.bf16.msra.mxu0 0
      %1282 = vmatprep.subr.bf16.mxu0 0
      %1283 = vmatpush1.bf16.msra.mxu0 0
      %1284 = vmatprep.subr.bf16.mxu0 0
      %1285 = vmatpush1.bf16.msra.mxu0 0
      %1286 = vmatprep.subr.bf16.mxu0 0
      %1287 = vmatpush1.bf16.msra.mxu0 0
      %1288 = vmatprep.subr.bf16.mxu0 0
      %1289 = vmatpush1.bf16.msra.mxu0 0
      %1290 = vmatprep.subr.bf16.mxu0 0
      %1291 = vmatpush1.bf16.msra.mxu0 0
      %1292 = vmatprep.subr.bf16.mxu0 0
      %1293 = vmatpush1.bf16.msra.mxu0 0
      %1294 = vmatprep.subr.bf16.mxu0 0
      %1295 = vmatpush1.bf16.msra.mxu0 0
      %1296 = vmatprep.subr.bf16.mxu0 0
      %1297 = vmatpush1.bf16.msra.mxu0 0
      %1298 = vmatprep.subr.bf16.mxu0 0
      %1299 = vmatpush1.bf16.msra.mxu0 0
      %1300 = vmatprep.subr.bf16.mxu0 0
      %1301 = vmatpush1.bf16.msra.mxu0 0
      %1302 = vmatprep.subr.bf16.mxu0 0
      %1303 = vmatpush1.bf16.msra.mxu0 0
      %1304 = vmatprep.subr.bf16.mxu0 0
      %1305 = vmatpush1.bf16.msra.mxu0 0
      %1306 = vmatprep.mubr.bf16.mxu0 0
      %1307 = vmatmul.mubr.bf16.gmra.mrb[0].mxu0 %v1207
      %v1308 = vpop.f32.mrb[0].mxu0
      %v1309 = vadd.f32 0.0, %v1308
      %v1310 = vpop.f32.mrb[0].mxu0
      %v1311 = vpop.f32.mrb[0].mxu0
      %v1312 = vadd.f32 0.0, %v1311
      %v1313 = vpop.f32.mrb[0].mxu0
      %1314 = vmatprep.mubr.bf16.mxu0 0
      %1315 = vmatmul.mubr.bf16.gmra.mrb[0].mxu0 %v1210
      %v1316 = vpop.f32.mrb[0].mxu0
      %v1317 = vadd.f32 0.0, %v1316
      %v1318 = vpop.f32.mrb[0].mxu0
      %v1319 = vpop.f32.mrb[0].mxu0
      %v1320 = vadd.f32 0.0, %v1319
      %v1321 = vpop.f32.mrb[0].mxu0
      %1322 = vdwg.mxu0
      %v1323 = vadd.f32 %v1170, %v1256
      %v1324 = vadd.f32 %v1171, %v1258
      %v1325 = vadd.f32 %v1172, %v1309
      %v1326 = vadd.f32 %v1173, %v1260
      %v1327 = vadd.f32 %v1174, %v1262
      %v1328 = vadd.f32 %v1175, %v1312
      %v1329 = vadd.f32 %v1176, %v1266
      %v1330 = vadd.f32 %v1177, %v1268
      %v1331 = vadd.f32 %v1178, %v1317
      %v1332 = vadd.f32 %v1179, %v1270
      %v1333 = vadd.f32 %v1180, %v1272
      %v1334 = vadd.f32 %v1181, %v1320
      %s1335 = scalar_lea.vmem %s2, 112
      %v1336 = vld [vmem:[%s1335] sm:$0xf]
      %v1337 = vld [vmem:[%s1335 + $0x4] sm:$0xf]
      %v1338 = vld [vmem:[%s1335 + $0x8] sm:$0xf]
      %v1339 = vld [vmem:[%s1335 + $0xc] sm:$0xf]
      %v1344 = vunpack.c.l.b16 %v1336
      %v1345 = vunpack.c.l.b16 %v1337
      %v1346 = vunpack.c.l.b16 %v1338
      %v1347 = vunpack.c.l.b16 %v1339
      %v1348 = vpack.c.b16 %v1345, %v1344
      %v1349 = vpack.c.b16 %v1347, %v1346
      %1350 = vrot.lane.b32.xlu0 %v316, 110
      %v1351 = vpop.permute.xlu0 %1350
      %1352 = vrot.lane.b32.xlu0 %v317, 110
      %v1353 = vpop.permute.xlu0 %1352
      %1354 = vrot.lane.b32.xlu0 %v318, 110
      %v1355 = vpop.permute.xlu0 %1354
      %v1356 = vsel %vm1203, %v1351, %v1353
      %v1357 = vsel %vm1203, %v1353, %v1355
      %v1359 = vsel %vm319, %v1348, 0
      %v1362 = vsel %vm319, %v1349, 0
      %v1365 = vsel %vm326, %v1356, 0
      %v1368 = vsel %vm326, %v1357, 0
      %v1371 = vsel %vm326, %v1355, 0
      %1373 = vmatprep.subr.bf16.mxu0 %v1368
      %1374 = vmatpush1.bf16.msra.mxu0 %v1365
      %1375 = vmatprep.subr.bf16.mxu0 0
      %1376 = vmatpush1.bf16.msra.mxu0 0
      %1377 = vmatprep.subr.bf16.mxu0 0
      %1378 = vmatpush1.bf16.msra.mxu0 0
      %1379 = vmatprep.subr.bf16.mxu0 0
      %1380 = vmatpush1.bf16.msra.mxu0 0
      %1381 = vmatprep.subr.bf16.mxu0 0
      %1382 = vmatpush1.bf16.msra.mxu0 0
      %1383 = vmatprep.subr.bf16.mxu0 0
      %1384 = vmatpush1.bf16.msra.mxu0 0
      %1385 = vmatprep.subr.bf16.mxu0 0
      %1386 = vmatpush1.bf16.msra.mxu0 0
      %1387 = vmatprep.subr.bf16.mxu0 0
      %1388 = vmatpush1.bf16.msra.mxu0 0
      %1389 = vmatprep.subr.bf16.mxu0 0
      %1390 = vmatpush1.bf16.msra.mxu0 0
      %1391 = vmatprep.subr.bf16.mxu0 0
      %1392 = vmatpush1.bf16.msra.mxu0 0
      %1393 = vmatprep.subr.bf16.mxu0 0
      %1394 = vmatpush1.bf16.msra.mxu0 0
      %1395 = vmatprep.subr.bf16.mxu0 0
      %1396 = vmatpush1.bf16.msra.mxu0 0
      %1397 = vmatprep.subr.bf16.mxu0 0
      %1398 = vmatpush1.bf16.msra.mxu0 0
      %1399 = vmatprep.subr.bf16.mxu0 0
      %1400 = vmatpush1.bf16.msra.mxu0 0
      %1401 = vmatprep.subr.bf16.mxu0 0
      %1402 = vmatpush1.bf16.msra.mxu0 0
      %1403 = vmatprep.subr.bf16.mxu0 0
      %1404 = vmatpush1.bf16.msra.mxu0 0
      %1405 = vmatprep.mubr.bf16.mxu0 0
      %1406 = vmatmul.mubr.bf16.gmra.mrb[0].mxu0 %v1359
      %v1407 = vpop.f32.mrb[0].mxu0
      %v1408 = vadd.f32 0.0, %v1407
      %v1409 = vpop.f32.mrb[0].mxu0
      %v1410 = vadd.f32 0.0, %v1409
      %v1411 = vpop.f32.mrb[0].mxu0
      %v1412 = vadd.f32 0.0, %v1411
      %v1413 = vpop.f32.mrb[0].mxu0
      %v1414 = vadd.f32 0.0, %v1413
      %1415 = vmatprep.mubr.bf16.mxu0 0
      %1416 = vmatmul.mubr.bf16.gmra.mrb[0].mxu0 %v1362
      %v1417 = vpop.f32.mrb[0].mxu0
      %v1418 = vadd.f32 0.0, %v1417
      %v1419 = vpop.f32.mrb[0].mxu0
      %v1420 = vadd.f32 0.0, %v1419
      %v1421 = vpop.f32.mrb[0].mxu0
      %v1422 = vadd.f32 0.0, %v1421
      %v1423 = vpop.f32.mrb[0].mxu0
      %v1424 = vadd.f32 0.0, %v1423
      %1425 = vdwg.mxu0
      %1426 = vmatprep.subr.bf16.mxu0 0
      %1427 = vmatpush1.bf16.msra.mxu0 %v1371
      %1428 = vmatprep.subr.bf16.mxu0 0
      %1429 = vmatpush1.bf16.msra.mxu0 0
      %1430 = vmatprep.subr.bf16.mxu0 0
      %1431 = vmatpush1.bf16.msra.mxu0 0
      %1432 = vmatprep.subr.bf16.mxu0 0
      %1433 = vmatpush1.bf16.msra.mxu0 0
      %1434 = vmatprep.subr.bf16.mxu0 0
      %1435 = vmatpush1.bf16.msra.mxu0 0
      %1436 = vmatprep.subr.bf16.mxu0 0
      %1437 = vmatpush1.bf16.msra.mxu0 0
      %1438 = vmatprep.subr.bf16.mxu0 0
      %1439 = vmatpush1.bf16.msra.mxu0 0
      %1440 = vmatprep.subr.bf16.mxu0 0
      %1441 = vmatpush1.bf16.msra.mxu0 0
      %1442 = vmatprep.subr.bf16.mxu0 0
      %1443 = vmatpush1.bf16.msra.mxu0 0
      %1444 = vmatprep.subr.bf16.mxu0 0
      %1445 = vmatpush1.bf16.msra.mxu0 0
      %1446 = vmatprep.subr.bf16.mxu0 0
      %1447 = vmatpush1.bf16.msra.mxu0 0
      %1448 = vmatprep.subr.bf16.mxu0 0
      %1449 = vmatpush1.bf16.msra.mxu0 0
      %1450 = vmatprep.subr.bf16.mxu0 0
      %1451 = vmatpush1.bf16.msra.mxu0 0
      %1452 = vmatprep.subr.bf16.mxu0 0
      %1453 = vmatpush1.bf16.msra.mxu0 0
      %1454 = vmatprep.subr.bf16.mxu0 0
      %1455 = vmatpush1.bf16.msra.mxu0 0
      %1456 = vmatprep.subr.bf16.mxu0 0
      %1457 = vmatpush1.bf16.msra.mxu0 0
      %1458 = vmatprep.mubr.bf16.mxu0 0
      %1459 = vmatmul.mubr.bf16.gmra.mrb[0].mxu0 %v1359
      %v1460 = vpop.f32.mrb[0].mxu0
      %v1461 = vadd.f32 0.0, %v1460
      %v1462 = vpop.f32.mrb[0].mxu0
      %v1463 = vpop.f32.mrb[0].mxu0
      %v1464 = vadd.f32 0.0, %v1463
      %v1465 = vpop.f32.mrb[0].mxu0
      %1466 = vmatprep.mubr.bf16.mxu0 0
      %1467 = vmatmul.mubr.bf16.gmra.mrb[0].mxu0 %v1362
      %v1468 = vpop.f32.mrb[0].mxu0
      %v1469 = vadd.f32 0.0, %v1468
      %v1470 = vpop.f32.mrb[0].mxu0
      %v1471 = vpop.f32.mrb[0].mxu0
      %v1472 = vadd.f32 0.0, %v1471
      %v1473 = vpop.f32.mrb[0].mxu0
      %1474 = vdwg.mxu0
      %v1475 = vadd.f32 %v1323, %v1408
      %v1476 = vadd.f32 %v1324, %v1410
      %v1477 = vadd.f32 %v1325, %v1461
      %v1478 = vadd.f32 %v1326, %v1412
      %v1479 = vadd.f32 %v1327, %v1414
      %v1480 = vadd.f32 %v1328, %v1464
      %v1481 = vadd.f32 %v1329, %v1418
      %v1482 = vadd.f32 %v1330, %v1420
      %v1483 = vadd.f32 %v1331, %v1469
      %v1484 = vadd.f32 %v1332, %v1422
      %v1485 = vadd.f32 %v1333, %v1424
      %v1486 = vadd.f32 %v1334, %v1472
      %s1487 = scalar_lea.vmem %s2, 128
      %v1488 = vld [vmem:[%s1487] sm:$0xf]
      %v1489 = vld [vmem:[%s1487 + $0x4] sm:$0xf]
      %v1490 = vld [vmem:[%s1487 + $0x8] sm:$0xf]
      %v1491 = vld [vmem:[%s1487 + $0xc] sm:$0xf]
      %v1496 = vunpack.c.l.b16 %v1488
      %v1497 = vunpack.c.l.b16 %v1489
      %v1498 = vunpack.c.l.b16 %v1490
      %v1499 = vunpack.c.l.b16 %v1491
      %v1500 = vpack.c.b16 %v1497, %v1496
      %v1501 = vpack.c.b16 %v1499, %v1498
      %1502 = vrot.lane.b32.xlu0 %v453, 109
      %v1503 = vpop.permute.xlu0 %1502
      %1504 = vrot.lane.b32.xlu0 %v454, 109
      %v1505 = vpop.permute.xlu0 %1504
      %1506 = vrot.lane.b32.xlu0 %v455, 109
      %v1507 = vpop.permute.xlu0 %1506
      %vm1508 = vcmask 891904
      %v1509 = vsel %vm1508, %v1503, %v1505
      %v1510 = vsel %vm1508, %v1505, %v1507
      %v1512 = vsel %vm319, %v1500, 0
      %v1515 = vsel %vm319, %v1501, 0
      %v1518 = vsel %vm326, %v1509, 0
      %v1521 = vsel %vm326, %v1510, 0
      %v1524 = vsel %vm326, %v1507, 0
      %1526 = vmatprep.subr.bf16.mxu0 %v1521
      %1527 = vmatpush1.bf16.msra.mxu0 %v1518
      %1528 = vmatprep.subr.bf16.mxu0 0
      %1529 = vmatpush1.bf16.msra.mxu0 0
      %1530 = vmatprep.subr.bf16.mxu0 0
      %1531 = vmatpush1.bf16.msra.mxu0 0
      %1532 = vmatprep.subr.bf16.mxu0 0
      %1533 = vmatpush1.bf16.msra.mxu0 0
      %1534 = vmatprep.subr.bf16.mxu0 0
      %1535 = vmatpush1.bf16.msra.mxu0 0
      %1536 = vmatprep.subr.bf16.mxu0 0
      %1537 = vmatpush1.bf16.msra.mxu0 0
      %1538 = vmatprep.subr.bf16.mxu0 0
      %1539 = vmatpush1.bf16.msra.mxu0 0
      %1540 = vmatprep.subr.bf16.mxu0 0
      %1541 = vmatpush1.bf16.msra.mxu0 0
      %1542 = vmatprep.subr.bf16.mxu0 0
      %1543 = vmatpush1.bf16.msra.mxu0 0
      %1544 = vmatprep.subr.bf16.mxu0 0
      %1545 = vmatpush1.bf16.msra.mxu0 0
      %1546 = vmatprep.subr.bf16.mxu0 0
      %1547 = vmatpush1.bf16.msra.mxu0 0
      %1548 = vmatprep.subr.bf16.mxu0 0
      %1549 = vmatpush1.bf16.msra.mxu0 0
      %1550 = vmatprep.subr.bf16.mxu0 0
      %1551 = vmatpush1.bf16.msra.mxu0 0
      %1552 = vmatprep.subr.bf16.mxu0 0
      %1553 = vmatpush1.bf16.msra.mxu0 0
      %1554 = vmatprep.subr.bf16.mxu0 0
      %1555 = vmatpush1.bf16.msra.mxu0 0
      %1556 = vmatprep.subr.bf16.mxu0 0
      %1557 = vmatpush1.bf16.msra.mxu0 0
      %1558 = vmatprep.mubr.bf16.mxu0 0
      %1559 = vmatmul.mubr.bf16.gmra.mrb[0].mxu0 %v1512
      %v1560 = vpop.f32.mrb[0].mxu0
      %v1561 = vadd.f32 0.0, %v1560
      %v1562 = vpop.f32.mrb[0].mxu0
      %v1563 = vadd.f32 0.0, %v1562
      %v1564 = vpop.f32.mrb[0].mxu0
      %v1565 = vadd.f32 0.0, %v1564
      %v1566 = vpop.f32.mrb[0].mxu0
      %v1567 = vadd.f32 0.0, %v1566
      %1568 = vmatprep.mubr.bf16.mxu0 0
      %1569 = vmatmul.mubr.bf16.gmra.mrb[0].mxu0 %v1515
      %v1570 = vpop.f32.mrb[0].mxu0
      %v1571 = vadd.f32 0.0, %v1570
      %v1572 = vpop.f32.mrb[0].mxu0
      %v1573 = vadd.f32 0.0, %v1572
      %v1574 = vpop.f32.mrb[0].mxu0
      %v1575 = vadd.f32 0.0, %v1574
      %v1576 = vpop.f32.mrb[0].mxu0
      %v1577 = vadd.f32 0.0, %v1576
      %1578 = vdwg.mxu0
      %1579 = vmatprep.subr.bf16.mxu0 0
      %1580 = vmatpush1.bf16.msra.mxu0 %v1524
      %1581 = vmatprep.subr.bf16.mxu0 0
      %1582 = vmatpush1.bf16.msra.mxu0 0
      %1583 = vmatprep.subr.bf16.mxu0 0
      %1584 = vmatpush1.bf16.msra.mxu0 0
      %1585 = vmatprep.subr.bf16.mxu0 0
      %1586 = vmatpush1.bf16.msra.mxu0 0
      %1587 = vmatprep.subr.bf16.mxu0 0
      %1588 = vmatpush1.bf16.msra.mxu0 0
      %1589 = vmatprep.subr.bf16.mxu0 0
      %1590 = vmatpush1.bf16.msra.mxu0 0
      %1591 = vmatprep.subr.bf16.mxu0 0
      %1592 = vmatpush1.bf16.msra.mxu0 0
      %1593 = vmatprep.subr.bf16.mxu0 0
      %1594 = vmatpush1.bf16.msra.mxu0 0
      %1595 = vmatprep.subr.bf16.mxu0 0
      %1596 = vmatpush1.bf16.msra.mxu0 0
      %1597 = vmatprep.subr.bf16.mxu0 0
      %1598 = vmatpush1.bf16.msra.mxu0 0
      %1599 = vmatprep.subr.bf16.mxu0 0
      %1600 = vmatpush1.bf16.msra.mxu0 0
      %1601 = vmatprep.subr.bf16.mxu0 0
      %1602 = vmatpush1.bf16.msra.mxu0 0
      %1603 = vmatprep.subr.bf16.mxu0 0
      %1604 = vmatpush1.bf16.msra.mxu0 0
      %1605 = vmatprep.subr.bf16.mxu0 0
      %1606 = vmatpush1.bf16.msra.mxu0 0
      %1607 = vmatprep.subr.bf16.mxu0 0
      %1608 = vmatpush1.bf16.msra.mxu0 0
      %1609 = vmatprep.subr.bf16.mxu0 0
      %1610 = vmatpush1.bf16.msra.mxu0 0
      %1611 = vmatprep.mubr.bf16.mxu0 0
      %1612 = vmatmul.mubr.bf16.gmra.mrb[0].mxu0 %v1512
      %v1613 = vpop.f32.mrb[0].mxu0
      %v1614 = vadd.f32 0.0, %v1613
      %v1615 = vpop.f32.mrb[0].mxu0
      %v1616 = vpop.f32.mrb[0].mxu0
      %v1617 = vadd.f32 0.0, %v1616
      %v1618 = vpop.f32.mrb[0].mxu0
      %1619 = vmatprep.mubr.bf16.mxu0 0
      %1620 = vmatmul.mubr.bf16.gmra.mrb[0].mxu0 %v1515
      %v1621 = vpop.f32.mrb[0].mxu0
      %v1622 = vadd.f32 0.0, %v1621
      %v1623 = vpop.f32.mrb[0].mxu0
      %v1624 = vpop.f32.mrb[0].mxu0
      %v1625 = vadd.f32 0.0, %v1624
      %v1626 = vpop.f32.mrb[0].mxu0
      %1627 = vdwg.mxu0
      %v1628 = vadd.f32 %v1475, %v1561
      %v1629 = vadd.f32 %v1476, %v1563
      %v1630 = vadd.f32 %v1477, %v1614
      %v1631 = vadd.f32 %v1478, %v1565
      %v1632 = vadd.f32 %v1479, %v1567
      %v1633 = vadd.f32 %v1480, %v1617
      %v1634 = vadd.f32 %v1481, %v1571
      %v1635 = vadd.f32 %v1482, %v1573
      %v1636 = vadd.f32 %v1483, %v1622
      %v1637 = vadd.f32 %v1484, %v1575
      %v1638 = vadd.f32 %v1485, %v1577
      %v1639 = vadd.f32 %v1486, %v1625
      %1640 = vmatprep.subr.bf16.mxu0 %v607
      %1641 = vmatpush1.bf16.msra.mxu0 %v604
      %1642 = vmatprep.subr.bf16.mxu0 0
      %1643 = vmatpush1.bf16.msra.mxu0 0
      %1644 = vmatprep.subr.bf16.mxu0 0
      %1645 = vmatpush1.bf16.msra.mxu0 0
      %1646 = vmatprep.subr.bf16.mxu0 0
      %1647 = vmatpush1.bf16.msra.mxu0 0
      %1648 = vmatprep.subr.bf16.mxu0 0
      %1649 = vmatpush1.bf16.msra.mxu0 0
      %1650 = vmatprep.subr.bf16.mxu0 0
      %1651 = vmatpush1.bf16.msra.mxu0 0
      %1652 = vmatprep.subr.bf16.mxu0 0
      %1653 = vmatpush1.bf16.msra.mxu0 0
      %1654 = vmatprep.subr.bf16.mxu0 0
      %1655 = vmatpush1.bf16.msra.mxu0 0
      %1656 = vmatprep.subr.bf16.mxu0 0
      %1657 = vmatpush1.bf16.msra.mxu0 0
      %1658 = vmatprep.subr.bf16.mxu0 0
      %1659 = vmatpush1.bf16.msra.mxu0 0
      %1660 = vmatprep.subr.bf16.mxu0 0
      %1661 = vmatpush1.bf16.msra.mxu0 0
      %1662 = vmatprep.subr.bf16.mxu0 0
      %1663 = vmatpush1.bf16.msra.mxu0 0
      %1664 = vmatprep.subr.bf16.mxu0 0
      %1665 = vmatpush1.bf16.msra.mxu0 0
      %1666 = vmatprep.subr.bf16.mxu0 0
      %1667 = vmatpush1.bf16.msra.mxu0 0
      %1668 = vmatprep.subr.bf16.mxu0 0
      %1669 = vmatpush1.bf16.msra.mxu0 0
      %1670 = vmatprep.subr.bf16.mxu0 0
      %1671 = vmatpush1.bf16.msra.mxu0 0
      %1672 = vmatprep.mubr.bf16.mxu0 0
      %1673 = vmatmul.mubr.bf16.gmra.mrb[0].mxu0 %v321
      %v1674 = vpop.f32.mrb[0].mxu0
      %v1675 = vadd.f32 0.0, %v1674
      %v1676 = vpop.f32.mrb[0].mxu0
      %v1677 = vadd.f32 0.0, %v1676
      %v1678 = vpop.f32.mrb[0].mxu0
      %v1679 = vadd.f32 0.0, %v1678
      %v1680 = vpop.f32.mrb[0].mxu0
      %v1681 = vadd.f32 0.0, %v1680
      %1682 = vmatprep.mubr.bf16.mxu0 0
      %1683 = vmatmul.mubr.bf16.gmra.mrb[0].mxu0 %v324
      %v1684 = vpop.f32.mrb[0].mxu0
      %v1685 = vadd.f32 0.0, %v1684
      %v1686 = vpop.f32.mrb[0].mxu0
      %v1687 = vadd.f32 0.0, %v1686
      %v1688 = vpop.f32.mrb[0].mxu0
      %v1689 = vadd.f32 0.0, %v1688
      %v1690 = vpop.f32.mrb[0].mxu0
      %v1691 = vadd.f32 0.0, %v1690
      %1692 = vdwg.mxu0
      %1693 = vmatprep.subr.bf16.mxu0 0
      %1694 = vmatpush1.bf16.msra.mxu0 %v610
      %1695 = vmatprep.subr.bf16.mxu0 0
      %1696 = vmatpush1.bf16.msra.mxu0 0
      %1697 = vmatprep.subr.bf16.mxu0 0
      %1698 = vmatpush1.bf16.msra.mxu0 0
      %1699 = vmatprep.subr.bf16.mxu0 0
      %1700 = vmatpush1.bf16.msra.mxu0 0
      %1701 = vmatprep.subr.bf16.mxu0 0
      %1702 = vmatpush1.bf16.msra.mxu0 0
      %1703 = vmatprep.subr.bf16.mxu0 0
      %1704 = vmatpush1.bf16.msra.mxu0 0
      %1705 = vmatprep.subr.bf16.mxu0 0
      %1706 = vmatpush1.bf16.msra.mxu0 0
      %1707 = vmatprep.subr.bf16.mxu0 0
      %1708 = vmatpush1.bf16.msra.mxu0 0
      %1709 = vmatprep.subr.bf16.mxu0 0
      %1710 = vmatpush1.bf16.msra.mxu0 0
      %1711 = vmatprep.subr.bf16.mxu0 0
      %1712 = vmatpush1.bf16.msra.mxu0 0
      %1713 = vmatprep.subr.bf16.mxu0 0
      %1714 = vmatpush1.bf16.msra.mxu0 0
      %1715 = vmatprep.subr.bf16.mxu0 0
      %1716 = vmatpush1.bf16.msra.mxu0 0
      %1717 = vmatprep.subr.bf16.mxu0 0
      %1718 = vmatpush1.bf16.msra.mxu0 0
      %1719 = vmatprep.subr.bf16.mxu0 0
      %1720 = vmatpush1.bf16.msra.mxu0 0
      %1721 = vmatprep.subr.bf16.mxu0 0
      %1722 = vmatpush1.bf16.msra.mxu0 0
      %1723 = vmatprep.subr.bf16.mxu0 0
      %1724 = vmatpush1.bf16.msra.mxu0 0
      %1725 = vmatprep.mubr.bf16.mxu0 0
      %1726 = vmatmul.mubr.bf16.gmra.mrb[0].mxu0 %v321
      %v1727 = vpop.f32.mrb[0].mxu0
      %v1728 = vadd.f32 0.0, %v1727
      %v1729 = vpop.f32.mrb[0].mxu0
      %v1730 = vpop.f32.mrb[0].mxu0
      %v1731 = vadd.f32 0.0, %v1730
      %v1732 = vpop.f32.mrb[0].mxu0
      %1733 = vmatprep.mubr.bf16.mxu0 0
      %1734 = vmatmul.mubr.bf16.gmra.mrb[0].mxu0 %v324
      %v1735 = vpop.f32.mrb[0].mxu0
      %v1736 = vadd.f32 0.0, %v1735
      %v1737 = vpop.f32.mrb[0].mxu0
      %v1738 = vpop.f32.mrb[0].mxu0
      %v1739 = vadd.f32 0.0, %v1738
      %v1740 = vpop.f32.mrb[0].mxu0
      %1741 = vdwg.mxu0
      %1742 = vmatprep.subr.bf16.mxu0 %v331
      %1743 = vmatpush1.bf16.msra.mxu0 %v328
      %1744 = vmatprep.subr.bf16.mxu0 0
      %1745 = vmatpush1.bf16.msra.mxu0 0
      %1746 = vmatprep.subr.bf16.mxu0 0
      %1747 = vmatpush1.bf16.msra.mxu0 0
      %1748 = vmatprep.subr.bf16.mxu0 0
      %1749 = vmatpush1.bf16.msra.mxu0 0
      %1750 = vmatprep.subr.bf16.mxu0 0
      %1751 = vmatpush1.bf16.msra.mxu0 0
      %1752 = vmatprep.subr.bf16.mxu0 0
      %1753 = vmatpush1.bf16.msra.mxu0 0
      %1754 = vmatprep.subr.bf16.mxu0 0
      %1755 = vmatpush1.bf16.msra.mxu0 0
      %1756 = vmatprep.subr.bf16.mxu0 0
      %1757 = vmatpush1.bf16.msra.mxu0 0
      %1758 = vmatprep.subr.bf16.mxu0 0
      %1759 = vmatpush1.bf16.msra.mxu0 0
      %1760 = vmatprep.subr.bf16.mxu0 0
      %1761 = vmatpush1.bf16.msra.mxu0 0
      %1762 = vmatprep.subr.bf16.mxu0 0
      %1763 = vmatpush1.bf16.msra.mxu0 0
      %1764 = vmatprep.subr.bf16.mxu0 0
      %1765 = vmatpush1.bf16.msra.mxu0 0
      %1766 = vmatprep.subr.bf16.mxu0 0
      %1767 = vmatpush1.bf16.msra.mxu0 0
      %1768 = vmatprep.subr.bf16.mxu0 0
      %1769 = vmatpush1.bf16.msra.mxu0 0
      %1770 = vmatprep.subr.bf16.mxu0 0
      %1771 = vmatpush1.bf16.msra.mxu0 0
      %1772 = vmatprep.subr.bf16.mxu0 0
      %1773 = vmatpush1.bf16.msra.mxu0 0
      %1774 = vmatprep.mubr.bf16.mxu0 0
      %1775 = vmatmul.mubr.bf16.gmra.mrb[0].mxu0 %v457
      %v1776 = vpop.f32.mrb[0].mxu0
      %v1777 = vadd.f32 %v1675, %v1776
      %v1778 = vpop.f32.mrb[0].mxu0
      %v1779 = vadd.f32 %v1677, %v1778
      %v1780 = vpop.f32.mrb[0].mxu0
      %v1781 = vadd.f32 %v1679, %v1780
      %v1782 = vpop.f32.mrb[0].mxu0
      %v1783 = vadd.f32 %v1681, %v1782
      %1784 = vmatprep.mubr.bf16.mxu0 0
      %1785 = vmatmul.mubr.bf16.gmra.mrb[0].mxu0 %v460
      %v1786 = vpop.f32.mrb[0].mxu0
      %v1787 = vadd.f32 %v1685, %v1786
      %v1788 = vpop.f32.mrb[0].mxu0
      %v1789 = vadd.f32 %v1687, %v1788
      %v1790 = vpop.f32.mrb[0].mxu0
      %v1791 = vadd.f32 %v1689, %v1790
      %v1792 = vpop.f32.mrb[0].mxu0
      %v1793 = vadd.f32 %v1691, %v1792
      %1794 = vdwg.mxu0
      %1795 = vmatprep.subr.bf16.mxu0 0
      %1796 = vmatpush1.bf16.msra.mxu0 %v334
      %1797 = vmatprep.subr.bf16.mxu0 0
      %1798 = vmatpush1.bf16.msra.mxu0 0
      %1799 = vmatprep.subr.bf16.mxu0 0
      %1800 = vmatpush1.bf16.msra.mxu0 0
      %1801 = vmatprep.subr.bf16.mxu0 0
      %1802 = vmatpush1.bf16.msra.mxu0 0
      %1803 = vmatprep.subr.bf16.mxu0 0
      %1804 = vmatpush1.bf16.msra.mxu0 0
      %1805 = vmatprep.subr.bf16.mxu0 0
      %1806 = vmatpush1.bf16.msra.mxu0 0
      %1807 = vmatprep.subr.bf16.mxu0 0
      %1808 = vmatpush1.bf16.msra.mxu0 0
      %1809 = vmatprep.subr.bf16.mxu0 0
      %1810 = vmatpush1.bf16.msra.mxu0 0
      %1811 = vmatprep.subr.bf16.mxu0 0
      %1812 = vmatpush1.bf16.msra.mxu0 0
      %1813 = vmatprep.subr.bf16.mxu0 0
      %1814 = vmatpush1.bf16.msra.mxu0 0
      %1815 = vmatprep.subr.bf16.mxu0 0
      %1816 = vmatpush1.bf16.msra.mxu0 0
      %1817 = vmatprep.subr.bf16.mxu0 0
      %1818 = vmatpush1.bf16.msra.mxu0 0
      %1819 = vmatprep.subr.bf16.mxu0 0
      %1820 = vmatpush1.bf16.msra.mxu0 0
      %1821 = vmatprep.subr.bf16.mxu0 0
      %1822 = vmatpush1.bf16.msra.mxu0 0
      %1823 = vmatprep.subr.bf16.mxu0 0
      %1824 = vmatpush1.bf16.msra.mxu0 0
      %1825 = vmatprep.subr.bf16.mxu0 0
      %1826 = vmatpush1.bf16.msra.mxu0 0
      %1827 = vmatprep.mubr.bf16.mxu0 0
      %1828 = vmatmul.mubr.bf16.gmra.mrb[0].mxu0 %v457
      %v1829 = vpop.f32.mrb[0].mxu0
      %v1830 = vadd.f32 %v1728, %v1829
      %v1831 = vpop.f32.mrb[0].mxu0
      %v1832 = vpop.f32.mrb[0].mxu0
      %v1833 = vadd.f32 %v1731, %v1832
      %v1834 = vpop.f32.mrb[0].mxu0
      %1835 = vmatprep.mubr.bf16.mxu0 0
      %1836 = vmatmul.mubr.bf16.gmra.mrb[0].mxu0 %v460
      %v1837 = vpop.f32.mrb[0].mxu0
      %v1838 = vadd.f32 %v1736, %v1837
      %v1839 = vpop.f32.mrb[0].mxu0
      %v1840 = vpop.f32.mrb[0].mxu0
      %v1841 = vadd.f32 %v1739, %v1840
      %v1842 = vpop.f32.mrb[0].mxu0
      %1843 = vdwg.mxu0
      %1844 = vrot.lane.b32.xlu0 %v316, 127
      %v1845 = vpop.permute.xlu0 %1844
      %1846 = vrot.lane.b32.xlu0 %v317, 127
      %v1847 = vpop.permute.xlu0 %1846
      %1848 = vrot.lane.b32.xlu0 %v318, 127
      %v1849 = vpop.permute.xlu0 %1848
      %v1850 = vsel %vm594, %v1845, %v1847
      %v1851 = vsel %vm594, %v1847, %v1849
      %v1853 = vsel %vm326, %v1850, 0
      %v1856 = vsel %vm326, %v1851, 0
      %v1859 = vsel %vm326, %v1849, 0
      %1861 = vmatprep.subr.bf16.mxu0 %v1856
      %1862 = vmatpush1.bf16.msra.mxu0 %v1853
      %1863 = vmatprep.subr.bf16.mxu0 0
      %1864 = vmatpush1.bf16.msra.mxu0 0
      %1865 = vmatprep.subr.bf16.mxu0 0
      %1866 = vmatpush1.bf16.msra.mxu0 0
      %1867 = vmatprep.subr.bf16.mxu0 0
      %1868 = vmatpush1.bf16.msra.mxu0 0
      %1869 = vmatprep.subr.bf16.mxu0 0
      %1870 = vmatpush1.bf16.msra.mxu0 0
      %1871 = vmatprep.subr.bf16.mxu0 0
      %1872 = vmatpush1.bf16.msra.mxu0 0
      %1873 = vmatprep.subr.bf16.mxu0 0
      %1874 = vmatpush1.bf16.msra.mxu0 0
      %1875 = vmatprep.subr.bf16.mxu0 0
      %1876 = vmatpush1.bf16.msra.mxu0 0
      %1877 = vmatprep.subr.bf16.mxu0 0
      %1878 = vmatpush1.bf16.msra.mxu0 0
      %1879 = vmatprep.subr.bf16.mxu0 0
      %1880 = vmatpush1.bf16.msra.mxu0 0
      %1881 = vmatprep.subr.bf16.mxu0 0
      %1882 = vmatpush1.bf16.msra.mxu0 0
      %1883 = vmatprep.subr.bf16.mxu0 0
      %1884 = vmatpush1.bf16.msra.mxu0 0
      %1885 = vmatprep.subr.bf16.mxu0 0
      %1886 = vmatpush1.bf16.msra.mxu0 0
      %1887 = vmatprep.subr.bf16.mxu0 0
      %1888 = vmatpush1.bf16.msra.mxu0 0
      %1889 = vmatprep.subr.bf16.mxu0 0
      %1890 = vmatpush1.bf16.msra.mxu0 0
      %1891 = vmatprep.subr.bf16.mxu0 0
      %1892 = vmatpush1.bf16.msra.mxu0 0
      %1893 = vmatprep.mubr.bf16.mxu0 0
      %1894 = vmatmul.mubr.bf16.gmra.mrb[0].mxu0 %v598
      %v1895 = vpop.f32.mrb[0].mxu0
      %v1896 = vadd.f32 0.0, %v1895
      %v1897 = vpop.f32.mrb[0].mxu0
      %v1898 = vadd.f32 0.0, %v1897
      %v1899 = vpop.f32.mrb[0].mxu0
      %v1900 = vadd.f32 0.0, %v1899
      %v1901 = vpop.f32.mrb[0].mxu0
      %v1902 = vadd.f32 0.0, %v1901
      %1903 = vmatprep.mubr.bf16.mxu0 0
      %1904 = vmatmul.mubr.bf16.gmra.mrb[0].mxu0 %v601
      %v1905 = vpop.f32.mrb[0].mxu0
      %v1906 = vadd.f32 0.0, %v1905
      %v1907 = vpop.f32.mrb[0].mxu0
      %v1908 = vadd.f32 0.0, %v1907
      %v1909 = vpop.f32.mrb[0].mxu0
      %v1910 = vadd.f32 0.0, %v1909
      %v1911 = vpop.f32.mrb[0].mxu0
      %v1912 = vadd.f32 0.0, %v1911
      %1913 = vdwg.mxu0
      %1914 = vmatprep.subr.bf16.mxu0 0
      %1915 = vmatpush1.bf16.msra.mxu0 %v1859
      %1916 = vmatprep.subr.bf16.mxu0 0
      %1917 = vmatpush1.bf16.msra.mxu0 0
      %1918 = vmatprep.subr.bf16.mxu0 0
      %1919 = vmatpush1.bf16.msra.mxu0 0
      %1920 = vmatprep.subr.bf16.mxu0 0
      %1921 = vmatpush1.bf16.msra.mxu0 0
      %1922 = vmatprep.subr.bf16.mxu0 0
      %1923 = vmatpush1.bf16.msra.mxu0 0
      %1924 = vmatprep.subr.bf16.mxu0 0
      %1925 = vmatpush1.bf16.msra.mxu0 0
      %1926 = vmatprep.subr.bf16.mxu0 0
      %1927 = vmatpush1.bf16.msra.mxu0 0
      %1928 = vmatprep.subr.bf16.mxu0 0
      %1929 = vmatpush1.bf16.msra.mxu0 0
      %1930 = vmatprep.subr.bf16.mxu0 0
      %1931 = vmatpush1.bf16.msra.mxu0 0
      %1932 = vmatprep.subr.bf16.mxu0 0
      %1933 = vmatpush1.bf16.msra.mxu0 0
      %1934 = vmatprep.subr.bf16.mxu0 0
      %1935 = vmatpush1.bf16.msra.mxu0 0
      %1936 = vmatprep.subr.bf16.mxu0 0
      %1937 = vmatpush1.bf16.msra.mxu0 0
      %1938 = vmatprep.subr.bf16.mxu0 0
      %1939 = vmatpush1.bf16.msra.mxu0 0
      %1940 = vmatprep.subr.bf16.mxu0 0
      %1941 = vmatpush1.bf16.msra.mxu0 0
      %1942 = vmatprep.subr.bf16.mxu0 0
      %1943 = vmatpush1.bf16.msra.mxu0 0
      %1944 = vmatprep.subr.bf16.mxu0 0
      %1945 = vmatpush1.bf16.msra.mxu0 0
      %1946 = vmatprep.mubr.bf16.mxu0 0
      %1947 = vmatmul.mubr.bf16.gmra.mrb[0].mxu0 %v598
      %v1948 = vpop.f32.mrb[0].mxu0
      %v1949 = vadd.f32 0.0, %v1948
      %v1950 = vpop.f32.mrb[0].mxu0
      %v1951 = vpop.f32.mrb[0].mxu0
      %v1952 = vadd.f32 0.0, %v1951
      %v1953 = vpop.f32.mrb[0].mxu0
      %1954 = vmatprep.mubr.bf16.mxu0 0
      %1955 = vmatmul.mubr.bf16.gmra.mrb[0].mxu0 %v601
      %v1956 = vpop.f32.mrb[0].mxu0
      %v1957 = vadd.f32 0.0, %v1956
      %v1958 = vpop.f32.mrb[0].mxu0
      %v1959 = vpop.f32.mrb[0].mxu0
      %v1960 = vadd.f32 0.0, %v1959
      %v1961 = vpop.f32.mrb[0].mxu0
      %1962 = vdwg.mxu0
      %v1963 = vadd.f32 %v1777, %v1896
      %v1964 = vadd.f32 %v1779, %v1898
      %v1965 = vadd.f32 %v1830, %v1949
      %v1966 = vadd.f32 %v1781, %v1900
      %v1967 = vadd.f32 %v1783, %v1902
      %v1968 = vadd.f32 %v1833, %v1952
      %v1969 = vadd.f32 %v1787, %v1906
      %v1970 = vadd.f32 %v1789, %v1908
      %v1971 = vadd.f32 %v1838, %v1957
      %v1972 = vadd.f32 %v1791, %v1910
      %v1973 = vadd.f32 %v1793, %v1912
      %v1974 = vadd.f32 %v1841, %v1960
      %1975 = vmatprep.subr.bf16.mxu0 %v911
      %1976 = vmatpush1.bf16.msra.mxu0 %v908
      %1977 = vmatprep.subr.bf16.mxu0 0
      %1978 = vmatpush1.bf16.msra.mxu0 0
      %1979 = vmatprep.subr.bf16.mxu0 0
      %1980 = vmatpush1.bf16.msra.mxu0 0
      %1981 = vmatprep.subr.bf16.mxu0 0
      %1982 = vmatpush1.bf16.msra.mxu0 0
      %1983 = vmatprep.subr.bf16.mxu0 0
      %1984 = vmatpush1.bf16.msra.mxu0 0
      %1985 = vmatprep.subr.bf16.mxu0 0
      %1986 = vmatpush1.bf16.msra.mxu0 0
      %1987 = vmatprep.subr.bf16.mxu0 0
      %1988 = vmatpush1.bf16.msra.mxu0 0
      %1989 = vmatprep.subr.bf16.mxu0 0
      %1990 = vmatpush1.bf16.msra.mxu0 0
      %1991 = vmatprep.subr.bf16.mxu0 0
      %1992 = vmatpush1.bf16.msra.mxu0 0
      %1993 = vmatprep.subr.bf16.mxu0 0
      %1994 = vmatpush1.bf16.msra.mxu0 0
      %1995 = vmatprep.subr.bf16.mxu0 0
      %1996 = vmatpush1.bf16.msra.mxu0 0
      %1997 = vmatprep.subr.bf16.mxu0 0
      %1998 = vmatpush1.bf16.msra.mxu0 0
      %1999 = vmatprep.subr.bf16.mxu0 0
      %2000 = vmatpush1.bf16.msra.mxu0 0
      %2001 = vmatprep.subr.bf16.mxu0 0
      %2002 = vmatpush1.bf16.msra.mxu0 0
      %2003 = vmatprep.subr.bf16.mxu0 0
      %2004 = vmatpush1.bf16.msra.mxu0 0
      %2005 = vmatprep.subr.bf16.mxu0 0
      %2006 = vmatpush1.bf16.msra.mxu0 0
      %2007 = vmatprep.mubr.bf16.mxu0 0
      %2008 = vmatmul.mubr.bf16.gmra.mrb[0].mxu0 %v750
      %v2009 = vpop.f32.mrb[0].mxu0
      %v2010 = vadd.f32 0.0, %v2009
      %v2011 = vpop.f32.mrb[0].mxu0
      %v2012 = vadd.f32 0.0, %v2011
      %v2013 = vpop.f32.mrb[0].mxu0
      %v2014 = vadd.f32 0.0, %v2013
      %v2015 = vpop.f32.mrb[0].mxu0
      %v2016 = vadd.f32 0.0, %v2015
      %2017 = vmatprep.mubr.bf16.mxu0 0
      %2018 = vmatmul.mubr.bf16.gmra.mrb[0].mxu0 %v753
      %v2019 = vpop.f32.mrb[0].mxu0
      %v2020 = vadd.f32 0.0, %v2019
      %v2021 = vpop.f32.mrb[0].mxu0
      %v2022 = vadd.f32 0.0, %v2021
      %v2023 = vpop.f32.mrb[0].mxu0
      %v2024 = vadd.f32 0.0, %v2023
      %v2025 = vpop.f32.mrb[0].mxu0
      %v2026 = vadd.f32 0.0, %v2025
      %2027 = vdwg.mxu0
      %2028 = vmatprep.subr.bf16.mxu0 0
      %2029 = vmatpush1.bf16.msra.mxu0 %v914
      %2030 = vmatprep.subr.bf16.mxu0 0
      %2031 = vmatpush1.bf16.msra.mxu0 0
      %2032 = vmatprep.subr.bf16.mxu0 0
      %2033 = vmatpush1.bf16.msra.mxu0 0
      %2034 = vmatprep.subr.bf16.mxu0 0
      %2035 = vmatpush1.bf16.msra.mxu0 0
      %2036 = vmatprep.subr.bf16.mxu0 0
      %2037 = vmatpush1.bf16.msra.mxu0 0
      %2038 = vmatprep.subr.bf16.mxu0 0
      %2039 = vmatpush1.bf16.msra.mxu0 0
      %2040 = vmatprep.subr.bf16.mxu0 0
      %2041 = vmatpush1.bf16.msra.mxu0 0
      %2042 = vmatprep.subr.bf16.mxu0 0
      %2043 = vmatpush1.bf16.msra.mxu0 0
      %2044 = vmatprep.subr.bf16.mxu0 0
      %2045 = vmatpush1.bf16.msra.mxu0 0
      %2046 = vmatprep.subr.bf16.mxu0 0
      %2047 = vmatpush1.bf16.msra.mxu0 0
      %2048 = vmatprep.subr.bf16.mxu0 0
      %2049 = vmatpush1.bf16.msra.mxu0 0
      %2050 = vmatprep.subr.bf16.mxu0 0
      %2051 = vmatpush1.bf16.msra.mxu0 0
      %2052 = vmatprep.subr.bf16.mxu0 0
      %2053 = vmatpush1.bf16.msra.mxu0 0
      %2054 = vmatprep.subr.bf16.mxu0 0
      %2055 = vmatpush1.bf16.msra.mxu0 0
      %2056 = vmatprep.subr.bf16.mxu0 0
      %2057 = vmatpush1.bf16.msra.mxu0 0
      %2058 = vmatprep.subr.bf16.mxu0 0
      %2059 = vmatpush1.bf16.msra.mxu0 0
      %2060 = vmatprep.mubr.bf16.mxu0 0
      %2061 = vmatmul.mubr.bf16.gmra.mrb[0].mxu0 %v750
      %v2062 = vpop.f32.mrb[0].mxu0
      %v2063 = vadd.f32 0.0, %v2062
      %v2064 = vpop.f32.mrb[0].mxu0
      %v2065 = vpop.f32.mrb[0].mxu0
      %v2066 = vadd.f32 0.0, %v2065
      %v2067 = vpop.f32.mrb[0].mxu0
      %2068 = vmatprep.mubr.bf16.mxu0 0
      %2069 = vmatmul.mubr.bf16.gmra.mrb[0].mxu0 %v753
      %v2070 = vpop.f32.mrb[0].mxu0
      %v2071 = vadd.f32 0.0, %v2070
      %v2072 = vpop.f32.mrb[0].mxu0
      %v2073 = vpop.f32.mrb[0].mxu0
      %v2074 = vadd.f32 0.0, %v2073
      %v2075 = vpop.f32.mrb[0].mxu0
      %2076 = vdwg.mxu0
      %v2077 = vadd.f32 %v1963, %v2010
      %v2078 = vadd.f32 %v1964, %v2012
      %v2079 = vadd.f32 %v1965, %v2063
      %v2080 = vadd.f32 %v1966, %v2014
      %v2081 = vadd.f32 %v1967, %v2016
      %v2082 = vadd.f32 %v1968, %v2066
      %v2083 = vadd.f32 %v1969, %v2020
      %v2084 = vadd.f32 %v1970, %v2022
      %v2085 = vadd.f32 %v1971, %v2071
      %v2086 = vadd.f32 %v1972, %v2024
      %v2087 = vadd.f32 %v1973, %v2026
      %v2088 = vadd.f32 %v1974, %v2074
      %2089 = vmatprep.subr.bf16.mxu0 %v1063
      %2090 = vmatpush1.bf16.msra.mxu0 %v1060
      %2091 = vmatprep.subr.bf16.mxu0 0
      %2092 = vmatpush1.bf16.msra.mxu0 0
      %2093 = vmatprep.subr.bf16.mxu0 0
      %2094 = vmatpush1.bf16.msra.mxu0 0
      %2095 = vmatprep.subr.bf16.mxu0 0
      %2096 = vmatpush1.bf16.msra.mxu0 0
      %2097 = vmatprep.subr.bf16.mxu0 0
      %2098 = vmatpush1.bf16.msra.mxu0 0
      %2099 = vmatprep.subr.bf16.mxu0 0
      %2100 = vmatpush1.bf16.msra.mxu0 0
      %2101 = vmatprep.subr.bf16.mxu0 0
      %2102 = vmatpush1.bf16.msra.mxu0 0
      %2103 = vmatprep.subr.bf16.mxu0 0
      %2104 = vmatpush1.bf16.msra.mxu0 0
      %2105 = vmatprep.subr.bf16.mxu0 0
      %2106 = vmatpush1.bf16.msra.mxu0 0
      %2107 = vmatprep.subr.bf16.mxu0 0
      %2108 = vmatpush1.bf16.msra.mxu0 0
      %2109 = vmatprep.subr.bf16.mxu0 0
      %2110 = vmatpush1.bf16.msra.mxu0 0
      %2111 = vmatprep.subr.bf16.mxu0 0
      %2112 = vmatpush1.bf16.msra.mxu0 0
      %2113 = vmatprep.subr.bf16.mxu0 0
      %2114 = vmatpush1.bf16.msra.mxu0 0
      %2115 = vmatprep.subr.bf16.mxu0 0
      %2116 = vmatpush1.bf16.msra.mxu0 0
      %2117 = vmatprep.subr.bf16.mxu0 0
      %2118 = vmatpush1.bf16.msra.mxu0 0
      %2119 = vmatprep.subr.bf16.mxu0 0
      %2120 = vmatpush1.bf16.msra.mxu0 0
      %2121 = vmatprep.mubr.bf16.mxu0 0
      %2122 = vmatmul.mubr.bf16.gmra.mrb[0].mxu0 %v902
      %v2123 = vpop.f32.mrb[0].mxu0
      %v2124 = vadd.f32 0.0, %v2123
      %v2125 = vpop.f32.mrb[0].mxu0
      %v2126 = vadd.f32 0.0, %v2125
      %v2127 = vpop.f32.mrb[0].mxu0
      %v2128 = vadd.f32 0.0, %v2127
      %v2129 = vpop.f32.mrb[0].mxu0
      %v2130 = vadd.f32 0.0, %v2129
      %2131 = vmatprep.mubr.bf16.mxu0 0
      %2132 = vmatmul.mubr.bf16.gmra.mrb[0].mxu0 %v905
      %v2133 = vpop.f32.mrb[0].mxu0
      %v2134 = vadd.f32 0.0, %v2133
      %v2135 = vpop.f32.mrb[0].mxu0
      %v2136 = vadd.f32 0.0, %v2135
      %v2137 = vpop.f32.mrb[0].mxu0
      %v2138 = vadd.f32 0.0, %v2137
      %v2139 = vpop.f32.mrb[0].mxu0
      %v2140 = vadd.f32 0.0, %v2139
      %2141 = vdwg.mxu0
      %2142 = vmatprep.subr.bf16.mxu0 0
      %2143 = vmatpush1.bf16.msra.mxu0 %v1066
      %2144 = vmatprep.subr.bf16.mxu0 0
      %2145 = vmatpush1.bf16.msra.mxu0 0
      %2146 = vmatprep.subr.bf16.mxu0 0
      %2147 = vmatpush1.bf16.msra.mxu0 0
      %2148 = vmatprep.subr.bf16.mxu0 0
      %2149 = vmatpush1.bf16.msra.mxu0 0
      %2150 = vmatprep.subr.bf16.mxu0 0
      %2151 = vmatpush1.bf16.msra.mxu0 0
      %2152 = vmatprep.subr.bf16.mxu0 0
      %2153 = vmatpush1.bf16.msra.mxu0 0
      %2154 = vmatprep.subr.bf16.mxu0 0
      %2155 = vmatpush1.bf16.msra.mxu0 0
      %2156 = vmatprep.subr.bf16.mxu0 0
      %2157 = vmatpush1.bf16.msra.mxu0 0
      %2158 = vmatprep.subr.bf16.mxu0 0
      %2159 = vmatpush1.bf16.msra.mxu0 0
      %2160 = vmatprep.subr.bf16.mxu0 0
      %2161 = vmatpush1.bf16.msra.mxu0 0
      %2162 = vmatprep.subr.bf16.mxu0 0
      %2163 = vmatpush1.bf16.msra.mxu0 0
      %2164 = vmatprep.subr.bf16.mxu0 0
      %2165 = vmatpush1.bf16.msra.mxu0 0
      %2166 = vmatprep.subr.bf16.mxu0 0
      %2167 = vmatpush1.bf16.msra.mxu0 0
      %2168 = vmatprep.subr.bf16.mxu0 0
      %2169 = vmatpush1.bf16.msra.mxu0 0
      %2170 = vmatprep.subr.bf16.mxu0 0
      %2171 = vmatpush1.bf16.msra.mxu0 0
      %2172 = vmatprep.subr.bf16.mxu0 0
      %2173 = vmatpush1.bf16.msra.mxu0 0
      %2174 = vmatprep.mubr.bf16.mxu0 0
      %2175 = vmatmul.mubr.bf16.gmra.mrb[0].mxu0 %v902
      %v2176 = vpop.f32.mrb[0].mxu0
      %v2177 = vadd.f32 0.0, %v2176
      %v2178 = vpop.f32.mrb[0].mxu0
      %v2179 = vpop.f32.mrb[0].mxu0
      %v2180 = vadd.f32 0.0, %v2179
      %v2181 = vpop.f32.mrb[0].mxu0
      %2182 = vmatprep.mubr.bf16.mxu0 0
      %2183 = vmatmul.mubr.bf16.gmra.mrb[0].mxu0 %v905
      %v2184 = vpop.f32.mrb[0].mxu0
      %v2185 = vadd.f32 0.0, %v2184
      %v2186 = vpop.f32.mrb[0].mxu0
      %v2187 = vpop.f32.mrb[0].mxu0
      %v2188 = vadd.f32 0.0, %v2187
      %v2189 = vpop.f32.mrb[0].mxu0
      %2190 = vdwg.mxu0
      %v2191 = vadd.f32 %v2077, %v2124
      %v2192 = vadd.f32 %v2078, %v2126
      %v2193 = vadd.f32 %v2079, %v2177
      %v2194 = vadd.f32 %v2080, %v2128
      %v2195 = vadd.f32 %v2081, %v2130
      %v2196 = vadd.f32 %v2082, %v2180
      %v2197 = vadd.f32 %v2083, %v2134
      %v2198 = vadd.f32 %v2084, %v2136
      %v2199 = vadd.f32 %v2085, %v2185
      %v2200 = vadd.f32 %v2086, %v2138
      %v2201 = vadd.f32 %v2087, %v2140
      %v2202 = vadd.f32 %v2088, %v2188
      %2203 = vrot.lane.b32.xlu0 %v898, 127
      %v2204 = vpop.permute.xlu0 %2203
      %2205 = vrot.lane.b32.xlu0 %v899, 127
      %v2206 = vpop.permute.xlu0 %2205
      %2207 = vrot.lane.b32.xlu0 %v900, 127
      %v2208 = vpop.permute.xlu0 %2207
      %v2209 = vsel %vm594, %v2204, %v2206
      %v2210 = vsel %vm594, %v2206, %v2208
      %v2212 = vsel %vm326, %v2209, 0
      %v2215 = vsel %vm326, %v2210, 0
      %v2218 = vsel %vm326, %v2208, 0
      %2220 = vmatprep.subr.bf16.mxu0 %v2215
      %2221 = vmatpush1.bf16.msra.mxu0 %v2212
      %2222 = vmatprep.subr.bf16.mxu0 0
      %2223 = vmatpush1.bf16.msra.mxu0 0
      %2224 = vmatprep.subr.bf16.mxu0 0
      %2225 = vmatpush1.bf16.msra.mxu0 0
      %2226 = vmatprep.subr.bf16.mxu0 0
      %2227 = vmatpush1.bf16.msra.mxu0 0
      %2228 = vmatprep.subr.bf16.mxu0 0
      %2229 = vmatpush1.bf16.msra.mxu0 0
      %2230 = vmatprep.subr.bf16.mxu0 0
      %2231 = vmatpush1.bf16.msra.mxu0 0
      %2232 = vmatprep.subr.bf16.mxu0 0
      %2233 = vmatpush1.bf16.msra.mxu0 0
      %2234 = vmatprep.subr.bf16.mxu0 0
      %2235 = vmatpush1.bf16.msra.mxu0 0
      %2236 = vmatprep.subr.bf16.mxu0 0
      %2237 = vmatpush1.bf16.msra.mxu0 0
      %2238 = vmatprep.subr.bf16.mxu0 0
      %2239 = vmatpush1.bf16.msra.mxu0 0
      %2240 = vmatprep.subr.bf16.mxu0 0
      %2241 = vmatpush1.bf16.msra.mxu0 0
      %2242 = vmatprep.subr.bf16.mxu0 0
      %2243 = vmatpush1.bf16.msra.mxu0 0
      %2244 = vmatprep.subr.bf16.mxu0 0
      %2245 = vmatpush1.bf16.msra.mxu0 0
      %2246 = vmatprep.subr.bf16.mxu0 0
      %2247 = vmatpush1.bf16.msra.mxu0 0
      %2248 = vmatprep.subr.bf16.mxu0 0
      %2249 = vmatpush1.bf16.msra.mxu0 0
      %2250 = vmatprep.subr.bf16.mxu0 0
      %2251 = vmatpush1.bf16.msra.mxu0 0
      %2252 = vmatprep.mubr.bf16.mxu0 0
      %2253 = vmatmul.mubr.bf16.gmra.mrb[0].mxu0 %v1054
      %v2254 = vpop.f32.mrb[0].mxu0
      %v2255 = vadd.f32 0.0, %v2254
      %v2256 = vpop.f32.mrb[0].mxu0
      %v2257 = vadd.f32 0.0, %v2256
      %v2258 = vpop.f32.mrb[0].mxu0
      %v2259 = vadd.f32 0.0, %v2258
      %v2260 = vpop.f32.mrb[0].mxu0
      %v2261 = vadd.f32 0.0, %v2260
      %2262 = vmatprep.mubr.bf16.mxu0 0
      %2263 = vmatmul.mubr.bf16.gmra.mrb[0].mxu0 %v1057
      %v2264 = vpop.f32.mrb[0].mxu0
      %v2265 = vadd.f32 0.0, %v2264
      %v2266 = vpop.f32.mrb[0].mxu0
      %v2267 = vadd.f32 0.0, %v2266
      %v2268 = vpop.f32.mrb[0].mxu0
      %v2269 = vadd.f32 0.0, %v2268
      %v2270 = vpop.f32.mrb[0].mxu0
      %v2271 = vadd.f32 0.0, %v2270
      %2272 = vdwg.mxu0
      %2273 = vmatprep.subr.bf16.mxu0 0
      %2274 = vmatpush1.bf16.msra.mxu0 %v2218
      %2275 = vmatprep.subr.bf16.mxu0 0
      %2276 = vmatpush1.bf16.msra.mxu0 0
      %2277 = vmatprep.subr.bf16.mxu0 0
      %2278 = vmatpush1.bf16.msra.mxu0 0
      %2279 = vmatprep.subr.bf16.mxu0 0
      %2280 = vmatpush1.bf16.msra.mxu0 0
      %2281 = vmatprep.subr.bf16.mxu0 0
      %2282 = vmatpush1.bf16.msra.mxu0 0
      %2283 = vmatprep.subr.bf16.mxu0 0
      %2284 = vmatpush1.bf16.msra.mxu0 0
      %2285 = vmatprep.subr.bf16.mxu0 0
      %2286 = vmatpush1.bf16.msra.mxu0 0
      %2287 = vmatprep.subr.bf16.mxu0 0
      %2288 = vmatpush1.bf16.msra.mxu0 0
      %2289 = vmatprep.subr.bf16.mxu0 0
      %2290 = vmatpush1.bf16.msra.mxu0 0
      %2291 = vmatprep.subr.bf16.mxu0 0
      %2292 = vmatpush1.bf16.msra.mxu0 0
      %2293 = vmatprep.subr.bf16.mxu0 0
      %2294 = vmatpush1.bf16.msra.mxu0 0
      %2295 = vmatprep.subr.bf16.mxu0 0
      %2296 = vmatpush1.bf16.msra.mxu0 0
      %2297 = vmatprep.subr.bf16.mxu0 0
      %2298 = vmatpush1.bf16.msra.mxu0 0
      %2299 = vmatprep.subr.bf16.mxu0 0
      %2300 = vmatpush1.bf16.msra.mxu0 0
      %2301 = vmatprep.subr.bf16.mxu0 0
      %2302 = vmatpush1.bf16.msra.mxu0 0
      %2303 = vmatprep.subr.bf16.mxu0 0
      %2304 = vmatpush1.bf16.msra.mxu0 0
      %2305 = vmatprep.mubr.bf16.mxu0 0
      %2306 = vmatmul.mubr.bf16.gmra.mrb[0].mxu0 %v1054
      %v2307 = vpop.f32.mrb[0].mxu0
      %v2308 = vadd.f32 0.0, %v2307
      %v2309 = vpop.f32.mrb[0].mxu0
      %v2310 = vpop.f32.mrb[0].mxu0
      %v2311 = vadd.f32 0.0, %v2310
      %v2312 = vpop.f32.mrb[0].mxu0
      %2313 = vmatprep.mubr.bf16.mxu0 0
      %2314 = vmatmul.mubr.bf16.gmra.mrb[0].mxu0 %v1057
      %v2315 = vpop.f32.mrb[0].mxu0
      %v2316 = vadd.f32 0.0, %v2315
      %v2317 = vpop.f32.mrb[0].mxu0
      %v2318 = vpop.f32.mrb[0].mxu0
      %v2319 = vadd.f32 0.0, %v2318
      %v2320 = vpop.f32.mrb[0].mxu0
      %2321 = vdwg.mxu0
      %v2322 = vadd.f32 %v2191, %v2255
      %v2323 = vadd.f32 %v2192, %v2257
      %v2324 = vadd.f32 %v2193, %v2308
      %v2325 = vadd.f32 %v2194, %v2259
      %v2326 = vadd.f32 %v2195, %v2261
      %v2327 = vadd.f32 %v2196, %v2311
      %v2328 = vadd.f32 %v2197, %v2265
      %v2329 = vadd.f32 %v2198, %v2267
      %v2330 = vadd.f32 %v2199, %v2316
      %v2331 = vadd.f32 %v2200, %v2269
      %v2332 = vadd.f32 %v2201, %v2271
      %v2333 = vadd.f32 %v2202, %v2319
      %2334 = vmatprep.subr.bf16.mxu0 %v1368
      %2335 = vmatpush1.bf16.msra.mxu0 %v1365
      %2336 = vmatprep.subr.bf16.mxu0 0
      %2337 = vmatpush1.bf16.msra.mxu0 0
      %2338 = vmatprep.subr.bf16.mxu0 0
      %2339 = vmatpush1.bf16.msra.mxu0 0
      %2340 = vmatprep.subr.bf16.mxu0 0
      %2341 = vmatpush1.bf16.msra.mxu0 0
      %2342 = vmatprep.subr.bf16.mxu0 0
      %2343 = vmatpush1.bf16.msra.mxu0 0
      %2344 = vmatprep.subr.bf16.mxu0 0
      %2345 = vmatpush1.bf16.msra.mxu0 0
      %2346 = vmatprep.subr.bf16.mxu0 0
      %2347 = vmatpush1.bf16.msra.mxu0 0
      %2348 = vmatprep.subr.bf16.mxu0 0
      %2349 = vmatpush1.bf16.msra.mxu0 0
      %2350 = vmatprep.subr.bf16.mxu0 0
      %2351 = vmatpush1.bf16.msra.mxu0 0
      %2352 = vmatprep.subr.bf16.mxu0 0
      %2353 = vmatpush1.bf16.msra.mxu0 0
      %2354 = vmatprep.subr.bf16.mxu0 0
      %2355 = vmatpush1.bf16.msra.mxu0 0
      %2356 = vmatprep.subr.bf16.mxu0 0
      %2357 = vmatpush1.bf16.msra.mxu0 0
      %2358 = vmatprep.subr.bf16.mxu0 0
      %2359 = vmatpush1.bf16.msra.mxu0 0
      %2360 = vmatprep.subr.bf16.mxu0 0
      %2361 = vmatpush1.bf16.msra.mxu0 0
      %2362 = vmatprep.subr.bf16.mxu0 0
      %2363 = vmatpush1.bf16.msra.mxu0 0
      %2364 = vmatprep.subr.bf16.mxu0 0
      %2365 = vmatpush1.bf16.msra.mxu0 0
      %2366 = vmatprep.mubr.bf16.mxu0 0
      %2367 = vmatmul.mubr.bf16.gmra.mrb[0].mxu0 %v1207
      %v2368 = vpop.f32.mrb[0].mxu0
      %v2369 = vadd.f32 0.0, %v2368
      %v2370 = vpop.f32.mrb[0].mxu0
      %v2371 = vadd.f32 0.0, %v2370
      %v2372 = vpop.f32.mrb[0].mxu0
      %v2373 = vadd.f32 0.0, %v2372
      %v2374 = vpop.f32.mrb[0].mxu0
      %v2375 = vadd.f32 0.0, %v2374
      %2376 = vmatprep.mubr.bf16.mxu0 0
      %2377 = vmatmul.mubr.bf16.gmra.mrb[0].mxu0 %v1210
      %v2378 = vpop.f32.mrb[0].mxu0
      %v2379 = vadd.f32 0.0, %v2378
      %v2380 = vpop.f32.mrb[0].mxu0
      %v2381 = vadd.f32 0.0, %v2380
      %v2382 = vpop.f32.mrb[0].mxu0
      %v2383 = vadd.f32 0.0, %v2382
      %v2384 = vpop.f32.mrb[0].mxu0
      %v2385 = vadd.f32 0.0, %v2384
      %2386 = vdwg.mxu0
      %2387 = vmatprep.subr.bf16.mxu0 0
      %2388 = vmatpush1.bf16.msra.mxu0 %v1371
      %2389 = vmatprep.subr.bf16.mxu0 0
      %2390 = vmatpush1.bf16.msra.mxu0 0
      %2391 = vmatprep.subr.bf16.mxu0 0
      %2392 = vmatpush1.bf16.msra.mxu0 0
      %2393 = vmatprep.subr.bf16.mxu0 0
      %2394 = vmatpush1.bf16.msra.mxu0 0
      %2395 = vmatprep.subr.bf16.mxu0 0
      %2396 = vmatpush1.bf16.msra.mxu0 0
      %2397 = vmatprep.subr.bf16.mxu0 0
      %2398 = vmatpush1.bf16.msra.mxu0 0
      %2399 = vmatprep.subr.bf16.mxu0 0
      %2400 = vmatpush1.bf16.msra.mxu0 0
      %2401 = vmatprep.subr.bf16.mxu0 0
      %2402 = vmatpush1.bf16.msra.mxu0 0
      %2403 = vmatprep.subr.bf16.mxu0 0
      %2404 = vmatpush1.bf16.msra.mxu0 0
      %2405 = vmatprep.subr.bf16.mxu0 0
      %2406 = vmatpush1.bf16.msra.mxu0 0
      %2407 = vmatprep.subr.bf16.mxu0 0
      %2408 = vmatpush1.bf16.msra.mxu0 0
      %2409 = vmatprep.subr.bf16.mxu0 0
      %2410 = vmatpush1.bf16.msra.mxu0 0
      %2411 = vmatprep.subr.bf16.mxu0 0
      %2412 = vmatpush1.bf16.msra.mxu0 0
      %2413 = vmatprep.subr.bf16.mxu0 0
      %2414 = vmatpush1.bf16.msra.mxu0 0
      %2415 = vmatprep.subr.bf16.mxu0 0
      %2416 = vmatpush1.bf16.msra.mxu0 0
      %2417 = vmatprep.subr.bf16.mxu0 0
      %2418 = vmatpush1.bf16.msra.mxu0 0
      %2419 = vmatprep.mubr.bf16.mxu0 0
      %2420 = vmatmul.mubr.bf16.gmra.mrb[0].mxu0 %v1207
      %v2421 = vpop.f32.mrb[0].mxu0
      %v2422 = vadd.f32 0.0, %v2421
      %v2423 = vpop.f32.mrb[0].mxu0
      %v2424 = vpop.f32.mrb[0].mxu0
      %v2425 = vadd.f32 0.0, %v2424
      %v2426 = vpop.f32.mrb[0].mxu0
      %2427 = vmatprep.mubr.bf16.mxu0 0
      %2428 = vmatmul.mubr.bf16.gmra.mrb[0].mxu0 %v1210
      %v2429 = vpop.f32.mrb[0].mxu0
      %v2430 = vadd.f32 0.0, %v2429
      %v2431 = vpop.f32.mrb[0].mxu0
      %v2432 = vpop.f32.mrb[0].mxu0
      %v2433 = vadd.f32 0.0, %v2432
      %v2434 = vpop.f32.mrb[0].mxu0
      %2435 = vdwg.mxu0
      %v2436 = vadd.f32 %v2322, %v2369
      %v2437 = vadd.f32 %v2323, %v2371
      %v2438 = vadd.f32 %v2324, %v2422
      %v2439 = vadd.f32 %v2325, %v2373
      %v2440 = vadd.f32 %v2326, %v2375
      %v2441 = vadd.f32 %v2327, %v2425
      %v2442 = vadd.f32 %v2328, %v2379
      %v2443 = vadd.f32 %v2329, %v2381
      %v2444 = vadd.f32 %v2330, %v2430
      %v2445 = vadd.f32 %v2331, %v2383
      %v2446 = vadd.f32 %v2332, %v2385
      %v2447 = vadd.f32 %v2333, %v2433
      %2448 = vmatprep.subr.bf16.mxu0 %v1521
      %2449 = vmatpush1.bf16.msra.mxu0 %v1518
      %2450 = vmatprep.subr.bf16.mxu0 0
      %2451 = vmatpush1.bf16.msra.mxu0 0
      %2452 = vmatprep.subr.bf16.mxu0 0
      %2453 = vmatpush1.bf16.msra.mxu0 0
      %2454 = vmatprep.subr.bf16.mxu0 0
      %2455 = vmatpush1.bf16.msra.mxu0 0
      %2456 = vmatprep.subr.bf16.mxu0 0
      %2457 = vmatpush1.bf16.msra.mxu0 0
      %2458 = vmatprep.subr.bf16.mxu0 0
      %2459 = vmatpush1.bf16.msra.mxu0 0
      %2460 = vmatprep.subr.bf16.mxu0 0
      %2461 = vmatpush1.bf16.msra.mxu0 0
      %2462 = vmatprep.subr.bf16.mxu0 0
      %2463 = vmatpush1.bf16.msra.mxu0 0
      %2464 = vmatprep.subr.bf16.mxu0 0
      %2465 = vmatpush1.bf16.msra.mxu0 0
      %2466 = vmatprep.subr.bf16.mxu0 0
      %2467 = vmatpush1.bf16.msra.mxu0 0
      %2468 = vmatprep.subr.bf16.mxu0 0
      %2469 = vmatpush1.bf16.msra.mxu0 0
      %2470 = vmatprep.subr.bf16.mxu0 0
      %2471 = vmatpush1.bf16.msra.mxu0 0
      %2472 = vmatprep.subr.bf16.mxu0 0
      %2473 = vmatpush1.bf16.msra.mxu0 0
      %2474 = vmatprep.subr.bf16.mxu0 0
      %2475 = vmatpush1.bf16.msra.mxu0 0
      %2476 = vmatprep.subr.bf16.mxu0 0
      %2477 = vmatpush1.bf16.msra.mxu0 0
      %2478 = vmatprep.subr.bf16.mxu0 0
      %2479 = vmatpush1.bf16.msra.mxu0 0
      %2480 = vmatprep.mubr.bf16.mxu0 0
      %2481 = vmatmul.mubr.bf16.gmra.mrb[0].mxu0 %v1359
      %v2482 = vpop.f32.mrb[0].mxu0
      %v2483 = vadd.f32 0.0, %v2482
      %v2484 = vpop.f32.mrb[0].mxu0
      %v2485 = vadd.f32 0.0, %v2484
      %v2486 = vpop.f32.mrb[0].mxu0
      %v2487 = vadd.f32 0.0, %v2486
      %v2488 = vpop.f32.mrb[0].mxu0
      %v2489 = vadd.f32 0.0, %v2488
      %2490 = vmatprep.mubr.bf16.mxu0 0
      %2491 = vmatmul.mubr.bf16.gmra.mrb[0].mxu0 %v1362
      %v2492 = vpop.f32.mrb[0].mxu0
      %v2493 = vadd.f32 0.0, %v2492
      %v2494 = vpop.f32.mrb[0].mxu0
      %v2495 = vadd.f32 0.0, %v2494
      %v2496 = vpop.f32.mrb[0].mxu0
      %v2497 = vadd.f32 0.0, %v2496
      %v2498 = vpop.f32.mrb[0].mxu0
      %v2499 = vadd.f32 0.0, %v2498
      %2500 = vdwg.mxu0
      %2501 = vmatprep.subr.bf16.mxu0 0
      %2502 = vmatpush1.bf16.msra.mxu0 %v1524
      %2503 = vmatprep.subr.bf16.mxu0 0
      %2504 = vmatpush1.bf16.msra.mxu0 0
      %2505 = vmatprep.subr.bf16.mxu0 0
      %2506 = vmatpush1.bf16.msra.mxu0 0
      %2507 = vmatprep.subr.bf16.mxu0 0
      %2508 = vmatpush1.bf16.msra.mxu0 0
      %2509 = vmatprep.subr.bf16.mxu0 0
      %2510 = vmatpush1.bf16.msra.mxu0 0
      %2511 = vmatprep.subr.bf16.mxu0 0
      %2512 = vmatpush1.bf16.msra.mxu0 0
      %2513 = vmatprep.subr.bf16.mxu0 0
      %2514 = vmatpush1.bf16.msra.mxu0 0
      %2515 = vmatprep.subr.bf16.mxu0 0
      %2516 = vmatpush1.bf16.msra.mxu0 0
      %2517 = vmatprep.subr.bf16.mxu0 0
      %2518 = vmatpush1.bf16.msra.mxu0 0
      %2519 = vmatprep.subr.bf16.mxu0 0
      %2520 = vmatpush1.bf16.msra.mxu0 0
      %2521 = vmatprep.subr.bf16.mxu0 0
      %2522 = vmatpush1.bf16.msra.mxu0 0
      %2523 = vmatprep.subr.bf16.mxu0 0
      %2524 = vmatpush1.bf16.msra.mxu0 0
      %2525 = vmatprep.subr.bf16.mxu0 0
      %2526 = vmatpush1.bf16.msra.mxu0 0
      %2527 = vmatprep.subr.bf16.mxu0 0
      %2528 = vmatpush1.bf16.msra.mxu0 0
      %2529 = vmatprep.subr.bf16.mxu0 0
      %2530 = vmatpush1.bf16.msra.mxu0 0
      %2531 = vmatprep.subr.bf16.mxu0 0
      %2532 = vmatpush1.bf16.msra.mxu0 0
      %2533 = vmatprep.mubr.bf16.mxu0 0
      %2534 = vmatmul.mubr.bf16.gmra.mrb[0].mxu0 %v1359
      %v2535 = vpop.f32.mrb[0].mxu0
      %v2536 = vadd.f32 0.0, %v2535
      %v2537 = vpop.f32.mrb[0].mxu0
      %v2538 = vpop.f32.mrb[0].mxu0
      %v2539 = vadd.f32 0.0, %v2538
      %v2540 = vpop.f32.mrb[0].mxu0
      %2541 = vmatprep.mubr.bf16.mxu0 0
      %2542 = vmatmul.mubr.bf16.gmra.mrb[0].mxu0 %v1362
      %v2543 = vpop.f32.mrb[0].mxu0
      %v2544 = vadd.f32 0.0, %v2543
      %v2545 = vpop.f32.mrb[0].mxu0
      %v2546 = vpop.f32.mrb[0].mxu0
      %v2547 = vadd.f32 0.0, %v2546
      %v2548 = vpop.f32.mrb[0].mxu0
      %2549 = vdwg.mxu0
      %v2550 = vadd.f32 %v2436, %v2483
      %v2551 = vadd.f32 %v2437, %v2485
      %v2552 = vadd.f32 %v2438, %v2536
      %v2553 = vadd.f32 %v2439, %v2487
      %v2554 = vadd.f32 %v2440, %v2489
      %v2555 = vadd.f32 %v2441, %v2539
      %v2556 = vadd.f32 %v2442, %v2493
      %v2557 = vadd.f32 %v2443, %v2495
      %v2558 = vadd.f32 %v2444, %v2544
      %v2559 = vadd.f32 %v2445, %v2497
      %v2560 = vadd.f32 %v2446, %v2499
      %v2561 = vadd.f32 %v2447, %v2547
      %2562 = vrot.lane.b32.xlu0 %v316, 109
      %v2563 = vpop.permute.xlu0 %2562
      %2564 = vrot.lane.b32.xlu0 %v317, 109
      %v2565 = vpop.permute.xlu0 %2564
      %2566 = vrot.lane.b32.xlu0 %v318, 109
      %v2567 = vpop.permute.xlu0 %2566
      %v2568 = vsel %vm1508, %v2563, %v2565
      %v2569 = vsel %vm1508, %v2565, %v2567
      %v2571 = vsel %vm326, %v2568, 0
      %v2574 = vsel %vm326, %v2569, 0
      %v2577 = vsel %vm326, %v2567, 0
      %2579 = vmatprep.subr.bf16.mxu0 %v2574
      %2580 = vmatpush1.bf16.msra.mxu0 %v2571
      %2581 = vmatprep.subr.bf16.mxu0 0
      %2582 = vmatpush1.bf16.msra.mxu0 0
      %2583 = vmatprep.subr.bf16.mxu0 0
      %2584 = vmatpush1.bf16.msra.mxu0 0
      %2585 = vmatprep.subr.bf16.mxu0 0
      %2586 = vmatpush1.bf16.msra.mxu0 0
      %2587 = vmatprep.subr.bf16.mxu0 0
      %2588 = vmatpush1.bf16.msra.mxu0 0
      %2589 = vmatprep.subr.bf16.mxu0 0
      %2590 = vmatpush1.bf16.msra.mxu0 0
      %2591 = vmatprep.subr.bf16.mxu0 0
      %2592 = vmatpush1.bf16.msra.mxu0 0
      %2593 = vmatprep.subr.bf16.mxu0 0
      %2594 = vmatpush1.bf16.msra.mxu0 0
      %2595 = vmatprep.subr.bf16.mxu0 0
      %2596 = vmatpush1.bf16.msra.mxu0 0
      %2597 = vmatprep.subr.bf16.mxu0 0
      %2598 = vmatpush1.bf16.msra.mxu0 0
      %2599 = vmatprep.subr.bf16.mxu0 0
      %2600 = vmatpush1.bf16.msra.mxu0 0
      %2601 = vmatprep.subr.bf16.mxu0 0
      %2602 = vmatpush1.bf16.msra.mxu0 0
      %2603 = vmatprep.subr.bf16.mxu0 0
      %2604 = vmatpush1.bf16.msra.mxu0 0
      %2605 = vmatprep.subr.bf16.mxu0 0
      %2606 = vmatpush1.bf16.msra.mxu0 0
      %2607 = vmatprep.subr.bf16.mxu0 0
      %2608 = vmatpush1.bf16.msra.mxu0 0
      %2609 = vmatprep.subr.bf16.mxu0 0
      %2610 = vmatpush1.bf16.msra.mxu0 0
      %2611 = vmatprep.mubr.bf16.mxu0 0
      %2612 = vmatmul.mubr.bf16.gmra.mrb[0].mxu0 %v1512
      %v2613 = vpop.f32.mrb[0].mxu0
      %v2614 = vadd.f32 0.0, %v2613
      %v2615 = vpop.f32.mrb[0].mxu0
      %v2616 = vadd.f32 0.0, %v2615
      %v2617 = vpop.f32.mrb[0].mxu0
      %v2618 = vadd.f32 0.0, %v2617
      %v2619 = vpop.f32.mrb[0].mxu0
      %v2620 = vadd.f32 0.0, %v2619
      %2621 = vmatprep.mubr.bf16.mxu0 0
      %2622 = vmatmul.mubr.bf16.gmra.mrb[0].mxu0 %v1515
      %v2623 = vpop.f32.mrb[0].mxu0
      %v2624 = vadd.f32 0.0, %v2623
      %v2625 = vpop.f32.mrb[0].mxu0
      %v2626 = vadd.f32 0.0, %v2625
      %v2627 = vpop.f32.mrb[0].mxu0
      %v2628 = vadd.f32 0.0, %v2627
      %v2629 = vpop.f32.mrb[0].mxu0
      %v2630 = vadd.f32 0.0, %v2629
      %2631 = vdwg.mxu0
      %2632 = vmatprep.subr.bf16.mxu0 0
      %2633 = vmatpush1.bf16.msra.mxu0 %v2577
      %2634 = vmatprep.subr.bf16.mxu0 0
      %2635 = vmatpush1.bf16.msra.mxu0 0
      %2636 = vmatprep.subr.bf16.mxu0 0
      %2637 = vmatpush1.bf16.msra.mxu0 0
      %2638 = vmatprep.subr.bf16.mxu0 0
      %2639 = vmatpush1.bf16.msra.mxu0 0
      %2640 = vmatprep.subr.bf16.mxu0 0
      %2641 = vmatpush1.bf16.msra.mxu0 0
      %2642 = vmatprep.subr.bf16.mxu0 0
      %2643 = vmatpush1.bf16.msra.mxu0 0
      %2644 = vmatprep.subr.bf16.mxu0 0
      %2645 = vmatpush1.bf16.msra.mxu0 0
      %2646 = vmatprep.subr.bf16.mxu0 0
      %2647 = vmatpush1.bf16.msra.mxu0 0
      %2648 = vmatprep.subr.bf16.mxu0 0
      %2649 = vmatpush1.bf16.msra.mxu0 0
      %2650 = vmatprep.subr.bf16.mxu0 0
      %2651 = vmatpush1.bf16.msra.mxu0 0
      %2652 = vmatprep.subr.bf16.mxu0 0
      %2653 = vmatpush1.bf16.msra.mxu0 0
      %2654 = vmatprep.subr.bf16.mxu0 0
      %2655 = vmatpush1.bf16.msra.mxu0 0
      %2656 = vmatprep.subr.bf16.mxu0 0
      %2657 = vmatpush1.bf16.msra.mxu0 0
      %2658 = vmatprep.subr.bf16.mxu0 0
      %2659 = vmatpush1.bf16.msra.mxu0 0
      %2660 = vmatprep.subr.bf16.mxu0 0
      %2661 = vmatpush1.bf16.msra.mxu0 0
      %2662 = vmatprep.subr.bf16.mxu0 0
      %2663 = vmatpush1.bf16.msra.mxu0 0
      %2664 = vmatprep.mubr.bf16.mxu0 0
      %2665 = vmatmul.mubr.bf16.gmra.mrb[0].mxu0 %v1512
      %v2666 = vpop.f32.mrb[0].mxu0
      %v2667 = vadd.f32 0.0, %v2666
      %v2668 = vpop.f32.mrb[0].mxu0
      %v2669 = vpop.f32.mrb[0].mxu0
      %v2670 = vadd.f32 0.0, %v2669
      %v2671 = vpop.f32.mrb[0].mxu0
      %2672 = vmatprep.mubr.bf16.mxu0 0
      %2673 = vmatmul.mubr.bf16.gmra.mrb[0].mxu0 %v1515
      %v2674 = vpop.f32.mrb[0].mxu0
      %v2675 = vadd.f32 0.0, %v2674
      %v2676 = vpop.f32.mrb[0].mxu0
      %v2677 = vpop.f32.mrb[0].mxu0
      %v2678 = vadd.f32 0.0, %v2677
      %v2679 = vpop.f32.mrb[0].mxu0
      %2680 = vdwg.mxu0
      %v2681 = vadd.f32 %v2550, %v2614
      %v2682 = vadd.f32 %v2551, %v2616
      %v2683 = vadd.f32 %v2552, %v2667
      %v2684 = vadd.f32 %v2553, %v2618
      %v2685 = vadd.f32 %v2554, %v2620
      %v2686 = vadd.f32 %v2555, %v2670
      %v2687 = vadd.f32 %v2556, %v2624
      %v2688 = vadd.f32 %v2557, %v2626
      %v2689 = vadd.f32 %v2558, %v2675
      %v2690 = vadd.f32 %v2559, %v2628
      %v2691 = vadd.f32 %v2560, %v2630
      %v2692 = vadd.f32 %v2561, %v2678
      %v2693 = vmax.f32 %v1628, %v2681
      %v2694 = vmax.f32 %v1629, %v2682
      %v2695 = vmax.f32 %v1630, %v2683
      %v2696 = vmax.f32 %v1631, %v2684
      %v2697 = vmax.f32 %v1632, %v2685
      %v2698 = vmax.f32 %v1633, %v2686
      %v2699 = vmax.f32 %v1634, %v2687
      %v2700 = vmax.f32 %v1635, %v2688
      %v2701 = vmax.f32 %v1636, %v2689
      %v2702 = vmax.f32 %v1637, %v2690
      %v2703 = vmax.f32 %v1638, %v2691
      %v2704 = vmax.f32 %v1639, %v2692
      %2705 = vmatprep.subr.bf16.mxu0 %v911
      %2706 = vmatpush1.bf16.msra.mxu0 %v908
      %2707 = vmatprep.subr.bf16.mxu0 0
      %2708 = vmatpush1.bf16.msra.mxu0 0
      %2709 = vmatprep.subr.bf16.mxu0 0
      %2710 = vmatpush1.bf16.msra.mxu0 0
      %2711 = vmatprep.subr.bf16.mxu0 0
      %2712 = vmatpush1.bf16.msra.mxu0 0
      %2713 = vmatprep.subr.bf16.mxu0 0
      %2714 = vmatpush1.bf16.msra.mxu0 0
      %2715 = vmatprep.subr.bf16.mxu0 0
      %2716 = vmatpush1.bf16.msra.mxu0 0
      %2717 = vmatprep.subr.bf16.mxu0 0
      %2718 = vmatpush1.bf16.msra.mxu0 0
      %2719 = vmatprep.subr.bf16.mxu0 0
      %2720 = vmatpush1.bf16.msra.mxu0 0
      %2721 = vmatprep.subr.bf16.mxu0 0
      %2722 = vmatpush1.bf16.msra.mxu0 0
      %2723 = vmatprep.subr.bf16.mxu0 0
      %2724 = vmatpush1.bf16.msra.mxu0 0
      %2725 = vmatprep.subr.bf16.mxu0 0
      %2726 = vmatpush1.bf16.msra.mxu0 0
      %2727 = vmatprep.subr.bf16.mxu0 0
      %2728 = vmatpush1.bf16.msra.mxu0 0
      %2729 = vmatprep.subr.bf16.mxu0 0
      %2730 = vmatpush1.bf16.msra.mxu0 0
      %2731 = vmatprep.subr.bf16.mxu0 0
      %2732 = vmatpush1.bf16.msra.mxu0 0
      %2733 = vmatprep.subr.bf16.mxu0 0
      %2734 = vmatpush1.bf16.msra.mxu0 0
      %2735 = vmatprep.subr.bf16.mxu0 0
      %2736 = vmatpush1.bf16.msra.mxu0 0
      %2737 = vmatprep.mubr.bf16.mxu0 0
      %2738 = vmatmul.mubr.bf16.gmra.mrb[0].mxu0 %v321
      %v2739 = vpop.f32.mrb[0].mxu0
      %v2740 = vadd.f32 0.0, %v2739
      %v2741 = vpop.f32.mrb[0].mxu0
      %v2742 = vadd.f32 0.0, %v2741
      %v2743 = vpop.f32.mrb[0].mxu0
      %v2744 = vadd.f32 0.0, %v2743
      %v2745 = vpop.f32.mrb[0].mxu0
      %v2746 = vadd.f32 0.0, %v2745
      %2747 = vmatprep.mubr.bf16.mxu0 0
      %2748 = vmatmul.mubr.bf16.gmra.mrb[0].mxu0 %v324
      %v2749 = vpop.f32.mrb[0].mxu0
      %v2750 = vadd.f32 0.0, %v2749
      %v2751 = vpop.f32.mrb[0].mxu0
      %v2752 = vadd.f32 0.0, %v2751
      %v2753 = vpop.f32.mrb[0].mxu0
      %v2754 = vadd.f32 0.0, %v2753
      %v2755 = vpop.f32.mrb[0].mxu0
      %v2756 = vadd.f32 0.0, %v2755
      %2757 = vdwg.mxu0
      %2758 = vmatprep.subr.bf16.mxu0 0
      %2759 = vmatpush1.bf16.msra.mxu0 %v914
      %2760 = vmatprep.subr.bf16.mxu0 0
      %2761 = vmatpush1.bf16.msra.mxu0 0
      %2762 = vmatprep.subr.bf16.mxu0 0
      %2763 = vmatpush1.bf16.msra.mxu0 0
      %2764 = vmatprep.subr.bf16.mxu0 0
      %2765 = vmatpush1.bf16.msra.mxu0 0
      %2766 = vmatprep.subr.bf16.mxu0 0
      %2767 = vmatpush1.bf16.msra.mxu0 0
      %2768 = vmatprep.subr.bf16.mxu0 0
      %2769 = vmatpush1.bf16.msra.mxu0 0
      %2770 = vmatprep.subr.bf16.mxu0 0
      %2771 = vmatpush1.bf16.msra.mxu0 0
      %2772 = vmatprep.subr.bf16.mxu0 0
      %2773 = vmatpush1.bf16.msra.mxu0 0
      %2774 = vmatprep.subr.bf16.mxu0 0
      %2775 = vmatpush1.bf16.msra.mxu0 0
      %2776 = vmatprep.subr.bf16.mxu0 0
      %2777 = vmatpush1.bf16.msra.mxu0 0
      %2778 = vmatprep.subr.bf16.mxu0 0
      %2779 = vmatpush1.bf16.msra.mxu0 0
      %2780 = vmatprep.subr.bf16.mxu0 0
      %2781 = vmatpush1.bf16.msra.mxu0 0
      %2782 = vmatprep.subr.bf16.mxu0 0
      %2783 = vmatpush1.bf16.msra.mxu0 0
      %2784 = vmatprep.subr.bf16.mxu0 0
      %2785 = vmatpush1.bf16.msra.mxu0 0
      %2786 = vmatprep.subr.bf16.mxu0 0
      %2787 = vmatpush1.bf16.msra.mxu0 0
      %2788 = vmatprep.subr.bf16.mxu0 0
      %2789 = vmatpush1.bf16.msra.mxu0 0
      %2790 = vmatprep.mubr.bf16.mxu0 0
      %2791 = vmatmul.mubr.bf16.gmra.mrb[0].mxu0 %v321
      %v2792 = vpop.f32.mrb[0].mxu0
      %v2793 = vadd.f32 0.0, %v2792
      %v2794 = vpop.f32.mrb[0].mxu0
      %v2795 = vpop.f32.mrb[0].mxu0
      %v2796 = vadd.f32 0.0, %v2795
      %v2797 = vpop.f32.mrb[0].mxu0
      %2798 = vmatprep.mubr.bf16.mxu0 0
      %2799 = vmatmul.mubr.bf16.gmra.mrb[0].mxu0 %v324
      %v2800 = vpop.f32.mrb[0].mxu0
      %v2801 = vadd.f32 0.0, %v2800
      %v2802 = vpop.f32.mrb[0].mxu0
      %v2803 = vpop.f32.mrb[0].mxu0
      %v2804 = vadd.f32 0.0, %v2803
      %v2805 = vpop.f32.mrb[0].mxu0
      %2806 = vdwg.mxu0
      %2807 = vmatprep.subr.bf16.mxu0 %v759
      %2808 = vmatpush1.bf16.msra.mxu0 %v756
      %2809 = vmatprep.subr.bf16.mxu0 0
      %2810 = vmatpush1.bf16.msra.mxu0 0
      %2811 = vmatprep.subr.bf16.mxu0 0
      %2812 = vmatpush1.bf16.msra.mxu0 0
      %2813 = vmatprep.subr.bf16.mxu0 0
      %2814 = vmatpush1.bf16.msra.mxu0 0
      %2815 = vmatprep.subr.bf16.mxu0 0
      %2816 = vmatpush1.bf16.msra.mxu0 0
      %2817 = vmatprep.subr.bf16.mxu0 0
      %2818 = vmatpush1.bf16.msra.mxu0 0
      %2819 = vmatprep.subr.bf16.mxu0 0
      %2820 = vmatpush1.bf16.msra.mxu0 0
      %2821 = vmatprep.subr.bf16.mxu0 0
      %2822 = vmatpush1.bf16.msra.mxu0 0
      %2823 = vmatprep.subr.bf16.mxu0 0
      %2824 = vmatpush1.bf16.msra.mxu0 0
      %2825 = vmatprep.subr.bf16.mxu0 0
      %2826 = vmatpush1.bf16.msra.mxu0 0
      %2827 = vmatprep.subr.bf16.mxu0 0
      %2828 = vmatpush1.bf16.msra.mxu0 0
      %2829 = vmatprep.subr.bf16.mxu0 0
      %2830 = vmatpush1.bf16.msra.mxu0 0
      %2831 = vmatprep.subr.bf16.mxu0 0
      %2832 = vmatpush1.bf16.msra.mxu0 0
      %2833 = vmatprep.subr.bf16.mxu0 0
      %2834 = vmatpush1.bf16.msra.mxu0 0
      %2835 = vmatprep.subr.bf16.mxu0 0
      %2836 = vmatpush1.bf16.msra.mxu0 0
      %2837 = vmatprep.subr.bf16.mxu0 0
      %2838 = vmatpush1.bf16.msra.mxu0 0
      %2839 = vmatprep.mubr.bf16.mxu0 0
      %2840 = vmatmul.mubr.bf16.gmra.mrb[0].mxu0 %v457
      %v2841 = vpop.f32.mrb[0].mxu0
      %v2842 = vadd.f32 %v2740, %v2841
      %v2843 = vpop.f32.mrb[0].mxu0
      %v2844 = vadd.f32 %v2742, %v2843
      %v2845 = vpop.f32.mrb[0].mxu0
      %v2846 = vadd.f32 %v2744, %v2845
      %v2847 = vpop.f32.mrb[0].mxu0
      %v2848 = vadd.f32 %v2746, %v2847
      %2849 = vmatprep.mubr.bf16.mxu0 0
      %2850 = vmatmul.mubr.bf16.gmra.mrb[0].mxu0 %v460
      %v2851 = vpop.f32.mrb[0].mxu0
      %v2852 = vadd.f32 %v2750, %v2851
      %v2853 = vpop.f32.mrb[0].mxu0
      %v2854 = vadd.f32 %v2752, %v2853
      %v2855 = vpop.f32.mrb[0].mxu0
      %v2856 = vadd.f32 %v2754, %v2855
      %v2857 = vpop.f32.mrb[0].mxu0
      %v2858 = vadd.f32 %v2756, %v2857
      %2859 = vdwg.mxu0
      %2860 = vmatprep.subr.bf16.mxu0 0
      %2861 = vmatpush1.bf16.msra.mxu0 %v762
      %2862 = vmatprep.subr.bf16.mxu0 0
      %2863 = vmatpush1.bf16.msra.mxu0 0
      %2864 = vmatprep.subr.bf16.mxu0 0
      %2865 = vmatpush1.bf16.msra.mxu0 0
      %2866 = vmatprep.subr.bf16.mxu0 0
      %2867 = vmatpush1.bf16.msra.mxu0 0
      %2868 = vmatprep.subr.bf16.mxu0 0
      %2869 = vmatpush1.bf16.msra.mxu0 0
      %2870 = vmatprep.subr.bf16.mxu0 0
      %2871 = vmatpush1.bf16.msra.mxu0 0
      %2872 = vmatprep.subr.bf16.mxu0 0
      %2873 = vmatpush1.bf16.msra.mxu0 0
      %2874 = vmatprep.subr.bf16.mxu0 0
      %2875 = vmatpush1.bf16.msra.mxu0 0
      %2876 = vmatprep.subr.bf16.mxu0 0
      %2877 = vmatpush1.bf16.msra.mxu0 0
      %2878 = vmatprep.subr.bf16.mxu0 0
      %2879 = vmatpush1.bf16.msra.mxu0 0
      %2880 = vmatprep.subr.bf16.mxu0 0
      %2881 = vmatpush1.bf16.msra.mxu0 0
      %2882 = vmatprep.subr.bf16.mxu0 0
      %2883 = vmatpush1.bf16.msra.mxu0 0
      %2884 = vmatprep.subr.bf16.mxu0 0
      %2885 = vmatpush1.bf16.msra.mxu0 0
      %2886 = vmatprep.subr.bf16.mxu0 0
      %2887 = vmatpush1.bf16.msra.mxu0 0
      %2888 = vmatprep.subr.bf16.mxu0 0
      %2889 = vmatpush1.bf16.msra.mxu0 0
      %2890 = vmatprep.subr.bf16.mxu0 0
      %2891 = vmatpush1.bf16.msra.mxu0 0
      %2892 = vmatprep.mubr.bf16.mxu0 0
      %2893 = vmatmul.mubr.bf16.gmra.mrb[0].mxu0 %v457
      %v2894 = vpop.f32.mrb[0].mxu0
      %v2895 = vadd.f32 %v2793, %v2894
      %v2896 = vpop.f32.mrb[0].mxu0
      %v2897 = vpop.f32.mrb[0].mxu0
      %v2898 = vadd.f32 %v2796, %v2897
      %v2899 = vpop.f32.mrb[0].mxu0
      %2900 = vmatprep.mubr.bf16.mxu0 0
      %2901 = vmatmul.mubr.bf16.gmra.mrb[0].mxu0 %v460
      %v2902 = vpop.f32.mrb[0].mxu0
      %v2903 = vadd.f32 %v2801, %v2902
      %v2904 = vpop.f32.mrb[0].mxu0
      %v2905 = vpop.f32.mrb[0].mxu0
      %v2906 = vadd.f32 %v2804, %v2905
      %v2907 = vpop.f32.mrb[0].mxu0
      %2908 = vdwg.mxu0
      %2909 = vmatprep.subr.bf16.mxu0 %v1063
      %2910 = vmatpush1.bf16.msra.mxu0 %v1060
      %2911 = vmatprep.subr.bf16.mxu0 0
      %2912 = vmatpush1.bf16.msra.mxu0 0
      %2913 = vmatprep.subr.bf16.mxu0 0
      %2914 = vmatpush1.bf16.msra.mxu0 0
      %2915 = vmatprep.subr.bf16.mxu0 0
      %2916 = vmatpush1.bf16.msra.mxu0 0
      %2917 = vmatprep.subr.bf16.mxu0 0
      %2918 = vmatpush1.bf16.msra.mxu0 0
      %2919 = vmatprep.subr.bf16.mxu0 0
      %2920 = vmatpush1.bf16.msra.mxu0 0
      %2921 = vmatprep.subr.bf16.mxu0 0
      %2922 = vmatpush1.bf16.msra.mxu0 0
      %2923 = vmatprep.subr.bf16.mxu0 0
      %2924 = vmatpush1.bf16.msra.mxu0 0
      %2925 = vmatprep.subr.bf16.mxu0 0
      %2926 = vmatpush1.bf16.msra.mxu0 0
      %2927 = vmatprep.subr.bf16.mxu0 0
      %2928 = vmatpush1.bf16.msra.mxu0 0
      %2929 = vmatprep.subr.bf16.mxu0 0
      %2930 = vmatpush1.bf16.msra.mxu0 0
      %2931 = vmatprep.subr.bf16.mxu0 0
      %2932 = vmatpush1.bf16.msra.mxu0 0
      %2933 = vmatprep.subr.bf16.mxu0 0
      %2934 = vmatpush1.bf16.msra.mxu0 0
      %2935 = vmatprep.subr.bf16.mxu0 0
      %2936 = vmatpush1.bf16.msra.mxu0 0
      %2937 = vmatprep.subr.bf16.mxu0 0
      %2938 = vmatpush1.bf16.msra.mxu0 0
      %2939 = vmatprep.subr.bf16.mxu0 0
      %2940 = vmatpush1.bf16.msra.mxu0 0
      %2941 = vmatprep.mubr.bf16.mxu0 0
      %2942 = vmatmul.mubr.bf16.gmra.mrb[0].mxu0 %v598
      %v2943 = vpop.f32.mrb[0].mxu0
      %v2944 = vadd.f32 0.0, %v2943
      %v2945 = vpop.f32.mrb[0].mxu0
      %v2946 = vadd.f32 0.0, %v2945
      %v2947 = vpop.f32.mrb[0].mxu0
      %v2948 = vadd.f32 0.0, %v2947
      %v2949 = vpop.f32.mrb[0].mxu0
      %v2950 = vadd.f32 0.0, %v2949
      %2951 = vmatprep.mubr.bf16.mxu0 0
      %2952 = vmatmul.mubr.bf16.gmra.mrb[0].mxu0 %v601
      %v2953 = vpop.f32.mrb[0].mxu0
      %v2954 = vadd.f32 0.0, %v2953
      %v2955 = vpop.f32.mrb[0].mxu0
      %v2956 = vadd.f32 0.0, %v2955
      %v2957 = vpop.f32.mrb[0].mxu0
      %v2958 = vadd.f32 0.0, %v2957
      %v2959 = vpop.f32.mrb[0].mxu0
      %v2960 = vadd.f32 0.0, %v2959
      %2961 = vdwg.mxu0
      %2962 = vmatprep.subr.bf16.mxu0 0
      %2963 = vmatpush1.bf16.msra.mxu0 %v1066
      %2964 = vmatprep.subr.bf16.mxu0 0
      %2965 = vmatpush1.bf16.msra.mxu0 0
      %2966 = vmatprep.subr.bf16.mxu0 0
      %2967 = vmatpush1.bf16.msra.mxu0 0
      %2968 = vmatprep.subr.bf16.mxu0 0
      %2969 = vmatpush1.bf16.msra.mxu0 0
      %2970 = vmatprep.subr.bf16.mxu0 0
      %2971 = vmatpush1.bf16.msra.mxu0 0
      %2972 = vmatprep.subr.bf16.mxu0 0
      %2973 = vmatpush1.bf16.msra.mxu0 0
      %2974 = vmatprep.subr.bf16.mxu0 0
      %2975 = vmatpush1.bf16.msra.mxu0 0
      %2976 = vmatprep.subr.bf16.mxu0 0
      %2977 = vmatpush1.bf16.msra.mxu0 0
      %2978 = vmatprep.subr.bf16.mxu0 0
      %2979 = vmatpush1.bf16.msra.mxu0 0
      %2980 = vmatprep.subr.bf16.mxu0 0
      %2981 = vmatpush1.bf16.msra.mxu0 0
      %2982 = vmatprep.subr.bf16.mxu0 0
      %2983 = vmatpush1.bf16.msra.mxu0 0
      %2984 = vmatprep.subr.bf16.mxu0 0
      %2985 = vmatpush1.bf16.msra.mxu0 0
      %2986 = vmatprep.subr.bf16.mxu0 0
      %2987 = vmatpush1.bf16.msra.mxu0 0
      %2988 = vmatprep.subr.bf16.mxu0 0
      %2989 = vmatpush1.bf16.msra.mxu0 0
      %2990 = vmatprep.subr.bf16.mxu0 0
      %2991 = vmatpush1.bf16.msra.mxu0 0
      %2992 = vmatprep.subr.bf16.mxu0 0
      %2993 = vmatpush1.bf16.msra.mxu0 0
      %2994 = vmatprep.mubr.bf16.mxu0 0
      %2995 = vmatmul.mubr.bf16.gmra.mrb[0].mxu0 %v598
      %v2996 = vpop.f32.mrb[0].mxu0
      %v2997 = vadd.f32 0.0, %v2996
      %v2998 = vpop.f32.mrb[0].mxu0
      %v2999 = vpop.f32.mrb[0].mxu0
      %v3000 = vadd.f32 0.0, %v2999
      %v3001 = vpop.f32.mrb[0].mxu0
      %3002 = vmatprep.mubr.bf16.mxu0 0
      %3003 = vmatmul.mubr.bf16.gmra.mrb[0].mxu0 %v601
      %v3004 = vpop.f32.mrb[0].mxu0
      %v3005 = vadd.f32 0.0, %v3004
      %v3006 = vpop.f32.mrb[0].mxu0
      %v3007 = vpop.f32.mrb[0].mxu0
      %v3008 = vadd.f32 0.0, %v3007
      %v3009 = vpop.f32.mrb[0].mxu0
      %3010 = vdwg.mxu0
      %v3011 = vadd.f32 %v2842, %v2944
      %v3012 = vadd.f32 %v2844, %v2946
      %v3013 = vadd.f32 %v2895, %v2997
      %v3014 = vadd.f32 %v2846, %v2948
      %v3015 = vadd.f32 %v2848, %v2950
      %v3016 = vadd.f32 %v2898, %v3000
      %v3017 = vadd.f32 %v2852, %v2954
      %v3018 = vadd.f32 %v2854, %v2956
      %v3019 = vadd.f32 %v2903, %v3005
      %v3020 = vadd.f32 %v2856, %v2958
      %v3021 = vadd.f32 %v2858, %v2960
      %v3022 = vadd.f32 %v2906, %v3008
      %3023 = vmatprep.subr.bf16.mxu0 %v1216
      %3024 = vmatpush1.bf16.msra.mxu0 %v1213
      %3025 = vmatprep.subr.bf16.mxu0 0
      %3026 = vmatpush1.bf16.msra.mxu0 0
      %3027 = vmatprep.subr.bf16.mxu0 0
      %3028 = vmatpush1.bf16.msra.mxu0 0
      %3029 = vmatprep.subr.bf16.mxu0 0
      %3030 = vmatpush1.bf16.msra.mxu0 0
      %3031 = vmatprep.subr.bf16.mxu0 0
      %3032 = vmatpush1.bf16.msra.mxu0 0
      %3033 = vmatprep.subr.bf16.mxu0 0
      %3034 = vmatpush1.bf16.msra.mxu0 0
      %3035 = vmatprep.subr.bf16.mxu0 0
      %3036 = vmatpush1.bf16.msra.mxu0 0
      %3037 = vmatprep.subr.bf16.mxu0 0
      %3038 = vmatpush1.bf16.msra.mxu0 0
      %3039 = vmatprep.subr.bf16.mxu0 0
      %3040 = vmatpush1.bf16.msra.mxu0 0
      %3041 = vmatprep.subr.bf16.mxu0 0
      %3042 = vmatpush1.bf16.msra.mxu0 0
      %3043 = vmatprep.subr.bf16.mxu0 0
      %3044 = vmatpush1.bf16.msra.mxu0 0
      %3045 = vmatprep.subr.bf16.mxu0 0
      %3046 = vmatpush1.bf16.msra.mxu0 0
      %3047 = vmatprep.subr.bf16.mxu0 0
      %3048 = vmatpush1.bf16.msra.mxu0 0
      %3049 = vmatprep.subr.bf16.mxu0 0
      %3050 = vmatpush1.bf16.msra.mxu0 0
      %3051 = vmatprep.subr.bf16.mxu0 0
      %3052 = vmatpush1.bf16.msra.mxu0 0
      %3053 = vmatprep.subr.bf16.mxu0 0
      %3054 = vmatpush1.bf16.msra.mxu0 0
      %3055 = vmatprep.mubr.bf16.mxu0 0
      %3056 = vmatmul.mubr.bf16.gmra.mrb[0].mxu0 %v750
      %v3057 = vpop.f32.mrb[0].mxu0
      %v3058 = vadd.f32 0.0, %v3057
      %v3059 = vpop.f32.mrb[0].mxu0
      %v3060 = vadd.f32 0.0, %v3059
      %v3061 = vpop.f32.mrb[0].mxu0
      %v3062 = vadd.f32 0.0, %v3061
      %v3063 = vpop.f32.mrb[0].mxu0
      %v3064 = vadd.f32 0.0, %v3063
      %3065 = vmatprep.mubr.bf16.mxu0 0
      %3066 = vmatmul.mubr.bf16.gmra.mrb[0].mxu0 %v753
      %v3067 = vpop.f32.mrb[0].mxu0
      %v3068 = vadd.f32 0.0, %v3067
      %v3069 = vpop.f32.mrb[0].mxu0
      %v3070 = vadd.f32 0.0, %v3069
      %v3071 = vpop.f32.mrb[0].mxu0
      %v3072 = vadd.f32 0.0, %v3071
      %v3073 = vpop.f32.mrb[0].mxu0
      %v3074 = vadd.f32 0.0, %v3073
      %3075 = vdwg.mxu0
      %3076 = vmatprep.subr.bf16.mxu0 0
      %3077 = vmatpush1.bf16.msra.mxu0 %v1219
      %3078 = vmatprep.subr.bf16.mxu0 0
      %3079 = vmatpush1.bf16.msra.mxu0 0
      %3080 = vmatprep.subr.bf16.mxu0 0
      %3081 = vmatpush1.bf16.msra.mxu0 0
      %3082 = vmatprep.subr.bf16.mxu0 0
      %3083 = vmatpush1.bf16.msra.mxu0 0
      %3084 = vmatprep.subr.bf16.mxu0 0
      %3085 = vmatpush1.bf16.msra.mxu0 0
      %3086 = vmatprep.subr.bf16.mxu0 0
      %3087 = vmatpush1.bf16.msra.mxu0 0
      %3088 = vmatprep.subr.bf16.mxu0 0
      %3089 = vmatpush1.bf16.msra.mxu0 0
      %3090 = vmatprep.subr.bf16.mxu0 0
      %3091 = vmatpush1.bf16.msra.mxu0 0
      %3092 = vmatprep.subr.bf16.mxu0 0
      %3093 = vmatpush1.bf16.msra.mxu0 0
      %3094 = vmatprep.subr.bf16.mxu0 0
      %3095 = vmatpush1.bf16.msra.mxu0 0
      %3096 = vmatprep.subr.bf16.mxu0 0
      %3097 = vmatpush1.bf16.msra.mxu0 0
      %3098 = vmatprep.subr.bf16.mxu0 0
      %3099 = vmatpush1.bf16.msra.mxu0 0
      %3100 = vmatprep.subr.bf16.mxu0 0
      %3101 = vmatpush1.bf16.msra.mxu0 0
      %3102 = vmatprep.subr.bf16.mxu0 0
      %3103 = vmatpush1.bf16.msra.mxu0 0
      %3104 = vmatprep.subr.bf16.mxu0 0
      %3105 = vmatpush1.bf16.msra.mxu0 0
      %3106 = vmatprep.subr.bf16.mxu0 0
      %3107 = vmatpush1.bf16.msra.mxu0 0
      %3108 = vmatprep.mubr.bf16.mxu0 0
      %3109 = vmatmul.mubr.bf16.gmra.mrb[0].mxu0 %v750
      %v3110 = vpop.f32.mrb[0].mxu0
      %v3111 = vadd.f32 0.0, %v3110
      %v3112 = vpop.f32.mrb[0].mxu0
      %v3113 = vpop.f32.mrb[0].mxu0
      %v3114 = vadd.f32 0.0, %v3113
      %v3115 = vpop.f32.mrb[0].mxu0
      %3116 = vmatprep.mubr.bf16.mxu0 0
      %3117 = vmatmul.mubr.bf16.gmra.mrb[0].mxu0 %v753
      %v3118 = vpop.f32.mrb[0].mxu0
      %v3119 = vadd.f32 0.0, %v3118
      %v3120 = vpop.f32.mrb[0].mxu0
      %v3121 = vpop.f32.mrb[0].mxu0
      %v3122 = vadd.f32 0.0, %v3121
      %v3123 = vpop.f32.mrb[0].mxu0
      %3124 = vdwg.mxu0
      %v3125 = vadd.f32 %v3011, %v3058
      %v3126 = vadd.f32 %v3012, %v3060
      %v3127 = vadd.f32 %v3013, %v3111
      %v3128 = vadd.f32 %v3014, %v3062
      %v3129 = vadd.f32 %v3015, %v3064
      %v3130 = vadd.f32 %v3016, %v3114
      %v3131 = vadd.f32 %v3017, %v3068
      %v3132 = vadd.f32 %v3018, %v3070
      %v3133 = vadd.f32 %v3019, %v3119
      %v3134 = vadd.f32 %v3020, %v3072
      %v3135 = vadd.f32 %v3021, %v3074
      %v3136 = vadd.f32 %v3022, %v3122
      %3137 = vmatprep.subr.bf16.mxu0 %v1368
      %3138 = vmatpush1.bf16.msra.mxu0 %v1365
      %3139 = vmatprep.subr.bf16.mxu0 0
      %3140 = vmatpush1.bf16.msra.mxu0 0
      %3141 = vmatprep.subr.bf16.mxu0 0
      %3142 = vmatpush1.bf16.msra.mxu0 0
      %3143 = vmatprep.subr.bf16.mxu0 0
      %3144 = vmatpush1.bf16.msra.mxu0 0
      %3145 = vmatprep.subr.bf16.mxu0 0
      %3146 = vmatpush1.bf16.msra.mxu0 0
      %3147 = vmatprep.subr.bf16.mxu0 0
      %3148 = vmatpush1.bf16.msra.mxu0 0
      %3149 = vmatprep.subr.bf16.mxu0 0
      %3150 = vmatpush1.bf16.msra.mxu0 0
      %3151 = vmatprep.subr.bf16.mxu0 0
      %3152 = vmatpush1.bf16.msra.mxu0 0
      %3153 = vmatprep.subr.bf16.mxu0 0
      %3154 = vmatpush1.bf16.msra.mxu0 0
      %3155 = vmatprep.subr.bf16.mxu0 0
      %3156 = vmatpush1.bf16.msra.mxu0 0
      %3157 = vmatprep.subr.bf16.mxu0 0
      %3158 = vmatpush1.bf16.msra.mxu0 0
      %3159 = vmatprep.subr.bf16.mxu0 0
      %3160 = vmatpush1.bf16.msra.mxu0 0
      %3161 = vmatprep.subr.bf16.mxu0 0
      %3162 = vmatpush1.bf16.msra.mxu0 0
      %3163 = vmatprep.subr.bf16.mxu0 0
      %3164 = vmatpush1.bf16.msra.mxu0 0
      %3165 = vmatprep.subr.bf16.mxu0 0
      %3166 = vmatpush1.bf16.msra.mxu0 0
      %3167 = vmatprep.subr.bf16.mxu0 0
      %3168 = vmatpush1.bf16.msra.mxu0 0
      %3169 = vmatprep.mubr.bf16.mxu0 0
      %3170 = vmatmul.mubr.bf16.gmra.mrb[0].mxu0 %v902
      %v3171 = vpop.f32.mrb[0].mxu0
      %v3172 = vadd.f32 0.0, %v3171
      %v3173 = vpop.f32.mrb[0].mxu0
      %v3174 = vadd.f32 0.0, %v3173
      %v3175 = vpop.f32.mrb[0].mxu0
      %v3176 = vadd.f32 0.0, %v3175
      %v3177 = vpop.f32.mrb[0].mxu0
      %v3178 = vadd.f32 0.0, %v3177
      %3179 = vmatprep.mubr.bf16.mxu0 0
      %3180 = vmatmul.mubr.bf16.gmra.mrb[0].mxu0 %v905
      %v3181 = vpop.f32.mrb[0].mxu0
      %v3182 = vadd.f32 0.0, %v3181
      %v3183 = vpop.f32.mrb[0].mxu0
      %v3184 = vadd.f32 0.0, %v3183
      %v3185 = vpop.f32.mrb[0].mxu0
      %v3186 = vadd.f32 0.0, %v3185
      %v3187 = vpop.f32.mrb[0].mxu0
      %v3188 = vadd.f32 0.0, %v3187
      %3189 = vdwg.mxu0
      %3190 = vmatprep.subr.bf16.mxu0 0
      %3191 = vmatpush1.bf16.msra.mxu0 %v1371
      %3192 = vmatprep.subr.bf16.mxu0 0
      %3193 = vmatpush1.bf16.msra.mxu0 0
      %3194 = vmatprep.subr.bf16.mxu0 0
      %3195 = vmatpush1.bf16.msra.mxu0 0
      %3196 = vmatprep.subr.bf16.mxu0 0
      %3197 = vmatpush1.bf16.msra.mxu0 0
      %3198 = vmatprep.subr.bf16.mxu0 0
      %3199 = vmatpush1.bf16.msra.mxu0 0
      %3200 = vmatprep.subr.bf16.mxu0 0
      %3201 = vmatpush1.bf16.msra.mxu0 0
      %3202 = vmatprep.subr.bf16.mxu0 0
      %3203 = vmatpush1.bf16.msra.mxu0 0
      %3204 = vmatprep.subr.bf16.mxu0 0
      %3205 = vmatpush1.bf16.msra.mxu0 0
      %3206 = vmatprep.subr.bf16.mxu0 0
      %3207 = vmatpush1.bf16.msra.mxu0 0
      %3208 = vmatprep.subr.bf16.mxu0 0
      %3209 = vmatpush1.bf16.msra.mxu0 0
      %3210 = vmatprep.subr.bf16.mxu0 0
      %3211 = vmatpush1.bf16.msra.mxu0 0
      %3212 = vmatprep.subr.bf16.mxu0 0
      %3213 = vmatpush1.bf16.msra.mxu0 0
      %3214 = vmatprep.subr.bf16.mxu0 0
      %3215 = vmatpush1.bf16.msra.mxu0 0
      %3216 = vmatprep.subr.bf16.mxu0 0
      %3217 = vmatpush1.bf16.msra.mxu0 0
      %3218 = vmatprep.subr.bf16.mxu0 0
      %3219 = vmatpush1.bf16.msra.mxu0 0
      %3220 = vmatprep.subr.bf16.mxu0 0
      %3221 = vmatpush1.bf16.msra.mxu0 0
      %3222 = vmatprep.mubr.bf16.mxu0 0
      %3223 = vmatmul.mubr.bf16.gmra.mrb[0].mxu0 %v902
      %v3224 = vpop.f32.mrb[0].mxu0
      %v3225 = vadd.f32 0.0, %v3224
      %v3226 = vpop.f32.mrb[0].mxu0
      %v3227 = vpop.f32.mrb[0].mxu0
      %v3228 = vadd.f32 0.0, %v3227
      %v3229 = vpop.f32.mrb[0].mxu0
      %3230 = vmatprep.mubr.bf16.mxu0 0
      %3231 = vmatmul.mubr.bf16.gmra.mrb[0].mxu0 %v905
      %v3232 = vpop.f32.mrb[0].mxu0
      %v3233 = vadd.f32 0.0, %v3232
      %v3234 = vpop.f32.mrb[0].mxu0
      %v3235 = vpop.f32.mrb[0].mxu0
      %v3236 = vadd.f32 0.0, %v3235
      %v3237 = vpop.f32.mrb[0].mxu0
      %3238 = vdwg.mxu0
      %v3239 = vadd.f32 %v3125, %v3172
      %v3240 = vadd.f32 %v3126, %v3174
      %v3241 = vadd.f32 %v3127, %v3225
      %v3242 = vadd.f32 %v3128, %v3176
      %v3243 = vadd.f32 %v3129, %v3178
      %v3244 = vadd.f32 %v3130, %v3228
      %v3245 = vadd.f32 %v3131, %v3182
      %v3246 = vadd.f32 %v3132, %v3184
      %v3247 = vadd.f32 %v3133, %v3233
      %v3248 = vadd.f32 %v3134, %v3186
      %v3249 = vadd.f32 %v3135, %v3188
      %v3250 = vadd.f32 %v3136, %v3236
      %3251 = vmatprep.subr.bf16.mxu0 %v1521
      %3252 = vmatpush1.bf16.msra.mxu0 %v1518
      %3253 = vmatprep.subr.bf16.mxu0 0
      %3254 = vmatpush1.bf16.msra.mxu0 0
      %3255 = vmatprep.subr.bf16.mxu0 0
      %3256 = vmatpush1.bf16.msra.mxu0 0
      %3257 = vmatprep.subr.bf16.mxu0 0
      %3258 = vmatpush1.bf16.msra.mxu0 0
      %3259 = vmatprep.subr.bf16.mxu0 0
      %3260 = vmatpush1.bf16.msra.mxu0 0
      %3261 = vmatprep.subr.bf16.mxu0 0
      %3262 = vmatpush1.bf16.msra.mxu0 0
      %3263 = vmatprep.subr.bf16.mxu0 0
      %3264 = vmatpush1.bf16.msra.mxu0 0
      %3265 = vmatprep.subr.bf16.mxu0 0
      %3266 = vmatpush1.bf16.msra.mxu0 0
      %3267 = vmatprep.subr.bf16.mxu0 0
      %3268 = vmatpush1.bf16.msra.mxu0 0
      %3269 = vmatprep.subr.bf16.mxu0 0
      %3270 = vmatpush1.bf16.msra.mxu0 0
      %3271 = vmatprep.subr.bf16.mxu0 0
      %3272 = vmatpush1.bf16.msra.mxu0 0
      %3273 = vmatprep.subr.bf16.mxu0 0
      %3274 = vmatpush1.bf16.msra.mxu0 0
      %3275 = vmatprep.subr.bf16.mxu0 0
      %3276 = vmatpush1.bf16.msra.mxu0 0
      %3277 = vmatprep.subr.bf16.mxu0 0
      %3278 = vmatpush1.bf16.msra.mxu0 0
      %3279 = vmatprep.subr.bf16.mxu0 0
      %3280 = vmatpush1.bf16.msra.mxu0 0
      %3281 = vmatprep.subr.bf16.mxu0 0
      %3282 = vmatpush1.bf16.msra.mxu0 0
      %3283 = vmatprep.mubr.bf16.mxu0 0
      %3284 = vmatmul.mubr.bf16.gmra.mrb[0].mxu0 %v1054
      %v3285 = vpop.f32.mrb[0].mxu0
      %v3286 = vadd.f32 0.0, %v3285
      %v3287 = vpop.f32.mrb[0].mxu0
      %v3288 = vadd.f32 0.0, %v3287
      %v3289 = vpop.f32.mrb[0].mxu0
      %v3290 = vadd.f32 0.0, %v3289
      %v3291 = vpop.f32.mrb[0].mxu0
      %v3292 = vadd.f32 0.0, %v3291
      %3293 = vmatprep.mubr.bf16.mxu0 0
      %3294 = vmatmul.mubr.bf16.gmra.mrb[0].mxu0 %v1057
      %v3295 = vpop.f32.mrb[0].mxu0
      %v3296 = vadd.f32 0.0, %v3295
      %v3297 = vpop.f32.mrb[0].mxu0
      %v3298 = vadd.f32 0.0, %v3297
      %v3299 = vpop.f32.mrb[0].mxu0
      %v3300 = vadd.f32 0.0, %v3299
      %v3301 = vpop.f32.mrb[0].mxu0
      %v3302 = vadd.f32 0.0, %v3301
      %3303 = vdwg.mxu0
      %3304 = vmatprep.subr.bf16.mxu0 0
      %3305 = vmatpush1.bf16.msra.mxu0 %v1524
      %3306 = vmatprep.subr.bf16.mxu0 0
      %3307 = vmatpush1.bf16.msra.mxu0 0
      %3308 = vmatprep.subr.bf16.mxu0 0
      %3309 = vmatpush1.bf16.msra.mxu0 0
      %3310 = vmatprep.subr.bf16.mxu0 0
      %3311 = vmatpush1.bf16.msra.mxu0 0
      %3312 = vmatprep.subr.bf16.mxu0 0
      %3313 = vmatpush1.bf16.msra.mxu0 0
      %3314 = vmatprep.subr.bf16.mxu0 0
      %3315 = vmatpush1.bf16.msra.mxu0 0
      %3316 = vmatprep.subr.bf16.mxu0 0
      %3317 = vmatpush1.bf16.msra.mxu0 0
      %3318 = vmatprep.subr.bf16.mxu0 0
      %3319 = vmatpush1.bf16.msra.mxu0 0
      %3320 = vmatprep.subr.bf16.mxu0 0
      %3321 = vmatpush1.bf16.msra.mxu0 0
      %3322 = vmatprep.subr.bf16.mxu0 0
      %3323 = vmatpush1.bf16.msra.mxu0 0
      %3324 = vmatprep.subr.bf16.mxu0 0
      %3325 = vmatpush1.bf16.msra.mxu0 0
      %3326 = vmatprep.subr.bf16.mxu0 0
      %3327 = vmatpush1.bf16.msra.mxu0 0
      %3328 = vmatprep.subr.bf16.mxu0 0
      %3329 = vmatpush1.bf16.msra.mxu0 0
      %3330 = vmatprep.subr.bf16.mxu0 0
      %3331 = vmatpush1.bf16.msra.mxu0 0
      %3332 = vmatprep.subr.bf16.mxu0 0
      %3333 = vmatpush1.bf16.msra.mxu0 0
      %3334 = vmatprep.subr.bf16.mxu0 0
      %3335 = vmatpush1.bf16.msra.mxu0 0
      %3336 = vmatprep.mubr.bf16.mxu0 0
      %3337 = vmatmul.mubr.bf16.gmra.mrb[0].mxu0 %v1054
      %v3338 = vpop.f32.mrb[0].mxu0
      %v3339 = vadd.f32 0.0, %v3338
      %v3340 = vpop.f32.mrb[0].mxu0
      %v3341 = vpop.f32.mrb[0].mxu0
      %v3342 = vadd.f32 0.0, %v3341
      %v3343 = vpop.f32.mrb[0].mxu0
      %3344 = vmatprep.mubr.bf16.mxu0 0
      %3345 = vmatmul.mubr.bf16.gmra.mrb[0].mxu0 %v1057
      %v3346 = vpop.f32.mrb[0].mxu0
      %v3347 = vadd.f32 0.0, %v3346
      %v3348 = vpop.f32.mrb[0].mxu0
      %v3349 = vpop.f32.mrb[0].mxu0
      %v3350 = vadd.f32 0.0, %v3349
      %v3351 = vpop.f32.mrb[0].mxu0
      %3352 = vdwg.mxu0
      %v3353 = vadd.f32 %v3239, %v3286
      %v3354 = vadd.f32 %v3240, %v3288
      %v3355 = vadd.f32 %v3241, %v3339
      %v3356 = vadd.f32 %v3242, %v3290
      %v3357 = vadd.f32 %v3243, %v3292
      %v3358 = vadd.f32 %v3244, %v3342
      %v3359 = vadd.f32 %v3245, %v3296
      %v3360 = vadd.f32 %v3246, %v3298
      %v3361 = vadd.f32 %v3247, %v3347
      %v3362 = vadd.f32 %v3248, %v3300
      %v3363 = vadd.f32 %v3249, %v3302
      %v3364 = vadd.f32 %v3250, %v3350
      %3365 = vrot.lane.b32.xlu0 %v746, 110
      %v3366 = vpop.permute.xlu0 %3365
      %3367 = vrot.lane.b32.xlu0 %v747, 110
      %v3368 = vpop.permute.xlu0 %3367
      %3369 = vrot.lane.b32.xlu0 %v748, 110
      %v3370 = vpop.permute.xlu0 %3369
      %v3371 = vsel %vm1203, %v3366, %v3368
      %v3372 = vsel %vm1203, %v3368, %v3370
      %v3374 = vsel %vm326, %v3371, 0
      %v3377 = vsel %vm326, %v3372, 0
      %v3380 = vsel %vm326, %v3370, 0
      %3382 = vmatprep.subr.bf16.mxu0 %v3377
      %3383 = vmatpush1.bf16.msra.mxu0 %v3374
      %3384 = vmatprep.subr.bf16.mxu0 0
      %3385 = vmatpush1.bf16.msra.mxu0 0
      %3386 = vmatprep.subr.bf16.mxu0 0
      %3387 = vmatpush1.bf16.msra.mxu0 0
      %3388 = vmatprep.subr.bf16.mxu0 0
      %3389 = vmatpush1.bf16.msra.mxu0 0
      %3390 = vmatprep.subr.bf16.mxu0 0
      %3391 = vmatpush1.bf16.msra.mxu0 0
      %3392 = vmatprep.subr.bf16.mxu0 0
      %3393 = vmatpush1.bf16.msra.mxu0 0
      %3394 = vmatprep.subr.bf16.mxu0 0
      %3395 = vmatpush1.bf16.msra.mxu0 0
      %3396 = vmatprep.subr.bf16.mxu0 0
      %3397 = vmatpush1.bf16.msra.mxu0 0
      %3398 = vmatprep.subr.bf16.mxu0 0
      %3399 = vmatpush1.bf16.msra.mxu0 0
      %3400 = vmatprep.subr.bf16.mxu0 0
      %3401 = vmatpush1.bf16.msra.mxu0 0
      %3402 = vmatprep.subr.bf16.mxu0 0
      %3403 = vmatpush1.bf16.msra.mxu0 0
      %3404 = vmatprep.subr.bf16.mxu0 0
      %3405 = vmatpush1.bf16.msra.mxu0 0
      %3406 = vmatprep.subr.bf16.mxu0 0
      %3407 = vmatpush1.bf16.msra.mxu0 0
      %3408 = vmatprep.subr.bf16.mxu0 0
      %3409 = vmatpush1.bf16.msra.mxu0 0
      %3410 = vmatprep.subr.bf16.mxu0 0
      %3411 = vmatpush1.bf16.msra.mxu0 0
      %3412 = vmatprep.subr.bf16.mxu0 0
      %3413 = vmatpush1.bf16.msra.mxu0 0
      %3414 = vmatprep.mubr.bf16.mxu0 0
      %3415 = vmatmul.mubr.bf16.gmra.mrb[0].mxu0 %v1207
      %v3416 = vpop.f32.mrb[0].mxu0
      %v3417 = vadd.f32 0.0, %v3416
      %v3418 = vpop.f32.mrb[0].mxu0
      %v3419 = vadd.f32 0.0, %v3418
      %v3420 = vpop.f32.mrb[0].mxu0
      %v3421 = vadd.f32 0.0, %v3420
      %v3422 = vpop.f32.mrb[0].mxu0
      %v3423 = vadd.f32 0.0, %v3422
      %3424 = vmatprep.mubr.bf16.mxu0 0
      %3425 = vmatmul.mubr.bf16.gmra.mrb[0].mxu0 %v1210
      %v3426 = vpop.f32.mrb[0].mxu0
      %v3427 = vadd.f32 0.0, %v3426
      %v3428 = vpop.f32.mrb[0].mxu0
      %v3429 = vadd.f32 0.0, %v3428
      %v3430 = vpop.f32.mrb[0].mxu0
      %v3431 = vadd.f32 0.0, %v3430
      %v3432 = vpop.f32.mrb[0].mxu0
      %v3433 = vadd.f32 0.0, %v3432
      %3434 = vdwg.mxu0
      %3435 = vmatprep.subr.bf16.mxu0 0
      %3436 = vmatpush1.bf16.msra.mxu0 %v3380
      %3437 = vmatprep.subr.bf16.mxu0 0
      %3438 = vmatpush1.bf16.msra.mxu0 0
      %3439 = vmatprep.subr.bf16.mxu0 0
      %3440 = vmatpush1.bf16.msra.mxu0 0
      %3441 = vmatprep.subr.bf16.mxu0 0
      %3442 = vmatpush1.bf16.msra.mxu0 0
      %3443 = vmatprep.subr.bf16.mxu0 0
      %3444 = vmatpush1.bf16.msra.mxu0 0
      %3445 = vmatprep.subr.bf16.mxu0 0
      %3446 = vmatpush1.bf16.msra.mxu0 0
      %3447 = vmatprep.subr.bf16.mxu0 0
      %3448 = vmatpush1.bf16.msra.mxu0 0
      %3449 = vmatprep.subr.bf16.mxu0 0
      %3450 = vmatpush1.bf16.msra.mxu0 0
      %3451 = vmatprep.subr.bf16.mxu0 0
      %3452 = vmatpush1.bf16.msra.mxu0 0
      %3453 = vmatprep.subr.bf16.mxu0 0
      %3454 = vmatpush1.bf16.msra.mxu0 0
      %3455 = vmatprep.subr.bf16.mxu0 0
      %3456 = vmatpush1.bf16.msra.mxu0 0
      %3457 = vmatprep.subr.bf16.mxu0 0
      %3458 = vmatpush1.bf16.msra.mxu0 0
      %3459 = vmatprep.subr.bf16.mxu0 0
      %3460 = vmatpush1.bf16.msra.mxu0 0
      %3461 = vmatprep.subr.bf16.mxu0 0
      %3462 = vmatpush1.bf16.msra.mxu0 0
      %3463 = vmatprep.subr.bf16.mxu0 0
      %3464 = vmatpush1.bf16.msra.mxu0 0
      %3465 = vmatprep.subr.bf16.mxu0 0
      %3466 = vmatpush1.bf16.msra.mxu0 0
      %3467 = vmatprep.mubr.bf16.mxu0 0
      %3468 = vmatmul.mubr.bf16.gmra.mrb[0].mxu0 %v1207
      %v3469 = vpop.f32.mrb[0].mxu0
      %v3470 = vadd.f32 0.0, %v3469
      %v3471 = vpop.f32.mrb[0].mxu0
      %v3472 = vpop.f32.mrb[0].mxu0
      %v3473 = vadd.f32 0.0, %v3472
      %v3474 = vpop.f32.mrb[0].mxu0
      %3475 = vmatprep.mubr.bf16.mxu0 0
      %3476 = vmatmul.mubr.bf16.gmra.mrb[0].mxu0 %v1210
      %v3477 = vpop.f32.mrb[0].mxu0
      %v3478 = vadd.f32 0.0, %v3477
      %v3479 = vpop.f32.mrb[0].mxu0
      %v3480 = vpop.f32.mrb[0].mxu0
      %v3481 = vadd.f32 0.0, %v3480
      %v3482 = vpop.f32.mrb[0].mxu0
      %3483 = vdwg.mxu0
      %v3484 = vadd.f32 %v3353, %v3417
      %v3485 = vadd.f32 %v3354, %v3419
      %v3486 = vadd.f32 %v3355, %v3470
      %v3487 = vadd.f32 %v3356, %v3421
      %v3488 = vadd.f32 %v3357, %v3423
      %v3489 = vadd.f32 %v3358, %v3473
      %v3490 = vadd.f32 %v3359, %v3427
      %v3491 = vadd.f32 %v3360, %v3429
      %v3492 = vadd.f32 %v3361, %v3478
      %v3493 = vadd.f32 %v3362, %v3431
      %v3494 = vadd.f32 %v3363, %v3433
      %v3495 = vadd.f32 %v3364, %v3481
      %3496 = vrot.lane.b32.xlu0 %v898, 110
      %v3497 = vpop.permute.xlu0 %3496
      %3498 = vrot.lane.b32.xlu0 %v899, 110
      %v3499 = vpop.permute.xlu0 %3498
      %3500 = vrot.lane.b32.xlu0 %v900, 110
      %v3501 = vpop.permute.xlu0 %3500
      %v3502 = vsel %vm1203, %v3497, %v3499
      %v3503 = vsel %vm1203, %v3499, %v3501
      %v3505 = vsel %vm326, %v3502, 0
      %v3508 = vsel %vm326, %v3503, 0
      %v3511 = vsel %vm326, %v3501, 0
      %3513 = vmatprep.subr.bf16.mxu0 %v3508
      %3514 = vmatpush1.bf16.msra.mxu0 %v3505
      %3515 = vmatprep.subr.bf16.mxu0 0
      %3516 = vmatpush1.bf16.msra.mxu0 0
      %3517 = vmatprep.subr.bf16.mxu0 0
      %3518 = vmatpush1.bf16.msra.mxu0 0
      %3519 = vmatprep.subr.bf16.mxu0 0
      %3520 = vmatpush1.bf16.msra.mxu0 0
      %3521 = vmatprep.subr.bf16.mxu0 0
      %3522 = vmatpush1.bf16.msra.mxu0 0
      %3523 = vmatprep.subr.bf16.mxu0 0
      %3524 = vmatpush1.bf16.msra.mxu0 0
      %3525 = vmatprep.subr.bf16.mxu0 0
      %3526 = vmatpush1.bf16.msra.mxu0 0
      %3527 = vmatprep.subr.bf16.mxu0 0
      %3528 = vmatpush1.bf16.msra.mxu0 0
      %3529 = vmatprep.subr.bf16.mxu0 0
      %3530 = vmatpush1.bf16.msra.mxu0 0
      %3531 = vmatprep.subr.bf16.mxu0 0
      %3532 = vmatpush1.bf16.msra.mxu0 0
      %3533 = vmatprep.subr.bf16.mxu0 0
      %3534 = vmatpush1.bf16.msra.mxu0 0
      %3535 = vmatprep.subr.bf16.mxu0 0
      %3536 = vmatpush1.bf16.msra.mxu0 0
      %3537 = vmatprep.subr.bf16.mxu0 0
      %3538 = vmatpush1.bf16.msra.mxu0 0
      %3539 = vmatprep.subr.bf16.mxu0 0
      %3540 = vmatpush1.bf16.msra.mxu0 0
      %3541 = vmatprep.subr.bf16.mxu0 0
      %3542 = vmatpush1.bf16.msra.mxu0 0
      %3543 = vmatprep.subr.bf16.mxu0 0
      %3544 = vmatpush1.bf16.msra.mxu0 0
      %3545 = vmatprep.mubr.bf16.mxu0 0
      %3546 = vmatmul.mubr.bf16.gmra.mrb[0].mxu0 %v1359
      %v3547 = vpop.f32.mrb[0].mxu0
      %v3548 = vadd.f32 0.0, %v3547
      %v3549 = vpop.f32.mrb[0].mxu0
      %v3550 = vadd.f32 0.0, %v3549
      %v3551 = vpop.f32.mrb[0].mxu0
      %v3552 = vadd.f32 0.0, %v3551
      %v3553 = vpop.f32.mrb[0].mxu0
      %v3554 = vadd.f32 0.0, %v3553
      %3555 = vmatprep.mubr.bf16.mxu0 0
      %3556 = vmatmul.mubr.bf16.gmra.mrb[0].mxu0 %v1362
      %v3557 = vpop.f32.mrb[0].mxu0
      %v3558 = vadd.f32 0.0, %v3557
      %v3559 = vpop.f32.mrb[0].mxu0
      %v3560 = vadd.f32 0.0, %v3559
      %v3561 = vpop.f32.mrb[0].mxu0
      %v3562 = vadd.f32 0.0, %v3561
      %v3563 = vpop.f32.mrb[0].mxu0
      %v3564 = vadd.f32 0.0, %v3563
      %3565 = vdwg.mxu0
      %3566 = vmatprep.subr.bf16.mxu0 0
      %3567 = vmatpush1.bf16.msra.mxu0 %v3511
      %3568 = vmatprep.subr.bf16.mxu0 0
      %3569 = vmatpush1.bf16.msra.mxu0 0
      %3570 = vmatprep.subr.bf16.mxu0 0
      %3571 = vmatpush1.bf16.msra.mxu0 0
      %3572 = vmatprep.subr.bf16.mxu0 0
      %3573 = vmatpush1.bf16.msra.mxu0 0
      %3574 = vmatprep.subr.bf16.mxu0 0
      %3575 = vmatpush1.bf16.msra.mxu0 0
      %3576 = vmatprep.subr.bf16.mxu0 0
      %3577 = vmatpush1.bf16.msra.mxu0 0
      %3578 = vmatprep.subr.bf16.mxu0 0
      %3579 = vmatpush1.bf16.msra.mxu0 0
      %3580 = vmatprep.subr.bf16.mxu0 0
      %3581 = vmatpush1.bf16.msra.mxu0 0
      %3582 = vmatprep.subr.bf16.mxu0 0
      %3583 = vmatpush1.bf16.msra.mxu0 0
      %3584 = vmatprep.subr.bf16.mxu0 0
      %3585 = vmatpush1.bf16.msra.mxu0 0
      %3586 = vmatprep.subr.bf16.mxu0 0
      %3587 = vmatpush1.bf16.msra.mxu0 0
      %3588 = vmatprep.subr.bf16.mxu0 0
      %3589 = vmatpush1.bf16.msra.mxu0 0
      %3590 = vmatprep.subr.bf16.mxu0 0
      %3591 = vmatpush1.bf16.msra.mxu0 0
      %3592 = vmatprep.subr.bf16.mxu0 0
      %3593 = vmatpush1.bf16.msra.mxu0 0
      %3594 = vmatprep.subr.bf16.mxu0 0
      %3595 = vmatpush1.bf16.msra.mxu0 0
      %3596 = vmatprep.subr.bf16.mxu0 0
      %3597 = vmatpush1.bf16.msra.mxu0 0
      %3598 = vmatprep.mubr.bf16.mxu0 0
      %3599 = vmatmul.mubr.bf16.gmra.mrb[0].mxu0 %v1359
      %v3600 = vpop.f32.mrb[0].mxu0
      %v3601 = vadd.f32 0.0, %v3600
      %v3602 = vpop.f32.mrb[0].mxu0
      %v3603 = vpop.f32.mrb[0].mxu0
      %v3604 = vadd.f32 0.0, %v3603
      %v3605 = vpop.f32.mrb[0].mxu0
      %3606 = vmatprep.mubr.bf16.mxu0 0
      %3607 = vmatmul.mubr.bf16.gmra.mrb[0].mxu0 %v1362
      %v3608 = vpop.f32.mrb[0].mxu0
      %v3609 = vadd.f32 0.0, %v3608
      %v3610 = vpop.f32.mrb[0].mxu0
      %v3611 = vpop.f32.mrb[0].mxu0
      %v3612 = vadd.f32 0.0, %v3611
      %v3613 = vpop.f32.mrb[0].mxu0
      %3614 = vdwg.mxu0
      %v3615 = vadd.f32 %v3484, %v3548
      %v3616 = vadd.f32 %v3485, %v3550
      %v3617 = vadd.f32 %v3486, %v3601
      %v3618 = vadd.f32 %v3487, %v3552
      %v3619 = vadd.f32 %v3488, %v3554
      %v3620 = vadd.f32 %v3489, %v3604
      %v3621 = vadd.f32 %v3490, %v3558
      %v3622 = vadd.f32 %v3491, %v3560
      %v3623 = vadd.f32 %v3492, %v3609
      %v3624 = vadd.f32 %v3493, %v3562
      %v3625 = vadd.f32 %v3494, %v3564
      %v3626 = vadd.f32 %v3495, %v3612
      %3627 = vrot.lane.b32.xlu0 %v746, 109
      %v3628 = vpop.permute.xlu0 %3627
      %3629 = vrot.lane.b32.xlu0 %v747, 109
      %v3630 = vpop.permute.xlu0 %3629
      %3631 = vrot.lane.b32.xlu0 %v748, 109
      %v3632 = vpop.permute.xlu0 %3631
      %v3633 = vsel %vm1508, %v3628, %v3630
      %v3634 = vsel %vm1508, %v3630, %v3632
      %v3636 = vsel %vm326, %v3633, 0
      %v3639 = vsel %vm326, %v3634, 0
      %v3642 = vsel %vm326, %v3632, 0
      %3644 = vmatprep.subr.bf16.mxu0 %v3639
      %3645 = vmatpush1.bf16.msra.mxu0 %v3636
      %3646 = vmatprep.subr.bf16.mxu0 0
      %3647 = vmatpush1.bf16.msra.mxu0 0
      %3648 = vmatprep.subr.bf16.mxu0 0
      %3649 = vmatpush1.bf16.msra.mxu0 0
      %3650 = vmatprep.subr.bf16.mxu0 0
      %3651 = vmatpush1.bf16.msra.mxu0 0
      %3652 = vmatprep.subr.bf16.mxu0 0
      %3653 = vmatpush1.bf16.msra.mxu0 0
      %3654 = vmatprep.subr.bf16.mxu0 0
      %3655 = vmatpush1.bf16.msra.mxu0 0
      %3656 = vmatprep.subr.bf16.mxu0 0
      %3657 = vmatpush1.bf16.msra.mxu0 0
      %3658 = vmatprep.subr.bf16.mxu0 0
      %3659 = vmatpush1.bf16.msra.mxu0 0
      %3660 = vmatprep.subr.bf16.mxu0 0
      %3661 = vmatpush1.bf16.msra.mxu0 0
      %3662 = vmatprep.subr.bf16.mxu0 0
      %3663 = vmatpush1.bf16.msra.mxu0 0
      %3664 = vmatprep.subr.bf16.mxu0 0
      %3665 = vmatpush1.bf16.msra.mxu0 0
      %3666 = vmatprep.subr.bf16.mxu0 0
      %3667 = vmatpush1.bf16.msra.mxu0 0
      %3668 = vmatprep.subr.bf16.mxu0 0
      %3669 = vmatpush1.bf16.msra.mxu0 0
      %3670 = vmatprep.subr.bf16.mxu0 0
      %3671 = vmatpush1.bf16.msra.mxu0 0
      %3672 = vmatprep.subr.bf16.mxu0 0
      %3673 = vmatpush1.bf16.msra.mxu0 0
      %3674 = vmatprep.subr.bf16.mxu0 0
      %3675 = vmatpush1.bf16.msra.mxu0 0
      %3676 = vmatprep.mubr.bf16.mxu0 0
      %3677 = vmatmul.mubr.bf16.gmra.mrb[0].mxu0 %v1512
      %v3678 = vpop.f32.mrb[0].mxu0
      %v3679 = vadd.f32 0.0, %v3678
      %v3680 = vpop.f32.mrb[0].mxu0
      %v3681 = vadd.f32 0.0, %v3680
      %v3682 = vpop.f32.mrb[0].mxu0
      %v3683 = vadd.f32 0.0, %v3682
      %v3684 = vpop.f32.mrb[0].mxu0
      %v3685 = vadd.f32 0.0, %v3684
      %3686 = vmatprep.mubr.bf16.mxu0 0
      %3687 = vmatmul.mubr.bf16.gmra.mrb[0].mxu0 %v1515
      %v3688 = vpop.f32.mrb[0].mxu0
      %v3689 = vadd.f32 0.0, %v3688
      %v3690 = vpop.f32.mrb[0].mxu0
      %v3691 = vadd.f32 0.0, %v3690
      %v3692 = vpop.f32.mrb[0].mxu0
      %v3693 = vadd.f32 0.0, %v3692
      %v3694 = vpop.f32.mrb[0].mxu0
      %v3695 = vadd.f32 0.0, %v3694
      %3696 = vdwg.mxu0
      %3697 = vmatprep.subr.bf16.mxu0 0
      %3698 = vmatpush1.bf16.msra.mxu0 %v3642
      %3699 = vmatprep.subr.bf16.mxu0 0
      %3700 = vmatpush1.bf16.msra.mxu0 0
      %3701 = vmatprep.subr.bf16.mxu0 0
      %3702 = vmatpush1.bf16.msra.mxu0 0
      %3703 = vmatprep.subr.bf16.mxu0 0
      %3704 = vmatpush1.bf16.msra.mxu0 0
      %3705 = vmatprep.subr.bf16.mxu0 0
      %3706 = vmatpush1.bf16.msra.mxu0 0
      %3707 = vmatprep.subr.bf16.mxu0 0
      %3708 = vmatpush1.bf16.msra.mxu0 0
      %3709 = vmatprep.subr.bf16.mxu0 0
      %3710 = vmatpush1.bf16.msra.mxu0 0
      %3711 = vmatprep.subr.bf16.mxu0 0
      %3712 = vmatpush1.bf16.msra.mxu0 0
      %3713 = vmatprep.subr.bf16.mxu0 0
      %3714 = vmatpush1.bf16.msra.mxu0 0
      %3715 = vmatprep.subr.bf16.mxu0 0
      %3716 = vmatpush1.bf16.msra.mxu0 0
      %3717 = vmatprep.subr.bf16.mxu0 0
      %3718 = vmatpush1.bf16.msra.mxu0 0
      %3719 = vmatprep.subr.bf16.mxu0 0
      %3720 = vmatpush1.bf16.msra.mxu0 0
      %3721 = vmatprep.subr.bf16.mxu0 0
      %3722 = vmatpush1.bf16.msra.mxu0 0
      %3723 = vmatprep.subr.bf16.mxu0 0
      %3724 = vmatpush1.bf16.msra.mxu0 0
      %3725 = vmatprep.subr.bf16.mxu0 0
      %3726 = vmatpush1.bf16.msra.mxu0 0
      %3727 = vmatprep.subr.bf16.mxu0 0
      %3728 = vmatpush1.bf16.msra.mxu0 0
      %3729 = vmatprep.mubr.bf16.mxu0 0
      %3730 = vmatmul.mubr.bf16.gmra.mrb[0].mxu0 %v1512
      %v3731 = vpop.f32.mrb[0].mxu0
      %v3732 = vadd.f32 0.0, %v3731
      %v3733 = vpop.f32.mrb[0].mxu0
      %v3734 = vpop.f32.mrb[0].mxu0
      %v3735 = vadd.f32 0.0, %v3734
      %v3736 = vpop.f32.mrb[0].mxu0
      %3737 = vmatprep.mubr.bf16.mxu0 0
      %3738 = vmatmul.mubr.bf16.gmra.mrb[0].mxu0 %v1515
      %v3739 = vpop.f32.mrb[0].mxu0
      %v3740 = vadd.f32 0.0, %v3739
      %v3741 = vpop.f32.mrb[0].mxu0
      %v3742 = vpop.f32.mrb[0].mxu0
      %v3743 = vadd.f32 0.0, %v3742
      %v3744 = vpop.f32.mrb[0].mxu0
      %3745 = vdwg.mxu0
      %v3746 = vadd.f32 %v3615, %v3679
      %v3747 = vadd.f32 %v3616, %v3681
      %v3748 = vadd.f32 %v3617, %v3732
      %v3749 = vadd.f32 %v3618, %v3683
      %v3750 = vadd.f32 %v3619, %v3685
      %v3751 = vadd.f32 %v3620, %v3735
      %v3752 = vadd.f32 %v3621, %v3689
      %v3753 = vadd.f32 %v3622, %v3691
      %v3754 = vadd.f32 %v3623, %v3740
      %v3755 = vadd.f32 %v3624, %v3693
      %v3756 = vadd.f32 %v3625, %v3695
      %v3757 = vadd.f32 %v3626, %v3743
      %v3758 = vmax.f32 %v2693, %v3746
      %v3759 = vmax.f32 %v2694, %v3747
      %v3760 = vmax.f32 %v2695, %v3748
      %v3761 = vmax.f32 %v2696, %v3749
      %v3762 = vmax.f32 %v2697, %v3750
      %v3763 = vmax.f32 %v2698, %v3751
      %v3764 = vmax.f32 %v2699, %v3752
      %v3765 = vmax.f32 %v2700, %v3753
      %v3766 = vmax.f32 %v2701, %v3754
      %v3767 = vmax.f32 %v2702, %v3755
      %v3768 = vmax.f32 %v2703, %v3756
      %v3769 = vmax.f32 %v2704, %v3757
      %3770 = vmatprep.subr.bf16.mxu0 %v1063
      %3771 = vmatpush1.bf16.msra.mxu0 %v1060
      %3772 = vmatprep.subr.bf16.mxu0 0
      %3773 = vmatpush1.bf16.msra.mxu0 0
      %3774 = vmatprep.subr.bf16.mxu0 0
      %3775 = vmatpush1.bf16.msra.mxu0 0
      %3776 = vmatprep.subr.bf16.mxu0 0
      %3777 = vmatpush1.bf16.msra.mxu0 0
      %3778 = vmatprep.subr.bf16.mxu0 0
      %3779 = vmatpush1.bf16.msra.mxu0 0
      %3780 = vmatprep.subr.bf16.mxu0 0
      %3781 = vmatpush1.bf16.msra.mxu0 0
      %3782 = vmatprep.subr.bf16.mxu0 0
      %3783 = vmatpush1.bf16.msra.mxu0 0
      %3784 = vmatprep.subr.bf16.mxu0 0
      %3785 = vmatpush1.bf16.msra.mxu0 0
      %3786 = vmatprep.subr.bf16.mxu0 0
      %3787 = vmatpush1.bf16.msra.mxu0 0
      %3788 = vmatprep.subr.bf16.mxu0 0
      %3789 = vmatpush1.bf16.msra.mxu0 0
      %3790 = vmatprep.subr.bf16.mxu0 0
      %3791 = vmatpush1.bf16.msra.mxu0 0
      %3792 = vmatprep.subr.bf16.mxu0 0
      %3793 = vmatpush1.bf16.msra.mxu0 0
      %3794 = vmatprep.subr.bf16.mxu0 0
      %3795 = vmatpush1.bf16.msra.mxu0 0
      %3796 = vmatprep.subr.bf16.mxu0 0
      %3797 = vmatpush1.bf16.msra.mxu0 0
      %3798 = vmatprep.subr.bf16.mxu0 0
      %3799 = vmatpush1.bf16.msra.mxu0 0
      %3800 = vmatprep.subr.bf16.mxu0 0
      %3801 = vmatpush1.bf16.msra.mxu0 0
      %3802 = vmatprep.mubr.bf16.mxu0 0
      %3803 = vmatmul.mubr.bf16.gmra.mrb[0].mxu0 %v321
      %v3804 = vpop.f32.mrb[0].mxu0
      %v3805 = vadd.f32 0.0, %v3804
      %v3806 = vpop.f32.mrb[0].mxu0
      %v3807 = vadd.f32 0.0, %v3806
      %v3808 = vpop.f32.mrb[0].mxu0
      %v3809 = vadd.f32 0.0, %v3808
      %v3810 = vpop.f32.mrb[0].mxu0
      %v3811 = vadd.f32 0.0, %v3810
      %3812 = vmatprep.mubr.bf16.mxu0 0
      %3813 = vmatmul.mubr.bf16.gmra.mrb[0].mxu0 %v324
      %v3814 = vpop.f32.mrb[0].mxu0
      %v3815 = vadd.f32 0.0, %v3814
      %v3816 = vpop.f32.mrb[0].mxu0
      %v3817 = vadd.f32 0.0, %v3816
      %v3818 = vpop.f32.mrb[0].mxu0
      %v3819 = vadd.f32 0.0, %v3818
      %v3820 = vpop.f32.mrb[0].mxu0
      %v3821 = vadd.f32 0.0, %v3820
      %3822 = vdwg.mxu0
      %3823 = vmatprep.subr.bf16.mxu0 0
      %3824 = vmatpush1.bf16.msra.mxu0 %v1066
      %3825 = vmatprep.subr.bf16.mxu0 0
      %3826 = vmatpush1.bf16.msra.mxu0 0
      %3827 = vmatprep.subr.bf16.mxu0 0
      %3828 = vmatpush1.bf16.msra.mxu0 0
      %3829 = vmatprep.subr.bf16.mxu0 0
      %3830 = vmatpush1.bf16.msra.mxu0 0
      %3831 = vmatprep.subr.bf16.mxu0 0
      %3832 = vmatpush1.bf16.msra.mxu0 0
      %3833 = vmatprep.subr.bf16.mxu0 0
      %3834 = vmatpush1.bf16.msra.mxu0 0
      %3835 = vmatprep.subr.bf16.mxu0 0
      %3836 = vmatpush1.bf16.msra.mxu0 0
      %3837 = vmatprep.subr.bf16.mxu0 0
      %3838 = vmatpush1.bf16.msra.mxu0 0
      %3839 = vmatprep.subr.bf16.mxu0 0
      %3840 = vmatpush1.bf16.msra.mxu0 0
      %3841 = vmatprep.subr.bf16.mxu0 0
      %3842 = vmatpush1.bf16.msra.mxu0 0
      %3843 = vmatprep.subr.bf16.mxu0 0
      %3844 = vmatpush1.bf16.msra.mxu0 0
      %3845 = vmatprep.subr.bf16.mxu0 0
      %3846 = vmatpush1.bf16.msra.mxu0 0
      %3847 = vmatprep.subr.bf16.mxu0 0
      %3848 = vmatpush1.bf16.msra.mxu0 0
      %3849 = vmatprep.subr.bf16.mxu0 0
      %3850 = vmatpush1.bf16.msra.mxu0 0
      %3851 = vmatprep.subr.bf16.mxu0 0
      %3852 = vmatpush1.bf16.msra.mxu0 0
      %3853 = vmatprep.subr.bf16.mxu0 0
      %3854 = vmatpush1.bf16.msra.mxu0 0
      %3855 = vmatprep.mubr.bf16.mxu0 0
      %3856 = vmatmul.mubr.bf16.gmra.mrb[0].mxu0 %v321
      %v3857 = vpop.f32.mrb[0].mxu0
      %v3858 = vadd.f32 0.0, %v3857
      %v3859 = vpop.f32.mrb[0].mxu0
      %v3860 = vpop.f32.mrb[0].mxu0
      %v3861 = vadd.f32 0.0, %v3860
      %v3862 = vpop.f32.mrb[0].mxu0
      %3863 = vmatprep.mubr.bf16.mxu0 0
      %3864 = vmatmul.mubr.bf16.gmra.mrb[0].mxu0 %v324
      %v3865 = vpop.f32.mrb[0].mxu0
      %v3866 = vadd.f32 0.0, %v3865
      %v3867 = vpop.f32.mrb[0].mxu0
      %v3868 = vpop.f32.mrb[0].mxu0
      %v3869 = vadd.f32 0.0, %v3868
      %v3870 = vpop.f32.mrb[0].mxu0
      %3871 = vdwg.mxu0
      %3872 = vmatprep.subr.bf16.mxu0 %v911
      %3873 = vmatpush1.bf16.msra.mxu0 %v908
      %3874 = vmatprep.subr.bf16.mxu0 0
      %3875 = vmatpush1.bf16.msra.mxu0 0
      %3876 = vmatprep.subr.bf16.mxu0 0
      %3877 = vmatpush1.bf16.msra.mxu0 0
      %3878 = vmatprep.subr.bf16.mxu0 0
      %3879 = vmatpush1.bf16.msra.mxu0 0
      %3880 = vmatprep.subr.bf16.mxu0 0
      %3881 = vmatpush1.bf16.msra.mxu0 0
      %3882 = vmatprep.subr.bf16.mxu0 0
      %3883 = vmatpush1.bf16.msra.mxu0 0
      %3884 = vmatprep.subr.bf16.mxu0 0
      %3885 = vmatpush1.bf16.msra.mxu0 0
      %3886 = vmatprep.subr.bf16.mxu0 0
      %3887 = vmatpush1.bf16.msra.mxu0 0
      %3888 = vmatprep.subr.bf16.mxu0 0
      %3889 = vmatpush1.bf16.msra.mxu0 0
      %3890 = vmatprep.subr.bf16.mxu0 0
      %3891 = vmatpush1.bf16.msra.mxu0 0
      %3892 = vmatprep.subr.bf16.mxu0 0
      %3893 = vmatpush1.bf16.msra.mxu0 0
      %3894 = vmatprep.subr.bf16.mxu0 0
      %3895 = vmatpush1.bf16.msra.mxu0 0
      %3896 = vmatprep.subr.bf16.mxu0 0
      %3897 = vmatpush1.bf16.msra.mxu0 0
      %3898 = vmatprep.subr.bf16.mxu0 0
      %3899 = vmatpush1.bf16.msra.mxu0 0
      %3900 = vmatprep.subr.bf16.mxu0 0
      %3901 = vmatpush1.bf16.msra.mxu0 0
      %3902 = vmatprep.subr.bf16.mxu0 0
      %3903 = vmatpush1.bf16.msra.mxu0 0
      %3904 = vmatprep.mubr.bf16.mxu0 0
      %3905 = vmatmul.mubr.bf16.gmra.mrb[0].mxu0 %v457
      %v3906 = vpop.f32.mrb[0].mxu0
      %v3907 = vadd.f32 %v3805, %v3906
      %v3908 = vpop.f32.mrb[0].mxu0
      %v3909 = vadd.f32 %v3807, %v3908
      %v3910 = vpop.f32.mrb[0].mxu0
      %v3911 = vadd.f32 %v3809, %v3910
      %v3912 = vpop.f32.mrb[0].mxu0
      %v3913 = vadd.f32 %v3811, %v3912
      %3914 = vmatprep.mubr.bf16.mxu0 0
      %3915 = vmatmul.mubr.bf16.gmra.mrb[0].mxu0 %v460
      %v3916 = vpop.f32.mrb[0].mxu0
      %v3917 = vadd.f32 %v3815, %v3916
      %v3918 = vpop.f32.mrb[0].mxu0
      %v3919 = vadd.f32 %v3817, %v3918
      %v3920 = vpop.f32.mrb[0].mxu0
      %v3921 = vadd.f32 %v3819, %v3920
      %v3922 = vpop.f32.mrb[0].mxu0
      %v3923 = vadd.f32 %v3821, %v3922
      %3924 = vdwg.mxu0
      %3925 = vmatprep.subr.bf16.mxu0 0
      %3926 = vmatpush1.bf16.msra.mxu0 %v914
      %3927 = vmatprep.subr.bf16.mxu0 0
      %3928 = vmatpush1.bf16.msra.mxu0 0
      %3929 = vmatprep.subr.bf16.mxu0 0
      %3930 = vmatpush1.bf16.msra.mxu0 0
      %3931 = vmatprep.subr.bf16.mxu0 0
      %3932 = vmatpush1.bf16.msra.mxu0 0
      %3933 = vmatprep.subr.bf16.mxu0 0
      %3934 = vmatpush1.bf16.msra.mxu0 0
      %3935 = vmatprep.subr.bf16.mxu0 0
      %3936 = vmatpush1.bf16.msra.mxu0 0
      %3937 = vmatprep.subr.bf16.mxu0 0
      %3938 = vmatpush1.bf16.msra.mxu0 0
      %3939 = vmatprep.subr.bf16.mxu0 0
      %3940 = vmatpush1.bf16.msra.mxu0 0
      %3941 = vmatprep.subr.bf16.mxu0 0
      %3942 = vmatpush1.bf16.msra.mxu0 0
      %3943 = vmatprep.subr.bf16.mxu0 0
      %3944 = vmatpush1.bf16.msra.mxu0 0
      %3945 = vmatprep.subr.bf16.mxu0 0
      %3946 = vmatpush1.bf16.msra.mxu0 0
      %3947 = vmatprep.subr.bf16.mxu0 0
      %3948 = vmatpush1.bf16.msra.mxu0 0
      %3949 = vmatprep.subr.bf16.mxu0 0
      %3950 = vmatpush1.bf16.msra.mxu0 0
      %3951 = vmatprep.subr.bf16.mxu0 0
      %3952 = vmatpush1.bf16.msra.mxu0 0
      %3953 = vmatprep.subr.bf16.mxu0 0
      %3954 = vmatpush1.bf16.msra.mxu0 0
      %3955 = vmatprep.subr.bf16.mxu0 0
      %3956 = vmatpush1.bf16.msra.mxu0 0
      %3957 = vmatprep.mubr.bf16.mxu0 0
      %3958 = vmatmul.mubr.bf16.gmra.mrb[0].mxu0 %v457
      %v3959 = vpop.f32.mrb[0].mxu0
      %v3960 = vadd.f32 %v3858, %v3959
      %v3961 = vpop.f32.mrb[0].mxu0
      %v3962 = vpop.f32.mrb[0].mxu0
      %v3963 = vadd.f32 %v3861, %v3962
      %v3964 = vpop.f32.mrb[0].mxu0
      %3965 = vmatprep.mubr.bf16.mxu0 0
      %3966 = vmatmul.mubr.bf16.gmra.mrb[0].mxu0 %v460
      %v3967 = vpop.f32.mrb[0].mxu0
      %v3968 = vadd.f32 %v3866, %v3967
      %v3969 = vpop.f32.mrb[0].mxu0
      %v3970 = vpop.f32.mrb[0].mxu0
      %v3971 = vadd.f32 %v3869, %v3970
      %v3972 = vpop.f32.mrb[0].mxu0
      %3973 = vdwg.mxu0
      %3974 = vmatprep.subr.bf16.mxu0 %v2215
      %3975 = vmatpush1.bf16.msra.mxu0 %v2212
      %3976 = vmatprep.subr.bf16.mxu0 0
      %3977 = vmatpush1.bf16.msra.mxu0 0
      %3978 = vmatprep.subr.bf16.mxu0 0
      %3979 = vmatpush1.bf16.msra.mxu0 0
      %3980 = vmatprep.subr.bf16.mxu0 0
      %3981 = vmatpush1.bf16.msra.mxu0 0
      %3982 = vmatprep.subr.bf16.mxu0 0
      %3983 = vmatpush1.bf16.msra.mxu0 0
      %3984 = vmatprep.subr.bf16.mxu0 0
      %3985 = vmatpush1.bf16.msra.mxu0 0
      %3986 = vmatprep.subr.bf16.mxu0 0
      %3987 = vmatpush1.bf16.msra.mxu0 0
      %3988 = vmatprep.subr.bf16.mxu0 0
      %3989 = vmatpush1.bf16.msra.mxu0 0
      %3990 = vmatprep.subr.bf16.mxu0 0
      %3991 = vmatpush1.bf16.msra.mxu0 0
      %3992 = vmatprep.subr.bf16.mxu0 0
      %3993 = vmatpush1.bf16.msra.mxu0 0
      %3994 = vmatprep.subr.bf16.mxu0 0
      %3995 = vmatpush1.bf16.msra.mxu0 0
      %3996 = vmatprep.subr.bf16.mxu0 0
      %3997 = vmatpush1.bf16.msra.mxu0 0
      %3998 = vmatprep.subr.bf16.mxu0 0
      %3999 = vmatpush1.bf16.msra.mxu0 0
      %4000 = vmatprep.subr.bf16.mxu0 0
      %4001 = vmatpush1.bf16.msra.mxu0 0
      %4002 = vmatprep.subr.bf16.mxu0 0
      %4003 = vmatpush1.bf16.msra.mxu0 0
      %4004 = vmatprep.subr.bf16.mxu0 0
      %4005 = vmatpush1.bf16.msra.mxu0 0
      %4006 = vmatprep.mubr.bf16.mxu0 0
      %4007 = vmatmul.mubr.bf16.gmra.mrb[0].mxu0 %v598
      %v4008 = vpop.f32.mrb[0].mxu0
      %v4009 = vadd.f32 0.0, %v4008
      %v4010 = vpop.f32.mrb[0].mxu0
      %v4011 = vadd.f32 0.0, %v4010
      %v4012 = vpop.f32.mrb[0].mxu0
      %v4013 = vadd.f32 0.0, %v4012
      %v4014 = vpop.f32.mrb[0].mxu0
      %v4015 = vadd.f32 0.0, %v4014
      %4016 = vmatprep.mubr.bf16.mxu0 0
      %4017 = vmatmul.mubr.bf16.gmra.mrb[0].mxu0 %v601
      %v4018 = vpop.f32.mrb[0].mxu0
      %v4019 = vadd.f32 0.0, %v4018
      %v4020 = vpop.f32.mrb[0].mxu0
      %v4021 = vadd.f32 0.0, %v4020
      %v4022 = vpop.f32.mrb[0].mxu0
      %v4023 = vadd.f32 0.0, %v4022
      %v4024 = vpop.f32.mrb[0].mxu0
      %v4025 = vadd.f32 0.0, %v4024
      %4026 = vdwg.mxu0
      %4027 = vmatprep.subr.bf16.mxu0 0
      %4028 = vmatpush1.bf16.msra.mxu0 %v2218
      %4029 = vmatprep.subr.bf16.mxu0 0
      %4030 = vmatpush1.bf16.msra.mxu0 0
      %4031 = vmatprep.subr.bf16.mxu0 0
      %4032 = vmatpush1.bf16.msra.mxu0 0
      %4033 = vmatprep.subr.bf16.mxu0 0
      %4034 = vmatpush1.bf16.msra.mxu0 0
      %4035 = vmatprep.subr.bf16.mxu0 0
      %4036 = vmatpush1.bf16.msra.mxu0 0
      %4037 = vmatprep.subr.bf16.mxu0 0
      %4038 = vmatpush1.bf16.msra.mxu0 0
      %4039 = vmatprep.subr.bf16.mxu0 0
      %4040 = vmatpush1.bf16.msra.mxu0 0
      %4041 = vmatprep.subr.bf16.mxu0 0
      %4042 = vmatpush1.bf16.msra.mxu0 0
      %4043 = vmatprep.subr.bf16.mxu0 0
      %4044 = vmatpush1.bf16.msra.mxu0 0
      %4045 = vmatprep.subr.bf16.mxu0 0
      %4046 = vmatpush1.bf16.msra.mxu0 0
      %4047 = vmatprep.subr.bf16.mxu0 0
      %4048 = vmatpush1.bf16.msra.mxu0 0
      %4049 = vmatprep.subr.bf16.mxu0 0
      %4050 = vmatpush1.bf16.msra.mxu0 0
      %4051 = vmatprep.subr.bf16.mxu0 0
      %4052 = vmatpush1.bf16.msra.mxu0 0
      %4053 = vmatprep.subr.bf16.mxu0 0
      %4054 = vmatpush1.bf16.msra.mxu0 0
      %4055 = vmatprep.subr.bf16.mxu0 0
      %4056 = vmatpush1.bf16.msra.mxu0 0
      %4057 = vmatprep.subr.bf16.mxu0 0
      %4058 = vmatpush1.bf16.msra.mxu0 0
      %4059 = vmatprep.mubr.bf16.mxu0 0
      %4060 = vmatmul.mubr.bf16.gmra.mrb[0].mxu0 %v598
      %v4061 = vpop.f32.mrb[0].mxu0
      %v4062 = vadd.f32 0.0, %v4061
      %v4063 = vpop.f32.mrb[0].mxu0
      %v4064 = vpop.f32.mrb[0].mxu0
      %v4065 = vadd.f32 0.0, %v4064
      %v4066 = vpop.f32.mrb[0].mxu0
      %4067 = vmatprep.mubr.bf16.mxu0 0
      %4068 = vmatmul.mubr.bf16.gmra.mrb[0].mxu0 %v601
      %v4069 = vpop.f32.mrb[0].mxu0
      %v4070 = vadd.f32 0.0, %v4069
      %v4071 = vpop.f32.mrb[0].mxu0
      %v4072 = vpop.f32.mrb[0].mxu0
      %v4073 = vadd.f32 0.0, %v4072
      %v4074 = vpop.f32.mrb[0].mxu0
      %4075 = vdwg.mxu0
      %v4076 = vadd.f32 %v3907, %v4009
      %v4077 = vadd.f32 %v3909, %v4011
      %v4078 = vadd.f32 %v3960, %v4062
      %v4079 = vadd.f32 %v3911, %v4013
      %v4080 = vadd.f32 %v3913, %v4015
      %v4081 = vadd.f32 %v3963, %v4065
      %v4082 = vadd.f32 %v3917, %v4019
      %v4083 = vadd.f32 %v3919, %v4021
      %v4084 = vadd.f32 %v3968, %v4070
      %v4085 = vadd.f32 %v3921, %v4023
      %v4086 = vadd.f32 %v3923, %v4025
      %v4087 = vadd.f32 %v3971, %v4073
      %4088 = vmatprep.subr.bf16.mxu0 %v1368
      %4089 = vmatpush1.bf16.msra.mxu0 %v1365
      %4090 = vmatprep.subr.bf16.mxu0 0
      %4091 = vmatpush1.bf16.msra.mxu0 0
      %4092 = vmatprep.subr.bf16.mxu0 0
      %4093 = vmatpush1.bf16.msra.mxu0 0
      %4094 = vmatprep.subr.bf16.mxu0 0
      %4095 = vmatpush1.bf16.msra.mxu0 0
      %4096 = vmatprep.subr.bf16.mxu0 0
      %4097 = vmatpush1.bf16.msra.mxu0 0
      %4098 = vmatprep.subr.bf16.mxu0 0
      %4099 = vmatpush1.bf16.msra.mxu0 0
      %4100 = vmatprep.subr.bf16.mxu0 0
      %4101 = vmatpush1.bf16.msra.mxu0 0
      %4102 = vmatprep.subr.bf16.mxu0 0
      %4103 = vmatpush1.bf16.msra.mxu0 0
      %4104 = vmatprep.subr.bf16.mxu0 0
      %4105 = vmatpush1.bf16.msra.mxu0 0
      %4106 = vmatprep.subr.bf16.mxu0 0
      %4107 = vmatpush1.bf16.msra.mxu0 0
      %4108 = vmatprep.subr.bf16.mxu0 0
      %4109 = vmatpush1.bf16.msra.mxu0 0
      %4110 = vmatprep.subr.bf16.mxu0 0
      %4111 = vmatpush1.bf16.msra.mxu0 0
      %4112 = vmatprep.subr.bf16.mxu0 0
      %4113 = vmatpush1.bf16.msra.mxu0 0
      %4114 = vmatprep.subr.bf16.mxu0 0
      %4115 = vmatpush1.bf16.msra.mxu0 0
      %4116 = vmatprep.subr.bf16.mxu0 0
      %4117 = vmatpush1.bf16.msra.mxu0 0
      %4118 = vmatprep.subr.bf16.mxu0 0
      %4119 = vmatpush1.bf16.msra.mxu0 0
      %4120 = vmatprep.mubr.bf16.mxu0 0
      %4121 = vmatmul.mubr.bf16.gmra.mrb[0].mxu0 %v750
      %v4122 = vpop.f32.mrb[0].mxu0
      %v4123 = vadd.f32 0.0, %v4122
      %v4124 = vpop.f32.mrb[0].mxu0
      %v4125 = vadd.f32 0.0, %v4124
      %v4126 = vpop.f32.mrb[0].mxu0
      %v4127 = vadd.f32 0.0, %v4126
      %v4128 = vpop.f32.mrb[0].mxu0
      %v4129 = vadd.f32 0.0, %v4128
      %4130 = vmatprep.mubr.bf16.mxu0 0
      %4131 = vmatmul.mubr.bf16.gmra.mrb[0].mxu0 %v753
      %v4132 = vpop.f32.mrb[0].mxu0
      %v4133 = vadd.f32 0.0, %v4132
      %v4134 = vpop.f32.mrb[0].mxu0
      %v4135 = vadd.f32 0.0, %v4134
      %v4136 = vpop.f32.mrb[0].mxu0
      %v4137 = vadd.f32 0.0, %v4136
      %v4138 = vpop.f32.mrb[0].mxu0
      %v4139 = vadd.f32 0.0, %v4138
      %4140 = vdwg.mxu0
      %4141 = vmatprep.subr.bf16.mxu0 0
      %4142 = vmatpush1.bf16.msra.mxu0 %v1371
      %4143 = vmatprep.subr.bf16.mxu0 0
      %4144 = vmatpush1.bf16.msra.mxu0 0
      %4145 = vmatprep.subr.bf16.mxu0 0
      %4146 = vmatpush1.bf16.msra.mxu0 0
      %4147 = vmatprep.subr.bf16.mxu0 0
      %4148 = vmatpush1.bf16.msra.mxu0 0
      %4149 = vmatprep.subr.bf16.mxu0 0
      %4150 = vmatpush1.bf16.msra.mxu0 0
      %4151 = vmatprep.subr.bf16.mxu0 0
      %4152 = vmatpush1.bf16.msra.mxu0 0
      %4153 = vmatprep.subr.bf16.mxu0 0
      %4154 = vmatpush1.bf16.msra.mxu0 0
      %4155 = vmatprep.subr.bf16.mxu0 0
      %4156 = vmatpush1.bf16.msra.mxu0 0
      %4157 = vmatprep.subr.bf16.mxu0 0
      %4158 = vmatpush1.bf16.msra.mxu0 0
      %4159 = vmatprep.subr.bf16.mxu0 0
      %4160 = vmatpush1.bf16.msra.mxu0 0
      %4161 = vmatprep.subr.bf16.mxu0 0
      %4162 = vmatpush1.bf16.msra.mxu0 0
      %4163 = vmatprep.subr.bf16.mxu0 0
      %4164 = vmatpush1.bf16.msra.mxu0 0
      %4165 = vmatprep.subr.bf16.mxu0 0
      %4166 = vmatpush1.bf16.msra.mxu0 0
      %4167 = vmatprep.subr.bf16.mxu0 0
      %4168 = vmatpush1.bf16.msra.mxu0 0
      %4169 = vmatprep.subr.bf16.mxu0 0
      %4170 = vmatpush1.bf16.msra.mxu0 0
      %4171 = vmatprep.subr.bf16.mxu0 0
      %4172 = vmatpush1.bf16.msra.mxu0 0
      %4173 = vmatprep.mubr.bf16.mxu0 0
      %4174 = vmatmul.mubr.bf16.gmra.mrb[0].mxu0 %v750
      %v4175 = vpop.f32.mrb[0].mxu0
      %v4176 = vadd.f32 0.0, %v4175
      %v4177 = vpop.f32.mrb[0].mxu0
      %v4178 = vpop.f32.mrb[0].mxu0
      %v4179 = vadd.f32 0.0, %v4178
      %v4180 = vpop.f32.mrb[0].mxu0
      %4181 = vmatprep.mubr.bf16.mxu0 0
      %4182 = vmatmul.mubr.bf16.gmra.mrb[0].mxu0 %v753
      %v4183 = vpop.f32.mrb[0].mxu0
      %v4184 = vadd.f32 0.0, %v4183
      %v4185 = vpop.f32.mrb[0].mxu0
      %v4186 = vpop.f32.mrb[0].mxu0
      %v4187 = vadd.f32 0.0, %v4186
      %v4188 = vpop.f32.mrb[0].mxu0
      %4189 = vdwg.mxu0
      %v4190 = vadd.f32 %v4076, %v4123
      %v4191 = vadd.f32 %v4077, %v4125
      %v4192 = vadd.f32 %v4078, %v4176
      %v4193 = vadd.f32 %v4079, %v4127
      %v4194 = vadd.f32 %v4080, %v4129
      %v4195 = vadd.f32 %v4081, %v4179
      %v4196 = vadd.f32 %v4082, %v4133
      %v4197 = vadd.f32 %v4083, %v4135
      %v4198 = vadd.f32 %v4084, %v4184
      %v4199 = vadd.f32 %v4085, %v4137
      %v4200 = vadd.f32 %v4086, %v4139
      %v4201 = vadd.f32 %v4087, %v4187
      %4202 = vmatprep.subr.bf16.mxu0 %v1521
      %4203 = vmatpush1.bf16.msra.mxu0 %v1518
      %4204 = vmatprep.subr.bf16.mxu0 0
      %4205 = vmatpush1.bf16.msra.mxu0 0
      %4206 = vmatprep.subr.bf16.mxu0 0
      %4207 = vmatpush1.bf16.msra.mxu0 0
      %4208 = vmatprep.subr.bf16.mxu0 0
      %4209 = vmatpush1.bf16.msra.mxu0 0
      %4210 = vmatprep.subr.bf16.mxu0 0
      %4211 = vmatpush1.bf16.msra.mxu0 0
      %4212 = vmatprep.subr.bf16.mxu0 0
      %4213 = vmatpush1.bf16.msra.mxu0 0
      %4214 = vmatprep.subr.bf16.mxu0 0
      %4215 = vmatpush1.bf16.msra.mxu0 0
      %4216 = vmatprep.subr.bf16.mxu0 0
      %4217 = vmatpush1.bf16.msra.mxu0 0
      %4218 = vmatprep.subr.bf16.mxu0 0
      %4219 = vmatpush1.bf16.msra.mxu0 0
      %4220 = vmatprep.subr.bf16.mxu0 0
      %4221 = vmatpush1.bf16.msra.mxu0 0
      %4222 = vmatprep.subr.bf16.mxu0 0
      %4223 = vmatpush1.bf16.msra.mxu0 0
      %4224 = vmatprep.subr.bf16.mxu0 0
      %4225 = vmatpush1.bf16.msra.mxu0 0
      %4226 = vmatprep.subr.bf16.mxu0 0
      %4227 = vmatpush1.bf16.msra.mxu0 0
      %4228 = vmatprep.subr.bf16.mxu0 0
      %4229 = vmatpush1.bf16.msra.mxu0 0
      %4230 = vmatprep.subr.bf16.mxu0 0
      %4231 = vmatpush1.bf16.msra.mxu0 0
      %4232 = vmatprep.subr.bf16.mxu0 0
      %4233 = vmatpush1.bf16.msra.mxu0 0
      %4234 = vmatprep.mubr.bf16.mxu0 0
      %4235 = vmatmul.mubr.bf16.gmra.mrb[0].mxu0 %v902
      %v4236 = vpop.f32.mrb[0].mxu0
      %v4237 = vadd.f32 0.0, %v4236
      %v4238 = vpop.f32.mrb[0].mxu0
      %v4239 = vadd.f32 0.0, %v4238
      %v4240 = vpop.f32.mrb[0].mxu0
      %v4241 = vadd.f32 0.0, %v4240
      %v4242 = vpop.f32.mrb[0].mxu0
      %v4243 = vadd.f32 0.0, %v4242
      %4244 = vmatprep.mubr.bf16.mxu0 0
      %4245 = vmatmul.mubr.bf16.gmra.mrb[0].mxu0 %v905
      %v4246 = vpop.f32.mrb[0].mxu0
      %v4247 = vadd.f32 0.0, %v4246
      %v4248 = vpop.f32.mrb[0].mxu0
      %v4249 = vadd.f32 0.0, %v4248
      %v4250 = vpop.f32.mrb[0].mxu0
      %v4251 = vadd.f32 0.0, %v4250
      %v4252 = vpop.f32.mrb[0].mxu0
      %v4253 = vadd.f32 0.0, %v4252
      %4254 = vdwg.mxu0
      %4255 = vmatprep.subr.bf16.mxu0 0
      %4256 = vmatpush1.bf16.msra.mxu0 %v1524
      %4257 = vmatprep.subr.bf16.mxu0 0
      %4258 = vmatpush1.bf16.msra.mxu0 0
      %4259 = vmatprep.subr.bf16.mxu0 0
      %4260 = vmatpush1.bf16.msra.mxu0 0
      %4261 = vmatprep.subr.bf16.mxu0 0
      %4262 = vmatpush1.bf16.msra.mxu0 0
      %4263 = vmatprep.subr.bf16.mxu0 0
      %4264 = vmatpush1.bf16.msra.mxu0 0
      %4265 = vmatprep.subr.bf16.mxu0 0
      %4266 = vmatpush1.bf16.msra.mxu0 0
      %4267 = vmatprep.subr.bf16.mxu0 0
      %4268 = vmatpush1.bf16.msra.mxu0 0
      %4269 = vmatprep.subr.bf16.mxu0 0
      %4270 = vmatpush1.bf16.msra.mxu0 0
      %4271 = vmatprep.subr.bf16.mxu0 0
      %4272 = vmatpush1.bf16.msra.mxu0 0
      %4273 = vmatprep.subr.bf16.mxu0 0
      %4274 = vmatpush1.bf16.msra.mxu0 0
      %4275 = vmatprep.subr.bf16.mxu0 0
      %4276 = vmatpush1.bf16.msra.mxu0 0
      %4277 = vmatprep.subr.bf16.mxu0 0
      %4278 = vmatpush1.bf16.msra.mxu0 0
      %4279 = vmatprep.subr.bf16.mxu0 0
      %4280 = vmatpush1.bf16.msra.mxu0 0
      %4281 = vmatprep.subr.bf16.mxu0 0
      %4282 = vmatpush1.bf16.msra.mxu0 0
      %4283 = vmatprep.subr.bf16.mxu0 0
      %4284 = vmatpush1.bf16.msra.mxu0 0
      %4285 = vmatprep.subr.bf16.mxu0 0
      %4286 = vmatpush1.bf16.msra.mxu0 0
      %4287 = vmatprep.mubr.bf16.mxu0 0
      %4288 = vmatmul.mubr.bf16.gmra.mrb[0].mxu0 %v902
      %v4289 = vpop.f32.mrb[0].mxu0
      %v4290 = vadd.f32 0.0, %v4289
      %v4291 = vpop.f32.mrb[0].mxu0
      %v4292 = vpop.f32.mrb[0].mxu0
      %v4293 = vadd.f32 0.0, %v4292
      %v4294 = vpop.f32.mrb[0].mxu0
      %4295 = vmatprep.mubr.bf16.mxu0 0
      %4296 = vmatmul.mubr.bf16.gmra.mrb[0].mxu0 %v905
      %v4297 = vpop.f32.mrb[0].mxu0
      %v4298 = vadd.f32 0.0, %v4297
      %v4299 = vpop.f32.mrb[0].mxu0
      %v4300 = vpop.f32.mrb[0].mxu0
      %v4301 = vadd.f32 0.0, %v4300
      %v4302 = vpop.f32.mrb[0].mxu0
      %4303 = vdwg.mxu0
      %v4304 = vadd.f32 %v4190, %v4237
      %v4305 = vadd.f32 %v4191, %v4239
      %v4306 = vadd.f32 %v4192, %v4290
      %v4307 = vadd.f32 %v4193, %v4241
      %v4308 = vadd.f32 %v4194, %v4243
      %v4309 = vadd.f32 %v4195, %v4293
      %v4310 = vadd.f32 %v4196, %v4247
      %v4311 = vadd.f32 %v4197, %v4249
      %v4312 = vadd.f32 %v4198, %v4298
      %v4313 = vadd.f32 %v4199, %v4251
      %v4314 = vadd.f32 %v4200, %v4253
      %v4315 = vadd.f32 %v4201, %v4301
      %4316 = vmatprep.subr.bf16.mxu0 %v2574
      %4317 = vmatpush1.bf16.msra.mxu0 %v2571
      %4318 = vmatprep.subr.bf16.mxu0 0
      %4319 = vmatpush1.bf16.msra.mxu0 0
      %4320 = vmatprep.subr.bf16.mxu0 0
      %4321 = vmatpush1.bf16.msra.mxu0 0
      %4322 = vmatprep.subr.bf16.mxu0 0
      %4323 = vmatpush1.bf16.msra.mxu0 0
      %4324 = vmatprep.subr.bf16.mxu0 0
      %4325 = vmatpush1.bf16.msra.mxu0 0
      %4326 = vmatprep.subr.bf16.mxu0 0
      %4327 = vmatpush1.bf16.msra.mxu0 0
      %4328 = vmatprep.subr.bf16.mxu0 0
      %4329 = vmatpush1.bf16.msra.mxu0 0
      %4330 = vmatprep.subr.bf16.mxu0 0
      %4331 = vmatpush1.bf16.msra.mxu0 0
      %4332 = vmatprep.subr.bf16.mxu0 0
      %4333 = vmatpush1.bf16.msra.mxu0 0
      %4334 = vmatprep.subr.bf16.mxu0 0
      %4335 = vmatpush1.bf16.msra.mxu0 0
      %4336 = vmatprep.subr.bf16.mxu0 0
      %4337 = vmatpush1.bf16.msra.mxu0 0
      %4338 = vmatprep.subr.bf16.mxu0 0
      %4339 = vmatpush1.bf16.msra.mxu0 0
      %4340 = vmatprep.subr.bf16.mxu0 0
      %4341 = vmatpush1.bf16.msra.mxu0 0
      %4342 = vmatprep.subr.bf16.mxu0 0
      %4343 = vmatpush1.bf16.msra.mxu0 0
      %4344 = vmatprep.subr.bf16.mxu0 0
      %4345 = vmatpush1.bf16.msra.mxu0 0
      %4346 = vmatprep.subr.bf16.mxu0 0
      %4347 = vmatpush1.bf16.msra.mxu0 0
      %4348 = vmatprep.mubr.bf16.mxu0 0
      %4349 = vmatmul.mubr.bf16.gmra.mrb[0].mxu0 %v1054
      %v4350 = vpop.f32.mrb[0].mxu0
      %v4351 = vadd.f32 0.0, %v4350
      %v4352 = vpop.f32.mrb[0].mxu0
      %v4353 = vadd.f32 0.0, %v4352
      %v4354 = vpop.f32.mrb[0].mxu0
      %v4355 = vadd.f32 0.0, %v4354
      %v4356 = vpop.f32.mrb[0].mxu0
      %v4357 = vadd.f32 0.0, %v4356
      %4358 = vmatprep.mubr.bf16.mxu0 0
      %4359 = vmatmul.mubr.bf16.gmra.mrb[0].mxu0 %v1057
      %v4360 = vpop.f32.mrb[0].mxu0
      %v4361 = vadd.f32 0.0, %v4360
      %v4362 = vpop.f32.mrb[0].mxu0
      %v4363 = vadd.f32 0.0, %v4362
      %v4364 = vpop.f32.mrb[0].mxu0
      %v4365 = vadd.f32 0.0, %v4364
      %v4366 = vpop.f32.mrb[0].mxu0
      %v4367 = vadd.f32 0.0, %v4366
      %4368 = vdwg.mxu0
      %4369 = vmatprep.subr.bf16.mxu0 0
      %4370 = vmatpush1.bf16.msra.mxu0 %v2577
      %4371 = vmatprep.subr.bf16.mxu0 0
      %4372 = vmatpush1.bf16.msra.mxu0 0
      %4373 = vmatprep.subr.bf16.mxu0 0
      %4374 = vmatpush1.bf16.msra.mxu0 0
      %4375 = vmatprep.subr.bf16.mxu0 0
      %4376 = vmatpush1.bf16.msra.mxu0 0
      %4377 = vmatprep.subr.bf16.mxu0 0
      %4378 = vmatpush1.bf16.msra.mxu0 0
      %4379 = vmatprep.subr.bf16.mxu0 0
      %4380 = vmatpush1.bf16.msra.mxu0 0
      %4381 = vmatprep.subr.bf16.mxu0 0
      %4382 = vmatpush1.bf16.msra.mxu0 0
      %4383 = vmatprep.subr.bf16.mxu0 0
      %4384 = vmatpush1.bf16.msra.mxu0 0
      %4385 = vmatprep.subr.bf16.mxu0 0
      %4386 = vmatpush1.bf16.msra.mxu0 0
      %4387 = vmatprep.subr.bf16.mxu0 0
      %4388 = vmatpush1.bf16.msra.mxu0 0
      %4389 = vmatprep.subr.bf16.mxu0 0
      %4390 = vmatpush1.bf16.msra.mxu0 0
      %4391 = vmatprep.subr.bf16.mxu0 0
      %4392 = vmatpush1.bf16.msra.mxu0 0
      %4393 = vmatprep.subr.bf16.mxu0 0
      %4394 = vmatpush1.bf16.msra.mxu0 0
      %4395 = vmatprep.subr.bf16.mxu0 0
      %4396 = vmatpush1.bf16.msra.mxu0 0
      %4397 = vmatprep.subr.bf16.mxu0 0
      %4398 = vmatpush1.bf16.msra.mxu0 0
      %4399 = vmatprep.subr.bf16.mxu0 0
      %4400 = vmatpush1.bf16.msra.mxu0 0
      %4401 = vmatprep.mubr.bf16.mxu0 0
      %4402 = vmatmul.mubr.bf16.gmra.mrb[0].mxu0 %v1054
      %v4403 = vpop.f32.mrb[0].mxu0
      %v4404 = vadd.f32 0.0, %v4403
      %v4405 = vpop.f32.mrb[0].mxu0
      %v4406 = vpop.f32.mrb[0].mxu0
      %v4407 = vadd.f32 0.0, %v4406
      %v4408 = vpop.f32.mrb[0].mxu0
      %4409 = vmatprep.mubr.bf16.mxu0 0
      %4410 = vmatmul.mubr.bf16.gmra.mrb[0].mxu0 %v1057
      %v4411 = vpop.f32.mrb[0].mxu0
      %v4412 = vadd.f32 0.0, %v4411
      %v4413 = vpop.f32.mrb[0].mxu0
      %v4414 = vpop.f32.mrb[0].mxu0
      %v4415 = vadd.f32 0.0, %v4414
      %v4416 = vpop.f32.mrb[0].mxu0
      %4417 = vdwg.mxu0
      %v4418 = vadd.f32 %v4304, %v4351
      %v4419 = vadd.f32 %v4305, %v4353
      %v4420 = vadd.f32 %v4306, %v4404
      %v4421 = vadd.f32 %v4307, %v4355
      %v4422 = vadd.f32 %v4308, %v4357
      %v4423 = vadd.f32 %v4309, %v4407
      %v4424 = vadd.f32 %v4310, %v4361
      %v4425 = vadd.f32 %v4311, %v4363
      %v4426 = vadd.f32 %v4312, %v4412
      %v4427 = vadd.f32 %v4313, %v4365
      %v4428 = vadd.f32 %v4314, %v4367
      %v4429 = vadd.f32 %v4315, %v4415
      %4430 = vmatprep.subr.bf16.mxu0 %v3508
      %4431 = vmatpush1.bf16.msra.mxu0 %v3505
      %4432 = vmatprep.subr.bf16.mxu0 0
      %4433 = vmatpush1.bf16.msra.mxu0 0
      %4434 = vmatprep.subr.bf16.mxu0 0
      %4435 = vmatpush1.bf16.msra.mxu0 0
      %4436 = vmatprep.subr.bf16.mxu0 0
      %4437 = vmatpush1.bf16.msra.mxu0 0
      %4438 = vmatprep.subr.bf16.mxu0 0
      %4439 = vmatpush1.bf16.msra.mxu0 0
      %4440 = vmatprep.subr.bf16.mxu0 0
      %4441 = vmatpush1.bf16.msra.mxu0 0
      %4442 = vmatprep.subr.bf16.mxu0 0
      %4443 = vmatpush1.bf16.msra.mxu0 0
      %4444 = vmatprep.subr.bf16.mxu0 0
      %4445 = vmatpush1.bf16.msra.mxu0 0
      %4446 = vmatprep.subr.bf16.mxu0 0
      %4447 = vmatpush1.bf16.msra.mxu0 0
      %4448 = vmatprep.subr.bf16.mxu0 0
      %4449 = vmatpush1.bf16.msra.mxu0 0
      %4450 = vmatprep.subr.bf16.mxu0 0
      %4451 = vmatpush1.bf16.msra.mxu0 0
      %4452 = vmatprep.subr.bf16.mxu0 0
      %4453 = vmatpush1.bf16.msra.mxu0 0
      %4454 = vmatprep.subr.bf16.mxu0 0
      %4455 = vmatpush1.bf16.msra.mxu0 0
      %4456 = vmatprep.subr.bf16.mxu0 0
      %4457 = vmatpush1.bf16.msra.mxu0 0
      %4458 = vmatprep.subr.bf16.mxu0 0
      %4459 = vmatpush1.bf16.msra.mxu0 0
      %4460 = vmatprep.subr.bf16.mxu0 0
      %4461 = vmatpush1.bf16.msra.mxu0 0
      %4462 = vmatprep.mubr.bf16.mxu0 0
      %4463 = vmatmul.mubr.bf16.gmra.mrb[0].mxu0 %v1207
      %v4464 = vpop.f32.mrb[0].mxu0
      %v4465 = vadd.f32 0.0, %v4464
      %v4466 = vpop.f32.mrb[0].mxu0
      %v4467 = vadd.f32 0.0, %v4466
      %v4468 = vpop.f32.mrb[0].mxu0
      %v4469 = vadd.f32 0.0, %v4468
      %v4470 = vpop.f32.mrb[0].mxu0
      %v4471 = vadd.f32 0.0, %v4470
      %4472 = vmatprep.mubr.bf16.mxu0 0
      %4473 = vmatmul.mubr.bf16.gmra.mrb[0].mxu0 %v1210
      %v4474 = vpop.f32.mrb[0].mxu0
      %v4475 = vadd.f32 0.0, %v4474
      %v4476 = vpop.f32.mrb[0].mxu0
      %v4477 = vadd.f32 0.0, %v4476
      %v4478 = vpop.f32.mrb[0].mxu0
      %v4479 = vadd.f32 0.0, %v4478
      %v4480 = vpop.f32.mrb[0].mxu0
      %v4481 = vadd.f32 0.0, %v4480
      %4482 = vdwg.mxu0
      %4483 = vmatprep.subr.bf16.mxu0 0
      %4484 = vmatpush1.bf16.msra.mxu0 %v3511
      %4485 = vmatprep.subr.bf16.mxu0 0
      %4486 = vmatpush1.bf16.msra.mxu0 0
      %4487 = vmatprep.subr.bf16.mxu0 0
      %4488 = vmatpush1.bf16.msra.mxu0 0
      %4489 = vmatprep.subr.bf16.mxu0 0
      %4490 = vmatpush1.bf16.msra.mxu0 0
      %4491 = vmatprep.subr.bf16.mxu0 0
      %4492 = vmatpush1.bf16.msra.mxu0 0
      %4493 = vmatprep.subr.bf16.mxu0 0
      %4494 = vmatpush1.bf16.msra.mxu0 0
      %4495 = vmatprep.subr.bf16.mxu0 0
      %4496 = vmatpush1.bf16.msra.mxu0 0
      %4497 = vmatprep.subr.bf16.mxu0 0
      %4498 = vmatpush1.bf16.msra.mxu0 0
      %4499 = vmatprep.subr.bf16.mxu0 0
      %4500 = vmatpush1.bf16.msra.mxu0 0
      %4501 = vmatprep.subr.bf16.mxu0 0
      %4502 = vmatpush1.bf16.msra.mxu0 0
      %4503 = vmatprep.subr.bf16.mxu0 0
      %4504 = vmatpush1.bf16.msra.mxu0 0
      %4505 = vmatprep.subr.bf16.mxu0 0
      %4506 = vmatpush1.bf16.msra.mxu0 0
      %4507 = vmatprep.subr.bf16.mxu0 0
      %4508 = vmatpush1.bf16.msra.mxu0 0
      %4509 = vmatprep.subr.bf16.mxu0 0
      %4510 = vmatpush1.bf16.msra.mxu0 0
      %4511 = vmatprep.subr.bf16.mxu0 0
      %4512 = vmatpush1.bf16.msra.mxu0 0
      %4513 = vmatprep.subr.bf16.mxu0 0
      %4514 = vmatpush1.bf16.msra.mxu0 0
      %4515 = vmatprep.mubr.bf16.mxu0 0
      %4516 = vmatmul.mubr.bf16.gmra.mrb[0].mxu0 %v1207
      %v4517 = vpop.f32.mrb[0].mxu0
      %v4518 = vadd.f32 0.0, %v4517
      %v4519 = vpop.f32.mrb[0].mxu0
      %v4520 = vpop.f32.mrb[0].mxu0
      %v4521 = vadd.f32 0.0, %v4520
      %v4522 = vpop.f32.mrb[0].mxu0
      %4523 = vmatprep.mubr.bf16.mxu0 0
      %4524 = vmatmul.mubr.bf16.gmra.mrb[0].mxu0 %v1210
      %v4525 = vpop.f32.mrb[0].mxu0
      %v4526 = vadd.f32 0.0, %v4525
      %v4527 = vpop.f32.mrb[0].mxu0
      %v4528 = vpop.f32.mrb[0].mxu0
      %v4529 = vadd.f32 0.0, %v4528
      %v4530 = vpop.f32.mrb[0].mxu0
      %4531 = vdwg.mxu0
      %v4532 = vadd.f32 %v4418, %v4465
      %v4533 = vadd.f32 %v4419, %v4467
      %v4534 = vadd.f32 %v4420, %v4518
      %v4535 = vadd.f32 %v4421, %v4469
      %v4536 = vadd.f32 %v4422, %v4471
      %v4537 = vadd.f32 %v4423, %v4521
      %v4538 = vadd.f32 %v4424, %v4475
      %v4539 = vadd.f32 %v4425, %v4477
      %v4540 = vadd.f32 %v4426, %v4526
      %v4541 = vadd.f32 %v4427, %v4479
      %v4542 = vadd.f32 %v4428, %v4481
      %v4543 = vadd.f32 %v4429, %v4529
      %4544 = vmatprep.subr.bf16.mxu0 %v3639
      %4545 = vmatpush1.bf16.msra.mxu0 %v3636
      %4546 = vmatprep.subr.bf16.mxu0 0
      %4547 = vmatpush1.bf16.msra.mxu0 0
      %4548 = vmatprep.subr.bf16.mxu0 0
      %4549 = vmatpush1.bf16.msra.mxu0 0
      %4550 = vmatprep.subr.bf16.mxu0 0
      %4551 = vmatpush1.bf16.msra.mxu0 0
      %4552 = vmatprep.subr.bf16.mxu0 0
      %4553 = vmatpush1.bf16.msra.mxu0 0
      %4554 = vmatprep.subr.bf16.mxu0 0
      %4555 = vmatpush1.bf16.msra.mxu0 0
      %4556 = vmatprep.subr.bf16.mxu0 0
      %4557 = vmatpush1.bf16.msra.mxu0 0
      %4558 = vmatprep.subr.bf16.mxu0 0
      %4559 = vmatpush1.bf16.msra.mxu0 0
      %4560 = vmatprep.subr.bf16.mxu0 0
      %4561 = vmatpush1.bf16.msra.mxu0 0
      %4562 = vmatprep.subr.bf16.mxu0 0
      %4563 = vmatpush1.bf16.msra.mxu0 0
      %4564 = vmatprep.subr.bf16.mxu0 0
      %4565 = vmatpush1.bf16.msra.mxu0 0
      %4566 = vmatprep.subr.bf16.mxu0 0
      %4567 = vmatpush1.bf16.msra.mxu0 0
      %4568 = vmatprep.subr.bf16.mxu0 0
      %4569 = vmatpush1.bf16.msra.mxu0 0
      %4570 = vmatprep.subr.bf16.mxu0 0
      %4571 = vmatpush1.bf16.msra.mxu0 0
      %4572 = vmatprep.subr.bf16.mxu0 0
      %4573 = vmatpush1.bf16.msra.mxu0 0
      %4574 = vmatprep.subr.bf16.mxu0 0
      %4575 = vmatpush1.bf16.msra.mxu0 0
      %4576 = vmatprep.mubr.bf16.mxu0 0
      %4577 = vmatmul.mubr.bf16.gmra.mrb[0].mxu0 %v1359
      %v4578 = vpop.f32.mrb[0].mxu0
      %v4579 = vadd.f32 0.0, %v4578
      %v4580 = vpop.f32.mrb[0].mxu0
      %v4581 = vadd.f32 0.0, %v4580
      %v4582 = vpop.f32.mrb[0].mxu0
      %v4583 = vadd.f32 0.0, %v4582
      %v4584 = vpop.f32.mrb[0].mxu0
      %v4585 = vadd.f32 0.0, %v4584
      %4586 = vmatprep.mubr.bf16.mxu0 0
      %4587 = vmatmul.mubr.bf16.gmra.mrb[0].mxu0 %v1362
      %v4588 = vpop.f32.mrb[0].mxu0
      %v4589 = vadd.f32 0.0, %v4588
      %v4590 = vpop.f32.mrb[0].mxu0
      %v4591 = vadd.f32 0.0, %v4590
      %v4592 = vpop.f32.mrb[0].mxu0
      %v4593 = vadd.f32 0.0, %v4592
      %v4594 = vpop.f32.mrb[0].mxu0
      %v4595 = vadd.f32 0.0, %v4594
      %4596 = vdwg.mxu0
      %4597 = vmatprep.subr.bf16.mxu0 0
      %4598 = vmatpush1.bf16.msra.mxu0 %v3642
      %4599 = vmatprep.subr.bf16.mxu0 0
      %4600 = vmatpush1.bf16.msra.mxu0 0
      %4601 = vmatprep.subr.bf16.mxu0 0
      %4602 = vmatpush1.bf16.msra.mxu0 0
      %4603 = vmatprep.subr.bf16.mxu0 0
      %4604 = vmatpush1.bf16.msra.mxu0 0
      %4605 = vmatprep.subr.bf16.mxu0 0
      %4606 = vmatpush1.bf16.msra.mxu0 0
      %4607 = vmatprep.subr.bf16.mxu0 0
      %4608 = vmatpush1.bf16.msra.mxu0 0
      %4609 = vmatprep.subr.bf16.mxu0 0
      %4610 = vmatpush1.bf16.msra.mxu0 0
      %4611 = vmatprep.subr.bf16.mxu0 0
      %4612 = vmatpush1.bf16.msra.mxu0 0
      %4613 = vmatprep.subr.bf16.mxu0 0
      %4614 = vmatpush1.bf16.msra.mxu0 0
      %4615 = vmatprep.subr.bf16.mxu0 0
      %4616 = vmatpush1.bf16.msra.mxu0 0
      %4617 = vmatprep.subr.bf16.mxu0 0
      %4618 = vmatpush1.bf16.msra.mxu0 0
      %4619 = vmatprep.subr.bf16.mxu0 0
      %4620 = vmatpush1.bf16.msra.mxu0 0
      %4621 = vmatprep.subr.bf16.mxu0 0
      %4622 = vmatpush1.bf16.msra.mxu0 0
      %4623 = vmatprep.subr.bf16.mxu0 0
      %4624 = vmatpush1.bf16.msra.mxu0 0
      %4625 = vmatprep.subr.bf16.mxu0 0
      %4626 = vmatpush1.bf16.msra.mxu0 0
      %4627 = vmatprep.subr.bf16.mxu0 0
      %4628 = vmatpush1.bf16.msra.mxu0 0
      %4629 = vmatprep.mubr.bf16.mxu0 0
      %4630 = vmatmul.mubr.bf16.gmra.mrb[0].mxu0 %v1359
      %v4631 = vpop.f32.mrb[0].mxu0
      %v4632 = vadd.f32 0.0, %v4631
      %v4633 = vpop.f32.mrb[0].mxu0
      %v4634 = vpop.f32.mrb[0].mxu0
      %v4635 = vadd.f32 0.0, %v4634
      %v4636 = vpop.f32.mrb[0].mxu0
      %4637 = vmatprep.mubr.bf16.mxu0 0
      %4638 = vmatmul.mubr.bf16.gmra.mrb[0].mxu0 %v1362
      %v4639 = vpop.f32.mrb[0].mxu0
      %v4640 = vadd.f32 0.0, %v4639
      %v4641 = vpop.f32.mrb[0].mxu0
      %v4642 = vpop.f32.mrb[0].mxu0
      %v4643 = vadd.f32 0.0, %v4642
      %v4644 = vpop.f32.mrb[0].mxu0
      %4645 = vdwg.mxu0
      %v4646 = vadd.f32 %v4532, %v4579
      %v4647 = vadd.f32 %v4533, %v4581
      %v4648 = vadd.f32 %v4534, %v4632
      %v4649 = vadd.f32 %v4535, %v4583
      %v4650 = vadd.f32 %v4536, %v4585
      %v4651 = vadd.f32 %v4537, %v4635
      %v4652 = vadd.f32 %v4538, %v4589
      %v4653 = vadd.f32 %v4539, %v4591
      %v4654 = vadd.f32 %v4540, %v4640
      %v4655 = vadd.f32 %v4541, %v4593
      %v4656 = vadd.f32 %v4542, %v4595
      %v4657 = vadd.f32 %v4543, %v4643
      %4658 = vrot.lane.b32.xlu0 %v898, 109
      %v4659 = vpop.permute.xlu0 %4658
      %4660 = vrot.lane.b32.xlu0 %v899, 109
      %v4661 = vpop.permute.xlu0 %4660
      %4662 = vrot.lane.b32.xlu0 %v900, 109
      %v4663 = vpop.permute.xlu0 %4662
      %v4664 = vsel %vm1508, %v4659, %v4661
      %v4665 = vsel %vm1508, %v4661, %v4663
      %v4667 = vsel %vm326, %v4664, 0
      %v4670 = vsel %vm326, %v4665, 0
      %v4673 = vsel %vm326, %v4663, 0
      %4675 = vmatprep.subr.bf16.mxu0 %v4670
      %4676 = vmatpush1.bf16.msra.mxu0 %v4667
      %4677 = vmatprep.subr.bf16.mxu0 0
      %4678 = vmatpush1.bf16.msra.mxu0 0
      %4679 = vmatprep.subr.bf16.mxu0 0
      %4680 = vmatpush1.bf16.msra.mxu0 0
      %4681 = vmatprep.subr.bf16.mxu0 0
      %4682 = vmatpush1.bf16.msra.mxu0 0
      %4683 = vmatprep.subr.bf16.mxu0 0
      %4684 = vmatpush1.bf16.msra.mxu0 0
      %4685 = vmatprep.subr.bf16.mxu0 0
      %4686 = vmatpush1.bf16.msra.mxu0 0
      %4687 = vmatprep.subr.bf16.mxu0 0
      %4688 = vmatpush1.bf16.msra.mxu0 0
      %4689 = vmatprep.subr.bf16.mxu0 0
      %4690 = vmatpush1.bf16.msra.mxu0 0
      %4691 = vmatprep.subr.bf16.mxu0 0
      %4692 = vmatpush1.bf16.msra.mxu0 0
      %4693 = vmatprep.subr.bf16.mxu0 0
      %4694 = vmatpush1.bf16.msra.mxu0 0
      %4695 = vmatprep.subr.bf16.mxu0 0
      %4696 = vmatpush1.bf16.msra.mxu0 0
      %4697 = vmatprep.subr.bf16.mxu0 0
      %4698 = vmatpush1.bf16.msra.mxu0 0
      %4699 = vmatprep.subr.bf16.mxu0 0
      %4700 = vmatpush1.bf16.msra.mxu0 0
      %4701 = vmatprep.subr.bf16.mxu0 0
      %4702 = vmatpush1.bf16.msra.mxu0 0
      %4703 = vmatprep.subr.bf16.mxu0 0
      %4704 = vmatpush1.bf16.msra.mxu0 0
      %4705 = vmatprep.subr.bf16.mxu0 0
      %4706 = vmatpush1.bf16.msra.mxu0 0
      %4707 = vmatprep.mubr.bf16.mxu0 0
      %4708 = vmatmul.mubr.bf16.gmra.mrb[0].mxu0 %v1512
      %v4709 = vpop.f32.mrb[0].mxu0
      %v4710 = vadd.f32 0.0, %v4709
      %v4711 = vpop.f32.mrb[0].mxu0
      %v4712 = vadd.f32 0.0, %v4711
      %v4713 = vpop.f32.mrb[0].mxu0
      %v4714 = vadd.f32 0.0, %v4713
      %v4715 = vpop.f32.mrb[0].mxu0
      %v4716 = vadd.f32 0.0, %v4715
      %4717 = vmatprep.mubr.bf16.mxu0 0
      %4718 = vmatmul.mubr.bf16.gmra.mrb[0].mxu0 %v1515
      %v4719 = vpop.f32.mrb[0].mxu0
      %v4720 = vadd.f32 0.0, %v4719
      %v4721 = vpop.f32.mrb[0].mxu0
      %v4722 = vadd.f32 0.0, %v4721
      %v4723 = vpop.f32.mrb[0].mxu0
      %v4724 = vadd.f32 0.0, %v4723
      %v4725 = vpop.f32.mrb[0].mxu0
      %v4726 = vadd.f32 0.0, %v4725
      %4727 = vdwg.mxu0
      %4728 = vmatprep.subr.bf16.mxu0 0
      %4729 = vmatpush1.bf16.msra.mxu0 %v4673
      %4730 = vmatprep.subr.bf16.mxu0 0
      %4731 = vmatpush1.bf16.msra.mxu0 0
      %4732 = vmatprep.subr.bf16.mxu0 0
      %4733 = vmatpush1.bf16.msra.mxu0 0
      %4734 = vmatprep.subr.bf16.mxu0 0
      %4735 = vmatpush1.bf16.msra.mxu0 0
      %4736 = vmatprep.subr.bf16.mxu0 0
      %4737 = vmatpush1.bf16.msra.mxu0 0
      %4738 = vmatprep.subr.bf16.mxu0 0
      %4739 = vmatpush1.bf16.msra.mxu0 0
      %4740 = vmatprep.subr.bf16.mxu0 0
      %4741 = vmatpush1.bf16.msra.mxu0 0
      %4742 = vmatprep.subr.bf16.mxu0 0
      %4743 = vmatpush1.bf16.msra.mxu0 0
      %4744 = vmatprep.subr.bf16.mxu0 0
      %4745 = vmatpush1.bf16.msra.mxu0 0
      %4746 = vmatprep.subr.bf16.mxu0 0
      %4747 = vmatpush1.bf16.msra.mxu0 0
      %4748 = vmatprep.subr.bf16.mxu0 0
      %4749 = vmatpush1.bf16.msra.mxu0 0
      %4750 = vmatprep.subr.bf16.mxu0 0
      %4751 = vmatpush1.bf16.msra.mxu0 0
      %4752 = vmatprep.subr.bf16.mxu0 0
      %4753 = vmatpush1.bf16.msra.mxu0 0
      %4754 = vmatprep.subr.bf16.mxu0 0
      %4755 = vmatpush1.bf16.msra.mxu0 0
      %4756 = vmatprep.subr.bf16.mxu0 0
      %4757 = vmatpush1.bf16.msra.mxu0 0
      %4758 = vmatprep.subr.bf16.mxu0 0
      %4759 = vmatpush1.bf16.msra.mxu0 0
      %4760 = vmatprep.mubr.bf16.mxu0 0
      %4761 = vmatmul.mubr.bf16.gmra.mrb[0].mxu0 %v1512
      %v4762 = vpop.f32.mrb[0].mxu0
      %v4763 = vadd.f32 0.0, %v4762
      %v4764 = vpop.f32.mrb[0].mxu0
      %v4765 = vpop.f32.mrb[0].mxu0
      %v4766 = vadd.f32 0.0, %v4765
      %v4767 = vpop.f32.mrb[0].mxu0
      %4768 = vmatprep.mubr.bf16.mxu0 0
      %4769 = vmatmul.mubr.bf16.gmra.mrb[0].mxu0 %v1515
      %v4770 = vpop.f32.mrb[0].mxu0
      %v4771 = vadd.f32 0.0, %v4770
      %v4772 = vpop.f32.mrb[0].mxu0
      %v4773 = vpop.f32.mrb[0].mxu0
      %v4774 = vadd.f32 0.0, %v4773
      %v4775 = vpop.f32.mrb[0].mxu0
      %4776 = vdwg.mxu0
      %v4777 = vadd.f32 %v4646, %v4710
      %v4778 = vadd.f32 %v4647, %v4712
      %v4779 = vadd.f32 %v4648, %v4763
      %v4780 = vadd.f32 %v4649, %v4714
      %v4781 = vadd.f32 %v4650, %v4716
      %v4782 = vadd.f32 %v4651, %v4766
      %v4783 = vadd.f32 %v4652, %v4720
      %v4784 = vadd.f32 %v4653, %v4722
      %v4785 = vadd.f32 %v4654, %v4771
      %v4786 = vadd.f32 %v4655, %v4724
      %v4787 = vadd.f32 %v4656, %v4726
      %v4788 = vadd.f32 %v4657, %v4774
      %v4789 = vmax.f32 %v3758, %v4777
      %v4790 = vmax.f32 %v3759, %v4778
      %v4791 = vmax.f32 %v3760, %v4779
      %v4792 = vmax.f32 %v3761, %v4780
      %v4793 = vmax.f32 %v3762, %v4781
      %v4794 = vmax.f32 %v3763, %v4782
      %v4795 = vmax.f32 %v3764, %v4783
      %v4796 = vmax.f32 %v3765, %v4784
      %v4797 = vmax.f32 %v3766, %v4785
      %v4798 = vmax.f32 %v3767, %v4786
      %v4799 = vmax.f32 %v3768, %v4787
      %v4800 = vmax.f32 %v3769, %v4788
      %v4801 = vld [vmem:[%s3] sm:$0xff]
      %v4802 = vld [vmem:[%s3 + $0x8] sm:$0xff]
      %v4803 = vld [vmem:[%s3 + $0x10] sm:$0xff]
      %v4804 = vld [vmem:[%s3 + $0x18] sm:$0xff]
      %4806 = vset.pattern.permute.xlu0 0
      %4807 = vperm.xlu0 %4806, %v4801
      %v4808 = vpop.permute.xlu0 %4807
      %4811 = vset.pattern.permute.xlu0 0
      %4812 = vperm.xlu0 %4811, %v4802
      %v4813 = vpop.permute.xlu0 %4812
      %4816 = vset.pattern.permute.xlu0 0
      %4817 = vperm.xlu0 %4816, %v4803
      %v4818 = vpop.permute.xlu0 %4817
      %4821 = vset.pattern.permute.xlu0 0
      %4822 = vperm.xlu0 %4821, %v4804
      %v4823 = vpop.permute.xlu0 %4822
      %v4825 = vadd.f32 %v4789, %v4808
      %v4826 = vadd.f32 %v4790, %v4808
      %v4827 = vadd.f32 %v4791, %v4808
      %v4828 = vadd.f32 %v4792, %v4813
      %v4829 = vadd.f32 %v4793, %v4813
      %v4830 = vadd.f32 %v4794, %v4813
      %v4831 = vadd.f32 %v4795, %v4818
      %v4832 = vadd.f32 %v4796, %v4818
      %v4833 = vadd.f32 %v4797, %v4818
      %v4834 = vadd.f32 %v4798, %v4823
      %v4835 = vadd.f32 %v4799, %v4823
      %v4836 = vadd.f32 %v4800, %v4823
      %v4838 = vlaneseq
      %v4839 = vshrl.u32 %v4838, 7
      %v4840 = vsub.s32 0, %v4839
      %v4841 = vrot.slane %v280, %v4840
      %v4842 = vlaneseq
      %v4843 = vshrl.u32 %v4842, 7
      %v4844 = vsub.s32 1, %v4843
      %v4845 = vrot.slane %v280, %v4844
      %v4846 = vlaneseq
      %v4847 = vshrl.u32 %v4846, 7
      %v4848 = vsub.s32 2, %v4847
      %v4849 = vrot.slane %v280, %v4848
      %v4853 = vmul.f32 %v4825, %v4841
      %v4854 = vmul.f32 %v4826, %v4845
      %v4855 = vmul.f32 %v4827, %v4849
      %v4856 = vmul.f32 %v4828, %v4841
      %v4857 = vmul.f32 %v4829, %v4845
      %v4858 = vmul.f32 %v4830, %v4849
      %v4859 = vmul.f32 %v4831, %v4841
      %v4860 = vmul.f32 %v4832, %v4845
      %v4861 = vmul.f32 %v4833, %v4849
      %v4862 = vmul.f32 %v4834, %v4841
      %v4863 = vmul.f32 %v4835, %v4845
      %v4864 = vmul.f32 %v4836, %v4849
      %v4865 = vpack.c.bf16 %v4856, %v4853
      %v4866 = vpack.c.bf16 %v4857, %v4854
      %v4867 = vpack.c.bf16 %v4858, %v4855
      %v4868 = vpack.c.bf16 %v4862, %v4859
      %v4869 = vpack.c.bf16 %v4863, %v4860
      %v4870 = vpack.c.bf16 %v4864, %v4861
      %v4871 = vld [vmem:[%s4] sm:$0xf]
      %v4872 = vld [vmem:[%s4 + $0x4] sm:$0xf]
      %v4873 = vld [vmem:[%s4 + $0x8] sm:$0xf]
      %v4874 = vld [vmem:[%s4 + $0xc] sm:$0xf]
      %s4875 = scalar_lea.vmem %s4, 16
      %v4876 = vld [vmem:[%s4875] sm:$0xf]
      %v4877 = vld [vmem:[%s4875 + $0x4] sm:$0xf]
      %v4878 = vld [vmem:[%s4875 + $0x8] sm:$0xf]
      %v4879 = vld [vmem:[%s4875 + $0xc] sm:$0xf]
      %v4884 = vunpack.c.l.b16 %v4876
      %v4885 = vunpack.c.l.b16 %v4877
      %v4886 = vunpack.c.l.b16 %v4878
      %v4887 = vunpack.c.l.b16 %v4879
      %v4888 = vpack.c.b16 %v4885, %v4884
      %v4889 = vpack.c.b16 %v4887, %v4886
      %4893 = vrot.lane.b32.xlu0 %v4865, 127
      %v4894 = vpop.permute.xlu0 %4893
      %4895 = vrot.lane.b32.xlu0 %v4866, 127
      %v4896 = vpop.permute.xlu0 %4895
      %4897 = vrot.lane.b32.xlu0 %v4867, 127
      %v4898 = vpop.permute.xlu0 %4897
      %v4899 = vsel %vm594, %v4894, %v4896
      %v4900 = vsel %vm594, %v4896, %v4898
      %vm4904 = vcmask 130048
      %v4906 = vsel %vm4904, %v4888, 0
      %v4909 = vsel %vm4904, %v4889, 0
      %4911 = vmatprep.subr.bf16.mxu0 %v4900
      %4912 = vmatpush1.bf16.msra.mxu0 %v4899
      %4913 = vmatprep.subr.bf16.mxu0 0
      %4914 = vmatpush1.bf16.msra.mxu0 0
      %4915 = vmatprep.subr.bf16.mxu0 0
      %4916 = vmatpush1.bf16.msra.mxu0 0
      %4917 = vmatprep.subr.bf16.mxu0 0
      %4918 = vmatpush1.bf16.msra.mxu0 0
      %4919 = vmatprep.subr.bf16.mxu0 0
      %4920 = vmatpush1.bf16.msra.mxu0 0
      %4921 = vmatprep.subr.bf16.mxu0 0
      %4922 = vmatpush1.bf16.msra.mxu0 0
      %4923 = vmatprep.subr.bf16.mxu0 0
      %4924 = vmatpush1.bf16.msra.mxu0 0
      %4925 = vmatprep.subr.bf16.mxu0 0
      %4926 = vmatpush1.bf16.msra.mxu0 0
      %4927 = vmatprep.subr.bf16.mxu0 0
      %4928 = vmatpush1.bf16.msra.mxu0 0
      %4929 = vmatprep.subr.bf16.mxu0 0
      %4930 = vmatpush1.bf16.msra.mxu0 0
      %4931 = vmatprep.subr.bf16.mxu0 0
      %4932 = vmatpush1.bf16.msra.mxu0 0
      %4933 = vmatprep.subr.bf16.mxu0 0
      %4934 = vmatpush1.bf16.msra.mxu0 0
      %4935 = vmatprep.subr.bf16.mxu0 0
      %4936 = vmatpush1.bf16.msra.mxu0 0
      %4937 = vmatprep.subr.bf16.mxu0 0
      %4938 = vmatpush1.bf16.msra.mxu0 0
      %4939 = vmatprep.subr.bf16.mxu0 0
      %4940 = vmatpush1.bf16.msra.mxu0 0
      %4941 = vmatprep.subr.bf16.mxu0 0
      %4942 = vmatpush1.bf16.msra.mxu0 0
      %4943 = vmatprep.mubr.bf16.mxu0 0
      %4944 = vmatmul.mubr.bf16.gmra.mrb[0].mxu0 %v4906
      %v4945 = vpop.f32.mrb[0].mxu0
      %v4946 = vadd.f32 0.0, %v4945
      %v4947 = vpop.f32.mrb[0].mxu0
      %v4948 = vadd.f32 0.0, %v4947
      %v4949 = vpop.f32.mrb[0].mxu0
      %v4950 = vadd.f32 0.0, %v4949
      %v4951 = vpop.f32.mrb[0].mxu0
      %v4952 = vadd.f32 0.0, %v4951
      %4953 = vmatprep.mubr.bf16.mxu0 0
      %4954 = vmatmul.mubr.bf16.gmra.mrb[0].mxu0 %v4909
      %v4955 = vpop.f32.mrb[0].mxu0
      %v4956 = vadd.f32 0.0, %v4955
      %v4957 = vpop.f32.mrb[0].mxu0
      %v4958 = vadd.f32 0.0, %v4957
      %v4959 = vpop.f32.mrb[0].mxu0
      %v4960 = vadd.f32 0.0, %v4959
      %v4961 = vpop.f32.mrb[0].mxu0
      %v4962 = vadd.f32 0.0, %v4961
      %4963 = vdwg.mxu0
      %4964 = vmatprep.subr.bf16.mxu0 0
      %4965 = vmatpush1.bf16.msra.mxu0 %v4898
      %4966 = vmatprep.subr.bf16.mxu0 0
      %4967 = vmatpush1.bf16.msra.mxu0 0
      %4968 = vmatprep.subr.bf16.mxu0 0
      %4969 = vmatpush1.bf16.msra.mxu0 0
      %4970 = vmatprep.subr.bf16.mxu0 0
      %4971 = vmatpush1.bf16.msra.mxu0 0
      %4972 = vmatprep.subr.bf16.mxu0 0
      %4973 = vmatpush1.bf16.msra.mxu0 0
      %4974 = vmatprep.subr.bf16.mxu0 0
      %4975 = vmatpush1.bf16.msra.mxu0 0
      %4976 = vmatprep.subr.bf16.mxu0 0
      %4977 = vmatpush1.bf16.msra.mxu0 0
      %4978 = vmatprep.subr.bf16.mxu0 0
      %4979 = vmatpush1.bf16.msra.mxu0 0
      %4980 = vmatprep.subr.bf16.mxu0 0
      %4981 = vmatpush1.bf16.msra.mxu0 0
      %4982 = vmatprep.subr.bf16.mxu0 0
      %4983 = vmatpush1.bf16.msra.mxu0 0
      %4984 = vmatprep.subr.bf16.mxu0 0
      %4985 = vmatpush1.bf16.msra.mxu0 0
      %4986 = vmatprep.subr.bf16.mxu0 0
      %4987 = vmatpush1.bf16.msra.mxu0 0
      %4988 = vmatprep.subr.bf16.mxu0 0
      %4989 = vmatpush1.bf16.msra.mxu0 0
      %4990 = vmatprep.subr.bf16.mxu0 0
      %4991 = vmatpush1.bf16.msra.mxu0 0
      %4992 = vmatprep.subr.bf16.mxu0 0
      %4993 = vmatpush1.bf16.msra.mxu0 0
      %4994 = vmatprep.subr.bf16.mxu0 0
      %4995 = vmatpush1.bf16.msra.mxu0 0
      %4996 = vmatprep.mubr.bf16.mxu0 0
      %4997 = vmatmul.mubr.bf16.gmra.mrb[0].mxu0 %v4906
      %v4998 = vpop.f32.mrb[0].mxu0
      %v4999 = vadd.f32 0.0, %v4998
      %v5000 = vpop.f32.mrb[0].mxu0
      %v5001 = vpop.f32.mrb[0].mxu0
      %v5002 = vadd.f32 0.0, %v5001
      %v5003 = vpop.f32.mrb[0].mxu0
      %5004 = vmatprep.mubr.bf16.mxu0 0
      %5005 = vmatmul.mubr.bf16.gmra.mrb[0].mxu0 %v4909
      %v5006 = vpop.f32.mrb[0].mxu0
      %v5007 = vadd.f32 0.0, %v5006
      %v5008 = vpop.f32.mrb[0].mxu0
      %v5009 = vpop.f32.mrb[0].mxu0
      %v5010 = vadd.f32 0.0, %v5009
      %v5011 = vpop.f32.mrb[0].mxu0
      %5012 = vdwg.mxu0
      %v5017 = vunpack.c.l.b16 %v4871
      %v5018 = vunpack.c.l.b16 %v4872
      %v5019 = vunpack.c.l.b16 %v4873
      %v5020 = vunpack.c.l.b16 %v4874
      %v5021 = vpack.c.b16 %v5018, %v5017
      %v5022 = vpack.c.b16 %v5020, %v5019
      %v5024 = vsel %vm4904, %v5021, 0
      %v5027 = vsel %vm4904, %v5022, 0
      %5029 = vmatprep.subr.bf16.mxu0 %v4866
      %5030 = vmatpush1.bf16.msra.mxu0 %v4865
      %5031 = vmatprep.subr.bf16.mxu0 0
      %5032 = vmatpush1.bf16.msra.mxu0 0
      %5033 = vmatprep.subr.bf16.mxu0 0
      %5034 = vmatpush1.bf16.msra.mxu0 0
      %5035 = vmatprep.subr.bf16.mxu0 0
      %5036 = vmatpush1.bf16.msra.mxu0 0
      %5037 = vmatprep.subr.bf16.mxu0 0
      %5038 = vmatpush1.bf16.msra.mxu0 0
      %5039 = vmatprep.subr.bf16.mxu0 0
      %5040 = vmatpush1.bf16.msra.mxu0 0
      %5041 = vmatprep.subr.bf16.mxu0 0
      %5042 = vmatpush1.bf16.msra.mxu0 0
      %5043 = vmatprep.subr.bf16.mxu0 0
      %5044 = vmatpush1.bf16.msra.mxu0 0
      %5045 = vmatprep.subr.bf16.mxu0 0
      %5046 = vmatpush1.bf16.msra.mxu0 0
      %5047 = vmatprep.subr.bf16.mxu0 0
      %5048 = vmatpush1.bf16.msra.mxu0 0
      %5049 = vmatprep.subr.bf16.mxu0 0
      %5050 = vmatpush1.bf16.msra.mxu0 0
      %5051 = vmatprep.subr.bf16.mxu0 0
      %5052 = vmatpush1.bf16.msra.mxu0 0
      %5053 = vmatprep.subr.bf16.mxu0 0
      %5054 = vmatpush1.bf16.msra.mxu0 0
      %5055 = vmatprep.subr.bf16.mxu0 0
      %5056 = vmatpush1.bf16.msra.mxu0 0
      %5057 = vmatprep.subr.bf16.mxu0 0
      %5058 = vmatpush1.bf16.msra.mxu0 0
      %5059 = vmatprep.subr.bf16.mxu0 0
      %5060 = vmatpush1.bf16.msra.mxu0 0
      %5061 = vmatprep.mubr.bf16.mxu0 0
      %5062 = vmatmul.mubr.bf16.gmra.mrb[0].mxu0 %v5024
      %v5063 = vpop.f32.mrb[0].mxu0
      %v5064 = vadd.f32 %v4946, %v5063
      %v5065 = vpop.f32.mrb[0].mxu0
      %v5066 = vadd.f32 %v4948, %v5065
      %v5067 = vpop.f32.mrb[0].mxu0
      %v5068 = vadd.f32 %v4950, %v5067
      %v5069 = vpop.f32.mrb[0].mxu0
      %v5070 = vadd.f32 %v4952, %v5069
      %5071 = vmatprep.mubr.bf16.mxu0 0
      %5072 = vmatmul.mubr.bf16.gmra.mrb[0].mxu0 %v5027
      %v5073 = vpop.f32.mrb[0].mxu0
      %v5074 = vadd.f32 %v4956, %v5073
      %v5075 = vpop.f32.mrb[0].mxu0
      %v5076 = vadd.f32 %v4958, %v5075
      %v5077 = vpop.f32.mrb[0].mxu0
      %v5078 = vadd.f32 %v4960, %v5077
      %v5079 = vpop.f32.mrb[0].mxu0
      %v5080 = vadd.f32 %v4962, %v5079
      %5081 = vdwg.mxu0
      %5082 = vmatprep.subr.bf16.mxu0 0
      %5083 = vmatpush1.bf16.msra.mxu0 %v4867
      %5084 = vmatprep.subr.bf16.mxu0 0
      %5085 = vmatpush1.bf16.msra.mxu0 0
      %5086 = vmatprep.subr.bf16.mxu0 0
      %5087 = vmatpush1.bf16.msra.mxu0 0
      %5088 = vmatprep.subr.bf16.mxu0 0
      %5089 = vmatpush1.bf16.msra.mxu0 0
      %5090 = vmatprep.subr.bf16.mxu0 0
      %5091 = vmatpush1.bf16.msra.mxu0 0
      %5092 = vmatprep.subr.bf16.mxu0 0
      %5093 = vmatpush1.bf16.msra.mxu0 0
      %5094 = vmatprep.subr.bf16.mxu0 0
      %5095 = vmatpush1.bf16.msra.mxu0 0
      %5096 = vmatprep.subr.bf16.mxu0 0
      %5097 = vmatpush1.bf16.msra.mxu0 0
      %5098 = vmatprep.subr.bf16.mxu0 0
      %5099 = vmatpush1.bf16.msra.mxu0 0
      %5100 = vmatprep.subr.bf16.mxu0 0
      %5101 = vmatpush1.bf16.msra.mxu0 0
      %5102 = vmatprep.subr.bf16.mxu0 0
      %5103 = vmatpush1.bf16.msra.mxu0 0
      %5104 = vmatprep.subr.bf16.mxu0 0
      %5105 = vmatpush1.bf16.msra.mxu0 0
      %5106 = vmatprep.subr.bf16.mxu0 0
      %5107 = vmatpush1.bf16.msra.mxu0 0
      %5108 = vmatprep.subr.bf16.mxu0 0
      %5109 = vmatpush1.bf16.msra.mxu0 0
      %5110 = vmatprep.subr.bf16.mxu0 0
      %5111 = vmatpush1.bf16.msra.mxu0 0
      %5112 = vmatprep.subr.bf16.mxu0 0
      %5113 = vmatpush1.bf16.msra.mxu0 0
      %5114 = vmatprep.mubr.bf16.mxu0 0
      %5115 = vmatmul.mubr.bf16.gmra.mrb[0].mxu0 %v5024
      %v5116 = vpop.f32.mrb[0].mxu0
      %v5117 = vadd.f32 %v4999, %v5116
      %v5118 = vpop.f32.mrb[0].mxu0
      %v5119 = vpop.f32.mrb[0].mxu0
      %v5120 = vadd.f32 %v5002, %v5119
      %v5121 = vpop.f32.mrb[0].mxu0
      %5122 = vmatprep.mubr.bf16.mxu0 0
      %5123 = vmatmul.mubr.bf16.gmra.mrb[0].mxu0 %v5027
      %v5124 = vpop.f32.mrb[0].mxu0
      %v5125 = vadd.f32 %v5007, %v5124
      %v5126 = vpop.f32.mrb[0].mxu0
      %v5127 = vpop.f32.mrb[0].mxu0
      %v5128 = vadd.f32 %v5010, %v5127
      %v5129 = vpop.f32.mrb[0].mxu0
      %5130 = vdwg.mxu0
      %s5131 = scalar_lea.vmem %s4, 32
      %v5132 = vld [vmem:[%s5131] sm:$0xf]
      %v5133 = vld [vmem:[%s5131 + $0x4] sm:$0xf]
      %v5134 = vld [vmem:[%s5131 + $0x8] sm:$0xf]
      %v5135 = vld [vmem:[%s5131 + $0xc] sm:$0xf]
      %v5140 = vunpack.c.l.b16 %v5132
      %v5141 = vunpack.c.l.b16 %v5133
      %v5142 = vunpack.c.l.b16 %v5134
      %v5143 = vunpack.c.l.b16 %v5135
      %v5144 = vpack.c.b16 %v5141, %v5140
      %v5145 = vpack.c.b16 %v5143, %v5142
      %5146 = vrot.lane.b32.xlu0 %v4865, 126
      %v5147 = vpop.permute.xlu0 %5146
      %5148 = vrot.lane.b32.xlu0 %v4866, 126
      %v5149 = vpop.permute.xlu0 %5148
      %5150 = vrot.lane.b32.xlu0 %v4867, 126
      %v5151 = vpop.permute.xlu0 %5150
      %vm5152 = vcmask 1031168
      %v5153 = vsel %vm5152, %v5147, %v5149
      %v5154 = vsel %vm5152, %v5149, %v5151
      %v5159 = vsel %vm4904, %v5144, 0
      %v5162 = vsel %vm4904, %v5145, 0
      %5164 = vmatprep.subr.bf16.mxu0 %v5154
      %5165 = vmatpush1.bf16.msra.mxu0 %v5153
      %5166 = vmatprep.subr.bf16.mxu0 0
      %5167 = vmatpush1.bf16.msra.mxu0 0
      %5168 = vmatprep.subr.bf16.mxu0 0
      %5169 = vmatpush1.bf16.msra.mxu0 0
      %5170 = vmatprep.subr.bf16.mxu0 0
      %5171 = vmatpush1.bf16.msra.mxu0 0
      %5172 = vmatprep.subr.bf16.mxu0 0
      %5173 = vmatpush1.bf16.msra.mxu0 0
      %5174 = vmatprep.subr.bf16.mxu0 0
      %5175 = vmatpush1.bf16.msra.mxu0 0
      %5176 = vmatprep.subr.bf16.mxu0 0
      %5177 = vmatpush1.bf16.msra.mxu0 0
      %5178 = vmatprep.subr.bf16.mxu0 0
      %5179 = vmatpush1.bf16.msra.mxu0 0
      %5180 = vmatprep.subr.bf16.mxu0 0
      %5181 = vmatpush1.bf16.msra.mxu0 0
      %5182 = vmatprep.subr.bf16.mxu0 0
      %5183 = vmatpush1.bf16.msra.mxu0 0
      %5184 = vmatprep.subr.bf16.mxu0 0
      %5185 = vmatpush1.bf16.msra.mxu0 0
      %5186 = vmatprep.subr.bf16.mxu0 0
      %5187 = vmatpush1.bf16.msra.mxu0 0
      %5188 = vmatprep.subr.bf16.mxu0 0
      %5189 = vmatpush1.bf16.msra.mxu0 0
      %5190 = vmatprep.subr.bf16.mxu0 0
      %5191 = vmatpush1.bf16.msra.mxu0 0
      %5192 = vmatprep.subr.bf16.mxu0 0
      %5193 = vmatpush1.bf16.msra.mxu0 0
      %5194 = vmatprep.subr.bf16.mxu0 0
      %5195 = vmatpush1.bf16.msra.mxu0 0
      %5196 = vmatprep.mubr.bf16.mxu0 0
      %5197 = vmatmul.mubr.bf16.gmra.mrb[0].mxu0 %v5159
      %v5198 = vpop.f32.mrb[0].mxu0
      %v5199 = vadd.f32 0.0, %v5198
      %v5200 = vpop.f32.mrb[0].mxu0
      %v5201 = vadd.f32 0.0, %v5200
      %v5202 = vpop.f32.mrb[0].mxu0
      %v5203 = vadd.f32 0.0, %v5202
      %v5204 = vpop.f32.mrb[0].mxu0
      %v5205 = vadd.f32 0.0, %v5204
      %5206 = vmatprep.mubr.bf16.mxu0 0
      %5207 = vmatmul.mubr.bf16.gmra.mrb[0].mxu0 %v5162
      %v5208 = vpop.f32.mrb[0].mxu0
      %v5209 = vadd.f32 0.0, %v5208
      %v5210 = vpop.f32.mrb[0].mxu0
      %v5211 = vadd.f32 0.0, %v5210
      %v5212 = vpop.f32.mrb[0].mxu0
      %v5213 = vadd.f32 0.0, %v5212
      %v5214 = vpop.f32.mrb[0].mxu0
      %v5215 = vadd.f32 0.0, %v5214
      %5216 = vdwg.mxu0
      %5217 = vmatprep.subr.bf16.mxu0 0
      %5218 = vmatpush1.bf16.msra.mxu0 %v5151
      %5219 = vmatprep.subr.bf16.mxu0 0
      %5220 = vmatpush1.bf16.msra.mxu0 0
      %5221 = vmatprep.subr.bf16.mxu0 0
      %5222 = vmatpush1.bf16.msra.mxu0 0
      %5223 = vmatprep.subr.bf16.mxu0 0
      %5224 = vmatpush1.bf16.msra.mxu0 0
      %5225 = vmatprep.subr.bf16.mxu0 0
      %5226 = vmatpush1.bf16.msra.mxu0 0
      %5227 = vmatprep.subr.bf16.mxu0 0
      %5228 = vmatpush1.bf16.msra.mxu0 0
      %5229 = vmatprep.subr.bf16.mxu0 0
      %5230 = vmatpush1.bf16.msra.mxu0 0
      %5231 = vmatprep.subr.bf16.mxu0 0
      %5232 = vmatpush1.bf16.msra.mxu0 0
      %5233 = vmatprep.subr.bf16.mxu0 0
      %5234 = vmatpush1.bf16.msra.mxu0 0
      %5235 = vmatprep.subr.bf16.mxu0 0
      %5236 = vmatpush1.bf16.msra.mxu0 0
      %5237 = vmatprep.subr.bf16.mxu0 0
      %5238 = vmatpush1.bf16.msra.mxu0 0
      %5239 = vmatprep.subr.bf16.mxu0 0
      %5240 = vmatpush1.bf16.msra.mxu0 0
      %5241 = vmatprep.subr.bf16.mxu0 0
      %5242 = vmatpush1.bf16.msra.mxu0 0
      %5243 = vmatprep.subr.bf16.mxu0 0
      %5244 = vmatpush1.bf16.msra.mxu0 0
      %5245 = vmatprep.subr.bf16.mxu0 0
      %5246 = vmatpush1.bf16.msra.mxu0 0
      %5247 = vmatprep.subr.bf16.mxu0 0
      %5248 = vmatpush1.bf16.msra.mxu0 0
      %5249 = vmatprep.mubr.bf16.mxu0 0
      %5250 = vmatmul.mubr.bf16.gmra.mrb[0].mxu0 %v5159
      %v5251 = vpop.f32.mrb[0].mxu0
      %v5252 = vadd.f32 0.0, %v5251
      %v5253 = vpop.f32.mrb[0].mxu0
      %v5254 = vpop.f32.mrb[0].mxu0
      %v5255 = vadd.f32 0.0, %v5254
      %v5256 = vpop.f32.mrb[0].mxu0
      %5257 = vmatprep.mubr.bf16.mxu0 0
      %5258 = vmatmul.mubr.bf16.gmra.mrb[0].mxu0 %v5162
      %v5259 = vpop.f32.mrb[0].mxu0
      %v5260 = vadd.f32 0.0, %v5259
      %v5261 = vpop.f32.mrb[0].mxu0
      %v5262 = vpop.f32.mrb[0].mxu0
      %v5263 = vadd.f32 0.0, %v5262
      %v5264 = vpop.f32.mrb[0].mxu0
      %5265 = vdwg.mxu0
      %v5266 = vadd.f32 %v5064, %v5199
      %v5267 = vadd.f32 %v5066, %v5201
      %v5268 = vadd.f32 %v5117, %v5252
      %v5269 = vadd.f32 %v5068, %v5203
      %v5270 = vadd.f32 %v5070, %v5205
      %v5271 = vadd.f32 %v5120, %v5255
      %v5272 = vadd.f32 %v5074, %v5209
      %v5273 = vadd.f32 %v5076, %v5211
      %v5274 = vadd.f32 %v5125, %v5260
      %v5275 = vadd.f32 %v5078, %v5213
      %v5276 = vadd.f32 %v5080, %v5215
      %v5277 = vadd.f32 %v5128, %v5263
      %s5278 = scalar_lea.vmem %s4, 48
      %v5279 = vld [vmem:[%s5278] sm:$0xf]
      %v5280 = vld [vmem:[%s5278 + $0x4] sm:$0xf]
      %v5281 = vld [vmem:[%s5278 + $0x8] sm:$0xf]
      %v5282 = vld [vmem:[%s5278 + $0xc] sm:$0xf]
      %v5287 = vunpack.c.l.b16 %v5279
      %v5288 = vunpack.c.l.b16 %v5280
      %v5289 = vunpack.c.l.b16 %v5281
      %v5290 = vunpack.c.l.b16 %v5282
      %v5291 = vpack.c.b16 %v5288, %v5287
      %v5292 = vpack.c.b16 %v5290, %v5289
      %5293 = vrot.lane.b32.xlu0 %v4865, 110
      %v5294 = vpop.permute.xlu0 %5293
      %5295 = vrot.lane.b32.xlu0 %v4866, 110
      %v5296 = vpop.permute.xlu0 %5295
      %5297 = vrot.lane.b32.xlu0 %v4867, 110
      %v5298 = vpop.permute.xlu0 %5297
      %v5299 = vsel %vm1203, %v5294, %v5296
      %v5300 = vsel %vm1203, %v5296, %v5298
      %v5305 = vsel %vm4904, %v5291, 0
      %v5308 = vsel %vm4904, %v5292, 0
      %5310 = vmatprep.subr.bf16.mxu0 %v5300
      %5311 = vmatpush1.bf16.msra.mxu0 %v5299
      %5312 = vmatprep.subr.bf16.mxu0 0
      %5313 = vmatpush1.bf16.msra.mxu0 0
      %5314 = vmatprep.subr.bf16.mxu0 0
      %5315 = vmatpush1.bf16.msra.mxu0 0
      %5316 = vmatprep.subr.bf16.mxu0 0
      %5317 = vmatpush1.bf16.msra.mxu0 0
      %5318 = vmatprep.subr.bf16.mxu0 0
      %5319 = vmatpush1.bf16.msra.mxu0 0
      %5320 = vmatprep.subr.bf16.mxu0 0
      %5321 = vmatpush1.bf16.msra.mxu0 0
      %5322 = vmatprep.subr.bf16.mxu0 0
      %5323 = vmatpush1.bf16.msra.mxu0 0
      %5324 = vmatprep.subr.bf16.mxu0 0
      %5325 = vmatpush1.bf16.msra.mxu0 0
      %5326 = vmatprep.subr.bf16.mxu0 0
      %5327 = vmatpush1.bf16.msra.mxu0 0
      %5328 = vmatprep.subr.bf16.mxu0 0
      %5329 = vmatpush1.bf16.msra.mxu0 0
      %5330 = vmatprep.subr.bf16.mxu0 0
      %5331 = vmatpush1.bf16.msra.mxu0 0
      %5332 = vmatprep.subr.bf16.mxu0 0
      %5333 = vmatpush1.bf16.msra.mxu0 0
      %5334 = vmatprep.subr.bf16.mxu0 0
      %5335 = vmatpush1.bf16.msra.mxu0 0
      %5336 = vmatprep.subr.bf16.mxu0 0
      %5337 = vmatpush1.bf16.msra.mxu0 0
      %5338 = vmatprep.subr.bf16.mxu0 0
      %5339 = vmatpush1.bf16.msra.mxu0 0
      %5340 = vmatprep.subr.bf16.mxu0 0
      %5341 = vmatpush1.bf16.msra.mxu0 0
      %5342 = vmatprep.mubr.bf16.mxu0 0
      %5343 = vmatmul.mubr.bf16.gmra.mrb[0].mxu0 %v5305
      %v5344 = vpop.f32.mrb[0].mxu0
      %v5345 = vadd.f32 0.0, %v5344
      %v5346 = vpop.f32.mrb[0].mxu0
      %v5347 = vadd.f32 0.0, %v5346
      %v5348 = vpop.f32.mrb[0].mxu0
      %v5349 = vadd.f32 0.0, %v5348
      %v5350 = vpop.f32.mrb[0].mxu0
      %v5351 = vadd.f32 0.0, %v5350
      %5352 = vmatprep.mubr.bf16.mxu0 0
      %5353 = vmatmul.mubr.bf16.gmra.mrb[0].mxu0 %v5308
      %v5354 = vpop.f32.mrb[0].mxu0
      %v5355 = vadd.f32 0.0, %v5354
      %v5356 = vpop.f32.mrb[0].mxu0
      %v5357 = vadd.f32 0.0, %v5356
      %v5358 = vpop.f32.mrb[0].mxu0
      %v5359 = vadd.f32 0.0, %v5358
      %v5360 = vpop.f32.mrb[0].mxu0
      %v5361 = vadd.f32 0.0, %v5360
      %5362 = vdwg.mxu0
      %5363 = vmatprep.subr.bf16.mxu0 0
      %5364 = vmatpush1.bf16.msra.mxu0 %v5298
      %5365 = vmatprep.subr.bf16.mxu0 0
      %5366 = vmatpush1.bf16.msra.mxu0 0
      %5367 = vmatprep.subr.bf16.mxu0 0
      %5368 = vmatpush1.bf16.msra.mxu0 0
      %5369 = vmatprep.subr.bf16.mxu0 0
      %5370 = vmatpush1.bf16.msra.mxu0 0
      %5371 = vmatprep.subr.bf16.mxu0 0
      %5372 = vmatpush1.bf16.msra.mxu0 0
      %5373 = vmatprep.subr.bf16.mxu0 0
      %5374 = vmatpush1.bf16.msra.mxu0 0
      %5375 = vmatprep.subr.bf16.mxu0 0
      %5376 = vmatpush1.bf16.msra.mxu0 0
      %5377 = vmatprep.subr.bf16.mxu0 0
      %5378 = vmatpush1.bf16.msra.mxu0 0
      %5379 = vmatprep.subr.bf16.mxu0 0
      %5380 = vmatpush1.bf16.msra.mxu0 0
      %5381 = vmatprep.subr.bf16.mxu0 0
      %5382 = vmatpush1.bf16.msra.mxu0 0
      %5383 = vmatprep.subr.bf16.mxu0 0
      %5384 = vmatpush1.bf16.msra.mxu0 0
      %5385 = vmatprep.subr.bf16.mxu0 0
      %5386 = vmatpush1.bf16.msra.mxu0 0
      %5387 = vmatprep.subr.bf16.mxu0 0
      %5388 = vmatpush1.bf16.msra.mxu0 0
      %5389 = vmatprep.subr.bf16.mxu0 0
      %5390 = vmatpush1.bf16.msra.mxu0 0
      %5391 = vmatprep.subr.bf16.mxu0 0
      %5392 = vmatpush1.bf16.msra.mxu0 0
      %5393 = vmatprep.subr.bf16.mxu0 0
      %5394 = vmatpush1.bf16.msra.mxu0 0
      %5395 = vmatprep.mubr.bf16.mxu0 0
      %5396 = vmatmul.mubr.bf16.gmra.mrb[0].mxu0 %v5305
      %v5397 = vpop.f32.mrb[0].mxu0
      %v5398 = vadd.f32 0.0, %v5397
      %v5399 = vpop.f32.mrb[0].mxu0
      %v5400 = vpop.f32.mrb[0].mxu0
      %v5401 = vadd.f32 0.0, %v5400
      %v5402 = vpop.f32.mrb[0].mxu0
      %5403 = vmatprep.mubr.bf16.mxu0 0
      %5404 = vmatmul.mubr.bf16.gmra.mrb[0].mxu0 %v5308
      %v5405 = vpop.f32.mrb[0].mxu0
      %v5406 = vadd.f32 0.0, %v5405
      %v5407 = vpop.f32.mrb[0].mxu0
      %v5408 = vpop.f32.mrb[0].mxu0
      %v5409 = vadd.f32 0.0, %v5408
      %v5410 = vpop.f32.mrb[0].mxu0
      %5411 = vdwg.mxu0
      %v5412 = vadd.f32 %v5266, %v5345
      %v5413 = vadd.f32 %v5267, %v5347
      %v5414 = vadd.f32 %v5268, %v5398
      %v5415 = vadd.f32 %v5269, %v5349
      %v5416 = vadd.f32 %v5270, %v5351
      %v5417 = vadd.f32 %v5271, %v5401
      %v5418 = vadd.f32 %v5272, %v5355
      %v5419 = vadd.f32 %v5273, %v5357
      %v5420 = vadd.f32 %v5274, %v5406
      %v5421 = vadd.f32 %v5275, %v5359
      %v5422 = vadd.f32 %v5276, %v5361
      %v5423 = vadd.f32 %v5277, %v5409
      %s5424 = scalar_lea.vmem %s4, 64
      %v5425 = vld [vmem:[%s5424] sm:$0xf]
      %v5426 = vld [vmem:[%s5424 + $0x4] sm:$0xf]
      %v5427 = vld [vmem:[%s5424 + $0x8] sm:$0xf]
      %v5428 = vld [vmem:[%s5424 + $0xc] sm:$0xf]
      %v5433 = vunpack.c.l.b16 %v5425
      %v5434 = vunpack.c.l.b16 %v5426
      %v5435 = vunpack.c.l.b16 %v5427
      %v5436 = vunpack.c.l.b16 %v5428
      %v5437 = vpack.c.b16 %v5434, %v5433
      %v5438 = vpack.c.b16 %v5436, %v5435
      %5439 = vrot.lane.b32.xlu0 %v4865, 109
      %v5440 = vpop.permute.xlu0 %5439
      %5441 = vrot.lane.b32.xlu0 %v4866, 109
      %v5442 = vpop.permute.xlu0 %5441
      %5443 = vrot.lane.b32.xlu0 %v4867, 109
      %v5444 = vpop.permute.xlu0 %5443
      %v5445 = vsel %vm1508, %v5440, %v5442
      %v5446 = vsel %vm1508, %v5442, %v5444
      %v5451 = vsel %vm4904, %v5437, 0
      %v5454 = vsel %vm4904, %v5438, 0
      %5456 = vmatprep.subr.bf16.mxu0 %v5446
      %5457 = vmatpush1.bf16.msra.mxu0 %v5445
      %5458 = vmatprep.subr.bf16.mxu0 0
      %5459 = vmatpush1.bf16.msra.mxu0 0
      %5460 = vmatprep.subr.bf16.mxu0 0
      %5461 = vmatpush1.bf16.msra.mxu0 0
      %5462 = vmatprep.subr.bf16.mxu0 0
      %5463 = vmatpush1.bf16.msra.mxu0 0
      %5464 = vmatprep.subr.bf16.mxu0 0
      %5465 = vmatpush1.bf16.msra.mxu0 0
      %5466 = vmatprep.subr.bf16.mxu0 0
      %5467 = vmatpush1.bf16.msra.mxu0 0
      %5468 = vmatprep.subr.bf16.mxu0 0
      %5469 = vmatpush1.bf16.msra.mxu0 0
      %5470 = vmatprep.subr.bf16.mxu0 0
      %5471 = vmatpush1.bf16.msra.mxu0 0
      %5472 = vmatprep.subr.bf16.mxu0 0
      %5473 = vmatpush1.bf16.msra.mxu0 0
      %5474 = vmatprep.subr.bf16.mxu0 0
      %5475 = vmatpush1.bf16.msra.mxu0 0
      %5476 = vmatprep.subr.bf16.mxu0 0
      %5477 = vmatpush1.bf16.msra.mxu0 0
      %5478 = vmatprep.subr.bf16.mxu0 0
      %5479 = vmatpush1.bf16.msra.mxu0 0
      %5480 = vmatprep.subr.bf16.mxu0 0
      %5481 = vmatpush1.bf16.msra.mxu0 0
      %5482 = vmatprep.subr.bf16.mxu0 0
      %5483 = vmatpush1.bf16.msra.mxu0 0
      %5484 = vmatprep.subr.bf16.mxu0 0
      %5485 = vmatpush1.bf16.msra.mxu0 0
      %5486 = vmatprep.subr.bf16.mxu0 0
      %5487 = vmatpush1.bf16.msra.mxu0 0
      %5488 = vmatprep.mubr.bf16.mxu0 0
      %5489 = vmatmul.mubr.bf16.gmra.mrb[0].mxu0 %v5451
      %v5490 = vpop.f32.mrb[0].mxu0
      %v5491 = vadd.f32 0.0, %v5490
      %v5492 = vpop.f32.mrb[0].mxu0
      %v5493 = vadd.f32 0.0, %v5492
      %v5494 = vpop.f32.mrb[0].mxu0
      %v5495 = vadd.f32 0.0, %v5494
      %v5496 = vpop.f32.mrb[0].mxu0
      %v5497 = vadd.f32 0.0, %v5496
      %5498 = vmatprep.mubr.bf16.mxu0 0
      %5499 = vmatmul.mubr.bf16.gmra.mrb[0].mxu0 %v5454
      %v5500 = vpop.f32.mrb[0].mxu0
      %v5501 = vadd.f32 0.0, %v5500
      %v5502 = vpop.f32.mrb[0].mxu0
      %v5503 = vadd.f32 0.0, %v5502
      %v5504 = vpop.f32.mrb[0].mxu0
      %v5505 = vadd.f32 0.0, %v5504
      %v5506 = vpop.f32.mrb[0].mxu0
      %v5507 = vadd.f32 0.0, %v5506
      %5508 = vdwg.mxu0
      %5509 = vmatprep.subr.bf16.mxu0 0
      %5510 = vmatpush1.bf16.msra.mxu0 %v5444
      %5511 = vmatprep.subr.bf16.mxu0 0
      %5512 = vmatpush1.bf16.msra.mxu0 0
      %5513 = vmatprep.subr.bf16.mxu0 0
      %5514 = vmatpush1.bf16.msra.mxu0 0
      %5515 = vmatprep.subr.bf16.mxu0 0
      %5516 = vmatpush1.bf16.msra.mxu0 0
      %5517 = vmatprep.subr.bf16.mxu0 0
      %5518 = vmatpush1.bf16.msra.mxu0 0
      %5519 = vmatprep.subr.bf16.mxu0 0
      %5520 = vmatpush1.bf16.msra.mxu0 0
      %5521 = vmatprep.subr.bf16.mxu0 0
      %5522 = vmatpush1.bf16.msra.mxu0 0
      %5523 = vmatprep.subr.bf16.mxu0 0
      %5524 = vmatpush1.bf16.msra.mxu0 0
      %5525 = vmatprep.subr.bf16.mxu0 0
      %5526 = vmatpush1.bf16.msra.mxu0 0
      %5527 = vmatprep.subr.bf16.mxu0 0
      %5528 = vmatpush1.bf16.msra.mxu0 0
      %5529 = vmatprep.subr.bf16.mxu0 0
      %5530 = vmatpush1.bf16.msra.mxu0 0
      %5531 = vmatprep.subr.bf16.mxu0 0
      %5532 = vmatpush1.bf16.msra.mxu0 0
      %5533 = vmatprep.subr.bf16.mxu0 0
      %5534 = vmatpush1.bf16.msra.mxu0 0
      %5535 = vmatprep.subr.bf16.mxu0 0
      %5536 = vmatpush1.bf16.msra.mxu0 0
      %5537 = vmatprep.subr.bf16.mxu0 0
      %5538 = vmatpush1.bf16.msra.mxu0 0
      %5539 = vmatprep.subr.bf16.mxu0 0
      %5540 = vmatpush1.bf16.msra.mxu0 0
      %5541 = vmatprep.mubr.bf16.mxu0 0
      %5542 = vmatmul.mubr.bf16.gmra.mrb[0].mxu0 %v5451
      %v5543 = vpop.f32.mrb[0].mxu0
      %v5544 = vadd.f32 0.0, %v5543
      %v5545 = vpop.f32.mrb[0].mxu0
      %v5546 = vpop.f32.mrb[0].mxu0
      %v5547 = vadd.f32 0.0, %v5546
      %v5548 = vpop.f32.mrb[0].mxu0
      %5549 = vmatprep.mubr.bf16.mxu0 0
      %5550 = vmatmul.mubr.bf16.gmra.mrb[0].mxu0 %v5454
      %v5551 = vpop.f32.mrb[0].mxu0
      %v5552 = vadd.f32 0.0, %v5551
      %v5553 = vpop.f32.mrb[0].mxu0
      %v5554 = vpop.f32.mrb[0].mxu0
      %v5555 = vadd.f32 0.0, %v5554
      %v5556 = vpop.f32.mrb[0].mxu0
      %5557 = vdwg.mxu0
      %v5558 = vadd.f32 %v5412, %v5491
      %v5559 = vadd.f32 %v5413, %v5493
      %v5560 = vadd.f32 %v5414, %v5544
      %v5561 = vadd.f32 %v5415, %v5495
      %v5562 = vadd.f32 %v5416, %v5497
      %v5563 = vadd.f32 %v5417, %v5547
      %v5564 = vadd.f32 %v5418, %v5501
      %v5565 = vadd.f32 %v5419, %v5503
      %v5566 = vadd.f32 %v5420, %v5552
      %v5567 = vadd.f32 %v5421, %v5505
      %v5568 = vadd.f32 %v5422, %v5507
      %v5569 = vadd.f32 %v5423, %v5555
      %s5570 = scalar_lea.vmem %s4, 80
      %v5571 = vld [vmem:[%s5570] sm:$0xf]
      %v5572 = vld [vmem:[%s5570 + $0x4] sm:$0xf]
      %v5573 = vld [vmem:[%s5570 + $0x8] sm:$0xf]
      %v5574 = vld [vmem:[%s5570 + $0xc] sm:$0xf]
      %v5579 = vunpack.c.l.b16 %v5571
      %v5580 = vunpack.c.l.b16 %v5572
      %v5581 = vunpack.c.l.b16 %v5573
      %v5582 = vunpack.c.l.b16 %v5574
      %v5583 = vpack.c.b16 %v5580, %v5579
      %v5584 = vpack.c.b16 %v5582, %v5581
      %5585 = vrot.lane.b32.xlu0 %v4865, 108
      %v5586 = vpop.permute.xlu0 %5585
      %5587 = vrot.lane.b32.xlu0 %v4866, 108
      %v5588 = vpop.permute.xlu0 %5587
      %5589 = vrot.lane.b32.xlu0 %v4867, 108
      %v5590 = vpop.permute.xlu0 %5589
      %vm5591 = vcmask 883712
      %v5592 = vsel %vm5591, %v5586, %v5588
      %v5593 = vsel %vm5591, %v5588, %v5590
      %v5598 = vsel %vm4904, %v5583, 0
      %v5601 = vsel %vm4904, %v5584, 0
      %5603 = vmatprep.subr.bf16.mxu0 %v5593
      %5604 = vmatpush1.bf16.msra.mxu0 %v5592
      %5605 = vmatprep.subr.bf16.mxu0 0
      %5606 = vmatpush1.bf16.msra.mxu0 0
      %5607 = vmatprep.subr.bf16.mxu0 0
      %5608 = vmatpush1.bf16.msra.mxu0 0
      %5609 = vmatprep.subr.bf16.mxu0 0
      %5610 = vmatpush1.bf16.msra.mxu0 0
      %5611 = vmatprep.subr.bf16.mxu0 0
      %5612 = vmatpush1.bf16.msra.mxu0 0
      %5613 = vmatprep.subr.bf16.mxu0 0
      %5614 = vmatpush1.bf16.msra.mxu0 0
      %5615 = vmatprep.subr.bf16.mxu0 0
      %5616 = vmatpush1.bf16.msra.mxu0 0
      %5617 = vmatprep.subr.bf16.mxu0 0
      %5618 = vmatpush1.bf16.msra.mxu0 0
      %5619 = vmatprep.subr.bf16.mxu0 0
      %5620 = vmatpush1.bf16.msra.mxu0 0
      %5621 = vmatprep.subr.bf16.mxu0 0
      %5622 = vmatpush1.bf16.msra.mxu0 0
      %5623 = vmatprep.subr.bf16.mxu0 0
      %5624 = vmatpush1.bf16.msra.mxu0 0
      %5625 = vmatprep.subr.bf16.mxu0 0
      %5626 = vmatpush1.bf16.msra.mxu0 0
      %5627 = vmatprep.subr.bf16.mxu0 0
      %5628 = vmatpush1.bf16.msra.mxu0 0
      %5629 = vmatprep.subr.bf16.mxu0 0
      %5630 = vmatpush1.bf16.msra.mxu0 0
      %5631 = vmatprep.subr.bf16.mxu0 0
      %5632 = vmatpush1.bf16.msra.mxu0 0
      %5633 = vmatprep.subr.bf16.mxu0 0
      %5634 = vmatpush1.bf16.msra.mxu0 0
      %5635 = vmatprep.mubr.bf16.mxu0 0
      %5636 = vmatmul.mubr.bf16.gmra.mrb[0].mxu0 %v5598
      %v5637 = vpop.f32.mrb[0].mxu0
      %v5638 = vadd.f32 0.0, %v5637
      %v5639 = vpop.f32.mrb[0].mxu0
      %v5640 = vadd.f32 0.0, %v5639
      %v5641 = vpop.f32.mrb[0].mxu0
      %v5642 = vadd.f32 0.0, %v5641
      %v5643 = vpop.f32.mrb[0].mxu0
      %v5644 = vadd.f32 0.0, %v5643
      %5645 = vmatprep.mubr.bf16.mxu0 0
      %5646 = vmatmul.mubr.bf16.gmra.mrb[0].mxu0 %v5601
      %v5647 = vpop.f32.mrb[0].mxu0
      %v5648 = vadd.f32 0.0, %v5647
      %v5649 = vpop.f32.mrb[0].mxu0
      %v5650 = vadd.f32 0.0, %v5649
      %v5651 = vpop.f32.mrb[0].mxu0
      %v5652 = vadd.f32 0.0, %v5651
      %v5653 = vpop.f32.mrb[0].mxu0
      %v5654 = vadd.f32 0.0, %v5653
      %5655 = vdwg.mxu0
      %5656 = vmatprep.subr.bf16.mxu0 0
      %5657 = vmatpush1.bf16.msra.mxu0 %v5590
      %5658 = vmatprep.subr.bf16.mxu0 0
      %5659 = vmatpush1.bf16.msra.mxu0 0
      %5660 = vmatprep.subr.bf16.mxu0 0
      %5661 = vmatpush1.bf16.msra.mxu0 0
      %5662 = vmatprep.subr.bf16.mxu0 0
      %5663 = vmatpush1.bf16.msra.mxu0 0
      %5664 = vmatprep.subr.bf16.mxu0 0
      %5665 = vmatpush1.bf16.msra.mxu0 0
      %5666 = vmatprep.subr.bf16.mxu0 0
      %5667 = vmatpush1.bf16.msra.mxu0 0
      %5668 = vmatprep.subr.bf16.mxu0 0
      %5669 = vmatpush1.bf16.msra.mxu0 0
      %5670 = vmatprep.subr.bf16.mxu0 0
      %5671 = vmatpush1.bf16.msra.mxu0 0
      %5672 = vmatprep.subr.bf16.mxu0 0
      %5673 = vmatpush1.bf16.msra.mxu0 0
      %5674 = vmatprep.subr.bf16.mxu0 0
      %5675 = vmatpush1.bf16.msra.mxu0 0
      %5676 = vmatprep.subr.bf16.mxu0 0
      %5677 = vmatpush1.bf16.msra.mxu0 0
      %5678 = vmatprep.subr.bf16.mxu0 0
      %5679 = vmatpush1.bf16.msra.mxu0 0
      %5680 = vmatprep.subr.bf16.mxu0 0
      %5681 = vmatpush1.bf16.msra.mxu0 0
      %5682 = vmatprep.subr.bf16.mxu0 0
      %5683 = vmatpush1.bf16.msra.mxu0 0
      %5684 = vmatprep.subr.bf16.mxu0 0
      %5685 = vmatpush1.bf16.msra.mxu0 0
      %5686 = vmatprep.subr.bf16.mxu0 0
      %5687 = vmatpush1.bf16.msra.mxu0 0
      %5688 = vmatprep.mubr.bf16.mxu0 0
      %5689 = vmatmul.mubr.bf16.gmra.mrb[0].mxu0 %v5598
      %v5690 = vpop.f32.mrb[0].mxu0
      %v5691 = vadd.f32 0.0, %v5690
      %v5692 = vpop.f32.mrb[0].mxu0
      %v5693 = vpop.f32.mrb[0].mxu0
      %v5694 = vadd.f32 0.0, %v5693
      %v5695 = vpop.f32.mrb[0].mxu0
      %5696 = vmatprep.mubr.bf16.mxu0 0
      %5697 = vmatmul.mubr.bf16.gmra.mrb[0].mxu0 %v5601
      %v5698 = vpop.f32.mrb[0].mxu0
      %v5699 = vadd.f32 0.0, %v5698
      %v5700 = vpop.f32.mrb[0].mxu0
      %v5701 = vpop.f32.mrb[0].mxu0
      %v5702 = vadd.f32 0.0, %v5701
      %v5703 = vpop.f32.mrb[0].mxu0
      %5704 = vdwg.mxu0
      %v5705 = vadd.f32 %v5558, %v5638
      %v5706 = vadd.f32 %v5559, %v5640
      %v5707 = vadd.f32 %v5560, %v5691
      %v5708 = vadd.f32 %v5561, %v5642
      %v5709 = vadd.f32 %v5562, %v5644
      %v5710 = vadd.f32 %v5563, %v5694
      %v5711 = vadd.f32 %v5564, %v5648
      %v5712 = vadd.f32 %v5565, %v5650
      %v5713 = vadd.f32 %v5566, %v5699
      %v5714 = vadd.f32 %v5567, %v5652
      %v5715 = vadd.f32 %v5568, %v5654
      %v5716 = vadd.f32 %v5569, %v5702
      %s5717 = scalar_lea.vmem %s4, 96
      %v5718 = vld [vmem:[%s5717] sm:$0xf]
      %v5719 = vld [vmem:[%s5717 + $0x4] sm:$0xf]
      %v5720 = vld [vmem:[%s5717 + $0x8] sm:$0xf]
      %v5721 = vld [vmem:[%s5717 + $0xc] sm:$0xf]
      %v5726 = vunpack.c.l.b16 %v5718
      %v5727 = vunpack.c.l.b16 %v5719
      %v5728 = vunpack.c.l.b16 %v5720
      %v5729 = vunpack.c.l.b16 %v5721
      %v5730 = vpack.c.b16 %v5727, %v5726
      %v5731 = vpack.c.b16 %v5729, %v5728
      %5732 = vrot.lane.b32.xlu0 %v4865, 92
      %v5733 = vpop.permute.xlu0 %5732
      %5734 = vrot.lane.b32.xlu0 %v4866, 92
      %v5735 = vpop.permute.xlu0 %5734
      %5736 = vrot.lane.b32.xlu0 %v4867, 92
      %v5737 = vpop.permute.xlu0 %5736
      %vm5738 = vcmask 752640
      %v5739 = vsel %vm5738, %v5733, %v5735
      %v5740 = vsel %vm5738, %v5735, %v5737
      %v5745 = vsel %vm4904, %v5730, 0
      %v5748 = vsel %vm4904, %v5731, 0
      %5750 = vmatprep.subr.bf16.mxu0 %v5740
      %5751 = vmatpush1.bf16.msra.mxu0 %v5739
      %5752 = vmatprep.subr.bf16.mxu0 0
      %5753 = vmatpush1.bf16.msra.mxu0 0
      %5754 = vmatprep.subr.bf16.mxu0 0
      %5755 = vmatpush1.bf16.msra.mxu0 0
      %5756 = vmatprep.subr.bf16.mxu0 0
      %5757 = vmatpush1.bf16.msra.mxu0 0
      %5758 = vmatprep.subr.bf16.mxu0 0
      %5759 = vmatpush1.bf16.msra.mxu0 0
      %5760 = vmatprep.subr.bf16.mxu0 0
      %5761 = vmatpush1.bf16.msra.mxu0 0
      %5762 = vmatprep.subr.bf16.mxu0 0
      %5763 = vmatpush1.bf16.msra.mxu0 0
      %5764 = vmatprep.subr.bf16.mxu0 0
      %5765 = vmatpush1.bf16.msra.mxu0 0
      %5766 = vmatprep.subr.bf16.mxu0 0
      %5767 = vmatpush1.bf16.msra.mxu0 0
      %5768 = vmatprep.subr.bf16.mxu0 0
      %5769 = vmatpush1.bf16.msra.mxu0 0
      %5770 = vmatprep.subr.bf16.mxu0 0
      %5771 = vmatpush1.bf16.msra.mxu0 0
      %5772 = vmatprep.subr.bf16.mxu0 0
      %5773 = vmatpush1.bf16.msra.mxu0 0
      %5774 = vmatprep.subr.bf16.mxu0 0
      %5775 = vmatpush1.bf16.msra.mxu0 0
      %5776 = vmatprep.subr.bf16.mxu0 0
      %5777 = vmatpush1.bf16.msra.mxu0 0
      %5778 = vmatprep.subr.bf16.mxu0 0
      %5779 = vmatpush1.bf16.msra.mxu0 0
      %5780 = vmatprep.subr.bf16.mxu0 0
      %5781 = vmatpush1.bf16.msra.mxu0 0
      %5782 = vmatprep.mubr.bf16.mxu0 0
      %5783 = vmatmul.mubr.bf16.gmra.mrb[0].mxu0 %v5745
      %v5784 = vpop.f32.mrb[0].mxu0
      %v5785 = vadd.f32 0.0, %v5784
      %v5786 = vpop.f32.mrb[0].mxu0
      %v5787 = vadd.f32 0.0, %v5786
      %v5788 = vpop.f32.mrb[0].mxu0
      %v5789 = vadd.f32 0.0, %v5788
      %v5790 = vpop.f32.mrb[0].mxu0
      %v5791 = vadd.f32 0.0, %v5790
      %5792 = vmatprep.mubr.bf16.mxu0 0
      %5793 = vmatmul.mubr.bf16.gmra.mrb[0].mxu0 %v5748
      %v5794 = vpop.f32.mrb[0].mxu0
      %v5795 = vadd.f32 0.0, %v5794
      %v5796 = vpop.f32.mrb[0].mxu0
      %v5797 = vadd.f32 0.0, %v5796
      %v5798 = vpop.f32.mrb[0].mxu0
      %v5799 = vadd.f32 0.0, %v5798
      %v5800 = vpop.f32.mrb[0].mxu0
      %v5801 = vadd.f32 0.0, %v5800
      %5802 = vdwg.mxu0
      %5803 = vmatprep.subr.bf16.mxu0 0
      %5804 = vmatpush1.bf16.msra.mxu0 %v5737
      %5805 = vmatprep.subr.bf16.mxu0 0
      %5806 = vmatpush1.bf16.msra.mxu0 0
      %5807 = vmatprep.subr.bf16.mxu0 0
      %5808 = vmatpush1.bf16.msra.mxu0 0
      %5809 = vmatprep.subr.bf16.mxu0 0
      %5810 = vmatpush1.bf16.msra.mxu0 0
      %5811 = vmatprep.subr.bf16.mxu0 0
      %5812 = vmatpush1.bf16.msra.mxu0 0
      %5813 = vmatprep.subr.bf16.mxu0 0
      %5814 = vmatpush1.bf16.msra.mxu0 0
      %5815 = vmatprep.subr.bf16.mxu0 0
      %5816 = vmatpush1.bf16.msra.mxu0 0
      %5817 = vmatprep.subr.bf16.mxu0 0
      %5818 = vmatpush1.bf16.msra.mxu0 0
      %5819 = vmatprep.subr.bf16.mxu0 0
      %5820 = vmatpush1.bf16.msra.mxu0 0
      %5821 = vmatprep.subr.bf16.mxu0 0
      %5822 = vmatpush1.bf16.msra.mxu0 0
      %5823 = vmatprep.subr.bf16.mxu0 0
      %5824 = vmatpush1.bf16.msra.mxu0 0
      %5825 = vmatprep.subr.bf16.mxu0 0
      %5826 = vmatpush1.bf16.msra.mxu0 0
      %5827 = vmatprep.subr.bf16.mxu0 0
      %5828 = vmatpush1.bf16.msra.mxu0 0
      %5829 = vmatprep.subr.bf16.mxu0 0
      %5830 = vmatpush1.bf16.msra.mxu0 0
      %5831 = vmatprep.subr.bf16.mxu0 0
      %5832 = vmatpush1.bf16.msra.mxu0 0
      %5833 = vmatprep.subr.bf16.mxu0 0
      %5834 = vmatpush1.bf16.msra.mxu0 0
      %5835 = vmatprep.mubr.bf16.mxu0 0
      %5836 = vmatmul.mubr.bf16.gmra.mrb[0].mxu0 %v5745
      %v5837 = vpop.f32.mrb[0].mxu0
      %v5838 = vadd.f32 0.0, %v5837
      %v5839 = vpop.f32.mrb[0].mxu0
      %v5840 = vpop.f32.mrb[0].mxu0
      %v5841 = vadd.f32 0.0, %v5840
      %v5842 = vpop.f32.mrb[0].mxu0
      %5843 = vmatprep.mubr.bf16.mxu0 0
      %5844 = vmatmul.mubr.bf16.gmra.mrb[0].mxu0 %v5748
      %v5845 = vpop.f32.mrb[0].mxu0
      %v5846 = vadd.f32 0.0, %v5845
      %v5847 = vpop.f32.mrb[0].mxu0
      %v5848 = vpop.f32.mrb[0].mxu0
      %v5849 = vadd.f32 0.0, %v5848
      %v5850 = vpop.f32.mrb[0].mxu0
      %5851 = vdwg.mxu0
      %v5852 = vadd.f32 %v5705, %v5785
      %v5853 = vadd.f32 %v5706, %v5787
      %v5854 = vadd.f32 %v5707, %v5838
      %v5855 = vadd.f32 %v5708, %v5789
      %v5856 = vadd.f32 %v5709, %v5791
      %v5857 = vadd.f32 %v5710, %v5841
      %v5858 = vadd.f32 %v5711, %v5795
      %v5859 = vadd.f32 %v5712, %v5797
      %v5860 = vadd.f32 %v5713, %v5846
      %v5861 = vadd.f32 %v5714, %v5799
      %v5862 = vadd.f32 %v5715, %v5801
      %v5863 = vadd.f32 %v5716, %v5849
      %s5864 = scalar_lea.vmem %s4, 112
      %v5865 = vld [vmem:[%s5864] sm:$0xf]
      %v5866 = vld [vmem:[%s5864 + $0x4] sm:$0xf]
      %v5867 = vld [vmem:[%s5864 + $0x8] sm:$0xf]
      %v5868 = vld [vmem:[%s5864 + $0xc] sm:$0xf]
      %v5873 = vunpack.c.l.b16 %v5865
      %v5874 = vunpack.c.l.b16 %v5866
      %v5875 = vunpack.c.l.b16 %v5867
      %v5876 = vunpack.c.l.b16 %v5868
      %v5877 = vpack.c.b16 %v5874, %v5873
      %v5878 = vpack.c.b16 %v5876, %v5875
      %5879 = vrot.lane.b32.xlu0 %v4865, 91
      %v5880 = vpop.permute.xlu0 %5879
      %5881 = vrot.lane.b32.xlu0 %v4866, 91
      %v5882 = vpop.permute.xlu0 %5881
      %5883 = vrot.lane.b32.xlu0 %v4867, 91
      %v5884 = vpop.permute.xlu0 %5883
      %vm5885 = vcmask 744448
      %v5886 = vsel %vm5885, %v5880, %v5882
      %v5887 = vsel %vm5885, %v5882, %v5884
      %v5892 = vsel %vm4904, %v5877, 0
      %v5895 = vsel %vm4904, %v5878, 0
      %5897 = vmatprep.subr.bf16.mxu0 %v5887
      %5898 = vmatpush1.bf16.msra.mxu0 %v5886
      %5899 = vmatprep.subr.bf16.mxu0 0
      %5900 = vmatpush1.bf16.msra.mxu0 0
      %5901 = vmatprep.subr.bf16.mxu0 0
      %5902 = vmatpush1.bf16.msra.mxu0 0
      %5903 = vmatprep.subr.bf16.mxu0 0
      %5904 = vmatpush1.bf16.msra.mxu0 0
      %5905 = vmatprep.subr.bf16.mxu0 0
      %5906 = vmatpush1.bf16.msra.mxu0 0
      %5907 = vmatprep.subr.bf16.mxu0 0
      %5908 = vmatpush1.bf16.msra.mxu0 0
      %5909 = vmatprep.subr.bf16.mxu0 0
      %5910 = vmatpush1.bf16.msra.mxu0 0
      %5911 = vmatprep.subr.bf16.mxu0 0
      %5912 = vmatpush1.bf16.msra.mxu0 0
      %5913 = vmatprep.subr.bf16.mxu0 0
      %5914 = vmatpush1.bf16.msra.mxu0 0
      %5915 = vmatprep.subr.bf16.mxu0 0
      %5916 = vmatpush1.bf16.msra.mxu0 0
      %5917 = vmatprep.subr.bf16.mxu0 0
      %5918 = vmatpush1.bf16.msra.mxu0 0
      %5919 = vmatprep.subr.bf16.mxu0 0
      %5920 = vmatpush1.bf16.msra.mxu0 0
      %5921 = vmatprep.subr.bf16.mxu0 0
      %5922 = vmatpush1.bf16.msra.mxu0 0
      %5923 = vmatprep.subr.bf16.mxu0 0
      %5924 = vmatpush1.bf16.msra.mxu0 0
      %5925 = vmatprep.subr.bf16.mxu0 0
      %5926 = vmatpush1.bf16.msra.mxu0 0
      %5927 = vmatprep.subr.bf16.mxu0 0
      %5928 = vmatpush1.bf16.msra.mxu0 0
      %5929 = vmatprep.mubr.bf16.mxu0 0
      %5930 = vmatmul.mubr.bf16.gmra.mrb[0].mxu0 %v5892
      %v5931 = vpop.f32.mrb[0].mxu0
      %v5932 = vadd.f32 0.0, %v5931
      %v5933 = vpop.f32.mrb[0].mxu0
      %v5934 = vadd.f32 0.0, %v5933
      %v5935 = vpop.f32.mrb[0].mxu0
      %v5936 = vadd.f32 0.0, %v5935
      %v5937 = vpop.f32.mrb[0].mxu0
      %v5938 = vadd.f32 0.0, %v5937
      %5939 = vmatprep.mubr.bf16.mxu0 0
      %5940 = vmatmul.mubr.bf16.gmra.mrb[0].mxu0 %v5895
      %v5941 = vpop.f32.mrb[0].mxu0
      %v5942 = vadd.f32 0.0, %v5941
      %v5943 = vpop.f32.mrb[0].mxu0
      %v5944 = vadd.f32 0.0, %v5943
      %v5945 = vpop.f32.mrb[0].mxu0
      %v5946 = vadd.f32 0.0, %v5945
      %v5947 = vpop.f32.mrb[0].mxu0
      %v5948 = vadd.f32 0.0, %v5947
      %5949 = vdwg.mxu0
      %5950 = vmatprep.subr.bf16.mxu0 0
      %5951 = vmatpush1.bf16.msra.mxu0 %v5884
      %5952 = vmatprep.subr.bf16.mxu0 0
      %5953 = vmatpush1.bf16.msra.mxu0 0
      %5954 = vmatprep.subr.bf16.mxu0 0
      %5955 = vmatpush1.bf16.msra.mxu0 0
      %5956 = vmatprep.subr.bf16.mxu0 0
      %5957 = vmatpush1.bf16.msra.mxu0 0
      %5958 = vmatprep.subr.bf16.mxu0 0
      %5959 = vmatpush1.bf16.msra.mxu0 0
      %5960 = vmatprep.subr.bf16.mxu0 0
      %5961 = vmatpush1.bf16.msra.mxu0 0
      %5962 = vmatprep.subr.bf16.mxu0 0
      %5963 = vmatpush1.bf16.msra.mxu0 0
      %5964 = vmatprep.subr.bf16.mxu0 0
      %5965 = vmatpush1.bf16.msra.mxu0 0
      %5966 = vmatprep.subr.bf16.mxu0 0
      %5967 = vmatpush1.bf16.msra.mxu0 0
      %5968 = vmatprep.subr.bf16.mxu0 0
      %5969 = vmatpush1.bf16.msra.mxu0 0
      %5970 = vmatprep.subr.bf16.mxu0 0
      %5971 = vmatpush1.bf16.msra.mxu0 0
      %5972 = vmatprep.subr.bf16.mxu0 0
      %5973 = vmatpush1.bf16.msra.mxu0 0
      %5974 = vmatprep.subr.bf16.mxu0 0
      %5975 = vmatpush1.bf16.msra.mxu0 0
      %5976 = vmatprep.subr.bf16.mxu0 0
      %5977 = vmatpush1.bf16.msra.mxu0 0
      %5978 = vmatprep.subr.bf16.mxu0 0
      %5979 = vmatpush1.bf16.msra.mxu0 0
      %5980 = vmatprep.subr.bf16.mxu0 0
      %5981 = vmatpush1.bf16.msra.mxu0 0
      %5982 = vmatprep.mubr.bf16.mxu0 0
      %5983 = vmatmul.mubr.bf16.gmra.mrb[0].mxu0 %v5892
      %v5984 = vpop.f32.mrb[0].mxu0
      %v5985 = vadd.f32 0.0, %v5984
      %v5986 = vpop.f32.mrb[0].mxu0
      %v5987 = vpop.f32.mrb[0].mxu0
      %v5988 = vadd.f32 0.0, %v5987
      %v5989 = vpop.f32.mrb[0].mxu0
      %5990 = vmatprep.mubr.bf16.mxu0 0
      %5991 = vmatmul.mubr.bf16.gmra.mrb[0].mxu0 %v5895
      %v5992 = vpop.f32.mrb[0].mxu0
      %v5993 = vadd.f32 0.0, %v5992
      %v5994 = vpop.f32.mrb[0].mxu0
      %v5995 = vpop.f32.mrb[0].mxu0
      %v5996 = vadd.f32 0.0, %v5995
      %v5997 = vpop.f32.mrb[0].mxu0
      %5998 = vdwg.mxu0
      %v5999 = vadd.f32 %v5852, %v5932
      %v6000 = vadd.f32 %v5853, %v5934
      %v6001 = vadd.f32 %v5854, %v5985
      %v6002 = vadd.f32 %v5855, %v5936
      %v6003 = vadd.f32 %v5856, %v5938
      %v6004 = vadd.f32 %v5857, %v5988
      %v6005 = vadd.f32 %v5858, %v5942
      %v6006 = vadd.f32 %v5859, %v5944
      %v6007 = vadd.f32 %v5860, %v5993
      %v6008 = vadd.f32 %v5861, %v5946
      %v6009 = vadd.f32 %v5862, %v5948
      %v6010 = vadd.f32 %v5863, %v5996
      %s6011 = scalar_lea.vmem %s4, 128
      %v6012 = vld [vmem:[%s6011] sm:$0xf]
      %v6013 = vld [vmem:[%s6011 + $0x4] sm:$0xf]
      %v6014 = vld [vmem:[%s6011 + $0x8] sm:$0xf]
      %v6015 = vld [vmem:[%s6011 + $0xc] sm:$0xf]
      %v6020 = vunpack.c.l.b16 %v6012
      %v6021 = vunpack.c.l.b16 %v6013
      %v6022 = vunpack.c.l.b16 %v6014
      %v6023 = vunpack.c.l.b16 %v6015
      %v6024 = vpack.c.b16 %v6021, %v6020
      %v6025 = vpack.c.b16 %v6023, %v6022
      %6026 = vrot.lane.b32.xlu0 %v4865, 90
      %v6027 = vpop.permute.xlu0 %6026
      %6028 = vrot.lane.b32.xlu0 %v4866, 90
      %v6029 = vpop.permute.xlu0 %6028
      %6030 = vrot.lane.b32.xlu0 %v4867, 90
      %v6031 = vpop.permute.xlu0 %6030
      %vm6032 = vcmask 736256
      %v6033 = vsel %vm6032, %v6027, %v6029
      %v6034 = vsel %vm6032, %v6029, %v6031
      %v6039 = vsel %vm4904, %v6024, 0
      %v6042 = vsel %vm4904, %v6025, 0
      %6044 = vmatprep.subr.bf16.mxu0 %v6034
      %6045 = vmatpush1.bf16.msra.mxu0 %v6033
      %6046 = vmatprep.subr.bf16.mxu0 0
      %6047 = vmatpush1.bf16.msra.mxu0 0
      %6048 = vmatprep.subr.bf16.mxu0 0
      %6049 = vmatpush1.bf16.msra.mxu0 0
      %6050 = vmatprep.subr.bf16.mxu0 0
      %6051 = vmatpush1.bf16.msra.mxu0 0
      %6052 = vmatprep.subr.bf16.mxu0 0
      %6053 = vmatpush1.bf16.msra.mxu0 0
      %6054 = vmatprep.subr.bf16.mxu0 0
      %6055 = vmatpush1.bf16.msra.mxu0 0
      %6056 = vmatprep.subr.bf16.mxu0 0
      %6057 = vmatpush1.bf16.msra.mxu0 0
      %6058 = vmatprep.subr.bf16.mxu0 0
      %6059 = vmatpush1.bf16.msra.mxu0 0
      %6060 = vmatprep.subr.bf16.mxu0 0
      %6061 = vmatpush1.bf16.msra.mxu0 0
      %6062 = vmatprep.subr.bf16.mxu0 0
      %6063 = vmatpush1.bf16.msra.mxu0 0
      %6064 = vmatprep.subr.bf16.mxu0 0
      %6065 = vmatpush1.bf16.msra.mxu0 0
      %6066 = vmatprep.subr.bf16.mxu0 0
      %6067 = vmatpush1.bf16.msra.mxu0 0
      %6068 = vmatprep.subr.bf16.mxu0 0
      %6069 = vmatpush1.bf16.msra.mxu0 0
      %6070 = vmatprep.subr.bf16.mxu0 0
      %6071 = vmatpush1.bf16.msra.mxu0 0
      %6072 = vmatprep.subr.bf16.mxu0 0
      %6073 = vmatpush1.bf16.msra.mxu0 0
      %6074 = vmatprep.subr.bf16.mxu0 0
      %6075 = vmatpush1.bf16.msra.mxu0 0
      %6076 = vmatprep.mubr.bf16.mxu0 0
      %6077 = vmatmul.mubr.bf16.gmra.mrb[0].mxu0 %v6039
      %v6078 = vpop.f32.mrb[0].mxu0
      %v6079 = vadd.f32 0.0, %v6078
      %v6080 = vpop.f32.mrb[0].mxu0
      %v6081 = vadd.f32 0.0, %v6080
      %v6082 = vpop.f32.mrb[0].mxu0
      %v6083 = vadd.f32 0.0, %v6082
      %v6084 = vpop.f32.mrb[0].mxu0
      %v6085 = vadd.f32 0.0, %v6084
      %6086 = vmatprep.mubr.bf16.mxu0 0
      %6087 = vmatmul.mubr.bf16.gmra.mrb[0].mxu0 %v6042
      %v6088 = vpop.f32.mrb[0].mxu0
      %v6089 = vadd.f32 0.0, %v6088
      %v6090 = vpop.f32.mrb[0].mxu0
      %v6091 = vadd.f32 0.0, %v6090
      %v6092 = vpop.f32.mrb[0].mxu0
      %v6093 = vadd.f32 0.0, %v6092
      %v6094 = vpop.f32.mrb[0].mxu0
      %v6095 = vadd.f32 0.0, %v6094
      %6096 = vdwg.mxu0
      %6097 = vmatprep.subr.bf16.mxu0 0
      %6098 = vmatpush1.bf16.msra.mxu0 %v6031
      %6099 = vmatprep.subr.bf16.mxu0 0
      %6100 = vmatpush1.bf16.msra.mxu0 0
      %6101 = vmatprep.subr.bf16.mxu0 0
      %6102 = vmatpush1.bf16.msra.mxu0 0
      %6103 = vmatprep.subr.bf16.mxu0 0
      %6104 = vmatpush1.bf16.msra.mxu0 0
      %6105 = vmatprep.subr.bf16.mxu0 0
      %6106 = vmatpush1.bf16.msra.mxu0 0
      %6107 = vmatprep.subr.bf16.mxu0 0
      %6108 = vmatpush1.bf16.msra.mxu0 0
      %6109 = vmatprep.subr.bf16.mxu0 0
      %6110 = vmatpush1.bf16.msra.mxu0 0
      %6111 = vmatprep.subr.bf16.mxu0 0
      %6112 = vmatpush1.bf16.msra.mxu0 0
      %6113 = vmatprep.subr.bf16.mxu0 0
      %6114 = vmatpush1.bf16.msra.mxu0 0
      %6115 = vmatprep.subr.bf16.mxu0 0
      %6116 = vmatpush1.bf16.msra.mxu0 0
      %6117 = vmatprep.subr.bf16.mxu0 0
      %6118 = vmatpush1.bf16.msra.mxu0 0
      %6119 = vmatprep.subr.bf16.mxu0 0
      %6120 = vmatpush1.bf16.msra.mxu0 0
      %6121 = vmatprep.subr.bf16.mxu0 0
      %6122 = vmatpush1.bf16.msra.mxu0 0
      %6123 = vmatprep.subr.bf16.mxu0 0
      %6124 = vmatpush1.bf16.msra.mxu0 0
      %6125 = vmatprep.subr.bf16.mxu0 0
      %6126 = vmatpush1.bf16.msra.mxu0 0
      %6127 = vmatprep.subr.bf16.mxu0 0
      %6128 = vmatpush1.bf16.msra.mxu0 0
      %6129 = vmatprep.mubr.bf16.mxu0 0
      %6130 = vmatmul.mubr.bf16.gmra.mrb[0].mxu0 %v6039
      %v6131 = vpop.f32.mrb[0].mxu0
      %v6132 = vadd.f32 0.0, %v6131
      %v6133 = vpop.f32.mrb[0].mxu0
      %v6134 = vpop.f32.mrb[0].mxu0
      %v6135 = vadd.f32 0.0, %v6134
      %v6136 = vpop.f32.mrb[0].mxu0
      %6137 = vmatprep.mubr.bf16.mxu0 0
      %6138 = vmatmul.mubr.bf16.gmra.mrb[0].mxu0 %v6042
      %v6139 = vpop.f32.mrb[0].mxu0
      %v6140 = vadd.f32 0.0, %v6139
      %v6141 = vpop.f32.mrb[0].mxu0
      %v6142 = vpop.f32.mrb[0].mxu0
      %v6143 = vadd.f32 0.0, %v6142
      %v6144 = vpop.f32.mrb[0].mxu0
      %6145 = vdwg.mxu0
      %v6146 = vadd.f32 %v5999, %v6079
      %v6147 = vadd.f32 %v6000, %v6081
      %v6148 = vadd.f32 %v6001, %v6132
      %v6149 = vadd.f32 %v6002, %v6083
      %v6150 = vadd.f32 %v6003, %v6085
      %v6151 = vadd.f32 %v6004, %v6135
      %v6152 = vadd.f32 %v6005, %v6089
      %v6153 = vadd.f32 %v6006, %v6091
      %v6154 = vadd.f32 %v6007, %v6140
      %v6155 = vadd.f32 %v6008, %v6093
      %v6156 = vadd.f32 %v6009, %v6095
      %v6157 = vadd.f32 %v6010, %v6143
      %6170 = vrot.lane.b32.xlu0 %v6146, 127
      %v6171 = vpop.permute.xlu0 %6170
      %6172 = vrot.lane.b32.xlu0 %v6147, 127
      %v6173 = vpop.permute.xlu0 %6172
      %6174 = vrot.lane.b32.xlu0 %v6148, 127
      %v6175 = vpop.permute.xlu0 %6174
      %6176 = vrot.lane.b32.xlu0 %v6149, 127
      %v6177 = vpop.permute.xlu0 %6176
      %6178 = vrot.lane.b32.xlu0 %v6150, 127
      %v6179 = vpop.permute.xlu0 %6178
      %6180 = vrot.lane.b32.xlu0 %v6151, 127
      %v6181 = vpop.permute.xlu0 %6180
      %6182 = vrot.lane.b32.xlu0 %v6152, 127
      %v6183 = vpop.permute.xlu0 %6182
      %6184 = vrot.lane.b32.xlu0 %v6153, 127
      %v6185 = vpop.permute.xlu0 %6184
      %6186 = vrot.lane.b32.xlu0 %v6154, 127
      %v6187 = vpop.permute.xlu0 %6186
      %6188 = vrot.lane.b32.xlu0 %v6155, 127
      %v6189 = vpop.permute.xlu0 %6188
      %6190 = vrot.lane.b32.xlu0 %v6156, 127
      %v6191 = vpop.permute.xlu0 %6190
      %6192 = vrot.lane.b32.xlu0 %v6157, 127
      %v6193 = vpop.permute.xlu0 %6192
      %vm6194 = vcmask 1039360
      %v6195 = vsel %vm6194, %v6171, %v6173
      %v6196 = vsel %vm6194, %v6173, %v6175
      %v6197 = vsel %vm6194, %v6177, %v6179
      %v6198 = vsel %vm6194, %v6179, %v6181
      %v6199 = vsel %vm6194, %v6183, %v6185
      %v6200 = vsel %vm6194, %v6185, %v6187
      %v6201 = vsel %vm6194, %v6189, %v6191
      %v6202 = vsel %vm6194, %v6191, %v6193
      %v6215 = vmax.f32 %v6146, %v6195
      %v6216 = vmax.f32 %v6147, %v6196
      %v6217 = vmax.f32 %v6148, %v6175
      %v6218 = vmax.f32 %v6149, %v6197
      %v6219 = vmax.f32 %v6150, %v6198
      %v6220 = vmax.f32 %v6151, %v6181
      %v6221 = vmax.f32 %v6152, %v6199
      %v6222 = vmax.f32 %v6153, %v6200
      %v6223 = vmax.f32 %v6154, %v6187
      %v6224 = vmax.f32 %v6155, %v6201
      %v6225 = vmax.f32 %v6156, %v6202
      %v6226 = vmax.f32 %v6157, %v6193
      %6239 = vrot.lane.b32.xlu0 %v6215, 110
      %v6240 = vpop.permute.xlu0 %6239
      %6241 = vrot.lane.b32.xlu0 %v6216, 110
      %v6242 = vpop.permute.xlu0 %6241
      %6243 = vrot.lane.b32.xlu0 %v6217, 110
      %v6244 = vpop.permute.xlu0 %6243
      %6245 = vrot.lane.b32.xlu0 %v6218, 110
      %v6246 = vpop.permute.xlu0 %6245
      %6247 = vrot.lane.b32.xlu0 %v6219, 110
      %v6248 = vpop.permute.xlu0 %6247
      %6249 = vrot.lane.b32.xlu0 %v6220, 110
      %v6250 = vpop.permute.xlu0 %6249
      %6251 = vrot.lane.b32.xlu0 %v6221, 110
      %v6252 = vpop.permute.xlu0 %6251
      %6253 = vrot.lane.b32.xlu0 %v6222, 110
      %v6254 = vpop.permute.xlu0 %6253
      %6255 = vrot.lane.b32.xlu0 %v6223, 110
      %v6256 = vpop.permute.xlu0 %6255
      %6257 = vrot.lane.b32.xlu0 %v6224, 110
      %v6258 = vpop.permute.xlu0 %6257
      %6259 = vrot.lane.b32.xlu0 %v6225, 110
      %v6260 = vpop.permute.xlu0 %6259
      %6261 = vrot.lane.b32.xlu0 %v6226, 110
      %v6262 = vpop.permute.xlu0 %6261
      %vm6263 = vcmask 900096
      %v6264 = vsel %vm6263, %v6240, %v6242
      %v6265 = vsel %vm6263, %v6242, %v6244
      %v6266 = vsel %vm6263, %v6246, %v6248
      %v6267 = vsel %vm6263, %v6248, %v6250
      %v6268 = vsel %vm6263, %v6252, %v6254
      %v6269 = vsel %vm6263, %v6254, %v6256
      %v6270 = vsel %vm6263, %v6258, %v6260
      %v6271 = vsel %vm6263, %v6260, %v6262
      %v6284 = vmax.f32 %v6215, %v6264
      %v6285 = vmax.f32 %v6216, %v6265
      %v6286 = vmax.f32 %v6217, %v6244
      %v6287 = vmax.f32 %v6218, %v6266
      %v6288 = vmax.f32 %v6219, %v6267
      %v6289 = vmax.f32 %v6220, %v6250
      %v6290 = vmax.f32 %v6221, %v6268
      %v6291 = vmax.f32 %v6222, %v6269
      %v6292 = vmax.f32 %v6223, %v6256
      %v6293 = vmax.f32 %v6224, %v6270
      %v6294 = vmax.f32 %v6225, %v6271
      %v6295 = vmax.f32 %v6226, %v6262
      %v6296 = vld [vmem:[%s5] sm:$0xff]
      %v6297 = vld [vmem:[%s5 + $0x8] sm:$0xff]
      %v6298 = vld [vmem:[%s5 + $0x10] sm:$0xff]
      %v6299 = vld [vmem:[%s5 + $0x18] sm:$0xff]
      %6301 = vset.pattern.permute.xlu0 0
      %6302 = vperm.xlu0 %6301, %v6296
      %v6303 = vpop.permute.xlu0 %6302
      %6306 = vset.pattern.permute.xlu0 0
      %6307 = vperm.xlu0 %6306, %v6297
      %v6308 = vpop.permute.xlu0 %6307
      %6311 = vset.pattern.permute.xlu0 0
      %6312 = vperm.xlu0 %6311, %v6298
      %v6313 = vpop.permute.xlu0 %6312
      %6316 = vset.pattern.permute.xlu0 0
      %6317 = vperm.xlu0 %6316, %v6299
      %v6318 = vpop.permute.xlu0 %6317
      %v6320 = vadd.f32 %v6284, %v6303
      %v6321 = vadd.f32 %v6285, %v6303
      %v6322 = vadd.f32 %v6286, %v6303
      %v6323 = vadd.f32 %v6287, %v6308
      %v6324 = vadd.f32 %v6288, %v6308
      %v6325 = vadd.f32 %v6289, %v6308
      %v6326 = vadd.f32 %v6290, %v6313
      %v6327 = vadd.f32 %v6291, %v6313
      %v6328 = vadd.f32 %v6292, %v6313
      %v6329 = vadd.f32 %v6293, %v6318
      %v6330 = vadd.f32 %v6294, %v6318
      %v6331 = vadd.f32 %v6295, %v6318
      %s6332 = scalar_lea.vmem %s4, 144
      %v6333 = vld [vmem:[%s6332] sm:$0xf]
      %v6334 = vld [vmem:[%s6332 + $0x4] sm:$0xf]
      %v6335 = vld [vmem:[%s6332 + $0x8] sm:$0xf]
      %v6336 = vld [vmem:[%s6332 + $0xc] sm:$0xf]
      %s6337 = scalar_lea.vmem %s4, 160
      %v6338 = vld [vmem:[%s6337] sm:$0xf]
      %v6339 = vld [vmem:[%s6337 + $0x4] sm:$0xf]
      %v6340 = vld [vmem:[%s6337 + $0x8] sm:$0xf]
      %v6341 = vld [vmem:[%s6337 + $0xc] sm:$0xf]
      %v6346 = vunpack.c.l.b16 %v6338
      %v6347 = vunpack.c.l.b16 %v6339
      %v6348 = vunpack.c.l.b16 %v6340
      %v6349 = vunpack.c.l.b16 %v6341
      %v6350 = vpack.c.b16 %v6347, %v6346
      %v6351 = vpack.c.b16 %v6349, %v6348
      %6355 = vrot.lane.b32.xlu0 %v4868, 127
      %v6356 = vpop.permute.xlu0 %6355
      %6357 = vrot.lane.b32.xlu0 %v4869, 127
      %v6358 = vpop.permute.xlu0 %6357
      %6359 = vrot.lane.b32.xlu0 %v4870, 127
      %v6360 = vpop.permute.xlu0 %6359
      %v6361 = vsel %vm594, %v6356, %v6358
      %v6362 = vsel %vm594, %v6358, %v6360
      %v6367 = vsel %vm4904, %v6350, 0
      %v6370 = vsel %vm4904, %v6351, 0
      %6372 = vmatprep.subr.bf16.mxu0 %v6362
      %6373 = vmatpush1.bf16.msra.mxu0 %v6361
      %6374 = vmatprep.subr.bf16.mxu0 0
      %6375 = vmatpush1.bf16.msra.mxu0 0
      %6376 = vmatprep.subr.bf16.mxu0 0
      %6377 = vmatpush1.bf16.msra.mxu0 0
      %6378 = vmatprep.subr.bf16.mxu0 0
      %6379 = vmatpush1.bf16.msra.mxu0 0
      %6380 = vmatprep.subr.bf16.mxu0 0
      %6381 = vmatpush1.bf16.msra.mxu0 0
      %6382 = vmatprep.subr.bf16.mxu0 0
      %6383 = vmatpush1.bf16.msra.mxu0 0
      %6384 = vmatprep.subr.bf16.mxu0 0
      %6385 = vmatpush1.bf16.msra.mxu0 0
      %6386 = vmatprep.subr.bf16.mxu0 0
      %6387 = vmatpush1.bf16.msra.mxu0 0
      %6388 = vmatprep.subr.bf16.mxu0 0
      %6389 = vmatpush1.bf16.msra.mxu0 0
      %6390 = vmatprep.subr.bf16.mxu0 0
      %6391 = vmatpush1.bf16.msra.mxu0 0
      %6392 = vmatprep.subr.bf16.mxu0 0
      %6393 = vmatpush1.bf16.msra.mxu0 0
      %6394 = vmatprep.subr.bf16.mxu0 0
      %6395 = vmatpush1.bf16.msra.mxu0 0
      %6396 = vmatprep.subr.bf16.mxu0 0
      %6397 = vmatpush1.bf16.msra.mxu0 0
      %6398 = vmatprep.subr.bf16.mxu0 0
      %6399 = vmatpush1.bf16.msra.mxu0 0
      %6400 = vmatprep.subr.bf16.mxu0 0
      %6401 = vmatpush1.bf16.msra.mxu0 0
      %6402 = vmatprep.subr.bf16.mxu0 0
      %6403 = vmatpush1.bf16.msra.mxu0 0
      %6404 = vmatprep.mubr.bf16.mxu0 0
      %6405 = vmatmul.mubr.bf16.gmra.mrb[0].mxu0 %v6367
      %v6406 = vpop.f32.mrb[0].mxu0
      %v6407 = vadd.f32 0.0, %v6406
      %v6408 = vpop.f32.mrb[0].mxu0
      %v6409 = vadd.f32 0.0, %v6408
      %v6410 = vpop.f32.mrb[0].mxu0
      %v6411 = vadd.f32 0.0, %v6410
      %v6412 = vpop.f32.mrb[0].mxu0
      %v6413 = vadd.f32 0.0, %v6412
      %6414 = vmatprep.mubr.bf16.mxu0 0
      %6415 = vmatmul.mubr.bf16.gmra.mrb[0].mxu0 %v6370
      %v6416 = vpop.f32.mrb[0].mxu0
      %v6417 = vadd.f32 0.0, %v6416
      %v6418 = vpop.f32.mrb[0].mxu0
      %v6419 = vadd.f32 0.0, %v6418
      %v6420 = vpop.f32.mrb[0].mxu0
      %v6421 = vadd.f32 0.0, %v6420
      %v6422 = vpop.f32.mrb[0].mxu0
      %v6423 = vadd.f32 0.0, %v6422
      %6424 = vdwg.mxu0
      %6425 = vmatprep.subr.bf16.mxu0 0
      %6426 = vmatpush1.bf16.msra.mxu0 %v6360
      %6427 = vmatprep.subr.bf16.mxu0 0
      %6428 = vmatpush1.bf16.msra.mxu0 0
      %6429 = vmatprep.subr.bf16.mxu0 0
      %6430 = vmatpush1.bf16.msra.mxu0 0
      %6431 = vmatprep.subr.bf16.mxu0 0
      %6432 = vmatpush1.bf16.msra.mxu0 0
      %6433 = vmatprep.subr.bf16.mxu0 0
      %6434 = vmatpush1.bf16.msra.mxu0 0
      %6435 = vmatprep.subr.bf16.mxu0 0
      %6436 = vmatpush1.bf16.msra.mxu0 0
      %6437 = vmatprep.subr.bf16.mxu0 0
      %6438 = vmatpush1.bf16.msra.mxu0 0
      %6439 = vmatprep.subr.bf16.mxu0 0
      %6440 = vmatpush1.bf16.msra.mxu0 0
      %6441 = vmatprep.subr.bf16.mxu0 0
      %6442 = vmatpush1.bf16.msra.mxu0 0
      %6443 = vmatprep.subr.bf16.mxu0 0
      %6444 = vmatpush1.bf16.msra.mxu0 0
      %6445 = vmatprep.subr.bf16.mxu0 0
      %6446 = vmatpush1.bf16.msra.mxu0 0
      %6447 = vmatprep.subr.bf16.mxu0 0
      %6448 = vmatpush1.bf16.msra.mxu0 0
      %6449 = vmatprep.subr.bf16.mxu0 0
      %6450 = vmatpush1.bf16.msra.mxu0 0
      %6451 = vmatprep.subr.bf16.mxu0 0
      %6452 = vmatpush1.bf16.msra.mxu0 0
      %6453 = vmatprep.subr.bf16.mxu0 0
      %6454 = vmatpush1.bf16.msra.mxu0 0
      %6455 = vmatprep.subr.bf16.mxu0 0
      %6456 = vmatpush1.bf16.msra.mxu0 0
      %6457 = vmatprep.mubr.bf16.mxu0 0
      %6458 = vmatmul.mubr.bf16.gmra.mrb[0].mxu0 %v6367
      %v6459 = vpop.f32.mrb[0].mxu0
      %v6460 = vadd.f32 0.0, %v6459
      %v6461 = vpop.f32.mrb[0].mxu0
      %v6462 = vpop.f32.mrb[0].mxu0
      %v6463 = vadd.f32 0.0, %v6462
      %v6464 = vpop.f32.mrb[0].mxu0
      %6465 = vmatprep.mubr.bf16.mxu0 0
      %6466 = vmatmul.mubr.bf16.gmra.mrb[0].mxu0 %v6370
      %v6467 = vpop.f32.mrb[0].mxu0
      %v6468 = vadd.f32 0.0, %v6467
      %v6469 = vpop.f32.mrb[0].mxu0
      %v6470 = vpop.f32.mrb[0].mxu0
      %v6471 = vadd.f32 0.0, %v6470
      %v6472 = vpop.f32.mrb[0].mxu0
      %6473 = vdwg.mxu0
      %v6478 = vunpack.c.l.b16 %v6333
      %v6479 = vunpack.c.l.b16 %v6334
      %v6480 = vunpack.c.l.b16 %v6335
      %v6481 = vunpack.c.l.b16 %v6336
      %v6482 = vpack.c.b16 %v6479, %v6478
      %v6483 = vpack.c.b16 %v6481, %v6480
      %v6485 = vsel %vm4904, %v6482, 0
      %v6488 = vsel %vm4904, %v6483, 0
      %6490 = vmatprep.subr.bf16.mxu0 %v4869
      %6491 = vmatpush1.bf16.msra.mxu0 %v4868
      %6492 = vmatprep.subr.bf16.mxu0 0
      %6493 = vmatpush1.bf16.msra.mxu0 0
      %6494 = vmatprep.subr.bf16.mxu0 0
      %6495 = vmatpush1.bf16.msra.mxu0 0
      %6496 = vmatprep.subr.bf16.mxu0 0
      %6497 = vmatpush1.bf16.msra.mxu0 0
      %6498 = vmatprep.subr.bf16.mxu0 0
      %6499 = vmatpush1.bf16.msra.mxu0 0
      %6500 = vmatprep.subr.bf16.mxu0 0
      %6501 = vmatpush1.bf16.msra.mxu0 0
      %6502 = vmatprep.subr.bf16.mxu0 0
      %6503 = vmatpush1.bf16.msra.mxu0 0
      %6504 = vmatprep.subr.bf16.mxu0 0
      %6505 = vmatpush1.bf16.msra.mxu0 0
      %6506 = vmatprep.subr.bf16.mxu0 0
      %6507 = vmatpush1.bf16.msra.mxu0 0
      %6508 = vmatprep.subr.bf16.mxu0 0
      %6509 = vmatpush1.bf16.msra.mxu0 0
      %6510 = vmatprep.subr.bf16.mxu0 0
      %6511 = vmatpush1.bf16.msra.mxu0 0
      %6512 = vmatprep.subr.bf16.mxu0 0
      %6513 = vmatpush1.bf16.msra.mxu0 0
      %6514 = vmatprep.subr.bf16.mxu0 0
      %6515 = vmatpush1.bf16.msra.mxu0 0
      %6516 = vmatprep.subr.bf16.mxu0 0
      %6517 = vmatpush1.bf16.msra.mxu0 0
      %6518 = vmatprep.subr.bf16.mxu0 0
      %6519 = vmatpush1.bf16.msra.mxu0 0
      %6520 = vmatprep.subr.bf16.mxu0 0
      %6521 = vmatpush1.bf16.msra.mxu0 0
      %6522 = vmatprep.mubr.bf16.mxu0 0
      %6523 = vmatmul.mubr.bf16.gmra.mrb[0].mxu0 %v6485
      %v6524 = vpop.f32.mrb[0].mxu0
      %v6525 = vadd.f32 %v6407, %v6524
      %v6526 = vpop.f32.mrb[0].mxu0
      %v6527 = vadd.f32 %v6409, %v6526
      %v6528 = vpop.f32.mrb[0].mxu0
      %v6529 = vadd.f32 %v6411, %v6528
      %v6530 = vpop.f32.mrb[0].mxu0
      %v6531 = vadd.f32 %v6413, %v6530
      %6532 = vmatprep.mubr.bf16.mxu0 0
      %6533 = vmatmul.mubr.bf16.gmra.mrb[0].mxu0 %v6488
      %v6534 = vpop.f32.mrb[0].mxu0
      %v6535 = vadd.f32 %v6417, %v6534
      %v6536 = vpop.f32.mrb[0].mxu0
      %v6537 = vadd.f32 %v6419, %v6536
      %v6538 = vpop.f32.mrb[0].mxu0
      %v6539 = vadd.f32 %v6421, %v6538
      %v6540 = vpop.f32.mrb[0].mxu0
      %v6541 = vadd.f32 %v6423, %v6540
      %6542 = vdwg.mxu0
      %6543 = vmatprep.subr.bf16.mxu0 0
      %6544 = vmatpush1.bf16.msra.mxu0 %v4870
      %6545 = vmatprep.subr.bf16.mxu0 0
      %6546 = vmatpush1.bf16.msra.mxu0 0
      %6547 = vmatprep.subr.bf16.mxu0 0
      %6548 = vmatpush1.bf16.msra.mxu0 0
      %6549 = vmatprep.subr.bf16.mxu0 0
      %6550 = vmatpush1.bf16.msra.mxu0 0
      %6551 = vmatprep.subr.bf16.mxu0 0
      %6552 = vmatpush1.bf16.msra.mxu0 0
      %6553 = vmatprep.subr.bf16.mxu0 0
      %6554 = vmatpush1.bf16.msra.mxu0 0
      %6555 = vmatprep.subr.bf16.mxu0 0
      %6556 = vmatpush1.bf16.msra.mxu0 0
      %6557 = vmatprep.subr.bf16.mxu0 0
      %6558 = vmatpush1.bf16.msra.mxu0 0
      %6559 = vmatprep.subr.bf16.mxu0 0
      %6560 = vmatpush1.bf16.msra.mxu0 0
      %6561 = vmatprep.subr.bf16.mxu0 0
      %6562 = vmatpush1.bf16.msra.mxu0 0
      %6563 = vmatprep.subr.bf16.mxu0 0
      %6564 = vmatpush1.bf16.msra.mxu0 0
      %6565 = vmatprep.subr.bf16.mxu0 0
      %6566 = vmatpush1.bf16.msra.mxu0 0
      %6567 = vmatprep.subr.bf16.mxu0 0
      %6568 = vmatpush1.bf16.msra.mxu0 0
      %6569 = vmatprep.subr.bf16.mxu0 0
      %6570 = vmatpush1.bf16.msra.mxu0 0
      %6571 = vmatprep.subr.bf16.mxu0 0
      %6572 = vmatpush1.bf16.msra.mxu0 0
      %6573 = vmatprep.subr.bf16.mxu0 0
      %6574 = vmatpush1.bf16.msra.mxu0 0
      %6575 = vmatprep.mubr.bf16.mxu0 0
      %6576 = vmatmul.mubr.bf16.gmra.mrb[0].mxu0 %v6485
      %v6577 = vpop.f32.mrb[0].mxu0
      %v6578 = vadd.f32 %v6460, %v6577
      %v6579 = vpop.f32.mrb[0].mxu0
      %v6580 = vpop.f32.mrb[0].mxu0
      %v6581 = vadd.f32 %v6463, %v6580
      %v6582 = vpop.f32.mrb[0].mxu0
      %6583 = vmatprep.mubr.bf16.mxu0 0
      %6584 = vmatmul.mubr.bf16.gmra.mrb[0].mxu0 %v6488
      %v6585 = vpop.f32.mrb[0].mxu0
      %v6586 = vadd.f32 %v6468, %v6585
      %v6587 = vpop.f32.mrb[0].mxu0
      %v6588 = vpop.f32.mrb[0].mxu0
      %v6589 = vadd.f32 %v6471, %v6588
      %v6590 = vpop.f32.mrb[0].mxu0
      %6591 = vdwg.mxu0
      %s6592 = scalar_lea.vmem %s4, 176
      %v6593 = vld [vmem:[%s6592] sm:$0xf]
      %v6594 = vld [vmem:[%s6592 + $0x4] sm:$0xf]
      %v6595 = vld [vmem:[%s6592 + $0x8] sm:$0xf]
      %v6596 = vld [vmem:[%s6592 + $0xc] sm:$0xf]
      %v6601 = vunpack.c.l.b16 %v6593
      %v6602 = vunpack.c.l.b16 %v6594
      %v6603 = vunpack.c.l.b16 %v6595
      %v6604 = vunpack.c.l.b16 %v6596
      %v6605 = vpack.c.b16 %v6602, %v6601
      %v6606 = vpack.c.b16 %v6604, %v6603
      %6607 = vrot.lane.b32.xlu0 %v4868, 126
      %v6608 = vpop.permute.xlu0 %6607
      %6609 = vrot.lane.b32.xlu0 %v4869, 126
      %v6610 = vpop.permute.xlu0 %6609
      %6611 = vrot.lane.b32.xlu0 %v4870, 126
      %v6612 = vpop.permute.xlu0 %6611
      %v6613 = vsel %vm5152, %v6608, %v6610
      %v6614 = vsel %vm5152, %v6610, %v6612
      %v6619 = vsel %vm4904, %v6605, 0
      %v6622 = vsel %vm4904, %v6606, 0
      %6624 = vmatprep.subr.bf16.mxu0 %v6614
      %6625 = vmatpush1.bf16.msra.mxu0 %v6613
      %6626 = vmatprep.subr.bf16.mxu0 0
      %6627 = vmatpush1.bf16.msra.mxu0 0
      %6628 = vmatprep.subr.bf16.mxu0 0
      %6629 = vmatpush1.bf16.msra.mxu0 0
      %6630 = vmatprep.subr.bf16.mxu0 0
      %6631 = vmatpush1.bf16.msra.mxu0 0
      %6632 = vmatprep.subr.bf16.mxu0 0
      %6633 = vmatpush1.bf16.msra.mxu0 0
      %6634 = vmatprep.subr.bf16.mxu0 0
      %6635 = vmatpush1.bf16.msra.mxu0 0
      %6636 = vmatprep.subr.bf16.mxu0 0
      %6637 = vmatpush1.bf16.msra.mxu0 0
      %6638 = vmatprep.subr.bf16.mxu0 0
      %6639 = vmatpush1.bf16.msra.mxu0 0
      %6640 = vmatprep.subr.bf16.mxu0 0
      %6641 = vmatpush1.bf16.msra.mxu0 0
      %6642 = vmatprep.subr.bf16.mxu0 0
      %6643 = vmatpush1.bf16.msra.mxu0 0
      %6644 = vmatprep.subr.bf16.mxu0 0
      %6645 = vmatpush1.bf16.msra.mxu0 0
      %6646 = vmatprep.subr.bf16.mxu0 0
      %6647 = vmatpush1.bf16.msra.mxu0 0
      %6648 = vmatprep.subr.bf16.mxu0 0
      %6649 = vmatpush1.bf16.msra.mxu0 0
      %6650 = vmatprep.subr.bf16.mxu0 0
      %6651 = vmatpush1.bf16.msra.mxu0 0
      %6652 = vmatprep.subr.bf16.mxu0 0
      %6653 = vmatpush1.bf16.msra.mxu0 0
      %6654 = vmatprep.subr.bf16.mxu0 0
      %6655 = vmatpush1.bf16.msra.mxu0 0
      %6656 = vmatprep.mubr.bf16.mxu0 0
      %6657 = vmatmul.mubr.bf16.gmra.mrb[0].mxu0 %v6619
      %v6658 = vpop.f32.mrb[0].mxu0
      %v6659 = vadd.f32 0.0, %v6658
      %v6660 = vpop.f32.mrb[0].mxu0
      %v6661 = vadd.f32 0.0, %v6660
      %v6662 = vpop.f32.mrb[0].mxu0
      %v6663 = vadd.f32 0.0, %v6662
      %v6664 = vpop.f32.mrb[0].mxu0
      %v6665 = vadd.f32 0.0, %v6664
      %6666 = vmatprep.mubr.bf16.mxu0 0
      %6667 = vmatmul.mubr.bf16.gmra.mrb[0].mxu0 %v6622
      %v6668 = vpop.f32.mrb[0].mxu0
      %v6669 = vadd.f32 0.0, %v6668
      %v6670 = vpop.f32.mrb[0].mxu0
      %v6671 = vadd.f32 0.0, %v6670
      %v6672 = vpop.f32.mrb[0].mxu0
      %v6673 = vadd.f32 0.0, %v6672
      %v6674 = vpop.f32.mrb[0].mxu0
      %v6675 = vadd.f32 0.0, %v6674
      %6676 = vdwg.mxu0
      %6677 = vmatprep.subr.bf16.mxu0 0
      %6678 = vmatpush1.bf16.msra.mxu0 %v6612
      %6679 = vmatprep.subr.bf16.mxu0 0
      %6680 = vmatpush1.bf16.msra.mxu0 0
      %6681 = vmatprep.subr.bf16.mxu0 0
      %6682 = vmatpush1.bf16.msra.mxu0 0
      %6683 = vmatprep.subr.bf16.mxu0 0
      %6684 = vmatpush1.bf16.msra.mxu0 0
      %6685 = vmatprep.subr.bf16.mxu0 0
      %6686 = vmatpush1.bf16.msra.mxu0 0
      %6687 = vmatprep.subr.bf16.mxu0 0
      %6688 = vmatpush1.bf16.msra.mxu0 0
      %6689 = vmatprep.subr.bf16.mxu0 0
      %6690 = vmatpush1.bf16.msra.mxu0 0
      %6691 = vmatprep.subr.bf16.mxu0 0
      %6692 = vmatpush1.bf16.msra.mxu0 0
      %6693 = vmatprep.subr.bf16.mxu0 0
      %6694 = vmatpush1.bf16.msra.mxu0 0
      %6695 = vmatprep.subr.bf16.mxu0 0
      %6696 = vmatpush1.bf16.msra.mxu0 0
      %6697 = vmatprep.subr.bf16.mxu0 0
      %6698 = vmatpush1.bf16.msra.mxu0 0
      %6699 = vmatprep.subr.bf16.mxu0 0
      %6700 = vmatpush1.bf16.msra.mxu0 0
      %6701 = vmatprep.subr.bf16.mxu0 0
      %6702 = vmatpush1.bf16.msra.mxu0 0
      %6703 = vmatprep.subr.bf16.mxu0 0
      %6704 = vmatpush1.bf16.msra.mxu0 0
      %6705 = vmatprep.subr.bf16.mxu0 0
      %6706 = vmatpush1.bf16.msra.mxu0 0
      %6707 = vmatprep.subr.bf16.mxu0 0
      %6708 = vmatpush1.bf16.msra.mxu0 0
      %6709 = vmatprep.mubr.bf16.mxu0 0
      %6710 = vmatmul.mubr.bf16.gmra.mrb[0].mxu0 %v6619
      %v6711 = vpop.f32.mrb[0].mxu0
      %v6712 = vadd.f32 0.0, %v6711
      %v6713 = vpop.f32.mrb[0].mxu0
      %v6714 = vpop.f32.mrb[0].mxu0
      %v6715 = vadd.f32 0.0, %v6714
      %v6716 = vpop.f32.mrb[0].mxu0
      %6717 = vmatprep.mubr.bf16.mxu0 0
      %6718 = vmatmul.mubr.bf16.gmra.mrb[0].mxu0 %v6622
      %v6719 = vpop.f32.mrb[0].mxu0
      %v6720 = vadd.f32 0.0, %v6719
      %v6721 = vpop.f32.mrb[0].mxu0
      %v6722 = vpop.f32.mrb[0].mxu0
      %v6723 = vadd.f32 0.0, %v6722
      %v6724 = vpop.f32.mrb[0].mxu0
      %6725 = vdwg.mxu0
      %v6726 = vadd.f32 %v6525, %v6659
      %v6727 = vadd.f32 %v6527, %v6661
      %v6728 = vadd.f32 %v6578, %v6712
      %v6729 = vadd.f32 %v6529, %v6663
      %v6730 = vadd.f32 %v6531, %v6665
      %v6731 = vadd.f32 %v6581, %v6715
      %v6732 = vadd.f32 %v6535, %v6669
      %v6733 = vadd.f32 %v6537, %v6671
      %v6734 = vadd.f32 %v6586, %v6720
      %v6735 = vadd.f32 %v6539, %v6673
      %v6736 = vadd.f32 %v6541, %v6675
      %v6737 = vadd.f32 %v6589, %v6723
      %s6738 = scalar_lea.vmem %s4, 192
      %v6739 = vld [vmem:[%s6738] sm:$0xf]
      %v6740 = vld [vmem:[%s6738 + $0x4] sm:$0xf]
      %v6741 = vld [vmem:[%s6738 + $0x8] sm:$0xf]
      %v6742 = vld [vmem:[%s6738 + $0xc] sm:$0xf]
      %v6747 = vunpack.c.l.b16 %v6739
      %v6748 = vunpack.c.l.b16 %v6740
      %v6749 = vunpack.c.l.b16 %v6741
      %v6750 = vunpack.c.l.b16 %v6742
      %v6751 = vpack.c.b16 %v6748, %v6747
      %v6752 = vpack.c.b16 %v6750, %v6749
      %6753 = vrot.lane.b32.xlu0 %v4868, 110
      %v6754 = vpop.permute.xlu0 %6753
      %6755 = vrot.lane.b32.xlu0 %v4869, 110
      %v6756 = vpop.permute.xlu0 %6755
      %6757 = vrot.lane.b32.xlu0 %v4870, 110
      %v6758 = vpop.permute.xlu0 %6757
      %v6759 = vsel %vm1203, %v6754, %v6756
      %v6760 = vsel %vm1203, %v6756, %v6758
      %v6765 = vsel %vm4904, %v6751, 0
      %v6768 = vsel %vm4904, %v6752, 0
      %6770 = vmatprep.subr.bf16.mxu0 %v6760
      %6771 = vmatpush1.bf16.msra.mxu0 %v6759
      %6772 = vmatprep.subr.bf16.mxu0 0
      %6773 = vmatpush1.bf16.msra.mxu0 0
      %6774 = vmatprep.subr.bf16.mxu0 0
      %6775 = vmatpush1.bf16.msra.mxu0 0
      %6776 = vmatprep.subr.bf16.mxu0 0
      %6777 = vmatpush1.bf16.msra.mxu0 0
      %6778 = vmatprep.subr.bf16.mxu0 0
      %6779 = vmatpush1.bf16.msra.mxu0 0
      %6780 = vmatprep.subr.bf16.mxu0 0
      %6781 = vmatpush1.bf16.msra.mxu0 0
      %6782 = vmatprep.subr.bf16.mxu0 0
      %6783 = vmatpush1.bf16.msra.mxu0 0
      %6784 = vmatprep.subr.bf16.mxu0 0
      %6785 = vmatpush1.bf16.msra.mxu0 0
      %6786 = vmatprep.subr.bf16.mxu0 0
      %6787 = vmatpush1.bf16.msra.mxu0 0
      %6788 = vmatprep.subr.bf16.mxu0 0
      %6789 = vmatpush1.bf16.msra.mxu0 0
      %6790 = vmatprep.subr.bf16.mxu0 0
      %6791 = vmatpush1.bf16.msra.mxu0 0
      %6792 = vmatprep.subr.bf16.mxu0 0
      %6793 = vmatpush1.bf16.msra.mxu0 0
      %6794 = vmatprep.subr.bf16.mxu0 0
      %6795 = vmatpush1.bf16.msra.mxu0 0
      %6796 = vmatprep.subr.bf16.mxu0 0
      %6797 = vmatpush1.bf16.msra.mxu0 0
      %6798 = vmatprep.subr.bf16.mxu0 0
      %6799 = vmatpush1.bf16.msra.mxu0 0
      %6800 = vmatprep.subr.bf16.mxu0 0
      %6801 = vmatpush1.bf16.msra.mxu0 0
      %6802 = vmatprep.mubr.bf16.mxu0 0
      %6803 = vmatmul.mubr.bf16.gmra.mrb[0].mxu0 %v6765
      %v6804 = vpop.f32.mrb[0].mxu0
      %v6805 = vadd.f32 0.0, %v6804
      %v6806 = vpop.f32.mrb[0].mxu0
      %v6807 = vadd.f32 0.0, %v6806
      %v6808 = vpop.f32.mrb[0].mxu0
      %v6809 = vadd.f32 0.0, %v6808
      %v6810 = vpop.f32.mrb[0].mxu0
      %v6811 = vadd.f32 0.0, %v6810
      %6812 = vmatprep.mubr.bf16.mxu0 0
      %6813 = vmatmul.mubr.bf16.gmra.mrb[0].mxu0 %v6768
      %v6814 = vpop.f32.mrb[0].mxu0
      %v6815 = vadd.f32 0.0, %v6814
      %v6816 = vpop.f32.mrb[0].mxu0
      %v6817 = vadd.f32 0.0, %v6816
      %v6818 = vpop.f32.mrb[0].mxu0
      %v6819 = vadd.f32 0.0, %v6818
      %v6820 = vpop.f32.mrb[0].mxu0
      %v6821 = vadd.f32 0.0, %v6820
      %6822 = vdwg.mxu0
      %6823 = vmatprep.subr.bf16.mxu0 0
      %6824 = vmatpush1.bf16.msra.mxu0 %v6758
      %6825 = vmatprep.subr.bf16.mxu0 0
      %6826 = vmatpush1.bf16.msra.mxu0 0
      %6827 = vmatprep.subr.bf16.mxu0 0
      %6828 = vmatpush1.bf16.msra.mxu0 0
      %6829 = vmatprep.subr.bf16.mxu0 0
      %6830 = vmatpush1.bf16.msra.mxu0 0
      %6831 = vmatprep.subr.bf16.mxu0 0
      %6832 = vmatpush1.bf16.msra.mxu0 0
      %6833 = vmatprep.subr.bf16.mxu0 0
      %6834 = vmatpush1.bf16.msra.mxu0 0
      %6835 = vmatprep.subr.bf16.mxu0 0
      %6836 = vmatpush1.bf16.msra.mxu0 0
      %6837 = vmatprep.subr.bf16.mxu0 0
      %6838 = vmatpush1.bf16.msra.mxu0 0
      %6839 = vmatprep.subr.bf16.mxu0 0
      %6840 = vmatpush1.bf16.msra.mxu0 0
      %6841 = vmatprep.subr.bf16.mxu0 0
      %6842 = vmatpush1.bf16.msra.mxu0 0
      %6843 = vmatprep.subr.bf16.mxu0 0
      %6844 = vmatpush1.bf16.msra.mxu0 0
      %6845 = vmatprep.subr.bf16.mxu0 0
      %6846 = vmatpush1.bf16.msra.mxu0 0
      %6847 = vmatprep.subr.bf16.mxu0 0
      %6848 = vmatpush1.bf16.msra.mxu0 0
      %6849 = vmatprep.subr.bf16.mxu0 0
      %6850 = vmatpush1.bf16.msra.mxu0 0
      %6851 = vmatprep.subr.bf16.mxu0 0
      %6852 = vmatpush1.bf16.msra.mxu0 0
      %6853 = vmatprep.subr.bf16.mxu0 0
      %6854 = vmatpush1.bf16.msra.mxu0 0
      %6855 = vmatprep.mubr.bf16.mxu0 0
      %6856 = vmatmul.mubr.bf16.gmra.mrb[0].mxu0 %v6765
      %v6857 = vpop.f32.mrb[0].mxu0
      %v6858 = vadd.f32 0.0, %v6857
      %v6859 = vpop.f32.mrb[0].mxu0
      %v6860 = vpop.f32.mrb[0].mxu0
      %v6861 = vadd.f32 0.0, %v6860
      %v6862 = vpop.f32.mrb[0].mxu0
      %6863 = vmatprep.mubr.bf16.mxu0 0
      %6864 = vmatmul.mubr.bf16.gmra.mrb[0].mxu0 %v6768
      %v6865 = vpop.f32.mrb[0].mxu0
      %v6866 = vadd.f32 0.0, %v6865
      %v6867 = vpop.f32.mrb[0].mxu0
      %v6868 = vpop.f32.mrb[0].mxu0
      %v6869 = vadd.f32 0.0, %v6868
      %v6870 = vpop.f32.mrb[0].mxu0
      %6871 = vdwg.mxu0
      %v6872 = vadd.f32 %v6726, %v6805
      %v6873 = vadd.f32 %v6727, %v6807
      %v6874 = vadd.f32 %v6728, %v6858
      %v6875 = vadd.f32 %v6729, %v6809
      %v6876 = vadd.f32 %v6730, %v6811
      %v6877 = vadd.f32 %v6731, %v6861
      %v6878 = vadd.f32 %v6732, %v6815
      %v6879 = vadd.f32 %v6733, %v6817
      %v6880 = vadd.f32 %v6734, %v6866
      %v6881 = vadd.f32 %v6735, %v6819
      %v6882 = vadd.f32 %v6736, %v6821
      %v6883 = vadd.f32 %v6737, %v6869
      %s6884 = scalar_lea.vmem %s4, 208
      %v6885 = vld [vmem:[%s6884] sm:$0xf]
      %v6886 = vld [vmem:[%s6884 + $0x4] sm:$0xf]
      %v6887 = vld [vmem:[%s6884 + $0x8] sm:$0xf]
      %v6888 = vld [vmem:[%s6884 + $0xc] sm:$0xf]
      %v6893 = vunpack.c.l.b16 %v6885
      %v6894 = vunpack.c.l.b16 %v6886
      %v6895 = vunpack.c.l.b16 %v6887
      %v6896 = vunpack.c.l.b16 %v6888
      %v6897 = vpack.c.b16 %v6894, %v6893
      %v6898 = vpack.c.b16 %v6896, %v6895
      %6899 = vrot.lane.b32.xlu0 %v4868, 109
      %v6900 = vpop.permute.xlu0 %6899
      %6901 = vrot.lane.b32.xlu0 %v4869, 109
      %v6902 = vpop.permute.xlu0 %6901
      %6903 = vrot.lane.b32.xlu0 %v4870, 109
      %v6904 = vpop.permute.xlu0 %6903
      %v6905 = vsel %vm1508, %v6900, %v6902
      %v6906 = vsel %vm1508, %v6902, %v6904
      %v6911 = vsel %vm4904, %v6897, 0
      %v6914 = vsel %vm4904, %v6898, 0
      %6916 = vmatprep.subr.bf16.mxu0 %v6906
      %6917 = vmatpush1.bf16.msra.mxu0 %v6905
      %6918 = vmatprep.subr.bf16.mxu0 0
      %6919 = vmatpush1.bf16.msra.mxu0 0
      %6920 = vmatprep.subr.bf16.mxu0 0
      %6921 = vmatpush1.bf16.msra.mxu0 0
      %6922 = vmatprep.subr.bf16.mxu0 0
      %6923 = vmatpush1.bf16.msra.mxu0 0
      %6924 = vmatprep.subr.bf16.mxu0 0
      %6925 = vmatpush1.bf16.msra.mxu0 0
      %6926 = vmatprep.subr.bf16.mxu0 0
      %6927 = vmatpush1.bf16.msra.mxu0 0
      %6928 = vmatprep.subr.bf16.mxu0 0
      %6929 = vmatpush1.bf16.msra.mxu0 0
      %6930 = vmatprep.subr.bf16.mxu0 0
      %6931 = vmatpush1.bf16.msra.mxu0 0
      %6932 = vmatprep.subr.bf16.mxu0 0
      %6933 = vmatpush1.bf16.msra.mxu0 0
      %6934 = vmatprep.subr.bf16.mxu0 0
      %6935 = vmatpush1.bf16.msra.mxu0 0
      %6936 = vmatprep.subr.bf16.mxu0 0
      %6937 = vmatpush1.bf16.msra.mxu0 0
      %6938 = vmatprep.subr.bf16.mxu0 0
      %6939 = vmatpush1.bf16.msra.mxu0 0
      %6940 = vmatprep.subr.bf16.mxu0 0
      %6941 = vmatpush1.bf16.msra.mxu0 0
      %6942 = vmatprep.subr.bf16.mxu0 0
      %6943 = vmatpush1.bf16.msra.mxu0 0
      %6944 = vmatprep.subr.bf16.mxu0 0
      %6945 = vmatpush1.bf16.msra.mxu0 0
      %6946 = vmatprep.subr.bf16.mxu0 0
      %6947 = vmatpush1.bf16.msra.mxu0 0
      %6948 = vmatprep.mubr.bf16.mxu0 0
      %6949 = vmatmul.mubr.bf16.gmra.mrb[0].mxu0 %v6911
      %v6950 = vpop.f32.mrb[0].mxu0
      %v6951 = vadd.f32 0.0, %v6950
      %v6952 = vpop.f32.mrb[0].mxu0
      %v6953 = vadd.f32 0.0, %v6952
      %v6954 = vpop.f32.mrb[0].mxu0
      %v6955 = vadd.f32 0.0, %v6954
      %v6956 = vpop.f32.mrb[0].mxu0
      %v6957 = vadd.f32 0.0, %v6956
      %6958 = vmatprep.mubr.bf16.mxu0 0
      %6959 = vmatmul.mubr.bf16.gmra.mrb[0].mxu0 %v6914
      %v6960 = vpop.f32.mrb[0].mxu0
      %v6961 = vadd.f32 0.0, %v6960
      %v6962 = vpop.f32.mrb[0].mxu0
      %v6963 = vadd.f32 0.0, %v6962
      %v6964 = vpop.f32.mrb[0].mxu0
      %v6965 = vadd.f32 0.0, %v6964
      %v6966 = vpop.f32.mrb[0].mxu0
      %v6967 = vadd.f32 0.0, %v6966
      %6968 = vdwg.mxu0
      %6969 = vmatprep.subr.bf16.mxu0 0
      %6970 = vmatpush1.bf16.msra.mxu0 %v6904
      %6971 = vmatprep.subr.bf16.mxu0 0
      %6972 = vmatpush1.bf16.msra.mxu0 0
      %6973 = vmatprep.subr.bf16.mxu0 0
      %6974 = vmatpush1.bf16.msra.mxu0 0
      %6975 = vmatprep.subr.bf16.mxu0 0
      %6976 = vmatpush1.bf16.msra.mxu0 0
      %6977 = vmatprep.subr.bf16.mxu0 0
      %6978 = vmatpush1.bf16.msra.mxu0 0
      %6979 = vmatprep.subr.bf16.mxu0 0
      %6980 = vmatpush1.bf16.msra.mxu0 0
      %6981 = vmatprep.subr.bf16.mxu0 0
      %6982 = vmatpush1.bf16.msra.mxu0 0
      %6983 = vmatprep.subr.bf16.mxu0 0
      %6984 = vmatpush1.bf16.msra.mxu0 0
      %6985 = vmatprep.subr.bf16.mxu0 0
      %6986 = vmatpush1.bf16.msra.mxu0 0
      %6987 = vmatprep.subr.bf16.mxu0 0
      %6988 = vmatpush1.bf16.msra.mxu0 0
      %6989 = vmatprep.subr.bf16.mxu0 0
      %6990 = vmatpush1.bf16.msra.mxu0 0
      %6991 = vmatprep.subr.bf16.mxu0 0
      %6992 = vmatpush1.bf16.msra.mxu0 0
      %6993 = vmatprep.subr.bf16.mxu0 0
      %6994 = vmatpush1.bf16.msra.mxu0 0
      %6995 = vmatprep.subr.bf16.mxu0 0
      %6996 = vmatpush1.bf16.msra.mxu0 0
      %6997 = vmatprep.subr.bf16.mxu0 0
      %6998 = vmatpush1.bf16.msra.mxu0 0
      %6999 = vmatprep.subr.bf16.mxu0 0
      %7000 = vmatpush1.bf16.msra.mxu0 0
      %7001 = vmatprep.mubr.bf16.mxu0 0
      %7002 = vmatmul.mubr.bf16.gmra.mrb[0].mxu0 %v6911
      %v7003 = vpop.f32.mrb[0].mxu0
      %v7004 = vadd.f32 0.0, %v7003
      %v7005 = vpop.f32.mrb[0].mxu0
      %v7006 = vpop.f32.mrb[0].mxu0
      %v7007 = vadd.f32 0.0, %v7006
      %v7008 = vpop.f32.mrb[0].mxu0
      %7009 = vmatprep.mubr.bf16.mxu0 0
      %7010 = vmatmul.mubr.bf16.gmra.mrb[0].mxu0 %v6914
      %v7011 = vpop.f32.mrb[0].mxu0
      %v7012 = vadd.f32 0.0, %v7011
      %v7013 = vpop.f32.mrb[0].mxu0
      %v7014 = vpop.f32.mrb[0].mxu0
      %v7015 = vadd.f32 0.0, %v7014
      %v7016 = vpop.f32.mrb[0].mxu0
      %7017 = vdwg.mxu0
      %v7018 = vadd.f32 %v6872, %v6951
      %v7019 = vadd.f32 %v6873, %v6953
      %v7020 = vadd.f32 %v6874, %v7004
      %v7021 = vadd.f32 %v6875, %v6955
      %v7022 = vadd.f32 %v6876, %v6957
      %v7023 = vadd.f32 %v6877, %v7007
      %v7024 = vadd.f32 %v6878, %v6961
      %v7025 = vadd.f32 %v6879, %v6963
      %v7026 = vadd.f32 %v6880, %v7012
      %v7027 = vadd.f32 %v6881, %v6965
      %v7028 = vadd.f32 %v6882, %v6967
      %v7029 = vadd.f32 %v6883, %v7015
      %s7030 = scalar_lea.vmem %s4, 224
      %v7031 = vld [vmem:[%s7030] sm:$0xf]
      %v7032 = vld [vmem:[%s7030 + $0x4] sm:$0xf]
      %v7033 = vld [vmem:[%s7030 + $0x8] sm:$0xf]
      %v7034 = vld [vmem:[%s7030 + $0xc] sm:$0xf]
      %v7039 = vunpack.c.l.b16 %v7031
      %v7040 = vunpack.c.l.b16 %v7032
      %v7041 = vunpack.c.l.b16 %v7033
      %v7042 = vunpack.c.l.b16 %v7034
      %v7043 = vpack.c.b16 %v7040, %v7039
      %v7044 = vpack.c.b16 %v7042, %v7041
      %7045 = vrot.lane.b32.xlu0 %v4868, 108
      %v7046 = vpop.permute.xlu0 %7045
      %7047 = vrot.lane.b32.xlu0 %v4869, 108
      %v7048 = vpop.permute.xlu0 %7047
      %7049 = vrot.lane.b32.xlu0 %v4870, 108
      %v7050 = vpop.permute.xlu0 %7049
      %v7051 = vsel %vm5591, %v7046, %v7048
      %v7052 = vsel %vm5591, %v7048, %v7050
      %v7057 = vsel %vm4904, %v7043, 0
      %v7060 = vsel %vm4904, %v7044, 0
      %7062 = vmatprep.subr.bf16.mxu0 %v7052
      %7063 = vmatpush1.bf16.msra.mxu0 %v7051
      %7064 = vmatprep.subr.bf16.mxu0 0
      %7065 = vmatpush1.bf16.msra.mxu0 0
      %7066 = vmatprep.subr.bf16.mxu0 0
      %7067 = vmatpush1.bf16.msra.mxu0 0
      %7068 = vmatprep.subr.bf16.mxu0 0
      %7069 = vmatpush1.bf16.msra.mxu0 0
      %7070 = vmatprep.subr.bf16.mxu0 0
      %7071 = vmatpush1.bf16.msra.mxu0 0
      %7072 = vmatprep.subr.bf16.mxu0 0
      %7073 = vmatpush1.bf16.msra.mxu0 0
      %7074 = vmatprep.subr.bf16.mxu0 0
      %7075 = vmatpush1.bf16.msra.mxu0 0
      %7076 = vmatprep.subr.bf16.mxu0 0
      %7077 = vmatpush1.bf16.msra.mxu0 0
      %7078 = vmatprep.subr.bf16.mxu0 0
      %7079 = vmatpush1.bf16.msra.mxu0 0
      %7080 = vmatprep.subr.bf16.mxu0 0
      %7081 = vmatpush1.bf16.msra.mxu0 0
      %7082 = vmatprep.subr.bf16.mxu0 0
      %7083 = vmatpush1.bf16.msra.mxu0 0
      %7084 = vmatprep.subr.bf16.mxu0 0
      %7085 = vmatpush1.bf16.msra.mxu0 0
      %7086 = vmatprep.subr.bf16.mxu0 0
      %7087 = vmatpush1.bf16.msra.mxu0 0
      %7088 = vmatprep.subr.bf16.mxu0 0
      %7089 = vmatpush1.bf16.msra.mxu0 0
      %7090 = vmatprep.subr.bf16.mxu0 0
      %7091 = vmatpush1.bf16.msra.mxu0 0
      %7092 = vmatprep.subr.bf16.mxu0 0
      %7093 = vmatpush1.bf16.msra.mxu0 0
      %7094 = vmatprep.mubr.bf16.mxu0 0
      %7095 = vmatmul.mubr.bf16.gmra.mrb[0].mxu0 %v7057
      %v7096 = vpop.f32.mrb[0].mxu0
      %v7097 = vadd.f32 0.0, %v7096
      %v7098 = vpop.f32.mrb[0].mxu0
      %v7099 = vadd.f32 0.0, %v7098
      %v7100 = vpop.f32.mrb[0].mxu0
      %v7101 = vadd.f32 0.0, %v7100
      %v7102 = vpop.f32.mrb[0].mxu0
      %v7103 = vadd.f32 0.0, %v7102
      %7104 = vmatprep.mubr.bf16.mxu0 0
      %7105 = vmatmul.mubr.bf16.gmra.mrb[0].mxu0 %v7060
      %v7106 = vpop.f32.mrb[0].mxu0
      %v7107 = vadd.f32 0.0, %v7106
      %v7108 = vpop.f32.mrb[0].mxu0
      %v7109 = vadd.f32 0.0, %v7108
      %v7110 = vpop.f32.mrb[0].mxu0
      %v7111 = vadd.f32 0.0, %v7110
      %v7112 = vpop.f32.mrb[0].mxu0
      %v7113 = vadd.f32 0.0, %v7112
      %7114 = vdwg.mxu0
      %7115 = vmatprep.subr.bf16.mxu0 0
      %7116 = vmatpush1.bf16.msra.mxu0 %v7050
      %7117 = vmatprep.subr.bf16.mxu0 0
      %7118 = vmatpush1.bf16.msra.mxu0 0
      %7119 = vmatprep.subr.bf16.mxu0 0
      %7120 = vmatpush1.bf16.msra.mxu0 0
      %7121 = vmatprep.subr.bf16.mxu0 0
      %7122 = vmatpush1.bf16.msra.mxu0 0
      %7123 = vmatprep.subr.bf16.mxu0 0
      %7124 = vmatpush1.bf16.msra.mxu0 0
      %7125 = vmatprep.subr.bf16.mxu0 0
      %7126 = vmatpush1.bf16.msra.mxu0 0
      %7127 = vmatprep.subr.bf16.mxu0 0
      %7128 = vmatpush1.bf16.msra.mxu0 0
      %7129 = vmatprep.subr.bf16.mxu0 0
      %7130 = vmatpush1.bf16.msra.mxu0 0
      %7131 = vmatprep.subr.bf16.mxu0 0
      %7132 = vmatpush1.bf16.msra.mxu0 0
      %7133 = vmatprep.subr.bf16.mxu0 0
      %7134 = vmatpush1.bf16.msra.mxu0 0
      %7135 = vmatprep.subr.bf16.mxu0 0
      %7136 = vmatpush1.bf16.msra.mxu0 0
      %7137 = vmatprep.subr.bf16.mxu0 0
      %7138 = vmatpush1.bf16.msra.mxu0 0
      %7139 = vmatprep.subr.bf16.mxu0 0
      %7140 = vmatpush1.bf16.msra.mxu0 0
      %7141 = vmatprep.subr.bf16.mxu0 0
      %7142 = vmatpush1.bf16.msra.mxu0 0
      %7143 = vmatprep.subr.bf16.mxu0 0
      %7144 = vmatpush1.bf16.msra.mxu0 0
      %7145 = vmatprep.subr.bf16.mxu0 0
      %7146 = vmatpush1.bf16.msra.mxu0 0
      %7147 = vmatprep.mubr.bf16.mxu0 0
      %7148 = vmatmul.mubr.bf16.gmra.mrb[0].mxu0 %v7057
      %v7149 = vpop.f32.mrb[0].mxu0
      %v7150 = vadd.f32 0.0, %v7149
      %v7151 = vpop.f32.mrb[0].mxu0
      %v7152 = vpop.f32.mrb[0].mxu0
      %v7153 = vadd.f32 0.0, %v7152
      %v7154 = vpop.f32.mrb[0].mxu0
      %7155 = vmatprep.mubr.bf16.mxu0 0
      %7156 = vmatmul.mubr.bf16.gmra.mrb[0].mxu0 %v7060
      %v7157 = vpop.f32.mrb[0].mxu0
      %v7158 = vadd.f32 0.0, %v7157
      %v7159 = vpop.f32.mrb[0].mxu0
      %v7160 = vpop.f32.mrb[0].mxu0
      %v7161 = vadd.f32 0.0, %v7160
      %v7162 = vpop.f32.mrb[0].mxu0
      %7163 = vdwg.mxu0
      %v7164 = vadd.f32 %v7018, %v7097
      %v7165 = vadd.f32 %v7019, %v7099
      %v7166 = vadd.f32 %v7020, %v7150
      %v7167 = vadd.f32 %v7021, %v7101
      %v7168 = vadd.f32 %v7022, %v7103
      %v7169 = vadd.f32 %v7023, %v7153
      %v7170 = vadd.f32 %v7024, %v7107
      %v7171 = vadd.f32 %v7025, %v7109
      %v7172 = vadd.f32 %v7026, %v7158
      %v7173 = vadd.f32 %v7027, %v7111
      %v7174 = vadd.f32 %v7028, %v7113
      %v7175 = vadd.f32 %v7029, %v7161
      %s7176 = scalar_lea.vmem %s4, 240
      %v7177 = vld [vmem:[%s7176] sm:$0xf]
      %v7178 = vld [vmem:[%s7176 + $0x4] sm:$0xf]
      %v7179 = vld [vmem:[%s7176 + $0x8] sm:$0xf]
      %v7180 = vld [vmem:[%s7176 + $0xc] sm:$0xf]
      %v7185 = vunpack.c.l.b16 %v7177
      %v7186 = vunpack.c.l.b16 %v7178
      %v7187 = vunpack.c.l.b16 %v7179
      %v7188 = vunpack.c.l.b16 %v7180
      %v7189 = vpack.c.b16 %v7186, %v7185
      %v7190 = vpack.c.b16 %v7188, %v7187
      %7191 = vrot.lane.b32.xlu0 %v4868, 92
      %v7192 = vpop.permute.xlu0 %7191
      %7193 = vrot.lane.b32.xlu0 %v4869, 92
      %v7194 = vpop.permute.xlu0 %7193
      %7195 = vrot.lane.b32.xlu0 %v4870, 92
      %v7196 = vpop.permute.xlu0 %7195
      %v7197 = vsel %vm5738, %v7192, %v7194
      %v7198 = vsel %vm5738, %v7194, %v7196
      %v7203 = vsel %vm4904, %v7189, 0
      %v7206 = vsel %vm4904, %v7190, 0
      %7208 = vmatprep.subr.bf16.mxu0 %v7198
      %7209 = vmatpush1.bf16.msra.mxu0 %v7197
      %7210 = vmatprep.subr.bf16.mxu0 0
      %7211 = vmatpush1.bf16.msra.mxu0 0
      %7212 = vmatprep.subr.bf16.mxu0 0
      %7213 = vmatpush1.bf16.msra.mxu0 0
      %7214 = vmatprep.subr.bf16.mxu0 0
      %7215 = vmatpush1.bf16.msra.mxu0 0
      %7216 = vmatprep.subr.bf16.mxu0 0
      %7217 = vmatpush1.bf16.msra.mxu0 0
      %7218 = vmatprep.subr.bf16.mxu0 0
      %7219 = vmatpush1.bf16.msra.mxu0 0
      %7220 = vmatprep.subr.bf16.mxu0 0
      %7221 = vmatpush1.bf16.msra.mxu0 0
      %7222 = vmatprep.subr.bf16.mxu0 0
      %7223 = vmatpush1.bf16.msra.mxu0 0
      %7224 = vmatprep.subr.bf16.mxu0 0
      %7225 = vmatpush1.bf16.msra.mxu0 0
      %7226 = vmatprep.subr.bf16.mxu0 0
      %7227 = vmatpush1.bf16.msra.mxu0 0
      %7228 = vmatprep.subr.bf16.mxu0 0
      %7229 = vmatpush1.bf16.msra.mxu0 0
      %7230 = vmatprep.subr.bf16.mxu0 0
      %7231 = vmatpush1.bf16.msra.mxu0 0
      %7232 = vmatprep.subr.bf16.mxu0 0
      %7233 = vmatpush1.bf16.msra.mxu0 0
      %7234 = vmatprep.subr.bf16.mxu0 0
      %7235 = vmatpush1.bf16.msra.mxu0 0
      %7236 = vmatprep.subr.bf16.mxu0 0
      %7237 = vmatpush1.bf16.msra.mxu0 0
      %7238 = vmatprep.subr.bf16.mxu0 0
      %7239 = vmatpush1.bf16.msra.mxu0 0
      %7240 = vmatprep.mubr.bf16.mxu0 0
      %7241 = vmatmul.mubr.bf16.gmra.mrb[0].mxu0 %v7203
      %v7242 = vpop.f32.mrb[0].mxu0
      %v7243 = vadd.f32 0.0, %v7242
      %v7244 = vpop.f32.mrb[0].mxu0
      %v7245 = vadd.f32 0.0, %v7244
      %v7246 = vpop.f32.mrb[0].mxu0
      %v7247 = vadd.f32 0.0, %v7246
      %v7248 = vpop.f32.mrb[0].mxu0
      %v7249 = vadd.f32 0.0, %v7248
      %7250 = vmatprep.mubr.bf16.mxu0 0
      %7251 = vmatmul.mubr.bf16.gmra.mrb[0].mxu0 %v7206
      %v7252 = vpop.f32.mrb[0].mxu0
      %v7253 = vadd.f32 0.0, %v7252
      %v7254 = vpop.f32.mrb[0].mxu0
      %v7255 = vadd.f32 0.0, %v7254
      %v7256 = vpop.f32.mrb[0].mxu0
      %v7257 = vadd.f32 0.0, %v7256
      %v7258 = vpop.f32.mrb[0].mxu0
      %v7259 = vadd.f32 0.0, %v7258
      %7260 = vdwg.mxu0
      %7261 = vmatprep.subr.bf16.mxu0 0
      %7262 = vmatpush1.bf16.msra.mxu0 %v7196
      %7263 = vmatprep.subr.bf16.mxu0 0
      %7264 = vmatpush1.bf16.msra.mxu0 0
      %7265 = vmatprep.subr.bf16.mxu0 0
      %7266 = vmatpush1.bf16.msra.mxu0 0
      %7267 = vmatprep.subr.bf16.mxu0 0
      %7268 = vmatpush1.bf16.msra.mxu0 0
      %7269 = vmatprep.subr.bf16.mxu0 0
      %7270 = vmatpush1.bf16.msra.mxu0 0
      %7271 = vmatprep.subr.bf16.mxu0 0
      %7272 = vmatpush1.bf16.msra.mxu0 0
      %7273 = vmatprep.subr.bf16.mxu0 0
      %7274 = vmatpush1.bf16.msra.mxu0 0
      %7275 = vmatprep.subr.bf16.mxu0 0
      %7276 = vmatpush1.bf16.msra.mxu0 0
      %7277 = vmatprep.subr.bf16.mxu0 0
      %7278 = vmatpush1.bf16.msra.mxu0 0
      %7279 = vmatprep.subr.bf16.mxu0 0
      %7280 = vmatpush1.bf16.msra.mxu0 0
      %7281 = vmatprep.subr.bf16.mxu0 0
      %7282 = vmatpush1.bf16.msra.mxu0 0
      %7283 = vmatprep.subr.bf16.mxu0 0
      %7284 = vmatpush1.bf16.msra.mxu0 0
      %7285 = vmatprep.subr.bf16.mxu0 0
      %7286 = vmatpush1.bf16.msra.mxu0 0
      %7287 = vmatprep.subr.bf16.mxu0 0
      %7288 = vmatpush1.bf16.msra.mxu0 0
      %7289 = vmatprep.subr.bf16.mxu0 0
      %7290 = vmatpush1.bf16.msra.mxu0 0
      %7291 = vmatprep.subr.bf16.mxu0 0
      %7292 = vmatpush1.bf16.msra.mxu0 0
      %7293 = vmatprep.mubr.bf16.mxu0 0
      %7294 = vmatmul.mubr.bf16.gmra.mrb[0].mxu0 %v7203
      %v7295 = vpop.f32.mrb[0].mxu0
      %v7296 = vadd.f32 0.0, %v7295
      %v7297 = vpop.f32.mrb[0].mxu0
      %v7298 = vpop.f32.mrb[0].mxu0
      %v7299 = vadd.f32 0.0, %v7298
      %v7300 = vpop.f32.mrb[0].mxu0
      %7301 = vmatprep.mubr.bf16.mxu0 0
      %7302 = vmatmul.mubr.bf16.gmra.mrb[0].mxu0 %v7206
      %v7303 = vpop.f32.mrb[0].mxu0
      %v7304 = vadd.f32 0.0, %v7303
      %v7305 = vpop.f32.mrb[0].mxu0
      %v7306 = vpop.f32.mrb[0].mxu0
      %v7307 = vadd.f32 0.0, %v7306
      %v7308 = vpop.f32.mrb[0].mxu0
      %7309 = vdwg.mxu0
      %v7310 = vadd.f32 %v7164, %v7243
      %v7311 = vadd.f32 %v7165, %v7245
      %v7312 = vadd.f32 %v7166, %v7296
      %v7313 = vadd.f32 %v7167, %v7247
      %v7314 = vadd.f32 %v7168, %v7249
      %v7315 = vadd.f32 %v7169, %v7299
      %v7316 = vadd.f32 %v7170, %v7253
      %v7317 = vadd.f32 %v7171, %v7255
      %v7318 = vadd.f32 %v7172, %v7304
      %v7319 = vadd.f32 %v7173, %v7257
      %v7320 = vadd.f32 %v7174, %v7259
      %v7321 = vadd.f32 %v7175, %v7307
      %s7322 = scalar_lea.vmem %s4, 256
      %v7323 = vld [vmem:[%s7322] sm:$0xf]
      %v7324 = vld [vmem:[%s7322 + $0x4] sm:$0xf]
      %v7325 = vld [vmem:[%s7322 + $0x8] sm:$0xf]
      %v7326 = vld [vmem:[%s7322 + $0xc] sm:$0xf]
      %v7331 = vunpack.c.l.b16 %v7323
      %v7332 = vunpack.c.l.b16 %v7324
      %v7333 = vunpack.c.l.b16 %v7325
      %v7334 = vunpack.c.l.b16 %v7326
      %v7335 = vpack.c.b16 %v7332, %v7331
      %v7336 = vpack.c.b16 %v7334, %v7333
      %7337 = vrot.lane.b32.xlu0 %v4868, 91
      %v7338 = vpop.permute.xlu0 %7337
      %7339 = vrot.lane.b32.xlu0 %v4869, 91
      %v7340 = vpop.permute.xlu0 %7339
      %7341 = vrot.lane.b32.xlu0 %v4870, 91
      %v7342 = vpop.permute.xlu0 %7341
      %v7343 = vsel %vm5885, %v7338, %v7340
      %v7344 = vsel %vm5885, %v7340, %v7342
      %v7349 = vsel %vm4904, %v7335, 0
      %v7352 = vsel %vm4904, %v7336, 0
      %7354 = vmatprep.subr.bf16.mxu0 %v7344
      %7355 = vmatpush1.bf16.msra.mxu0 %v7343
      %7356 = vmatprep.subr.bf16.mxu0 0
      %7357 = vmatpush1.bf16.msra.mxu0 0
      %7358 = vmatprep.subr.bf16.mxu0 0
      %7359 = vmatpush1.bf16.msra.mxu0 0
      %7360 = vmatprep.subr.bf16.mxu0 0
      %7361 = vmatpush1.bf16.msra.mxu0 0
      %7362 = vmatprep.subr.bf16.mxu0 0
      %7363 = vmatpush1.bf16.msra.mxu0 0
      %7364 = vmatprep.subr.bf16.mxu0 0
      %7365 = vmatpush1.bf16.msra.mxu0 0
      %7366 = vmatprep.subr.bf16.mxu0 0
      %7367 = vmatpush1.bf16.msra.mxu0 0
      %7368 = vmatprep.subr.bf16.mxu0 0
      %7369 = vmatpush1.bf16.msra.mxu0 0
      %7370 = vmatprep.subr.bf16.mxu0 0
      %7371 = vmatpush1.bf16.msra.mxu0 0
      %7372 = vmatprep.subr.bf16.mxu0 0
      %7373 = vmatpush1.bf16.msra.mxu0 0
      %7374 = vmatprep.subr.bf16.mxu0 0
      %7375 = vmatpush1.bf16.msra.mxu0 0
      %7376 = vmatprep.subr.bf16.mxu0 0
      %7377 = vmatpush1.bf16.msra.mxu0 0
      %7378 = vmatprep.subr.bf16.mxu0 0
      %7379 = vmatpush1.bf16.msra.mxu0 0
      %7380 = vmatprep.subr.bf16.mxu0 0
      %7381 = vmatpush1.bf16.msra.mxu0 0
      %7382 = vmatprep.subr.bf16.mxu0 0
      %7383 = vmatpush1.bf16.msra.mxu0 0
      %7384 = vmatprep.subr.bf16.mxu0 0
      %7385 = vmatpush1.bf16.msra.mxu0 0
      %7386 = vmatprep.mubr.bf16.mxu0 0
      %7387 = vmatmul.mubr.bf16.gmra.mrb[0].mxu0 %v7349
      %v7388 = vpop.f32.mrb[0].mxu0
      %v7389 = vadd.f32 0.0, %v7388
      %v7390 = vpop.f32.mrb[0].mxu0
      %v7391 = vadd.f32 0.0, %v7390
      %v7392 = vpop.f32.mrb[0].mxu0
      %v7393 = vadd.f32 0.0, %v7392
      %v7394 = vpop.f32.mrb[0].mxu0
      %v7395 = vadd.f32 0.0, %v7394
      %7396 = vmatprep.mubr.bf16.mxu0 0
      %7397 = vmatmul.mubr.bf16.gmra.mrb[0].mxu0 %v7352
      %v7398 = vpop.f32.mrb[0].mxu0
      %v7399 = vadd.f32 0.0, %v7398
      %v7400 = vpop.f32.mrb[0].mxu0
      %v7401 = vadd.f32 0.0, %v7400
      %v7402 = vpop.f32.mrb[0].mxu0
      %v7403 = vadd.f32 0.0, %v7402
      %v7404 = vpop.f32.mrb[0].mxu0
      %v7405 = vadd.f32 0.0, %v7404
      %7406 = vdwg.mxu0
      %7407 = vmatprep.subr.bf16.mxu0 0
      %7408 = vmatpush1.bf16.msra.mxu0 %v7342
      %7409 = vmatprep.subr.bf16.mxu0 0
      %7410 = vmatpush1.bf16.msra.mxu0 0
      %7411 = vmatprep.subr.bf16.mxu0 0
      %7412 = vmatpush1.bf16.msra.mxu0 0
      %7413 = vmatprep.subr.bf16.mxu0 0
      %7414 = vmatpush1.bf16.msra.mxu0 0
      %7415 = vmatprep.subr.bf16.mxu0 0
      %7416 = vmatpush1.bf16.msra.mxu0 0
      %7417 = vmatprep.subr.bf16.mxu0 0
      %7418 = vmatpush1.bf16.msra.mxu0 0
      %7419 = vmatprep.subr.bf16.mxu0 0
      %7420 = vmatpush1.bf16.msra.mxu0 0
      %7421 = vmatprep.subr.bf16.mxu0 0
      %7422 = vmatpush1.bf16.msra.mxu0 0
      %7423 = vmatprep.subr.bf16.mxu0 0
      %7424 = vmatpush1.bf16.msra.mxu0 0
      %7425 = vmatprep.subr.bf16.mxu0 0
      %7426 = vmatpush1.bf16.msra.mxu0 0
      %7427 = vmatprep.subr.bf16.mxu0 0
      %7428 = vmatpush1.bf16.msra.mxu0 0
      %7429 = vmatprep.subr.bf16.mxu0 0
      %7430 = vmatpush1.bf16.msra.mxu0 0
      %7431 = vmatprep.subr.bf16.mxu0 0
      %7432 = vmatpush1.bf16.msra.mxu0 0
      %7433 = vmatprep.subr.bf16.mxu0 0
      %7434 = vmatpush1.bf16.msra.mxu0 0
      %7435 = vmatprep.subr.bf16.mxu0 0
      %7436 = vmatpush1.bf16.msra.mxu0 0
      %7437 = vmatprep.subr.bf16.mxu0 0
      %7438 = vmatpush1.bf16.msra.mxu0 0
      %7439 = vmatprep.mubr.bf16.mxu0 0
      %7440 = vmatmul.mubr.bf16.gmra.mrb[0].mxu0 %v7349
      %v7441 = vpop.f32.mrb[0].mxu0
      %v7442 = vadd.f32 0.0, %v7441
      %v7443 = vpop.f32.mrb[0].mxu0
      %v7444 = vpop.f32.mrb[0].mxu0
      %v7445 = vadd.f32 0.0, %v7444
      %v7446 = vpop.f32.mrb[0].mxu0
      %7447 = vmatprep.mubr.bf16.mxu0 0
      %7448 = vmatmul.mubr.bf16.gmra.mrb[0].mxu0 %v7352
      %v7449 = vpop.f32.mrb[0].mxu0
      %v7450 = vadd.f32 0.0, %v7449
      %v7451 = vpop.f32.mrb[0].mxu0
      %v7452 = vpop.f32.mrb[0].mxu0
      %v7453 = vadd.f32 0.0, %v7452
      %v7454 = vpop.f32.mrb[0].mxu0
      %7455 = vdwg.mxu0
      %v7456 = vadd.f32 %v7310, %v7389
      %v7457 = vadd.f32 %v7311, %v7391
      %v7458 = vadd.f32 %v7312, %v7442
      %v7459 = vadd.f32 %v7313, %v7393
      %v7460 = vadd.f32 %v7314, %v7395
      %v7461 = vadd.f32 %v7315, %v7445
      %v7462 = vadd.f32 %v7316, %v7399
      %v7463 = vadd.f32 %v7317, %v7401
      %v7464 = vadd.f32 %v7318, %v7450
      %v7465 = vadd.f32 %v7319, %v7403
      %v7466 = vadd.f32 %v7320, %v7405
      %v7467 = vadd.f32 %v7321, %v7453
      %s7468 = scalar_lea.vmem %s4, 272
      %v7469 = vld [vmem:[%s7468] sm:$0xf]
      %v7470 = vld [vmem:[%s7468 + $0x4] sm:$0xf]
      %v7471 = vld [vmem:[%s7468 + $0x8] sm:$0xf]
      %v7472 = vld [vmem:[%s7468 + $0xc] sm:$0xf]
      %v7477 = vunpack.c.l.b16 %v7469
      %v7478 = vunpack.c.l.b16 %v7470
      %v7479 = vunpack.c.l.b16 %v7471
      %v7480 = vunpack.c.l.b16 %v7472
      %v7481 = vpack.c.b16 %v7478, %v7477
      %v7482 = vpack.c.b16 %v7480, %v7479
      %7483 = vrot.lane.b32.xlu0 %v4868, 90
      %v7484 = vpop.permute.xlu0 %7483
      %7485 = vrot.lane.b32.xlu0 %v4869, 90
      %v7486 = vpop.permute.xlu0 %7485
      %7487 = vrot.lane.b32.xlu0 %v4870, 90
      %v7488 = vpop.permute.xlu0 %7487
      %v7489 = vsel %vm6032, %v7484, %v7486
      %v7490 = vsel %vm6032, %v7486, %v7488
      %v7495 = vsel %vm4904, %v7481, 0
      %v7498 = vsel %vm4904, %v7482, 0
      %7500 = vmatprep.subr.bf16.mxu0 %v7490
      %7501 = vmatpush1.bf16.msra.mxu0 %v7489
      %7502 = vmatprep.subr.bf16.mxu0 0
      %7503 = vmatpush1.bf16.msra.mxu0 0
      %7504 = vmatprep.subr.bf16.mxu0 0
      %7505 = vmatpush1.bf16.msra.mxu0 0
      %7506 = vmatprep.subr.bf16.mxu0 0
      %7507 = vmatpush1.bf16.msra.mxu0 0
      %7508 = vmatprep.subr.bf16.mxu0 0
      %7509 = vmatpush1.bf16.msra.mxu0 0
      %7510 = vmatprep.subr.bf16.mxu0 0
      %7511 = vmatpush1.bf16.msra.mxu0 0
      %7512 = vmatprep.subr.bf16.mxu0 0
      %7513 = vmatpush1.bf16.msra.mxu0 0
      %7514 = vmatprep.subr.bf16.mxu0 0
      %7515 = vmatpush1.bf16.msra.mxu0 0
      %7516 = vmatprep.subr.bf16.mxu0 0
      %7517 = vmatpush1.bf16.msra.mxu0 0
      %7518 = vmatprep.subr.bf16.mxu0 0
      %7519 = vmatpush1.bf16.msra.mxu0 0
      %7520 = vmatprep.subr.bf16.mxu0 0
      %7521 = vmatpush1.bf16.msra.mxu0 0
      %7522 = vmatprep.subr.bf16.mxu0 0
      %7523 = vmatpush1.bf16.msra.mxu0 0
      %7524 = vmatprep.subr.bf16.mxu0 0
      %7525 = vmatpush1.bf16.msra.mxu0 0
      %7526 = vmatprep.subr.bf16.mxu0 0
      %7527 = vmatpush1.bf16.msra.mxu0 0
      %7528 = vmatprep.subr.bf16.mxu0 0
      %7529 = vmatpush1.bf16.msra.mxu0 0
      %7530 = vmatprep.subr.bf16.mxu0 0
      %7531 = vmatpush1.bf16.msra.mxu0 0
      %7532 = vmatprep.mubr.bf16.mxu0 0
      %7533 = vmatmul.mubr.bf16.gmra.mrb[0].mxu0 %v7495
      %v7534 = vpop.f32.mrb[0].mxu0
      %v7535 = vadd.f32 0.0, %v7534
      %v7536 = vpop.f32.mrb[0].mxu0
      %v7537 = vadd.f32 0.0, %v7536
      %v7538 = vpop.f32.mrb[0].mxu0
      %v7539 = vadd.f32 0.0, %v7538
      %v7540 = vpop.f32.mrb[0].mxu0
      %v7541 = vadd.f32 0.0, %v7540
      %7542 = vmatprep.mubr.bf16.mxu0 0
      %7543 = vmatmul.mubr.bf16.gmra.mrb[0].mxu0 %v7498
      %v7544 = vpop.f32.mrb[0].mxu0
      %v7545 = vadd.f32 0.0, %v7544
      %v7546 = vpop.f32.mrb[0].mxu0
      %v7547 = vadd.f32 0.0, %v7546
      %v7548 = vpop.f32.mrb[0].mxu0
      %v7549 = vadd.f32 0.0, %v7548
      %v7550 = vpop.f32.mrb[0].mxu0
      %v7551 = vadd.f32 0.0, %v7550
      %7552 = vdwg.mxu0
      %7553 = vmatprep.subr.bf16.mxu0 0
      %7554 = vmatpush1.bf16.msra.mxu0 %v7488
      %7555 = vmatprep.subr.bf16.mxu0 0
      %7556 = vmatpush1.bf16.msra.mxu0 0
      %7557 = vmatprep.subr.bf16.mxu0 0
      %7558 = vmatpush1.bf16.msra.mxu0 0
      %7559 = vmatprep.subr.bf16.mxu0 0
      %7560 = vmatpush1.bf16.msra.mxu0 0
      %7561 = vmatprep.subr.bf16.mxu0 0
      %7562 = vmatpush1.bf16.msra.mxu0 0
      %7563 = vmatprep.subr.bf16.mxu0 0
      %7564 = vmatpush1.bf16.msra.mxu0 0
      %7565 = vmatprep.subr.bf16.mxu0 0
      %7566 = vmatpush1.bf16.msra.mxu0 0
      %7567 = vmatprep.subr.bf16.mxu0 0
      %7568 = vmatpush1.bf16.msra.mxu0 0
      %7569 = vmatprep.subr.bf16.mxu0 0
      %7570 = vmatpush1.bf16.msra.mxu0 0
      %7571 = vmatprep.subr.bf16.mxu0 0
      %7572 = vmatpush1.bf16.msra.mxu0 0
      %7573 = vmatprep.subr.bf16.mxu0 0
      %7574 = vmatpush1.bf16.msra.mxu0 0
      %7575 = vmatprep.subr.bf16.mxu0 0
      %7576 = vmatpush1.bf16.msra.mxu0 0
      %7577 = vmatprep.subr.bf16.mxu0 0
      %7578 = vmatpush1.bf16.msra.mxu0 0
      %7579 = vmatprep.subr.bf16.mxu0 0
      %7580 = vmatpush1.bf16.msra.mxu0 0
      %7581 = vmatprep.subr.bf16.mxu0 0
      %7582 = vmatpush1.bf16.msra.mxu0 0
      %7583 = vmatprep.subr.bf16.mxu0 0
      %7584 = vmatpush1.bf16.msra.mxu0 0
      %7585 = vmatprep.mubr.bf16.mxu0 0
      %7586 = vmatmul.mubr.bf16.gmra.mrb[0].mxu0 %v7495
      %v7587 = vpop.f32.mrb[0].mxu0
      %v7588 = vadd.f32 0.0, %v7587
      %v7589 = vpop.f32.mrb[0].mxu0
      %v7590 = vpop.f32.mrb[0].mxu0
      %v7591 = vadd.f32 0.0, %v7590
      %v7592 = vpop.f32.mrb[0].mxu0
      %7593 = vmatprep.mubr.bf16.mxu0 0
      %7594 = vmatmul.mubr.bf16.gmra.mrb[0].mxu0 %v7498
      %v7595 = vpop.f32.mrb[0].mxu0
      %v7596 = vadd.f32 0.0, %v7595
      %v7597 = vpop.f32.mrb[0].mxu0
      %v7598 = vpop.f32.mrb[0].mxu0
      %v7599 = vadd.f32 0.0, %v7598
      %v7600 = vpop.f32.mrb[0].mxu0
      %7601 = vdwg.mxu0
      %v7602 = vadd.f32 %v7456, %v7535
      %v7603 = vadd.f32 %v7457, %v7537
      %v7604 = vadd.f32 %v7458, %v7588
      %v7605 = vadd.f32 %v7459, %v7539
      %v7606 = vadd.f32 %v7460, %v7541
      %v7607 = vadd.f32 %v7461, %v7591
      %v7608 = vadd.f32 %v7462, %v7545
      %v7609 = vadd.f32 %v7463, %v7547
      %v7610 = vadd.f32 %v7464, %v7596
      %v7611 = vadd.f32 %v7465, %v7549
      %v7612 = vadd.f32 %v7466, %v7551
      %v7613 = vadd.f32 %v7467, %v7599
      %7626 = vrot.lane.b32.xlu0 %v7602, 127
      %v7627 = vpop.permute.xlu0 %7626
      %7628 = vrot.lane.b32.xlu0 %v7603, 127
      %v7629 = vpop.permute.xlu0 %7628
      %7630 = vrot.lane.b32.xlu0 %v7604, 127
      %v7631 = vpop.permute.xlu0 %7630
      %7632 = vrot.lane.b32.xlu0 %v7605, 127
      %v7633 = vpop.permute.xlu0 %7632
      %7634 = vrot.lane.b32.xlu0 %v7606, 127
      %v7635 = vpop.permute.xlu0 %7634
      %7636 = vrot.lane.b32.xlu0 %v7607, 127
      %v7637 = vpop.permute.xlu0 %7636
      %7638 = vrot.lane.b32.xlu0 %v7608, 127
      %v7639 = vpop.permute.xlu0 %7638
      %7640 = vrot.lane.b32.xlu0 %v7609, 127
      %v7641 = vpop.permute.xlu0 %7640
      %7642 = vrot.lane.b32.xlu0 %v7610, 127
      %v7643 = vpop.permute.xlu0 %7642
      %7644 = vrot.lane.b32.xlu0 %v7611, 127
      %v7645 = vpop.permute.xlu0 %7644
      %7646 = vrot.lane.b32.xlu0 %v7612, 127
      %v7647 = vpop.permute.xlu0 %7646
      %7648 = vrot.lane.b32.xlu0 %v7613, 127
      %v7649 = vpop.permute.xlu0 %7648
      %v7650 = vsel %vm6194, %v7627, %v7629
      %v7651 = vsel %vm6194, %v7629, %v7631
      %v7652 = vsel %vm6194, %v7633, %v7635
      %v7653 = vsel %vm6194, %v7635, %v7637
      %v7654 = vsel %vm6194, %v7639, %v7641
      %v7655 = vsel %vm6194, %v7641, %v7643
      %v7656 = vsel %vm6194, %v7645, %v7647
      %v7657 = vsel %vm6194, %v7647, %v7649
      %v7670 = vmax.f32 %v7602, %v7650
      %v7671 = vmax.f32 %v7603, %v7651
      %v7672 = vmax.f32 %v7604, %v7631
      %v7673 = vmax.f32 %v7605, %v7652
      %v7674 = vmax.f32 %v7606, %v7653
      %v7675 = vmax.f32 %v7607, %v7637
      %v7676 = vmax.f32 %v7608, %v7654
      %v7677 = vmax.f32 %v7609, %v7655
      %v7678 = vmax.f32 %v7610, %v7643
      %v7679 = vmax.f32 %v7611, %v7656
      %v7680 = vmax.f32 %v7612, %v7657
      %v7681 = vmax.f32 %v7613, %v7649
      %7694 = vrot.lane.b32.xlu0 %v7670, 110
      %v7695 = vpop.permute.xlu0 %7694
      %7696 = vrot.lane.b32.xlu0 %v7671, 110
      %v7697 = vpop.permute.xlu0 %7696
      %7698 = vrot.lane.b32.xlu0 %v7672, 110
      %v7699 = vpop.permute.xlu0 %7698
      %7700 = vrot.lane.b32.xlu0 %v7673, 110
      %v7701 = vpop.permute.xlu0 %7700
      %7702 = vrot.lane.b32.xlu0 %v7674, 110
      %v7703 = vpop.permute.xlu0 %7702
      %7704 = vrot.lane.b32.xlu0 %v7675, 110
      %v7705 = vpop.permute.xlu0 %7704
      %7706 = vrot.lane.b32.xlu0 %v7676, 110
      %v7707 = vpop.permute.xlu0 %7706
      %7708 = vrot.lane.b32.xlu0 %v7677, 110
      %v7709 = vpop.permute.xlu0 %7708
      %7710 = vrot.lane.b32.xlu0 %v7678, 110
      %v7711 = vpop.permute.xlu0 %7710
      %7712 = vrot.lane.b32.xlu0 %v7679, 110
      %v7713 = vpop.permute.xlu0 %7712
      %7714 = vrot.lane.b32.xlu0 %v7680, 110
      %v7715 = vpop.permute.xlu0 %7714
      %7716 = vrot.lane.b32.xlu0 %v7681, 110
      %v7717 = vpop.permute.xlu0 %7716
      %v7718 = vsel %vm6263, %v7695, %v7697
      %v7719 = vsel %vm6263, %v7697, %v7699
      %v7720 = vsel %vm6263, %v7701, %v7703
      %v7721 = vsel %vm6263, %v7703, %v7705
      %v7722 = vsel %vm6263, %v7707, %v7709
      %v7723 = vsel %vm6263, %v7709, %v7711
      %v7724 = vsel %vm6263, %v7713, %v7715
      %v7725 = vsel %vm6263, %v7715, %v7717
      %v7738 = vmax.f32 %v7670, %v7718
      %v7739 = vmax.f32 %v7671, %v7719
      %v7740 = vmax.f32 %v7672, %v7699
      %v7741 = vmax.f32 %v7673, %v7720
      %v7742 = vmax.f32 %v7674, %v7721
      %v7743 = vmax.f32 %v7675, %v7705
      %v7744 = vmax.f32 %v7676, %v7722
      %v7745 = vmax.f32 %v7677, %v7723
      %v7746 = vmax.f32 %v7678, %v7711
      %v7747 = vmax.f32 %v7679, %v7724
      %v7748 = vmax.f32 %v7680, %v7725
      %v7749 = vmax.f32 %v7681, %v7717
      %s7750 = scalar_lea.vmem %s5, 32
      %v7751 = vld [vmem:[%s7750] sm:$0xff]
      %v7752 = vld [vmem:[%s7750 + $0x8] sm:$0xff]
      %v7753 = vld [vmem:[%s7750 + $0x10] sm:$0xff]
      %v7754 = vld [vmem:[%s7750 + $0x18] sm:$0xff]
      %7756 = vset.pattern.permute.xlu0 0
      %7757 = vperm.xlu0 %7756, %v7751
      %v7758 = vpop.permute.xlu0 %7757
      %7761 = vset.pattern.permute.xlu0 0
      %7762 = vperm.xlu0 %7761, %v7752
      %v7763 = vpop.permute.xlu0 %7762
      %7766 = vset.pattern.permute.xlu0 0
      %7767 = vperm.xlu0 %7766, %v7753
      %v7768 = vpop.permute.xlu0 %7767
      %7771 = vset.pattern.permute.xlu0 0
      %7772 = vperm.xlu0 %7771, %v7754
      %v7773 = vpop.permute.xlu0 %7772
      %v7775 = vadd.f32 %v7738, %v7758
      %v7776 = vadd.f32 %v7739, %v7758
      %v7777 = vadd.f32 %v7740, %v7758
      %v7778 = vadd.f32 %v7741, %v7763
      %v7779 = vadd.f32 %v7742, %v7763
      %v7780 = vadd.f32 %v7743, %v7763
      %v7781 = vadd.f32 %v7744, %v7768
      %v7782 = vadd.f32 %v7745, %v7768
      %v7783 = vadd.f32 %v7746, %v7768
      %v7784 = vadd.f32 %v7747, %v7773
      %v7785 = vadd.f32 %v7748, %v7773
      %v7786 = vadd.f32 %v7749, %v7773
      %v7787 = vadd.f32 %v6320, %v7775
      %v7788 = vadd.f32 %v6321, %v7776
      %v7789 = vadd.f32 %v6322, %v7777
      %v7790 = vadd.f32 %v6323, %v7778
      %v7791 = vadd.f32 %v6324, %v7779
      %v7792 = vadd.f32 %v6325, %v7780
      %v7793 = vadd.f32 %v6326, %v7781
      %v7794 = vadd.f32 %v6327, %v7782
      %v7795 = vadd.f32 %v6328, %v7783
      %v7796 = vadd.f32 %v6329, %v7784
      %v7797 = vadd.f32 %v6330, %v7785
      %v7798 = vadd.f32 %v6331, %v7786
      %v7799 = vld [vmem:[%s6] sm:$0xff]
      %v7800 = vld [vmem:[%s6 + $0x8] sm:$0xff]
      %v7801 = vld [vmem:[%s6 + $0x10] sm:$0xff]
      %v7802 = vld [vmem:[%s6 + $0x18] sm:$0xff]
      %v7803 = vld [vmem:[%s6 + $0x20] sm:$0xff]
      %v7804 = vld [vmem:[%s6 + $0x28] sm:$0xff]
      %v7805 = vld [vmem:[%s6 + $0x30] sm:$0xff]
      %v7806 = vld [vmem:[%s6 + $0x38] sm:$0xff]
      %v7807 = vld [vmem:[%s6 + $0x40] sm:$0xff]
      %v7808 = vld [vmem:[%s6 + $0x48] sm:$0xff]
      %v7809 = vld [vmem:[%s6 + $0x50] sm:$0xff]
      %v7810 = vld [vmem:[%s6 + $0x58] sm:$0xff]
      %v7811 = vld [vmem:[%s6 + $0x60] sm:$0xff]
      %v7812 = vld [vmem:[%s6 + $0x68] sm:$0xff]
      %v7813 = vld [vmem:[%s6 + $0x70] sm:$0xff]
      %v7814 = vld [vmem:[%s6 + $0x78] sm:$0xff]
      %v7815 = vld [vmem:[%s6 + $0x80] sm:$0xff]
      %v7816 = vld [vmem:[%s6 + $0x88] sm:$0xff]
      %v7817 = vld [vmem:[%s6 + $0x90] sm:$0xff]
      %v7818 = vld [vmem:[%s6 + $0x98] sm:$0xff]
      %v7819 = vld [vmem:[%s6 + $0xa0] sm:$0xff]
      %v7820 = vld [vmem:[%s6 + $0xa8] sm:$0xff]
      %v7821 = vld [vmem:[%s6 + $0xb0] sm:$0xff]
      %v7822 = vld [vmem:[%s6 + $0xb8] sm:$0xff]
      %v7823 = vld [vmem:[%s6 + $0xc0] sm:$0xff]
      %v7824 = vld [vmem:[%s6 + $0xc8] sm:$0xff]
      %v7825 = vld [vmem:[%s6 + $0xd0] sm:$0xff]
      %v7826 = vld [vmem:[%s6 + $0xd8] sm:$0xff]
      %v7827 = vld [vmem:[%s6 + $0xe0] sm:$0xff]
      %v7828 = vld [vmem:[%s6 + $0xe8] sm:$0xff]
      %v7829 = vld [vmem:[%s6 + $0xf0] sm:$0xff]
      %v7830 = vld [vmem:[%s6 + $0xf8] sm:$0xff]
      %v7831 = vld [vmem:[%s6 + $0x100] sm:$0xff]
      %v7832 = vld [vmem:[%s6 + $0x108] sm:$0xff]
      %v7833 = vld [vmem:[%s6 + $0x110] sm:$0xff]
      %v7834 = vld [vmem:[%s6 + $0x118] sm:$0xff]
      %v7835 = vld [vmem:[%s6 + $0x120] sm:$0xff]
      %v7836 = vld [vmem:[%s6 + $0x128] sm:$0xff]
      %v7837 = vld [vmem:[%s6 + $0x130] sm:$0x1]
      %vm7838 = vcmask 400384
      %v7840 = vsel %vm7838, %v7789, 0
      %v7843 = vsel %vm7838, %v7792, 0
      %v7846 = vsel %vm7838, %v7795, 0
      %v7849 = vsel %vm7838, %v7798, 0
      %vm7851 = vcmask 1040384
      %v7853 = vsel %vm7851, %v7837, 0
      %7855 = vmatprep.subr.mxu0 0.0
      %7856 = vmatpush1.msra.mxu0 %v7799
      %7857 = vmatprep.subr.mxu0 0.0
      %7858 = vmatpush1.msra.mxu0 %v7800
      %7859 = vmatprep.subr.mxu0 0.0
      %7860 = vmatpush1.msra.mxu0 %v7801
      %7861 = vmatprep.subr.mxu0 0.0
      %7862 = vmatpush1.msra.mxu0 %v7802
      %7863 = vmatprep.subr.mxu0 0.0
      %7864 = vmatpush1.msra.mxu0 %v7803
      %7865 = vmatprep.subr.mxu0 0.0
      %7866 = vmatpush1.msra.mxu0 %v7804
      %7867 = vmatprep.subr.mxu0 0.0
      %7868 = vmatpush1.msra.mxu0 %v7805
      %7869 = vmatprep.subr.mxu0 0.0
      %7870 = vmatpush1.msra.mxu0 %v7806
      %7871 = vmatprep.subr.mxu0 0.0
      %7872 = vmatpush1.msra.mxu0 %v7807
      %7873 = vmatprep.subr.mxu0 0.0
      %7874 = vmatpush1.msra.mxu0 %v7808
      %7875 = vmatprep.subr.mxu0 0.0
      %7876 = vmatpush1.msra.mxu0 %v7809
      %7877 = vmatprep.subr.mxu0 0.0
      %7878 = vmatpush1.msra.mxu0 %v7810
      %7879 = vmatprep.subr.mxu0 0.0
      %7880 = vmatpush1.msra.mxu0 %v7811
      %7881 = vmatprep.subr.mxu0 0.0
      %7882 = vmatpush1.msra.mxu0 %v7812
      %7883 = vmatprep.subr.mxu0 0.0
      %7884 = vmatpush1.msra.mxu0 %v7813
      %7885 = vmatprep.subr.mxu0 0.0
      %7886 = vmatpush1.msra.mxu0 %v7814
      %7887 = vmatprep.subr.mxu0 0.0
      %7888 = vmatpush1.msra.mxu0 %v7815
      %7889 = vmatprep.subr.mxu0 0.0
      %7890 = vmatpush1.msra.mxu0 %v7816
      %7891 = vmatprep.subr.mxu0 0.0
      %7892 = vmatpush1.msra.mxu0 %v7817
      %7893 = vmatprep.subr.mxu0 0.0
      %7894 = vmatpush1.msra.mxu0 %v7818
      %7895 = vmatprep.subr.mxu0 0.0
      %7896 = vmatpush1.msra.mxu0 %v7819
      %7897 = vmatprep.subr.mxu0 0.0
      %7898 = vmatpush1.msra.mxu0 %v7820
      %7899 = vmatprep.subr.mxu0 0.0
      %7900 = vmatpush1.msra.mxu0 %v7821
      %7901 = vmatprep.subr.mxu0 0.0
      %7902 = vmatpush1.msra.mxu0 %v7822
      %7903 = vmatprep.subr.mxu0 0.0
      %7904 = vmatpush1.msra.mxu0 %v7823
      %7905 = vmatprep.subr.mxu0 0.0
      %7906 = vmatpush1.msra.mxu0 %v7824
      %7907 = vmatprep.subr.mxu0 0.0
      %7908 = vmatpush1.msra.mxu0 %v7825
      %7909 = vmatprep.subr.mxu0 0.0
      %7910 = vmatpush1.msra.mxu0 %v7826
      %7911 = vmatprep.subr.mxu0 0.0
      %7912 = vmatpush1.msra.mxu0 %v7827
      %7913 = vmatprep.subr.mxu0 0.0
      %7914 = vmatpush1.msra.mxu0 %v7828
      %7915 = vmatprep.subr.mxu0 0.0
      %7916 = vmatpush1.msra.mxu0 %v7829
      %7917 = vmatprep.subr.mxu0 0.0
      %7918 = vmatpush1.msra.mxu0 %v7830
      %7919 = vmatprep.mubr.f32.mxu0 %v7788
      %7920 = vmatmul.mubr.f32.gmra.mrb[0].mxu0 %v7787
      %v7921 = vpop.f32.mrb[0].mxu0
      %v7922 = vadd.f32 0.0, %v7921
      %v7923 = vpop.f32.mrb[0].mxu0
      %7924 = vmatprep.mubr.f32.mxu0 %v7791
      %7925 = vmatmul.mubr.f32.gmra.mrb[0].mxu0 %v7790
      %v7926 = vpop.f32.mrb[0].mxu0
      %v7927 = vadd.f32 0.0, %v7926
      %v7928 = vpop.f32.mrb[0].mxu0
      %7929 = vmatprep.mubr.f32.mxu0 %v7794
      %7930 = vmatmul.mubr.f32.gmra.mrb[0].mxu0 %v7793
      %v7931 = vpop.f32.mrb[0].mxu0
      %v7932 = vadd.f32 0.0, %v7931
      %v7933 = vpop.f32.mrb[0].mxu0
      %7934 = vmatprep.mubr.f32.mxu0 %v7797
      %7935 = vmatmul.mubr.f32.gmra.mrb[0].mxu0 %v7796
      %v7936 = vpop.f32.mrb[0].mxu0
      %v7937 = vadd.f32 0.0, %v7936
      %v7938 = vpop.f32.mrb[0].mxu0
      %7939 = vdwg.mxu0
      %7940 = vmatprep.subr.mxu0 0.0
      %7941 = vmatpush1.msra.mxu0 %v7831
      %7942 = vmatprep.subr.mxu0 0.0
      %7943 = vmatpush1.msra.mxu0 %v7832
      %7944 = vmatprep.subr.mxu0 0.0
      %7945 = vmatpush1.msra.mxu0 %v7833
      %7946 = vmatprep.subr.mxu0 0.0
      %7947 = vmatpush1.msra.mxu0 %v7834
      %7948 = vmatprep.subr.mxu0 0.0
      %7949 = vmatpush1.msra.mxu0 %v7835
      %7950 = vmatprep.subr.mxu0 0.0
      %7951 = vmatpush1.msra.mxu0 %v7836
      %7952 = vmatprep.subr.mxu0 0.0
      %7953 = vmatpush1.msra.mxu0 %v7853
      %7954 = vmatprep.subr.mxu0 0.0
      %7955 = vmatpush1.msra.mxu0 0.0
      %7956 = vmatprep.subr.mxu0 0.0
      %7957 = vmatpush1.msra.mxu0 0.0
      %7958 = vmatprep.subr.mxu0 0.0
      %7959 = vmatpush1.msra.mxu0 0.0
      %7960 = vmatprep.subr.mxu0 0.0
      %7961 = vmatpush1.msra.mxu0 0.0
      %7962 = vmatprep.subr.mxu0 0.0
      %7963 = vmatpush1.msra.mxu0 0.0
      %7964 = vmatprep.subr.mxu0 0.0
      %7965 = vmatpush1.msra.mxu0 0.0
      %7966 = vmatprep.subr.mxu0 0.0
      %7967 = vmatpush1.msra.mxu0 0.0
      %7968 = vmatprep.subr.mxu0 0.0
      %7969 = vmatpush1.msra.mxu0 0.0
      %7970 = vmatprep.subr.mxu0 0.0
      %7971 = vmatpush1.msra.mxu0 0.0
      %7972 = vmatprep.subr.mxu0 0.0
      %7973 = vmatpush1.msra.mxu0 0.0
      %7974 = vmatprep.subr.mxu0 0.0
      %7975 = vmatpush1.msra.mxu0 0.0
      %7976 = vmatprep.subr.mxu0 0.0
      %7977 = vmatpush1.msra.mxu0 0.0
      %7978 = vmatprep.subr.mxu0 0.0
      %7979 = vmatpush1.msra.mxu0 0.0
      %7980 = vmatprep.subr.mxu0 0.0
      %7981 = vmatpush1.msra.mxu0 0.0
      %7982 = vmatprep.subr.mxu0 0.0
      %7983 = vmatpush1.msra.mxu0 0.0
      %7984 = vmatprep.subr.mxu0 0.0
      %7985 = vmatpush1.msra.mxu0 0.0
      %7986 = vmatprep.subr.mxu0 0.0
      %7987 = vmatpush1.msra.mxu0 0.0
      %7988 = vmatprep.subr.mxu0 0.0
      %7989 = vmatpush1.msra.mxu0 0.0
      %7990 = vmatprep.subr.mxu0 0.0
      %7991 = vmatpush1.msra.mxu0 0.0
      %7992 = vmatprep.subr.mxu0 0.0
      %7993 = vmatpush1.msra.mxu0 0.0
      %7994 = vmatprep.subr.mxu0 0.0
      %7995 = vmatpush1.msra.mxu0 0.0
      %7996 = vmatprep.subr.mxu0 0.0
      %7997 = vmatpush1.msra.mxu0 0.0
      %7998 = vmatprep.subr.mxu0 0.0
      %7999 = vmatpush1.msra.mxu0 0.0
      %8000 = vmatprep.subr.mxu0 0.0
      %8001 = vmatpush1.msra.mxu0 0.0
      %8002 = vmatprep.subr.mxu0 0.0
      %8003 = vmatpush1.msra.mxu0 0.0
      %8004 = vmatprep.mubr.f32.mxu0 0.0
      %8005 = vmatmul.mubr.f32.gmra.mrb[0].mxu0 %v7840
      %v8006 = vpop.f32.mrb[0].mxu0
      %v8007 = vadd.f32 %v7922, %v8006
      %v8008 = vpop.f32.mrb[0].mxu0
      %8009 = vmatprep.mubr.f32.mxu0 0.0
      %8010 = vmatmul.mubr.f32.gmra.mrb[0].mxu0 %v7843
      %v8011 = vpop.f32.mrb[0].mxu0
      %v8012 = vadd.f32 %v7927, %v8011
      %v8013 = vpop.f32.mrb[0].mxu0
      %8014 = vmatprep.mubr.f32.mxu0 0.0
      %8015 = vmatmul.mubr.f32.gmra.mrb[0].mxu0 %v7846
      %v8016 = vpop.f32.mrb[0].mxu0
      %v8017 = vadd.f32 %v7932, %v8016
      %v8018 = vpop.f32.mrb[0].mxu0
      %8019 = vmatprep.mubr.f32.mxu0 0.0
      %8020 = vmatmul.mubr.f32.gmra.mrb[0].mxu0 %v7849
      %v8021 = vpop.f32.mrb[0].mxu0
      %v8022 = vadd.f32 %v7937, %v8021
      %v8023 = vpop.f32.mrb[0].mxu0
      %8024 = vdwg.mxu0
      %v8025 = vpack.c.bf16 %v8012, %v8007
      %v8026 = vpack.c.bf16 %v8022, %v8017
      %v8029 = vunpack.c.l.b16 %v8025
      %v8030 = vunpack.c.h.b16 %v8025
      %v8031 = vunpack.c.l.b16 %v8026
      %v8032 = vunpack.c.h.b16 %v8026
      %v8033 = vpack.c.b16 %v8029, %v8029
      %v8034 = vpack.c.b16 %v8030, %v8030
      %v8035 = vpack.c.b16 %v8031, %v8031
      %v8036 = vpack.c.b16 %v8032, %v8032
      %vm8041 = vcmask 519168
      %8042 = vst.msk [vmem:[%s278] sm:$0xf] %vm8041, %v8033
      %8043 = vst.msk [vmem:[%s278 + $0x4] sm:$0xf] %vm8041, %v8034
      %8044 = vst.msk [vmem:[%s278 + $0x8] sm:$0xf] %vm8041, %v8035
      %8045 = vst.msk [vmem:[%s278 + $0xc] sm:$0xf] %vm8041, %v8036
      %p8046 = scmp.lt.s32.totalorder %s18, 1
      %s8047 = scalar_select %p8046, %s18, 1
      %s8048 = smul.addr %s8047, 4
      %s8049 = smul.addr %s8048, 4
      %s8050 = scalar_lea.vmem %s7, %s8049
      // Predicated region
      $region49: #{parallel_net.2} parent=47 // pred_check
        %p8051 = pneg %p188
      $region50: #{parallel_net.2} parent=47 // pred_check_branch
        %8053 = sbr.rel (%p8051) target = $region52
      $region51: #{parallel_net.2} parent=47 // pred_region
        _
      $region52: #{parallel_net.2} parent=47 // pred_fallthru
        _
    $region48: #{parallel_net.2} parent=5 // pred_fallthru
      _
    %p8054 = scmp.le.s32.totalorder 2, %s13
    // Predicated region
    $region53: #{parallel_net.2} parent=5 // pred_check
      %p8055 = pneg %p8054
    $region54: #{parallel_net.2} parent=5 // pred_check_branch
      %8057 = sbr.rel (%p8055) target = $region56
    $region55: #{parallel_net.2} parent=5 // pred_region
      %s8058 = ssub.s32 %s13, 2
      // Predicated region
      $region57: #{parallel_net.2} parent=55 // pred_check
        %p8059 = pneg %p194
      $region58: #{parallel_net.2} parent=55 // pred_check_branch
        %8061 = sbr.rel (%p8059) target = $region60
      $region59: #{parallel_net.2} parent=55 // pred_region
        %p8062 = scmp.lt.s32.totalorder %s19, 1
        %s8063 = scalar_select %p8062, %s19, 1
        %s8064 = smul.addr %s8063, 4
        %s8065 = smul.addr %s8064, 4
        %s8066 = scalar_lea.vmem %s7, %s8065
      $region60: #{parallel_net.2} parent=55 // pred_fallthru
        _
    $region56: #{parallel_net.2} parent=5 // pred_fallthru
      _
  $region6: #{parallel_net.2} parent=0 // loop_footer
    %s17 = sadd.s32 1, %s13
  $region7: #{parallel_net.2} parent=0 // loop_footer_branch
    %12 = sbr.rel target = $region3
  $region8: #{parallel_net.2} parent=0 // loop_exit
    _

</llo_original>
